<compile_context>
chip_gen: v7x
topology: tpu7x:2x2x1
jax: 0.10.0
libtpu: 0.0.40
codegen_flags: <defaults>
</compile_context>

<pallas_src>
import jax
import jax.numpy as jnp
from jax.experimental import pallas as pl
from jax.experimental.pallas import tpu as pltpu

TM = 256  # batch tile (full MXU M-occupancy on v6e/v7x; sweep 256-512 if desired)

D_IN, D_H1, D_H2, D_OUT = 2048, 1024, 512, 128


def mlp_kernel(x_ref, w1_ref, b1_ref, w2_ref, b2_ref, w3_ref, b3_ref, o_ref):
    # In-kernel bf16 cast of the activation tile (x BlockSpec stays f32).
    x = x_ref[...].astype(jnp.bfloat16)
    # fc1 + ReLU (bf16 inputs, f32 accumulate, re-cast to bf16 for next MXU pass)
    h1 = jnp.dot(x, w1_ref[...], preferred_element_type=jnp.float32)
    h1 = jnp.maximum(h1 + b1_ref[...], 0.0).astype(jnp.bfloat16)
    # fc2 + ReLU
    h2 = jnp.dot(h1, w2_ref[...], preferred_element_type=jnp.float32)
    h2 = jnp.maximum(h2 + b2_ref[...], 0.0).astype(jnp.bfloat16)
    # fc3 (no activation), output in f32
    h3 = jnp.dot(h2, w3_ref[...], preferred_element_type=jnp.float32)
    o_ref[...] = (h3 + b3_ref[...]).astype(o_ref.dtype)


def prepare_params(params):
    """One-time bf16 cast of the weight matrices (call once, outside the hot path)."""
    w1, b1, w2, b2, w3, b3 = params
    return (w1.astype(jnp.bfloat16), b1,
            w2.astype(jnp.bfloat16), b2,
            w3.astype(jnp.bfloat16), b3)


def video_stream_forward(x, params, *, tm=TM):
    """x: [B, C, H, W] float32 with C*H*W == 2048. Returns [B, 128] float32."""
    B = x.shape[0]
    x2d = x.reshape(B, -1)  # nn.Flatten on NCHW
    assert x2d.shape[1] == D_IN, f"expected {D_IN} flattened features, got {x2d.shape[1]}"

    w1, b1, w2, b2, w3, b3 = params
    # Weights should already be bf16 (prepare_params). Python-level dtype guard only;
    # no per-call cast op is emitted when they are.
    if w1.dtype != jnp.bfloat16:
        w1, w2, w3 = (w.astype(jnp.bfloat16) for w in (w1, w2, w3))

    # Batch tiling: full-batch block when B < tm (block == full dim is always legal);
    # otherwise tm-sized blocks with a (masked) partial last tile -- no padded copy of x.
    tm_eff = tm if B >= tm else B
    n_tiles = pl.cdiv(B, tm_eff)

    # Weights / biases: constant index_map -> VMEM-resident, DMA'd once.
    const2d = lambda shape: pl.BlockSpec(shape, lambda i: (0, 0))

    flops = 2 * B * (D_IN * D_H1 + D_H1 * D_H2 + D_H2 * D_OUT)
    bytes_accessed = (
        2 * (D_IN * D_H1 + D_H1 * D_H2 + D_H2 * D_OUT)   # bf16 weights
        + 4 * (D_H1 + D_H2 + D_OUT)                      # f32 biases
        + 4 * B * D_IN                                   # f32 x (cast to bf16 in-kernel)
        + 4 * B * D_OUT                                  # f32 out
    )

    out = pl.pallas_call(
        mlp_kernel,
        out_shape=jax.ShapeDtypeStruct((B, D_OUT), jnp.float32),
        grid=(n_tiles,),
        in_specs=[
            pl.BlockSpec((tm_eff, D_IN), lambda i: (i, 0)),   # x tile (f32)
            const2d((D_IN, D_H1)),                            # w1 (bf16)
            const2d((1, D_H1)),                               # b1 (f32)
            const2d((D_H1, D_H2)),                            # w2 (bf16)
            const2d((1, D_H2)),                               # b2 (f32)
            const2d((D_H2, D_OUT)),                           # w3 (bf16)
            const2d((1, D_OUT)),                              # b3 (f32)
        ],
        out_specs=pl.BlockSpec((tm_eff, D_OUT), lambda i: (i, 0)),
        compiler_params=pltpu.CompilerParams(
            dimension_semantics=("parallel",),            # v7x: split batch across 2 TCs
            vmem_limit_bytes=32 << 20,                    # ~18 MiB needed at TM=256; headroom
        ),
        cost_estimate=pl.CostEstimate(
            flops=flops, transcendentals=0, bytes_accessed=bytes_accessed),
    )(x2d, w1, b1, w2, b2, w3, b3)

    return out


def init_params(key):
    """Deterministic init mimicking PyTorch Linear default (uniform +/- 1/sqrt(fan_in))."""
    def linear(key, fan_in, fan_out):
        kw, kb = jax.random.split(key)
        bound = 1.0 / jnp.sqrt(float(fan_in))
        # stored as [in, out] so kernel computes y = x @ W + b
        w = jax.random.uniform(kw, (fan_in, fan_out), jnp.float32, -bound, bound)
        b = jax.random.uniform(kb, (1, fan_out), jnp.float32, -bound, bound)
        return w, b

    k1, k2, k3 = jax.random.split(key, 3)
    w1, b1 = linear(k1, D_IN, D_H1)
    w2, b2 = linear(k2, D_H1, D_H2)
    w3, b3 = linear(k3, D_H2, D_OUT)
    return (w1, b1, w2, b2, w3, b3)


if __name__ == "__main__":
    key = jax.random.PRNGKey(0)
    kx, kp = jax.random.split(key)

    # [B=2, C=2, H=32, W=32] -> 2*32*32 = 2048 flattened features (matches fc1)
    x = jax.random.normal(kx, (2, 2, 32, 32), dtype=jnp.float32)
    params_f32 = init_params(kp)
    params = prepare_params(params_f32)   # one-time bf16 weight cast, outside hot path

    out = video_stream_forward(x, params)
    out = jax.block_until_ready(out)

    # Reference in plain JAX with the same bf16 weight/activation casts (f32 accumulation).
    w1, b1, w2, b2, w3, b3 = params_f32
    hi = jax.lax.Precision.HIGHEST
    xb = x.reshape(x.shape[0], -1).astype(jnp.bfloat16).astype(jnp.float32)
    w1f = w1.astype(jnp.bfloat16).astype(jnp.float32)
    w2f = w2.astype(jnp.bfloat16).astype(jnp.float32)
    w3f = w3.astype(jnp.bfloat16).astype(jnp.float32)
    h1 = jnp.maximum(jnp.dot(xb, w1f, precision=hi) + b1, 0.0)
    h1 = h1.astype(jnp.bfloat16).astype(jnp.float32)
    h2 = jnp.maximum(jnp.dot(h1, w2f, precision=hi) + b2, 0.0)
    h2 = h2.astype(jnp.bfloat16).astype(jnp.float32)
    ref = jnp.dot(h2, w3f, precision=hi) + b3

    assert out.shape == (2, 128)
    assert jnp.allclose(out, ref, atol=1e-2, rtol=1e-2), "mismatch vs reference"

    print("KERNEL_OK")
</pallas_src>

<mosaic_0001>
module attributes {stable_mosaic.version = 11 : i64} {
  func.func @mlp_kernel(%arg0: i32, %arg1: memref<2x2048xf32, #tpu.memory_space<vmem>>, %arg2: memref<2048x1024xbf16, #tpu.memory_space<vmem>>, %arg3: memref<1x1024xf32, #tpu.memory_space<vmem>>, %arg4: memref<1024x512xbf16, #tpu.memory_space<vmem>>, %arg5: memref<1x512xf32, #tpu.memory_space<vmem>>, %arg6: memref<512x128xbf16, #tpu.memory_space<vmem>>, %arg7: memref<1x128xf32, #tpu.memory_space<vmem>>, %arg8: memref<2x128xf32, #tpu.memory_space<vmem>>) attributes {dimension_semantics = [#tpu.dimension_semantics<parallel>], iteration_bounds = array<i64: 1>, scalar_prefetch = 0 : i64, scratch_operands = 0 : i64, tpu.core_type = #tpu.core_type<tc>, window_params = [{transform_indices = @transform_0, window_bounds = array<i64: 2, 2048>}, {pipeline_mode = #tpu.pipeline_mode<synchronous>, transform_indices = @transform_1, window_bounds = array<i64: 2048, 1024>}, {pipeline_mode = #tpu.pipeline_mode<synchronous>, transform_indices = @transform_2, window_bounds = array<i64: 1, 1024>}, {pipeline_mode = #tpu.pipeline_mode<synchronous>, transform_indices = @transform_3, window_bounds = array<i64: 1024, 512>}, {pipeline_mode = #tpu.pipeline_mode<synchronous>, transform_indices = @transform_4, window_bounds = array<i64: 1, 512>}, {pipeline_mode = #tpu.pipeline_mode<synchronous>, transform_indices = @transform_5, window_bounds = array<i64: 512, 128>}, {pipeline_mode = #tpu.pipeline_mode<synchronous>, transform_indices = @transform_6, window_bounds = array<i64: 1, 128>}, {transform_indices = @transform_7, window_bounds = array<i64: 2, 128>}]} {
    %c0 = arith.constant 0 : index
    %c0_0 = arith.constant 0 : index
    %0 = vector.load %arg1[%c0, %c0_0] : memref<2x2048xf32, #tpu.memory_space<vmem>>, vector<2x2048xf32>
    %1 = arith.truncf %0 : vector<2x2048xf32> to vector<2x2048xbf16>
    %c0_1 = arith.constant 0 : index
    %c0_2 = arith.constant 0 : index
    %2 = vector.load %arg2[%c0_1, %c0_2] : memref<2048x1024xbf16, #tpu.memory_space<vmem>>, vector<2048x1024xbf16>
    %cst = arith.constant dense<0.000000e+00> : vector<2x1024xf32>
    %3 = tpu.matmul %1, %2, %cst {dimension_numbers = #tpu.dot_dimension_numbers<[1], [0], [0], [1], [0, 0, 1, 1], [], []>} : vector<2x2048xbf16>, vector<2048x1024xbf16>, vector<2x1024xf32> -> vector<2x1024xf32>
    %c0_3 = arith.constant 0 : index
    %c0_4 = arith.constant 0 : index
    %4 = vector.load %arg3[%c0_3, %c0_4] : memref<1x1024xf32, #tpu.memory_space<vmem>>, vector<1x1024xf32>
    %5 = vector.broadcast %4 : vector<1x1024xf32> to vector<2x1024xf32>
    %6 = arith.addf %3, %5 : vector<2x1024xf32>
    %cst_5 = arith.constant 0.000000e+00 : f32
    %7 = vector.broadcast %cst_5 : f32 to vector<2x1024xf32>
    %8 = arith.maximumf %6, %7 : vector<2x1024xf32>
    %9 = arith.truncf %8 : vector<2x1024xf32> to vector<2x1024xbf16>
    %c0_6 = arith.constant 0 : index
    %c0_7 = arith.constant 0 : index
    %10 = vector.load %arg4[%c0_6, %c0_7] : memref<1024x512xbf16, #tpu.memory_space<vmem>>, vector<1024x512xbf16>
    %cst_8 = arith.constant dense<0.000000e+00> : vector<2x512xf32>
    %11 = tpu.matmul %9, %10, %cst_8 {dimension_numbers = #tpu.dot_dimension_numbers<[1], [0], [0], [1], [0, 0, 1, 1], [], []>} : vector<2x1024xbf16>, vector<1024x512xbf16>, vector<2x512xf32> -> vector<2x512xf32>
    %c0_9 = arith.constant 0 : index
    %c0_10 = arith.constant 0 : index
    %12 = vector.load %arg5[%c0_9, %c0_10] : memref<1x512xf32, #tpu.memory_space<vmem>>, vector<1x512xf32>
    %13 = vector.broadcast %12 : vector<1x512xf32> to vector<2x512xf32>
    %14 = arith.addf %11, %13 : vector<2x512xf32>
    %cst_11 = arith.constant 0.000000e+00 : f32
    %15 = vector.broadcast %cst_11 : f32 to vector<2x512xf32>
    %16 = arith.maximumf %14, %15 : vector<2x512xf32>
    %17 = arith.truncf %16 : vector<2x512xf32> to vector<2x512xbf16>
    %c0_12 = arith.constant 0 : index
    %c0_13 = arith.constant 0 : index
    %18 = vector.load %arg6[%c0_12, %c0_13] : memref<512x128xbf16, #tpu.memory_space<vmem>>, vector<512x128xbf16>
    %cst_14 = arith.constant dense<0.000000e+00> : vector<2x128xf32>
    %19 = tpu.matmul %17, %18, %cst_14 {dimension_numbers = #tpu.dot_dimension_numbers<[1], [0], [0], [1], [0, 0, 1, 1], [], []>} : vector<2x512xbf16>, vector<512x128xbf16>, vector<2x128xf32> -> vector<2x128xf32>
    %c0_15 = arith.constant 0 : index
    %c0_16 = arith.constant 0 : index
    %20 = vector.load %arg7[%c0_15, %c0_16] : memref<1x128xf32, #tpu.memory_space<vmem>>, vector<1x128xf32>
    %21 = vector.broadcast %20 : vector<1x128xf32> to vector<2x128xf32>
    %22 = arith.addf %19, %21 : vector<2x128xf32>
    %c0_17 = arith.constant 0 : index
    %c0_18 = arith.constant 0 : index
    %23 = vector.load %arg8[%c0_17, %c0_18] : memref<2x128xf32, #tpu.memory_space<vmem>>, vector<2x128xf32>
    tpu.vector_store %arg8[%c0_17, %c0_18], %22 {strides = array<i32>} : memref<2x128xf32, #tpu.memory_space<vmem>>, vector<2x128xf32>,
    return
  }
  func.func @transform_0(%arg0: i32) -> (i32, i32) {
    %c0_i32 = arith.constant 0 : i32
    %c0_i32_0 = arith.constant 0 : i32
    return %arg0, %c0_i32 : i32, i32
  }
  func.func @transform_1(%arg0: i32) -> (i32, i32) {
    %c0_i32 = arith.constant 0 : i32
    %c0_i32_0 = arith.constant 0 : i32
    %c0_i32_1 = arith.constant 0 : i32
    return %c0_i32, %c0_i32_0 : i32, i32
  }
  func.func @transform_2(%arg0: i32) -> (i32, i32) {
    %c0_i32 = arith.constant 0 : i32
    %c0_i32_0 = arith.constant 0 : i32
    %c0_i32_1 = arith.constant 0 : i32
    return %c0_i32, %c0_i32_0 : i32, i32
  }
  func.func @transform_3(%arg0: i32) -> (i32, i32) {
    %c0_i32 = arith.constant 0 : i32
    %c0_i32_0 = arith.constant 0 : i32
    %c0_i32_1 = arith.constant 0 : i32
    return %c0_i32, %c0_i32_0 : i32, i32
  }
  func.func @transform_4(%arg0: i32) -> (i32, i32) {
    %c0_i32 = arith.constant 0 : i32
    %c0_i32_0 = arith.constant 0 : i32
    %c0_i32_1 = arith.constant 0 : i32
    return %c0_i32, %c0_i32_0 : i32, i32
  }
  func.func @transform_5(%arg0: i32) -> (i32, i32) {
    %c0_i32 = arith.constant 0 : i32
    %c0_i32_0 = arith.constant 0 : i32
    %c0_i32_1 = arith.constant 0 : i32
    return %c0_i32, %c0_i32_0 : i32, i32
  }
  func.func @transform_6(%arg0: i32) -> (i32, i32) {
    %c0_i32 = arith.constant 0 : i32
    %c0_i32_0 = arith.constant 0 : i32
    %c0_i32_1 = arith.constant 0 : i32
    return %c0_i32, %c0_i32_0 : i32, i32
  }
  func.func @transform_7(%arg0: i32) -> (i32, i32) {
    %c0_i32 = arith.constant 0 : i32
    %c0_i32_0 = arith.constant 0 : i32
    return %arg0, %c0_i32 : i32, i32
  }
}

</mosaic_0001>

<llo_original>
// kernel: tpu_custom_call.1
$region0: #{tpu_custom_call.1}
  #allocation0 [shape = 'u32[]', space=smem, size = 0x4, offset = 0x4, fixed_abs, tag = 'smem constant byte address 0x4 - core index']
  #allocation1 [shape = 'u32[144,128]{1,0:T(1,128)}', space=vmem, size = 0x12000, scoped, tag = 'internal scratch']
  %s0 = inlined_call_operand.hbm [shape: f32[2,2048], index: 0, kind: input, shape index: {}]
  %s1 = inlined_call_operand.hbm [shape: bf16[2048,1024], index: 1, kind: input, shape index: {}]
  %s2 = inlined_call_operand.hbm [shape: f32[1,1024], index: 2, kind: input, shape index: {}]
  %s3 = inlined_call_operand.hbm [shape: bf16[1024,512], index: 3, kind: input, shape index: {}]
  %s4 = inlined_call_operand.hbm [shape: f32[1,512], index: 4, kind: input, shape index: {}]
  %s5 = inlined_call_operand.hbm [shape: bf16[512,128], index: 5, kind: input, shape index: {}]
  %s6 = inlined_call_operand.hbm [shape: f32[1,128], index: 6, kind: input, shape index: {}]
  %s7 = inlined_call_operand.hbm [shape: f32[2,128], index: 7, kind: output, shape index: {}]
  %s8 = sld [smem:[#allocation0]]
  $region66: #{tpu_custom_call.1} parent=0
    _
  %s10 = ssub.s32 1, %s8
  %s11 = scalar_select 0, %s10, %s8
  $region1: #{tpu_custom_call.1} parent=0
    #allocation2 [shape = 'u8[16384]{0}', space=vmem, size = 0x4000, scoped, tag = 'input window, operand 0, single buffered']
    #allocation3 [shape = 's32[1]{0}', space=sflag, size = 0x4, scoped, tag = 'scoped memory for tpu_custom_call.1']
    #allocation4 [shape = 's32[1]{0}', space=sflag, size = 0x4, scoped, tag = 'scoped memory for tpu_custom_call.1']
    #allocation5 [shape = 'u8[4194304]{0}', space=vmem, size = 0x400000, scoped, tag = 'input window, operand 1, single buffered']
    #allocation6 [shape = 's32[1]{0}', space=sflag, size = 0x4, scoped, tag = 'scoped memory for tpu_custom_call.1']
    #allocation7 [shape = 'u8[4096]{0}', space=vmem, size = 0x1000, scoped, tag = 'input window, operand 2, single buffered']
    #allocation8 [shape = 'u8[1048576]{0}', space=vmem, size = 0x100000, scoped, tag = 'input window, operand 3, single buffered']
    #allocation9 [shape = 's32[1]{0}', space=sflag, size = 0x4, scoped, tag = 'scoped memory for tpu_custom_call.1']
    #allocation10 [shape = 'u8[2048]{0}', space=vmem, size = 0x800, scoped, tag = 'input window, operand 4, single buffered']
    #allocation11 [shape = 'u8[131072]{0}', space=vmem, size = 0x20000, scoped, tag = 'input window, operand 5, single buffered']
    #allocation12 [shape = 's32[1]{0}', space=sflag, size = 0x4, scoped, tag = 'scoped memory for tpu_custom_call.1']
    #allocation13 [shape = 'u8[512]{0}', space=vmem, size = 0x400, scoped, tag = 'input window, operand 6, single buffered']
    #allocation14 [shape = 'u8[1024]{0}', space=vmem, size = 0x400, scoped, tag = 'output window, operand 0, single buffered']
    %12 = vsyncpa [#allocation3], 0
    %13 = vsyncpa [#allocation6], 0
    %14 = vsyncpa [#allocation9], 0
    %15 = vsyncpa [#allocation12], 0
    %16 = vsyncpa [#allocation4], 0
    // Predicated region
    $region2: #{tpu_custom_call.1} parent=1 // pred_check
      _
    $region3: #{tpu_custom_call.1} parent=1 // pred_check_branch
      %18 = sbr.rel (0) target = $region5
    $region4: #{tpu_custom_call.1} parent=1 // pred_region
      %s20 = ssub.s32 512, 512
      %21 = vsyncadd [#allocation3], %s20
      %s23 = sshll.u32 [#allocation2], 4
      %s24 = int_to_ptr.vmem [resolvable:$true] %s23
      %26 = dma.hbm_to_vmem [thread:$0]  %s0, 512, %s24, [#allocation3]
    $region5: #{tpu_custom_call.1} parent=1 // pred_fallthru
      _
    // Predicated region
    $region6: #{tpu_custom_call.1} parent=1 // pred_check
      _
    $region7: #{tpu_custom_call.1} parent=1 // pred_check_branch
      %28 = sbr.rel (0) target = $region9
    $region8: #{tpu_custom_call.1} parent=1 // pred_region
      %s30 = ssub.s32 131072, 131072
      %31 = vsyncadd [#allocation6], %s30
      %s32 = sshll.u32 [#allocation5], 4
      %s33 = int_to_ptr.vmem [resolvable:$true] %s32
      %38 = dma.hbm_to_vmem [thread:$0]  %s1, 131072, %s33, [#allocation6], 512, 512, 32
    $region9: #{tpu_custom_call.1} parent=1 // pred_fallthru
      _
    // Predicated region
    $region10: #{tpu_custom_call.1} parent=1 // pred_check
      _
    $region11: #{tpu_custom_call.1} parent=1 // pred_check_branch
      %40 = sbr.rel (0) target = $region13
    $region12: #{tpu_custom_call.1} parent=1 // pred_region
      %s42 = ssub.s32 128, 128
      %43 = vsyncadd [#allocation6], %s42
      %s45 = sshll.u32 [#allocation7], 4
      %s46 = int_to_ptr.vmem [resolvable:$true] %s45
      %48 = dma.hbm_to_vmem [thread:$0]  %s2, 128, %s46, [#allocation6]
    $region13: #{tpu_custom_call.1} parent=1 // pred_fallthru
      _
    // Predicated region
    $region14: #{tpu_custom_call.1} parent=1 // pred_check
      _
    $region15: #{tpu_custom_call.1} parent=1 // pred_check_branch
      %50 = sbr.rel (0) target = $region17
    $region16: #{tpu_custom_call.1} parent=1 // pred_region
      %s52 = ssub.s32 32768, 32768
      %53 = vsyncadd [#allocation9], %s52
      %s54 = sshll.u32 [#allocation8], 4
      %s55 = int_to_ptr.vmem [resolvable:$true] %s54
      %60 = dma.hbm_to_vmem [thread:$0]  %s3, 32768, %s55, [#allocation9], 256, 256, 16
    $region17: #{tpu_custom_call.1} parent=1 // pred_fallthru
      _
    // Predicated region
    $region18: #{tpu_custom_call.1} parent=1 // pred_check
      _
    $region19: #{tpu_custom_call.1} parent=1 // pred_check_branch
      %62 = sbr.rel (0) target = $region21
    $region20: #{tpu_custom_call.1} parent=1 // pred_region
      %s64 = ssub.s32 64, 64
      %65 = vsyncadd [#allocation9], %s64
      %s67 = sshll.u32 [#allocation10], 4
      %s68 = int_to_ptr.vmem [resolvable:$true] %s67
      %70 = dma.hbm_to_vmem [thread:$0]  %s4, 64, %s68, [#allocation9]
    $region21: #{tpu_custom_call.1} parent=1 // pred_fallthru
      _
    // Predicated region
    $region22: #{tpu_custom_call.1} parent=1 // pred_check
      _
    $region23: #{tpu_custom_call.1} parent=1 // pred_check_branch
      %72 = sbr.rel (0) target = $region25
    $region24: #{tpu_custom_call.1} parent=1 // pred_region
      %s74 = ssub.s32 4096, 4096
      %75 = vsyncadd [#allocation12], %s74
      %s76 = sshll.u32 [#allocation11], 4
      %s77 = int_to_ptr.vmem [resolvable:$true] %s76
      %82 = dma.hbm_to_vmem [thread:$0]  %s5, 4096, %s77, [#allocation12], 64, 64, 4
    $region25: #{tpu_custom_call.1} parent=1 // pred_fallthru
      _
    // Predicated region
    $region26: #{tpu_custom_call.1} parent=1 // pred_check
      _
    $region27: #{tpu_custom_call.1} parent=1 // pred_check_branch
      %84 = sbr.rel (0) target = $region29
    $region28: #{tpu_custom_call.1} parent=1 // pred_region
      %s86 = ssub.s32 16, 16
      %87 = vsyncadd [#allocation12], %s86
      %s89 = sshll.u32 [#allocation13], 4
      %s90 = int_to_ptr.vmem [resolvable:$true] %s89
      %92 = dma.hbm_to_vmem [thread:$0]  %s6, 16, %s90, [#allocation12]
    $region29: #{tpu_custom_call.1} parent=1 // pred_fallthru
      _
    // Predicated region
    $region30: #{tpu_custom_call.1} parent=1 // pred_check
      _
    $region31: #{tpu_custom_call.1} parent=1 // pred_check_branch
      %94 = sbr.rel (0) target = $region33
    $region32: #{tpu_custom_call.1} parent=1 // pred_region
      %95 = dma.done [#allocation3], 512
    $region33: #{tpu_custom_call.1} parent=1 // pred_fallthru
      _
    // Predicated region
    $region34: #{tpu_custom_call.1} parent=1 // pred_check
      _
    $region35: #{tpu_custom_call.1} parent=1 // pred_check_branch
      %97 = sbr.rel (0) target = $region37
    $region36: #{tpu_custom_call.1} parent=1 // pred_region
      %98 = dma.done [#allocation6], 131072
    $region37: #{tpu_custom_call.1} parent=1 // pred_fallthru
      _
    // Predicated region
    $region38: #{tpu_custom_call.1} parent=1 // pred_check
      _
    $region39: #{tpu_custom_call.1} parent=1 // pred_check_branch
      %100 = sbr.rel (0) target = $region41
    $region40: #{tpu_custom_call.1} parent=1 // pred_region
      %101 = dma.done [#allocation6], 128
    $region41: #{tpu_custom_call.1} parent=1 // pred_fallthru
      _
    // Predicated region
    $region42: #{tpu_custom_call.1} parent=1 // pred_check
      _
    $region43: #{tpu_custom_call.1} parent=1 // pred_check_branch
      %103 = sbr.rel (0) target = $region45
    $region44: #{tpu_custom_call.1} parent=1 // pred_region
      %104 = dma.done [#allocation9], 32768
    $region45: #{tpu_custom_call.1} parent=1 // pred_fallthru
      _
    // Predicated region
    $region46: #{tpu_custom_call.1} parent=1 // pred_check
      _
    $region47: #{tpu_custom_call.1} parent=1 // pred_check_branch
      %106 = sbr.rel (0) target = $region49
    $region48: #{tpu_custom_call.1} parent=1 // pred_region
      %107 = dma.done [#allocation9], 64
    $region49: #{tpu_custom_call.1} parent=1 // pred_fallthru
      _
    // Predicated region
    $region50: #{tpu_custom_call.1} parent=1 // pred_check
      _
    $region51: #{tpu_custom_call.1} parent=1 // pred_check_branch
      %109 = sbr.rel (0) target = $region53
    $region52: #{tpu_custom_call.1} parent=1 // pred_region
      %110 = dma.done [#allocation12], 4096
    $region53: #{tpu_custom_call.1} parent=1 // pred_fallthru
      _
    // Predicated region
    $region54: #{tpu_custom_call.1} parent=1 // pred_check
      _
    $region55: #{tpu_custom_call.1} parent=1 // pred_check_branch
      %112 = sbr.rel (0) target = $region57
    $region56: #{tpu_custom_call.1} parent=1 // pred_region
      %113 = dma.done [#allocation12], 16
    $region57: #{tpu_custom_call.1} parent=1 // pred_fallthru
      _
    %v115 = vld [vmem:[#allocation2] sm:$0xff]
    %v116 = vld [vmem:[#allocation2 + $0x8] sm:$0xff]
    %v117 = vld [vmem:[#allocation2 + $0x10] sm:$0xff]
    %v118 = vld [vmem:[#allocation2 + $0x18] sm:$0xff]
    %v123 = vcombine.high %v115, %v115
    %v125 = vunpack.c.l.s4 1983009808
    %v126 = vunpack.c.0.s8 %v125
    %v127 = vlaneseq
    %v128 = vshrl.u32 %v127, 7
    %v129 = vsub.s32 %v126, %v128
    %v130 = vrot.slane %v115, %v129
    %v132 = vunpack.c.l.s4 1983009808
    %v133 = vunpack.c.0.s8 %v132
    %v134 = vlaneseq
    %v135 = vshrl.u32 %v134, 7
    %v136 = vsub.s32 %v133, %v135
    %v137 = vrot.slane %v123, %v136
    %v138 = vcombine.high %v130, %v130
    %v139 = vcombine.high %v137, %v137
    %v140 = vcombine.high %v116, %v116
    %v142 = vunpack.c.l.s4 1983009808
    %v143 = vunpack.c.0.s8 %v142
    %v144 = vlaneseq
    %v145 = vshrl.u32 %v144, 7
    %v146 = vsub.s32 %v143, %v145
    %v147 = vrot.slane %v116, %v146
    %v149 = vunpack.c.l.s4 1983009808
    %v150 = vunpack.c.0.s8 %v149
    %v151 = vlaneseq
    %v152 = vshrl.u32 %v151, 7
    %v153 = vsub.s32 %v150, %v152
    %v154 = vrot.slane %v140, %v153
    %v155 = vcombine.high %v147, %v147
    %v156 = vcombine.high %v154, %v154
    %v157 = vcombine.high %v117, %v117
    %v159 = vunpack.c.l.s4 1983009808
    %v160 = vunpack.c.0.s8 %v159
    %v161 = vlaneseq
    %v162 = vshrl.u32 %v161, 7
    %v163 = vsub.s32 %v160, %v162
    %v164 = vrot.slane %v117, %v163
    %v166 = vunpack.c.l.s4 1983009808
    %v167 = vunpack.c.0.s8 %v166
    %v168 = vlaneseq
    %v169 = vshrl.u32 %v168, 7
    %v170 = vsub.s32 %v167, %v169
    %v171 = vrot.slane %v157, %v170
    %v172 = vcombine.high %v164, %v164
    %v173 = vcombine.high %v171, %v171
    %v174 = vcombine.high %v118, %v118
    %v176 = vunpack.c.l.s4 1983009808
    %v177 = vunpack.c.0.s8 %v176
    %v178 = vlaneseq
    %v179 = vshrl.u32 %v178, 7
    %v180 = vsub.s32 %v177, %v179
    %v181 = vrot.slane %v118, %v180
    %v183 = vunpack.c.l.s4 1983009808
    %v184 = vunpack.c.0.s8 %v183
    %v185 = vlaneseq
    %v186 = vshrl.u32 %v185, 7
    %v187 = vsub.s32 %v184, %v186
    %v188 = vrot.slane %v174, %v187
    %v189 = vcombine.high %v181, %v181
    %v190 = vcombine.high %v188, %v188
    %v207 = vpack.c.bf16 %v130, %v130
    %v208 = vpack.c.bf16 %v138, %v138
    %v209 = vpack.c.bf16 %v137, %v137
    %v210 = vpack.c.bf16 %v139, %v139
    %v211 = vpack.c.bf16 %v147, %v147
    %v212 = vpack.c.bf16 %v155, %v155
    %v213 = vpack.c.bf16 %v154, %v154
    %v214 = vpack.c.bf16 %v156, %v156
    %v215 = vpack.c.bf16 %v164, %v164
    %v216 = vpack.c.bf16 %v172, %v172
    %v217 = vpack.c.bf16 %v171, %v171
    %v218 = vpack.c.bf16 %v173, %v173
    %v219 = vpack.c.bf16 %v181, %v181
    %v220 = vpack.c.bf16 %v189, %v189
    %v221 = vpack.c.bf16 %v188, %v188
    %v222 = vpack.c.bf16 %v190, %v190
    %v223 = vld [vmem:[#allocation5] sm:$0xff]
    %v224 = vld [vmem:[#allocation5 + $0x8] sm:$0xff]
    %v225 = vld [vmem:[#allocation5 + $0x10] sm:$0xff]
    %v226 = vld [vmem:[#allocation5 + $0x18] sm:$0xff]
    %v227 = vld [vmem:[#allocation5 + $0x20] sm:$0xff]
    %v228 = vld [vmem:[#allocation5 + $0x28] sm:$0xff]
    %v229 = vld [vmem:[#allocation5 + $0x30] sm:$0xff]
    %v230 = vld [vmem:[#allocation5 + $0x38] sm:$0xff]
    %v231 = vld [vmem:[#allocation5 + $0x40] sm:$0xff]
    %v232 = vld [vmem:[#allocation5 + $0x48] sm:$0xff]
    %v233 = vld [vmem:[#allocation5 + $0x50] sm:$0xff]
    %v234 = vld [vmem:[#allocation5 + $0x58] sm:$0xff]
    %v235 = vld [vmem:[#allocation5 + $0x60] sm:$0xff]
    %v236 = vld [vmem:[#allocation5 + $0x68] sm:$0xff]
    %v237 = vld [vmem:[#allocation5 + $0x70] sm:$0xff]
    %v238 = vld [vmem:[#allocation5 + $0x78] sm:$0xff]
    %v239 = vld [vmem:[#allocation5 + $0x80] sm:$0xff]
    %v240 = vld [vmem:[#allocation5 + $0x88] sm:$0xff]
    %v241 = vld [vmem:[#allocation5 + $0x90] sm:$0xff]
    %v242 = vld [vmem:[#allocation5 + $0x98] sm:$0xff]
    %v243 = vld [vmem:[#allocation5 + $0xa0] sm:$0xff]
    %v244 = vld [vmem:[#allocation5 + $0xa8] sm:$0xff]
    %v245 = vld [vmem:[#allocation5 + $0xb0] sm:$0xff]
    %v246 = vld [vmem:[#allocation5 + $0xb8] sm:$0xff]
    %v247 = vld [vmem:[#allocation5 + $0xc0] sm:$0xff]
    %v248 = vld [vmem:[#allocation5 + $0xc8] sm:$0xff]
    %v249 = vld [vmem:[#allocation5 + $0xd0] sm:$0xff]
    %v250 = vld [vmem:[#allocation5 + $0xd8] sm:$0xff]
    %v251 = vld [vmem:[#allocation5 + $0xe0] sm:$0xff]
    %v252 = vld [vmem:[#allocation5 + $0xe8] sm:$0xff]
    %v253 = vld [vmem:[#allocation5 + $0xf0] sm:$0xff]
    %v254 = vld [vmem:[#allocation5 + $0xf8] sm:$0xff]
    %v255 = vld [vmem:[#allocation5 + $0x100] sm:$0xff]
    %v256 = vld [vmem:[#allocation5 + $0x108] sm:$0xff]
    %v257 = vld [vmem:[#allocation5 + $0x110] sm:$0xff]
    %v258 = vld [vmem:[#allocation5 + $0x118] sm:$0xff]
    %v259 = vld [vmem:[#allocation5 + $0x120] sm:$0xff]
    %v260 = vld [vmem:[#allocation5 + $0x128] sm:$0xff]
    %v261 = vld [vmem:[#allocation5 + $0x130] sm:$0xff]
    %v262 = vld [vmem:[#allocation5 + $0x138] sm:$0xff]
    %v263 = vld [vmem:[#allocation5 + $0x140] sm:$0xff]
    %v264 = vld [vmem:[#allocation5 + $0x148] sm:$0xff]
    %v265 = vld [vmem:[#allocation5 + $0x150] sm:$0xff]
    %v266 = vld [vmem:[#allocation5 + $0x158] sm:$0xff]
    %v267 = vld [vmem:[#allocation5 + $0x160] sm:$0xff]
    %v268 = vld [vmem:[#allocation5 + $0x168] sm:$0xff]
    %v269 = vld [vmem:[#allocation5 + $0x170] sm:$0xff]
    %v270 = vld [vmem:[#allocation5 + $0x178] sm:$0xff]
    %v271 = vld [vmem:[#allocation5 + $0x180] sm:$0xff]
    %v272 = vld [vmem:[#allocation5 + $0x188] sm:$0xff]
    %v273 = vld [vmem:[#allocation5 + $0x190] sm:$0xff]
    %v274 = vld [vmem:[#allocation5 + $0x198] sm:$0xff]
    %v275 = vld [vmem:[#allocation5 + $0x1a0] sm:$0xff]
    %v276 = vld [vmem:[#allocation5 + $0x1a8] sm:$0xff]
    %v277 = vld [vmem:[#allocation5 + $0x1b0] sm:$0xff]
    %v278 = vld [vmem:[#allocation5 + $0x1b8] sm:$0xff]
    %v279 = vld [vmem:[#allocation5 + $0x1c0] sm:$0xff]
    %v280 = vld [vmem:[#allocation5 + $0x1c8] sm:$0xff]
    %v281 = vld [vmem:[#allocation5 + $0x1d0] sm:$0xff]
    %v282 = vld [vmem:[#allocation5 + $0x1d8] sm:$0xff]
    %v283 = vld [vmem:[#allocation5 + $0x1e0] sm:$0xff]
    %v284 = vld [vmem:[#allocation5 + $0x1e8] sm:$0xff]
    %v285 = vld [vmem:[#allocation5 + $0x1f0] sm:$0xff]
    %v286 = vld [vmem:[#allocation5 + $0x1f8] sm:$0xff]
    %v287 = vld [vmem:[#allocation5 + $0x200] sm:$0xff]
    %v288 = vld [vmem:[#allocation5 + $0x208] sm:$0xff]
    %v289 = vld [vmem:[#allocation5 + $0x210] sm:$0xff]
    %v290 = vld [vmem:[#allocation5 + $0x218] sm:$0xff]
    %v291 = vld [vmem:[#allocation5 + $0x220] sm:$0xff]
    %v292 = vld [vmem:[#allocation5 + $0x228] sm:$0xff]
    %v293 = vld [vmem:[#allocation5 + $0x230] sm:$0xff]
    %v294 = vld [vmem:[#allocation5 + $0x238] sm:$0xff]
    %v295 = vld [vmem:[#allocation5 + $0x240] sm:$0xff]
    %v296 = vld [vmem:[#allocation5 + $0x248] sm:$0xff]
    %v297 = vld [vmem:[#allocation5 + $0x250] sm:$0xff]
    %v298 = vld [vmem:[#allocation5 + $0x258] sm:$0xff]
    %v299 = vld [vmem:[#allocation5 + $0x260] sm:$0xff]
    %v300 = vld [vmem:[#allocation5 + $0x268] sm:$0xff]
    %v301 = vld [vmem:[#allocation5 + $0x270] sm:$0xff]
    %v302 = vld [vmem:[#allocation5 + $0x278] sm:$0xff]
    %v303 = vld [vmem:[#allocation5 + $0x280] sm:$0xff]
    %v304 = vld [vmem:[#allocation5 + $0x288] sm:$0xff]
    %v305 = vld [vmem:[#allocation5 + $0x290] sm:$0xff]
    %v306 = vld [vmem:[#allocation5 + $0x298] sm:$0xff]
    %v307 = vld [vmem:[#allocation5 + $0x2a0] sm:$0xff]
    %v308 = vld [vmem:[#allocation5 + $0x2a8] sm:$0xff]
    %v309 = vld [vmem:[#allocation5 + $0x2b0] sm:$0xff]
    %v310 = vld [vmem:[#allocation5 + $0x2b8] sm:$0xff]
    %v311 = vld [vmem:[#allocation5 + $0x2c0] sm:$0xff]
    %v312 = vld [vmem:[#allocation5 + $0x2c8] sm:$0xff]
    %v313 = vld [vmem:[#allocation5 + $0x2d0] sm:$0xff]
    %v314 = vld [vmem:[#allocation5 + $0x2d8] sm:$0xff]
    %v315 = vld [vmem:[#allocation5 + $0x2e0] sm:$0xff]
    %v316 = vld [vmem:[#allocation5 + $0x2e8] sm:$0xff]
    %v317 = vld [vmem:[#allocation5 + $0x2f0] sm:$0xff]
    %v318 = vld [vmem:[#allocation5 + $0x2f8] sm:$0xff]
    %v319 = vld [vmem:[#allocation5 + $0x300] sm:$0xff]
    %v320 = vld [vmem:[#allocation5 + $0x308] sm:$0xff]
    %v321 = vld [vmem:[#allocation5 + $0x310] sm:$0xff]
    %v322 = vld [vmem:[#allocation5 + $0x318] sm:$0xff]
    %v323 = vld [vmem:[#allocation5 + $0x320] sm:$0xff]
    %v324 = vld [vmem:[#allocation5 + $0x328] sm:$0xff]
    %v325 = vld [vmem:[#allocation5 + $0x330] sm:$0xff]
    %v326 = vld [vmem:[#allocation5 + $0x338] sm:$0xff]
    %v327 = vld [vmem:[#allocation5 + $0x340] sm:$0xff]
    %v328 = vld [vmem:[#allocation5 + $0x348] sm:$0xff]
    %v329 = vld [vmem:[#allocation5 + $0x350] sm:$0xff]
    %v330 = vld [vmem:[#allocation5 + $0x358] sm:$0xff]
    %v331 = vld [vmem:[#allocation5 + $0x360] sm:$0xff]
    %v332 = vld [vmem:[#allocation5 + $0x368] sm:$0xff]
    %v333 = vld [vmem:[#allocation5 + $0x370] sm:$0xff]
    %v334 = vld [vmem:[#allocation5 + $0x378] sm:$0xff]
    %v335 = vld [vmem:[#allocation5 + $0x380] sm:$0xff]
    %v336 = vld [vmem:[#allocation5 + $0x388] sm:$0xff]
    %v337 = vld [vmem:[#allocation5 + $0x390] sm:$0xff]
    %v338 = vld [vmem:[#allocation5 + $0x398] sm:$0xff]
    %v339 = vld [vmem:[#allocation5 + $0x3a0] sm:$0xff]
    %v340 = vld [vmem:[#allocation5 + $0x3a8] sm:$0xff]
    %v341 = vld [vmem:[#allocation5 + $0x3b0] sm:$0xff]
    %v342 = vld [vmem:[#allocation5 + $0x3b8] sm:$0xff]
    %v343 = vld [vmem:[#allocation5 + $0x3c0] sm:$0xff]
    %v344 = vld [vmem:[#allocation5 + $0x3c8] sm:$0xff]
    %v345 = vld [vmem:[#allocation5 + $0x3d0] sm:$0xff]
    %v346 = vld [vmem:[#allocation5 + $0x3d8] sm:$0xff]
    %v347 = vld [vmem:[#allocation5 + $0x3e0] sm:$0xff]
    %v348 = vld [vmem:[#allocation5 + $0x3e8] sm:$0xff]
    %v349 = vld [vmem:[#allocation5 + $0x3f0] sm:$0xff]
    %v350 = vld [vmem:[#allocation5 + $0x3f8] sm:$0xff]
    %v351 = vld [vmem:[#allocation5 + $0x400] sm:$0xff]
    %v352 = vld [vmem:[#allocation5 + $0x408] sm:$0xff]
    %v353 = vld [vmem:[#allocation5 + $0x410] sm:$0xff]
    %v354 = vld [vmem:[#allocation5 + $0x418] sm:$0xff]
    %v355 = vld [vmem:[#allocation5 + $0x420] sm:$0xff]
    %v356 = vld [vmem:[#allocation5 + $0x428] sm:$0xff]
    %v357 = vld [vmem:[#allocation5 + $0x430] sm:$0xff]
    %v358 = vld [vmem:[#allocation5 + $0x438] sm:$0xff]
    %v359 = vld [vmem:[#allocation5 + $0x440] sm:$0xff]
    %v360 = vld [vmem:[#allocation5 + $0x448] sm:$0xff]
    %v361 = vld [vmem:[#allocation5 + $0x450] sm:$0xff]
    %v362 = vld [vmem:[#allocation5 + $0x458] sm:$0xff]
    %v363 = vld [vmem:[#allocation5 + $0x460] sm:$0xff]
    %v364 = vld [vmem:[#allocation5 + $0x468] sm:$0xff]
    %v365 = vld [vmem:[#allocation5 + $0x470] sm:$0xff]
    %v366 = vld [vmem:[#allocation5 + $0x478] sm:$0xff]
    %v367 = vld [vmem:[#allocation5 + $0x480] sm:$0xff]
    %v368 = vld [vmem:[#allocation5 + $0x488] sm:$0xff]
    %v369 = vld [vmem:[#allocation5 + $0x490] sm:$0xff]
    %v370 = vld [vmem:[#allocation5 + $0x498] sm:$0xff]
    %v371 = vld [vmem:[#allocation5 + $0x4a0] sm:$0xff]
    %v372 = vld [vmem:[#allocation5 + $0x4a8] sm:$0xff]
    %v373 = vld [vmem:[#allocation5 + $0x4b0] sm:$0xff]
    %v374 = vld [vmem:[#allocation5 + $0x4b8] sm:$0xff]
    %v375 = vld [vmem:[#allocation5 + $0x4c0] sm:$0xff]
    %v376 = vld [vmem:[#allocation5 + $0x4c8] sm:$0xff]
    %v377 = vld [vmem:[#allocation5 + $0x4d0] sm:$0xff]
    %v378 = vld [vmem:[#allocation5 + $0x4d8] sm:$0xff]
    %v379 = vld [vmem:[#allocation5 + $0x4e0] sm:$0xff]
    %v380 = vld [vmem:[#allocation5 + $0x4e8] sm:$0xff]
    %v381 = vld [vmem:[#allocation5 + $0x4f0] sm:$0xff]
    %v382 = vld [vmem:[#allocation5 + $0x4f8] sm:$0xff]
    %v383 = vld [vmem:[#allocation5 + $0x500] sm:$0xff]
    %v384 = vld [vmem:[#allocation5 + $0x508] sm:$0xff]
    %v385 = vld [vmem:[#allocation5 + $0x510] sm:$0xff]
    %v386 = vld [vmem:[#allocation5 + $0x518] sm:$0xff]
    %v387 = vld [vmem:[#allocation5 + $0x520] sm:$0xff]
    %v388 = vld [vmem:[#allocation5 + $0x528] sm:$0xff]
    %v389 = vld [vmem:[#allocation5 + $0x530] sm:$0xff]
    %v390 = vld [vmem:[#allocation5 + $0x538] sm:$0xff]
    %v391 = vld [vmem:[#allocation5 + $0x540] sm:$0xff]
    %v392 = vld [vmem:[#allocation5 + $0x548] sm:$0xff]
    %v393 = vld [vmem:[#allocation5 + $0x550] sm:$0xff]
    %v394 = vld [vmem:[#allocation5 + $0x558] sm:$0xff]
    %v395 = vld [vmem:[#allocation5 + $0x560] sm:$0xff]
    %v396 = vld [vmem:[#allocation5 + $0x568] sm:$0xff]
    %v397 = vld [vmem:[#allocation5 + $0x570] sm:$0xff]
    %v398 = vld [vmem:[#allocation5 + $0x578] sm:$0xff]
    %v399 = vld [vmem:[#allocation5 + $0x580] sm:$0xff]
    %v400 = vld [vmem:[#allocation5 + $0x588] sm:$0xff]
    %v401 = vld [vmem:[#allocation5 + $0x590] sm:$0xff]
    %v402 = vld [vmem:[#allocation5 + $0x598] sm:$0xff]
    %v403 = vld [vmem:[#allocation5 + $0x5a0] sm:$0xff]
    %v404 = vld [vmem:[#allocation5 + $0x5a8] sm:$0xff]
    %v405 = vld [vmem:[#allocation5 + $0x5b0] sm:$0xff]
    %v406 = vld [vmem:[#allocation5 + $0x5b8] sm:$0xff]
    %v407 = vld [vmem:[#allocation5 + $0x5c0] sm:$0xff]
    %v408 = vld [vmem:[#allocation5 + $0x5c8] sm:$0xff]
    %v409 = vld [vmem:[#allocation5 + $0x5d0] sm:$0xff]
    %v410 = vld [vmem:[#allocation5 + $0x5d8] sm:$0xff]
    %v411 = vld [vmem:[#allocation5 + $0x5e0] sm:$0xff]
    %v412 = vld [vmem:[#allocation5 + $0x5e8] sm:$0xff]
    %v413 = vld [vmem:[#allocation5 + $0x5f0] sm:$0xff]
    %v414 = vld [vmem:[#allocation5 + $0x5f8] sm:$0xff]
    %v415 = vld [vmem:[#allocation5 + $0x600] sm:$0xff]
    %v416 = vld [vmem:[#allocation5 + $0x608] sm:$0xff]
    %v417 = vld [vmem:[#allocation5 + $0x610] sm:$0xff]
    %v418 = vld [vmem:[#allocation5 + $0x618] sm:$0xff]
    %v419 = vld [vmem:[#allocation5 + $0x620] sm:$0xff]
    %v420 = vld [vmem:[#allocation5 + $0x628] sm:$0xff]
    %v421 = vld [vmem:[#allocation5 + $0x630] sm:$0xff]
    %v422 = vld [vmem:[#allocation5 + $0x638] sm:$0xff]
    %v423 = vld [vmem:[#allocation5 + $0x640] sm:$0xff]
    %v424 = vld [vmem:[#allocation5 + $0x648] sm:$0xff]
    %v425 = vld [vmem:[#allocation5 + $0x650] sm:$0xff]
    %v426 = vld [vmem:[#allocation5 + $0x658] sm:$0xff]
    %v427 = vld [vmem:[#allocation5 + $0x660] sm:$0xff]
    %v428 = vld [vmem:[#allocation5 + $0x668] sm:$0xff]
    %v429 = vld [vmem:[#allocation5 + $0x670] sm:$0xff]
    %v430 = vld [vmem:[#allocation5 + $0x678] sm:$0xff]
    %v431 = vld [vmem:[#allocation5 + $0x680] sm:$0xff]
    %v432 = vld [vmem:[#allocation5 + $0x688] sm:$0xff]
    %v433 = vld [vmem:[#allocation5 + $0x690] sm:$0xff]
    %v434 = vld [vmem:[#allocation5 + $0x698] sm:$0xff]
    %v435 = vld [vmem:[#allocation5 + $0x6a0] sm:$0xff]
    %v436 = vld [vmem:[#allocation5 + $0x6a8] sm:$0xff]
    %v437 = vld [vmem:[#allocation5 + $0x6b0] sm:$0xff]
    %v438 = vld [vmem:[#allocation5 + $0x6b8] sm:$0xff]
    %v439 = vld [vmem:[#allocation5 + $0x6c0] sm:$0xff]
    %v440 = vld [vmem:[#allocation5 + $0x6c8] sm:$0xff]
    %v441 = vld [vmem:[#allocation5 + $0x6d0] sm:$0xff]
    %v442 = vld [vmem:[#allocation5 + $0x6d8] sm:$0xff]
    %v443 = vld [vmem:[#allocation5 + $0x6e0] sm:$0xff]
    %v444 = vld [vmem:[#allocation5 + $0x6e8] sm:$0xff]
    %v445 = vld [vmem:[#allocation5 + $0x6f0] sm:$0xff]
    %v446 = vld [vmem:[#allocation5 + $0x6f8] sm:$0xff]
    %v447 = vld [vmem:[#allocation5 + $0x700] sm:$0xff]
    %v448 = vld [vmem:[#allocation5 + $0x708] sm:$0xff]
    %v449 = vld [vmem:[#allocation5 + $0x710] sm:$0xff]
    %v450 = vld [vmem:[#allocation5 + $0x718] sm:$0xff]
    %v451 = vld [vmem:[#allocation5 + $0x720] sm:$0xff]
    %v452 = vld [vmem:[#allocation5 + $0x728] sm:$0xff]
    %v453 = vld [vmem:[#allocation5 + $0x730] sm:$0xff]
    %v454 = vld [vmem:[#allocation5 + $0x738] sm:$0xff]
    %v455 = vld [vmem:[#allocation5 + $0x740] sm:$0xff]
    %v456 = vld [vmem:[#allocation5 + $0x748] sm:$0xff]
    %v457 = vld [vmem:[#allocation5 + $0x750] sm:$0xff]
    %v458 = vld [vmem:[#allocation5 + $0x758] sm:$0xff]
    %v459 = vld [vmem:[#allocation5 + $0x760] sm:$0xff]
    %v460 = vld [vmem:[#allocation5 + $0x768] sm:$0xff]
    %v461 = vld [vmem:[#allocation5 + $0x770] sm:$0xff]
    %v462 = vld [vmem:[#allocation5 + $0x778] sm:$0xff]
    %v463 = vld [vmem:[#allocation5 + $0x780] sm:$0xff]
    %v464 = vld [vmem:[#allocation5 + $0x788] sm:$0xff]
    %v465 = vld [vmem:[#allocation5 + $0x790] sm:$0xff]
    %v466 = vld [vmem:[#allocation5 + $0x798] sm:$0xff]
    %v467 = vld [vmem:[#allocation5 + $0x7a0] sm:$0xff]
    %v468 = vld [vmem:[#allocation5 + $0x7a8] sm:$0xff]
    %v469 = vld [vmem:[#allocation5 + $0x7b0] sm:$0xff]
    %v470 = vld [vmem:[#allocation5 + $0x7b8] sm:$0xff]
    %v471 = vld [vmem:[#allocation5 + $0x7c0] sm:$0xff]
    %v472 = vld [vmem:[#allocation5 + $0x7c8] sm:$0xff]
    %v473 = vld [vmem:[#allocation5 + $0x7d0] sm:$0xff]
    %v474 = vld [vmem:[#allocation5 + $0x7d8] sm:$0xff]
    %v475 = vld [vmem:[#allocation5 + $0x7e0] sm:$0xff]
    %v476 = vld [vmem:[#allocation5 + $0x7e8] sm:$0xff]
    %v477 = vld [vmem:[#allocation5 + $0x7f0] sm:$0xff]
    %v478 = vld [vmem:[#allocation5 + $0x7f8] sm:$0xff]
    %v479 = vld [vmem:[#allocation5 + $0x800] sm:$0xff]
    %v480 = vld [vmem:[#allocation5 + $0x808] sm:$0xff]
    %v481 = vld [vmem:[#allocation5 + $0x810] sm:$0xff]
    %v482 = vld [vmem:[#allocation5 + $0x818] sm:$0xff]
    %v483 = vld [vmem:[#allocation5 + $0x820] sm:$0xff]
    %v484 = vld [vmem:[#allocation5 + $0x828] sm:$0xff]
    %v485 = vld [vmem:[#allocation5 + $0x830] sm:$0xff]
    %v486 = vld [vmem:[#allocation5 + $0x838] sm:$0xff]
    %v487 = vld [vmem:[#allocation5 + $0x840] sm:$0xff]
    %v488 = vld [vmem:[#allocation5 + $0x848] sm:$0xff]
    %v489 = vld [vmem:[#allocation5 + $0x850] sm:$0xff]
    %v490 = vld [vmem:[#allocation5 + $0x858] sm:$0xff]
    %v491 = vld [vmem:[#allocation5 + $0x860] sm:$0xff]
    %v492 = vld [vmem:[#allocation5 + $0x868] sm:$0xff]
    %v493 = vld [vmem:[#allocation5 + $0x870] sm:$0xff]
    %v494 = vld [vmem:[#allocation5 + $0x878] sm:$0xff]
    %v495 = vld [vmem:[#allocation5 + $0x880] sm:$0xff]
    %v496 = vld [vmem:[#allocation5 + $0x888] sm:$0xff]
    %v497 = vld [vmem:[#allocation5 + $0x890] sm:$0xff]
    %v498 = vld [vmem:[#allocation5 + $0x898] sm:$0xff]
    %v499 = vld [vmem:[#allocation5 + $0x8a0] sm:$0xff]
    %v500 = vld [vmem:[#allocation5 + $0x8a8] sm:$0xff]
    %v501 = vld [vmem:[#allocation5 + $0x8b0] sm:$0xff]
    %v502 = vld [vmem:[#allocation5 + $0x8b8] sm:$0xff]
    %v503 = vld [vmem:[#allocation5 + $0x8c0] sm:$0xff]
    %v504 = vld [vmem:[#allocation5 + $0x8c8] sm:$0xff]
    %v505 = vld [vmem:[#allocation5 + $0x8d0] sm:$0xff]
    %v506 = vld [vmem:[#allocation5 + $0x8d8] sm:$0xff]
    %v507 = vld [vmem:[#allocation5 + $0x8e0] sm:$0xff]
    %v508 = vld [vmem:[#allocation5 + $0x8e8] sm:$0xff]
    %v509 = vld [vmem:[#allocation5 + $0x8f0] sm:$0xff]
    %v510 = vld [vmem:[#allocation5 + $0x8f8] sm:$0xff]
    %v511 = vld [vmem:[#allocation5 + $0x900] sm:$0xff]
    %v512 = vld [vmem:[#allocation5 + $0x908] sm:$0xff]
    %v513 = vld [vmem:[#allocation5 + $0x910] sm:$0xff]
    %v514 = vld [vmem:[#allocation5 + $0x918] sm:$0xff]
    %v515 = vld [vmem:[#allocation5 + $0x920] sm:$0xff]
    %v516 = vld [vmem:[#allocation5 + $0x928] sm:$0xff]
    %v517 = vld [vmem:[#allocation5 + $0x930] sm:$0xff]
    %v518 = vld [vmem:[#allocation5 + $0x938] sm:$0xff]
    %v519 = vld [vmem:[#allocation5 + $0x940] sm:$0xff]
    %v520 = vld [vmem:[#allocation5 + $0x948] sm:$0xff]
    %v521 = vld [vmem:[#allocation5 + $0x950] sm:$0xff]
    %v522 = vld [vmem:[#allocation5 + $0x958] sm:$0xff]
    %v523 = vld [vmem:[#allocation5 + $0x960] sm:$0xff]
    %v524 = vld [vmem:[#allocation5 + $0x968] sm:$0xff]
    %v525 = vld [vmem:[#allocation5 + $0x970] sm:$0xff]
    %v526 = vld [vmem:[#allocation5 + $0x978] sm:$0xff]
    %v527 = vld [vmem:[#allocation5 + $0x980] sm:$0xff]
    %v528 = vld [vmem:[#allocation5 + $0x988] sm:$0xff]
    %v529 = vld [vmem:[#allocation5 + $0x990] sm:$0xff]
    %v530 = vld [vmem:[#allocation5 + $0x998] sm:$0xff]
    %v531 = vld [vmem:[#allocation5 + $0x9a0] sm:$0xff]
    %v532 = vld [vmem:[#allocation5 + $0x9a8] sm:$0xff]
    %v533 = vld [vmem:[#allocation5 + $0x9b0] sm:$0xff]
    %v534 = vld [vmem:[#allocation5 + $0x9b8] sm:$0xff]
    %v535 = vld [vmem:[#allocation5 + $0x9c0] sm:$0xff]
    %v536 = vld [vmem:[#allocation5 + $0x9c8] sm:$0xff]
    %v537 = vld [vmem:[#allocation5 + $0x9d0] sm:$0xff]
    %v538 = vld [vmem:[#allocation5 + $0x9d8] sm:$0xff]
    %v539 = vld [vmem:[#allocation5 + $0x9e0] sm:$0xff]
    %v540 = vld [vmem:[#allocation5 + $0x9e8] sm:$0xff]
    %v541 = vld [vmem:[#allocation5 + $0x9f0] sm:$0xff]
    %v542 = vld [vmem:[#allocation5 + $0x9f8] sm:$0xff]
    %v543 = vld [vmem:[#allocation5 + $0xa00] sm:$0xff]
    %v544 = vld [vmem:[#allocation5 + $0xa08] sm:$0xff]
    %v545 = vld [vmem:[#allocation5 + $0xa10] sm:$0xff]
    %v546 = vld [vmem:[#allocation5 + $0xa18] sm:$0xff]
    %v547 = vld [vmem:[#allocation5 + $0xa20] sm:$0xff]
    %v548 = vld [vmem:[#allocation5 + $0xa28] sm:$0xff]
    %v549 = vld [vmem:[#allocation5 + $0xa30] sm:$0xff]
    %v550 = vld [vmem:[#allocation5 + $0xa38] sm:$0xff]
    %v551 = vld [vmem:[#allocation5 + $0xa40] sm:$0xff]
    %v552 = vld [vmem:[#allocation5 + $0xa48] sm:$0xff]
    %v553 = vld [vmem:[#allocation5 + $0xa50] sm:$0xff]
    %v554 = vld [vmem:[#allocation5 + $0xa58] sm:$0xff]
    %v555 = vld [vmem:[#allocation5 + $0xa60] sm:$0xff]
    %v556 = vld [vmem:[#allocation5 + $0xa68] sm:$0xff]
    %v557 = vld [vmem:[#allocation5 + $0xa70] sm:$0xff]
    %v558 = vld [vmem:[#allocation5 + $0xa78] sm:$0xff]
    %v559 = vld [vmem:[#allocation5 + $0xa80] sm:$0xff]
    %v560 = vld [vmem:[#allocation5 + $0xa88] sm:$0xff]
    %v561 = vld [vmem:[#allocation5 + $0xa90] sm:$0xff]
    %v562 = vld [vmem:[#allocation5 + $0xa98] sm:$0xff]
    %v563 = vld [vmem:[#allocation5 + $0xaa0] sm:$0xff]
    %v564 = vld [vmem:[#allocation5 + $0xaa8] sm:$0xff]
    %v565 = vld [vmem:[#allocation5 + $0xab0] sm:$0xff]
    %v566 = vld [vmem:[#allocation5 + $0xab8] sm:$0xff]
    %v567 = vld [vmem:[#allocation5 + $0xac0] sm:$0xff]
    %v568 = vld [vmem:[#allocation5 + $0xac8] sm:$0xff]
    %v569 = vld [vmem:[#allocation5 + $0xad0] sm:$0xff]
    %v570 = vld [vmem:[#allocation5 + $0xad8] sm:$0xff]
    %v571 = vld [vmem:[#allocation5 + $0xae0] sm:$0xff]
    %v572 = vld [vmem:[#allocation5 + $0xae8] sm:$0xff]
    %v573 = vld [vmem:[#allocation5 + $0xaf0] sm:$0xff]
    %v574 = vld [vmem:[#allocation5 + $0xaf8] sm:$0xff]
    %v575 = vld [vmem:[#allocation5 + $0xb00] sm:$0xff]
    %v576 = vld [vmem:[#allocation5 + $0xb08] sm:$0xff]
    %v577 = vld [vmem:[#allocation5 + $0xb10] sm:$0xff]
    %v578 = vld [vmem:[#allocation5 + $0xb18] sm:$0xff]
    %v579 = vld [vmem:[#allocation5 + $0xb20] sm:$0xff]
    %v580 = vld [vmem:[#allocation5 + $0xb28] sm:$0xff]
    %v581 = vld [vmem:[#allocation5 + $0xb30] sm:$0xff]
    %v582 = vld [vmem:[#allocation5 + $0xb38] sm:$0xff]
    %v583 = vld [vmem:[#allocation5 + $0xb40] sm:$0xff]
    %v584 = vld [vmem:[#allocation5 + $0xb48] sm:$0xff]
    %v585 = vld [vmem:[#allocation5 + $0xb50] sm:$0xff]
    %v586 = vld [vmem:[#allocation5 + $0xb58] sm:$0xff]
    %v587 = vld [vmem:[#allocation5 + $0xb60] sm:$0xff]
    %v588 = vld [vmem:[#allocation5 + $0xb68] sm:$0xff]
    %v589 = vld [vmem:[#allocation5 + $0xb70] sm:$0xff]
    %v590 = vld [vmem:[#allocation5 + $0xb78] sm:$0xff]
    %v591 = vld [vmem:[#allocation5 + $0xb80] sm:$0xff]
    %v592 = vld [vmem:[#allocation5 + $0xb88] sm:$0xff]
    %v593 = vld [vmem:[#allocation5 + $0xb90] sm:$0xff]
    %v594 = vld [vmem:[#allocation5 + $0xb98] sm:$0xff]
    %v595 = vld [vmem:[#allocation5 + $0xba0] sm:$0xff]
    %v596 = vld [vmem:[#allocation5 + $0xba8] sm:$0xff]
    %v597 = vld [vmem:[#allocation5 + $0xbb0] sm:$0xff]
    %v598 = vld [vmem:[#allocation5 + $0xbb8] sm:$0xff]
    %v599 = vld [vmem:[#allocation5 + $0xbc0] sm:$0xff]
    %v600 = vld [vmem:[#allocation5 + $0xbc8] sm:$0xff]
    %v601 = vld [vmem:[#allocation5 + $0xbd0] sm:$0xff]
    %v602 = vld [vmem:[#allocation5 + $0xbd8] sm:$0xff]
    %v603 = vld [vmem:[#allocation5 + $0xbe0] sm:$0xff]
    %v604 = vld [vmem:[#allocation5 + $0xbe8] sm:$0xff]
    %v605 = vld [vmem:[#allocation5 + $0xbf0] sm:$0xff]
    %v606 = vld [vmem:[#allocation5 + $0xbf8] sm:$0xff]
    %v607 = vld [vmem:[#allocation5 + $0xc00] sm:$0xff]
    %v608 = vld [vmem:[#allocation5 + $0xc08] sm:$0xff]
    %v609 = vld [vmem:[#allocation5 + $0xc10] sm:$0xff]
    %v610 = vld [vmem:[#allocation5 + $0xc18] sm:$0xff]
    %v611 = vld [vmem:[#allocation5 + $0xc20] sm:$0xff]
    %v612 = vld [vmem:[#allocation5 + $0xc28] sm:$0xff]
    %v613 = vld [vmem:[#allocation5 + $0xc30] sm:$0xff]
    %v614 = vld [vmem:[#allocation5 + $0xc38] sm:$0xff]
    %v615 = vld [vmem:[#allocation5 + $0xc40] sm:$0xff]
    %v616 = vld [vmem:[#allocation5 + $0xc48] sm:$0xff]
    %v617 = vld [vmem:[#allocation5 + $0xc50] sm:$0xff]
    %v618 = vld [vmem:[#allocation5 + $0xc58] sm:$0xff]
    %v619 = vld [vmem:[#allocation5 + $0xc60] sm:$0xff]
    %v620 = vld [vmem:[#allocation5 + $0xc68] sm:$0xff]
    %v621 = vld [vmem:[#allocation5 + $0xc70] sm:$0xff]
    %v622 = vld [vmem:[#allocation5 + $0xc78] sm:$0xff]
    %v623 = vld [vmem:[#allocation5 + $0xc80] sm:$0xff]
    %v624 = vld [vmem:[#allocation5 + $0xc88] sm:$0xff]
    %v625 = vld [vmem:[#allocation5 + $0xc90] sm:$0xff]
    %v626 = vld [vmem:[#allocation5 + $0xc98] sm:$0xff]
    %v627 = vld [vmem:[#allocation5 + $0xca0] sm:$0xff]
    %v628 = vld [vmem:[#allocation5 + $0xca8] sm:$0xff]
    %v629 = vld [vmem:[#allocation5 + $0xcb0] sm:$0xff]
    %v630 = vld [vmem:[#allocation5 + $0xcb8] sm:$0xff]
    %v631 = vld [vmem:[#allocation5 + $0xcc0] sm:$0xff]
    %v632 = vld [vmem:[#allocation5 + $0xcc8] sm:$0xff]
    %v633 = vld [vmem:[#allocation5 + $0xcd0] sm:$0xff]
    %v634 = vld [vmem:[#allocation5 + $0xcd8] sm:$0xff]
    %v635 = vld [vmem:[#allocation5 + $0xce0] sm:$0xff]
    %v636 = vld [vmem:[#allocation5 + $0xce8] sm:$0xff]
    %v637 = vld [vmem:[#allocation5 + $0xcf0] sm:$0xff]
    %v638 = vld [vmem:[#allocation5 + $0xcf8] sm:$0xff]
    %v639 = vld [vmem:[#allocation5 + $0xd00] sm:$0xff]
    %v640 = vld [vmem:[#allocation5 + $0xd08] sm:$0xff]
    %v641 = vld [vmem:[#allocation5 + $0xd10] sm:$0xff]
    %v642 = vld [vmem:[#allocation5 + $0xd18] sm:$0xff]
    %v643 = vld [vmem:[#allocation5 + $0xd20] sm:$0xff]
    %v644 = vld [vmem:[#allocation5 + $0xd28] sm:$0xff]
    %v645 = vld [vmem:[#allocation5 + $0xd30] sm:$0xff]
    %v646 = vld [vmem:[#allocation5 + $0xd38] sm:$0xff]
    %v647 = vld [vmem:[#allocation5 + $0xd40] sm:$0xff]
    %v648 = vld [vmem:[#allocation5 + $0xd48] sm:$0xff]
    %v649 = vld [vmem:[#allocation5 + $0xd50] sm:$0xff]
    %v650 = vld [vmem:[#allocation5 + $0xd58] sm:$0xff]
    %v651 = vld [vmem:[#allocation5 + $0xd60] sm:$0xff]
    %v652 = vld [vmem:[#allocation5 + $0xd68] sm:$0xff]
    %v653 = vld [vmem:[#allocation5 + $0xd70] sm:$0xff]
    %v654 = vld [vmem:[#allocation5 + $0xd78] sm:$0xff]
    %v655 = vld [vmem:[#allocation5 + $0xd80] sm:$0xff]
    %v656 = vld [vmem:[#allocation5 + $0xd88] sm:$0xff]
    %v657 = vld [vmem:[#allocation5 + $0xd90] sm:$0xff]
    %v658 = vld [vmem:[#allocation5 + $0xd98] sm:$0xff]
    %v659 = vld [vmem:[#allocation5 + $0xda0] sm:$0xff]
    %v660 = vld [vmem:[#allocation5 + $0xda8] sm:$0xff]
    %v661 = vld [vmem:[#allocation5 + $0xdb0] sm:$0xff]
    %v662 = vld [vmem:[#allocation5 + $0xdb8] sm:$0xff]
    %v663 = vld [vmem:[#allocation5 + $0xdc0] sm:$0xff]
    %v664 = vld [vmem:[#allocation5 + $0xdc8] sm:$0xff]
    %v665 = vld [vmem:[#allocation5 + $0xdd0] sm:$0xff]
    %v666 = vld [vmem:[#allocation5 + $0xdd8] sm:$0xff]
    %v667 = vld [vmem:[#allocation5 + $0xde0] sm:$0xff]
    %v668 = vld [vmem:[#allocation5 + $0xde8] sm:$0xff]
    %v669 = vld [vmem:[#allocation5 + $0xdf0] sm:$0xff]
    %v670 = vld [vmem:[#allocation5 + $0xdf8] sm:$0xff]
    %v671 = vld [vmem:[#allocation5 + $0xe00] sm:$0xff]
    %v672 = vld [vmem:[#allocation5 + $0xe08] sm:$0xff]
    %v673 = vld [vmem:[#allocation5 + $0xe10] sm:$0xff]
    %v674 = vld [vmem:[#allocation5 + $0xe18] sm:$0xff]
    %v675 = vld [vmem:[#allocation5 + $0xe20] sm:$0xff]
    %v676 = vld [vmem:[#allocation5 + $0xe28] sm:$0xff]
    %v677 = vld [vmem:[#allocation5 + $0xe30] sm:$0xff]
    %v678 = vld [vmem:[#allocation5 + $0xe38] sm:$0xff]
    %v679 = vld [vmem:[#allocation5 + $0xe40] sm:$0xff]
    %v680 = vld [vmem:[#allocation5 + $0xe48] sm:$0xff]
    %v681 = vld [vmem:[#allocation5 + $0xe50] sm:$0xff]
    %v682 = vld [vmem:[#allocation5 + $0xe58] sm:$0xff]
    %v683 = vld [vmem:[#allocation5 + $0xe60] sm:$0xff]
    %v684 = vld [vmem:[#allocation5 + $0xe68] sm:$0xff]
    %v685 = vld [vmem:[#allocation5 + $0xe70] sm:$0xff]
    %v686 = vld [vmem:[#allocation5 + $0xe78] sm:$0xff]
    %v687 = vld [vmem:[#allocation5 + $0xe80] sm:$0xff]
    %v688 = vld [vmem:[#allocation5 + $0xe88] sm:$0xff]
    %v689 = vld [vmem:[#allocation5 + $0xe90] sm:$0xff]
    %v690 = vld [vmem:[#allocation5 + $0xe98] sm:$0xff]
    %v691 = vld [vmem:[#allocation5 + $0xea0] sm:$0xff]
    %v692 = vld [vmem:[#allocation5 + $0xea8] sm:$0xff]
    %v693 = vld [vmem:[#allocation5 + $0xeb0] sm:$0xff]
    %v694 = vld [vmem:[#allocation5 + $0xeb8] sm:$0xff]
    %v695 = vld [vmem:[#allocation5 + $0xec0] sm:$0xff]
    %v696 = vld [vmem:[#allocation5 + $0xec8] sm:$0xff]
    %v697 = vld [vmem:[#allocation5 + $0xed0] sm:$0xff]
    %v698 = vld [vmem:[#allocation5 + $0xed8] sm:$0xff]
    %v699 = vld [vmem:[#allocation5 + $0xee0] sm:$0xff]
    %v700 = vld [vmem:[#allocation5 + $0xee8] sm:$0xff]
    %v701 = vld [vmem:[#allocation5 + $0xef0] sm:$0xff]
    %v702 = vld [vmem:[#allocation5 + $0xef8] sm:$0xff]
    %v703 = vld [vmem:[#allocation5 + $0xf00] sm:$0xff]
    %v704 = vld [vmem:[#allocation5 + $0xf08] sm:$0xff]
    %v705 = vld [vmem:[#allocation5 + $0xf10] sm:$0xff]
    %v706 = vld [vmem:[#allocation5 + $0xf18] sm:$0xff]
    %v707 = vld [vmem:[#allocation5 + $0xf20] sm:$0xff]
    %v708 = vld [vmem:[#allocation5 + $0xf28] sm:$0xff]
    %v709 = vld [vmem:[#allocation5 + $0xf30] sm:$0xff]
    %v710 = vld [vmem:[#allocation5 + $0xf38] sm:$0xff]
    %v711 = vld [vmem:[#allocation5 + $0xf40] sm:$0xff]
    %v712 = vld [vmem:[#allocation5 + $0xf48] sm:$0xff]
    %v713 = vld [vmem:[#allocation5 + $0xf50] sm:$0xff]
    %v714 = vld [vmem:[#allocation5 + $0xf58] sm:$0xff]
    %v715 = vld [vmem:[#allocation5 + $0xf60] sm:$0xff]
    %v716 = vld [vmem:[#allocation5 + $0xf68] sm:$0xff]
    %v717 = vld [vmem:[#allocation5 + $0xf70] sm:$0xff]
    %v718 = vld [vmem:[#allocation5 + $0xf78] sm:$0xff]
    %v719 = vld [vmem:[#allocation5 + $0xf80] sm:$0xff]
    %v720 = vld [vmem:[#allocation5 + $0xf88] sm:$0xff]
    %v721 = vld [vmem:[#allocation5 + $0xf90] sm:$0xff]
    %v722 = vld [vmem:[#allocation5 + $0xf98] sm:$0xff]
    %v723 = vld [vmem:[#allocation5 + $0xfa0] sm:$0xff]
    %v724 = vld [vmem:[#allocation5 + $0xfa8] sm:$0xff]
    %v725 = vld [vmem:[#allocation5 + $0xfb0] sm:$0xff]
    %v726 = vld [vmem:[#allocation5 + $0xfb8] sm:$0xff]
    %v727 = vld [vmem:[#allocation5 + $0xfc0] sm:$0xff]
    %v728 = vld [vmem:[#allocation5 + $0xfc8] sm:$0xff]
    %v729 = vld [vmem:[#allocation5 + $0xfd0] sm:$0xff]
    %v730 = vld [vmem:[#allocation5 + $0xfd8] sm:$0xff]
    %v731 = vld [vmem:[#allocation5 + $0xfe0] sm:$0xff]
    %v732 = vld [vmem:[#allocation5 + $0xfe8] sm:$0xff]
    %v733 = vld [vmem:[#allocation5 + $0xff0] sm:$0xff]
    %v734 = vld [vmem:[#allocation5 + $0xff8] sm:$0xff]
    %v735 = vld [vmem:[#allocation5 + $0x1000] sm:$0xff]
    %v736 = vld [vmem:[#allocation5 + $0x1008] sm:$0xff]
    %v737 = vld [vmem:[#allocation5 + $0x1010] sm:$0xff]
    %v738 = vld [vmem:[#allocation5 + $0x1018] sm:$0xff]
    %v739 = vld [vmem:[#allocation5 + $0x1020] sm:$0xff]
    %v740 = vld [vmem:[#allocation5 + $0x1028] sm:$0xff]
    %v741 = vld [vmem:[#allocation5 + $0x1030] sm:$0xff]
    %v742 = vld [vmem:[#allocation5 + $0x1038] sm:$0xff]
    %v743 = vld [vmem:[#allocation5 + $0x1040] sm:$0xff]
    %v744 = vld [vmem:[#allocation5 + $0x1048] sm:$0xff]
    %v745 = vld [vmem:[#allocation5 + $0x1050] sm:$0xff]
    %v746 = vld [vmem:[#allocation5 + $0x1058] sm:$0xff]
    %v747 = vld [vmem:[#allocation5 + $0x1060] sm:$0xff]
    %v748 = vld [vmem:[#allocation5 + $0x1068] sm:$0xff]
    %v749 = vld [vmem:[#allocation5 + $0x1070] sm:$0xff]
    %v750 = vld [vmem:[#allocation5 + $0x1078] sm:$0xff]
    %v751 = vld [vmem:[#allocation5 + $0x1080] sm:$0xff]
    %v752 = vld [vmem:[#allocation5 + $0x1088] sm:$0xff]
    %v753 = vld [vmem:[#allocation5 + $0x1090] sm:$0xff]
    %v754 = vld [vmem:[#allocation5 + $0x1098] sm:$0xff]
    %v755 = vld [vmem:[#allocation5 + $0x10a0] sm:$0xff]
    %v756 = vld [vmem:[#allocation5 + $0x10a8] sm:$0xff]
    %v757 = vld [vmem:[#allocation5 + $0x10b0] sm:$0xff]
    %v758 = vld [vmem:[#allocation5 + $0x10b8] sm:$0xff]
    %v759 = vld [vmem:[#allocation5 + $0x10c0] sm:$0xff]
    %v760 = vld [vmem:[#allocation5 + $0x10c8] sm:$0xff]
    %v761 = vld [vmem:[#allocation5 + $0x10d0] sm:$0xff]
    %v762 = vld [vmem:[#allocation5 + $0x10d8] sm:$0xff]
    %v763 = vld [vmem:[#allocation5 + $0x10e0] sm:$0xff]
    %v764 = vld [vmem:[#allocation5 + $0x10e8] sm:$0xff]
    %v765 = vld [vmem:[#allocation5 + $0x10f0] sm:$0xff]
    %v766 = vld [vmem:[#allocation5 + $0x10f8] sm:$0xff]
    %v767 = vld [vmem:[#allocation5 + $0x1100] sm:$0xff]
    %v768 = vld [vmem:[#allocation5 + $0x1108] sm:$0xff]
    %v769 = vld [vmem:[#allocation5 + $0x1110] sm:$0xff]
    %v770 = vld [vmem:[#allocation5 + $0x1118] sm:$0xff]
    %v771 = vld [vmem:[#allocation5 + $0x1120] sm:$0xff]
    %v772 = vld [vmem:[#allocation5 + $0x1128] sm:$0xff]
    %v773 = vld [vmem:[#allocation5 + $0x1130] sm:$0xff]
    %v774 = vld [vmem:[#allocation5 + $0x1138] sm:$0xff]
    %v775 = vld [vmem:[#allocation5 + $0x1140] sm:$0xff]
    %v776 = vld [vmem:[#allocation5 + $0x1148] sm:$0xff]
    %v777 = vld [vmem:[#allocation5 + $0x1150] sm:$0xff]
    %v778 = vld [vmem:[#allocation5 + $0x1158] sm:$0xff]
    %v779 = vld [vmem:[#allocation5 + $0x1160] sm:$0xff]
    %v780 = vld [vmem:[#allocation5 + $0x1168] sm:$0xff]
    %v781 = vld [vmem:[#allocation5 + $0x1170] sm:$0xff]
    %v782 = vld [vmem:[#allocation5 + $0x1178] sm:$0xff]
    %v783 = vld [vmem:[#allocation5 + $0x1180] sm:$0xff]
    %v784 = vld [vmem:[#allocation5 + $0x1188] sm:$0xff]
    %v785 = vld [vmem:[#allocation5 + $0x1190] sm:$0xff]
    %v786 = vld [vmem:[#allocation5 + $0x1198] sm:$0xff]
    %v787 = vld [vmem:[#allocation5 + $0x11a0] sm:$0xff]
    %v788 = vld [vmem:[#allocation5 + $0x11a8] sm:$0xff]
    %v789 = vld [vmem:[#allocation5 + $0x11b0] sm:$0xff]
    %v790 = vld [vmem:[#allocation5 + $0x11b8] sm:$0xff]
    %v791 = vld [vmem:[#allocation5 + $0x11c0] sm:$0xff]
    %v792 = vld [vmem:[#allocation5 + $0x11c8] sm:$0xff]
    %v793 = vld [vmem:[#allocation5 + $0x11d0] sm:$0xff]
    %v794 = vld [vmem:[#allocation5 + $0x11d8] sm:$0xff]
    %v795 = vld [vmem:[#allocation5 + $0x11e0] sm:$0xff]
    %v796 = vld [vmem:[#allocation5 + $0x11e8] sm:$0xff]
    %v797 = vld [vmem:[#allocation5 + $0x11f0] sm:$0xff]
    %v798 = vld [vmem:[#allocation5 + $0x11f8] sm:$0xff]
    %v799 = vld [vmem:[#allocation5 + $0x1200] sm:$0xff]
    %v800 = vld [vmem:[#allocation5 + $0x1208] sm:$0xff]
    %v801 = vld [vmem:[#allocation5 + $0x1210] sm:$0xff]
    %v802 = vld [vmem:[#allocation5 + $0x1218] sm:$0xff]
    %v803 = vld [vmem:[#allocation5 + $0x1220] sm:$0xff]
    %v804 = vld [vmem:[#allocation5 + $0x1228] sm:$0xff]
    %v805 = vld [vmem:[#allocation5 + $0x1230] sm:$0xff]
    %v806 = vld [vmem:[#allocation5 + $0x1238] sm:$0xff]
    %v807 = vld [vmem:[#allocation5 + $0x1240] sm:$0xff]
    %v808 = vld [vmem:[#allocation5 + $0x1248] sm:$0xff]
    %v809 = vld [vmem:[#allocation5 + $0x1250] sm:$0xff]
    %v810 = vld [vmem:[#allocation5 + $0x1258] sm:$0xff]
    %v811 = vld [vmem:[#allocation5 + $0x1260] sm:$0xff]
    %v812 = vld [vmem:[#allocation5 + $0x1268] sm:$0xff]
    %v813 = vld [vmem:[#allocation5 + $0x1270] sm:$0xff]
    %v814 = vld [vmem:[#allocation5 + $0x1278] sm:$0xff]
    %v815 = vld [vmem:[#allocation5 + $0x1280] sm:$0xff]
    %v816 = vld [vmem:[#allocation5 + $0x1288] sm:$0xff]
    %v817 = vld [vmem:[#allocation5 + $0x1290] sm:$0xff]
    %v818 = vld [vmem:[#allocation5 + $0x1298] sm:$0xff]
    %v819 = vld [vmem:[#allocation5 + $0x12a0] sm:$0xff]
    %v820 = vld [vmem:[#allocation5 + $0x12a8] sm:$0xff]
    %v821 = vld [vmem:[#allocation5 + $0x12b0] sm:$0xff]
    %v822 = vld [vmem:[#allocation5 + $0x12b8] sm:$0xff]
    %v823 = vld [vmem:[#allocation5 + $0x12c0] sm:$0xff]
    %v824 = vld [vmem:[#allocation5 + $0x12c8] sm:$0xff]
    %v825 = vld [vmem:[#allocation5 + $0x12d0] sm:$0xff]
    %v826 = vld [vmem:[#allocation5 + $0x12d8] sm:$0xff]
    %v827 = vld [vmem:[#allocation5 + $0x12e0] sm:$0xff]
    %v828 = vld [vmem:[#allocation5 + $0x12e8] sm:$0xff]
    %v829 = vld [vmem:[#allocation5 + $0x12f0] sm:$0xff]
    %v830 = vld [vmem:[#allocation5 + $0x12f8] sm:$0xff]
    %v831 = vld [vmem:[#allocation5 + $0x1300] sm:$0xff]
    %v832 = vld [vmem:[#allocation5 + $0x1308] sm:$0xff]
    %v833 = vld [vmem:[#allocation5 + $0x1310] sm:$0xff]
    %v834 = vld [vmem:[#allocation5 + $0x1318] sm:$0xff]
    %v835 = vld [vmem:[#allocation5 + $0x1320] sm:$0xff]
    %v836 = vld [vmem:[#allocation5 + $0x1328] sm:$0xff]
    %v837 = vld [vmem:[#allocation5 + $0x1330] sm:$0xff]
    %v838 = vld [vmem:[#allocation5 + $0x1338] sm:$0xff]
    %v839 = vld [vmem:[#allocation5 + $0x1340] sm:$0xff]
    %v840 = vld [vmem:[#allocation5 + $0x1348] sm:$0xff]
    %v841 = vld [vmem:[#allocation5 + $0x1350] sm:$0xff]
    %v842 = vld [vmem:[#allocation5 + $0x1358] sm:$0xff]
    %v843 = vld [vmem:[#allocation5 + $0x1360] sm:$0xff]
    %v844 = vld [vmem:[#allocation5 + $0x1368] sm:$0xff]
    %v845 = vld [vmem:[#allocation5 + $0x1370] sm:$0xff]
    %v846 = vld [vmem:[#allocation5 + $0x1378] sm:$0xff]
    %v847 = vld [vmem:[#allocation5 + $0x1380] sm:$0xff]
    %v848 = vld [vmem:[#allocation5 + $0x1388] sm:$0xff]
    %v849 = vld [vmem:[#allocation5 + $0x1390] sm:$0xff]
    %v850 = vld [vmem:[#allocation5 + $0x1398] sm:$0xff]
    %v851 = vld [vmem:[#allocation5 + $0x13a0] sm:$0xff]
    %v852 = vld [vmem:[#allocation5 + $0x13a8] sm:$0xff]
    %v853 = vld [vmem:[#allocation5 + $0x13b0] sm:$0xff]
    %v854 = vld [vmem:[#allocation5 + $0x13b8] sm:$0xff]
    %v855 = vld [vmem:[#allocation5 + $0x13c0] sm:$0xff]
    %v856 = vld [vmem:[#allocation5 + $0x13c8] sm:$0xff]
    %v857 = vld [vmem:[#allocation5 + $0x13d0] sm:$0xff]
    %v858 = vld [vmem:[#allocation5 + $0x13d8] sm:$0xff]
    %v859 = vld [vmem:[#allocation5 + $0x13e0] sm:$0xff]
    %v860 = vld [vmem:[#allocation5 + $0x13e8] sm:$0xff]
    %v861 = vld [vmem:[#allocation5 + $0x13f0] sm:$0xff]
    %v862 = vld [vmem:[#allocation5 + $0x13f8] sm:$0xff]
    %v863 = vld [vmem:[#allocation5 + $0x1400] sm:$0xff]
    %v864 = vld [vmem:[#allocation5 + $0x1408] sm:$0xff]
    %v865 = vld [vmem:[#allocation5 + $0x1410] sm:$0xff]
    %v866 = vld [vmem:[#allocation5 + $0x1418] sm:$0xff]
    %v867 = vld [vmem:[#allocation5 + $0x1420] sm:$0xff]
    %v868 = vld [vmem:[#allocation5 + $0x1428] sm:$0xff]
    %v869 = vld [vmem:[#allocation5 + $0x1430] sm:$0xff]
    %v870 = vld [vmem:[#allocation5 + $0x1438] sm:$0xff]
    %v871 = vld [vmem:[#allocation5 + $0x1440] sm:$0xff]
    %v872 = vld [vmem:[#allocation5 + $0x1448] sm:$0xff]
    %v873 = vld [vmem:[#allocation5 + $0x1450] sm:$0xff]
    %v874 = vld [vmem:[#allocation5 + $0x1458] sm:$0xff]
    %v875 = vld [vmem:[#allocation5 + $0x1460] sm:$0xff]
    %v876 = vld [vmem:[#allocation5 + $0x1468] sm:$0xff]
    %v877 = vld [vmem:[#allocation5 + $0x1470] sm:$0xff]
    %v878 = vld [vmem:[#allocation5 + $0x1478] sm:$0xff]
    %v879 = vld [vmem:[#allocation5 + $0x1480] sm:$0xff]
    %v880 = vld [vmem:[#allocation5 + $0x1488] sm:$0xff]
    %v881 = vld [vmem:[#allocation5 + $0x1490] sm:$0xff]
    %v882 = vld [vmem:[#allocation5 + $0x1498] sm:$0xff]
    %v883 = vld [vmem:[#allocation5 + $0x14a0] sm:$0xff]
    %v884 = vld [vmem:[#allocation5 + $0x14a8] sm:$0xff]
    %v885 = vld [vmem:[#allocation5 + $0x14b0] sm:$0xff]
    %v886 = vld [vmem:[#allocation5 + $0x14b8] sm:$0xff]
    %v887 = vld [vmem:[#allocation5 + $0x14c0] sm:$0xff]
    %v888 = vld [vmem:[#allocation5 + $0x14c8] sm:$0xff]
    %v889 = vld [vmem:[#allocation5 + $0x14d0] sm:$0xff]
    %v890 = vld [vmem:[#allocation5 + $0x14d8] sm:$0xff]
    %v891 = vld [vmem:[#allocation5 + $0x14e0] sm:$0xff]
    %v892 = vld [vmem:[#allocation5 + $0x14e8] sm:$0xff]
    %v893 = vld [vmem:[#allocation5 + $0x14f0] sm:$0xff]
    %v894 = vld [vmem:[#allocation5 + $0x14f8] sm:$0xff]
    %v895 = vld [vmem:[#allocation5 + $0x1500] sm:$0xff]
    %v896 = vld [vmem:[#allocation5 + $0x1508] sm:$0xff]
    %v897 = vld [vmem:[#allocation5 + $0x1510] sm:$0xff]
    %v898 = vld [vmem:[#allocation5 + $0x1518] sm:$0xff]
    %v899 = vld [vmem:[#allocation5 + $0x1520] sm:$0xff]
    %v900 = vld [vmem:[#allocation5 + $0x1528] sm:$0xff]
    %v901 = vld [vmem:[#allocation5 + $0x1530] sm:$0xff]
    %v902 = vld [vmem:[#allocation5 + $0x1538] sm:$0xff]
    %v903 = vld [vmem:[#allocation5 + $0x1540] sm:$0xff]
    %v904 = vld [vmem:[#allocation5 + $0x1548] sm:$0xff]
    %v905 = vld [vmem:[#allocation5 + $0x1550] sm:$0xff]
    %v906 = vld [vmem:[#allocation5 + $0x1558] sm:$0xff]
    %v907 = vld [vmem:[#allocation5 + $0x1560] sm:$0xff]
    %v908 = vld [vmem:[#allocation5 + $0x1568] sm:$0xff]
    %v909 = vld [vmem:[#allocation5 + $0x1570] sm:$0xff]
    %v910 = vld [vmem:[#allocation5 + $0x1578] sm:$0xff]
    %v911 = vld [vmem:[#allocation5 + $0x1580] sm:$0xff]
    %v912 = vld [vmem:[#allocation5 + $0x1588] sm:$0xff]
    %v913 = vld [vmem:[#allocation5 + $0x1590] sm:$0xff]
    %v914 = vld [vmem:[#allocation5 + $0x1598] sm:$0xff]
    %v915 = vld [vmem:[#allocation5 + $0x15a0] sm:$0xff]
    %v916 = vld [vmem:[#allocation5 + $0x15a8] sm:$0xff]
    %v917 = vld [vmem:[#allocation5 + $0x15b0] sm:$0xff]
    %v918 = vld [vmem:[#allocation5 + $0x15b8] sm:$0xff]
    %v919 = vld [vmem:[#allocation5 + $0x15c0] sm:$0xff]
    %v920 = vld [vmem:[#allocation5 + $0x15c8] sm:$0xff]
    %v921 = vld [vmem:[#allocation5 + $0x15d0] sm:$0xff]
    %v922 = vld [vmem:[#allocation5 + $0x15d8] sm:$0xff]
    %v923 = vld [vmem:[#allocation5 + $0x15e0] sm:$0xff]
    %v924 = vld [vmem:[#allocation5 + $0x15e8] sm:$0xff]
    %v925 = vld [vmem:[#allocation5 + $0x15f0] sm:$0xff]
    %v926 = vld [vmem:[#allocation5 + $0x15f8] sm:$0xff]
    %v927 = vld [vmem:[#allocation5 + $0x1600] sm:$0xff]
    %v928 = vld [vmem:[#allocation5 + $0x1608] sm:$0xff]
    %v929 = vld [vmem:[#allocation5 + $0x1610] sm:$0xff]
    %v930 = vld [vmem:[#allocation5 + $0x1618] sm:$0xff]
    %v931 = vld [vmem:[#allocation5 + $0x1620] sm:$0xff]
    %v932 = vld [vmem:[#allocation5 + $0x1628] sm:$0xff]
    %v933 = vld [vmem:[#allocation5 + $0x1630] sm:$0xff]
    %v934 = vld [vmem:[#allocation5 + $0x1638] sm:$0xff]
    %v935 = vld [vmem:[#allocation5 + $0x1640] sm:$0xff]
    %v936 = vld [vmem:[#allocation5 + $0x1648] sm:$0xff]
    %v937 = vld [vmem:[#allocation5 + $0x1650] sm:$0xff]
    %v938 = vld [vmem:[#allocation5 + $0x1658] sm:$0xff]
    %v939 = vld [vmem:[#allocation5 + $0x1660] sm:$0xff]
    %v940 = vld [vmem:[#allocation5 + $0x1668] sm:$0xff]
    %v941 = vld [vmem:[#allocation5 + $0x1670] sm:$0xff]
    %v942 = vld [vmem:[#allocation5 + $0x1678] sm:$0xff]
    %v943 = vld [vmem:[#allocation5 + $0x1680] sm:$0xff]
    %v944 = vld [vmem:[#allocation5 + $0x1688] sm:$0xff]
    %v945 = vld [vmem:[#allocation5 + $0x1690] sm:$0xff]
    %v946 = vld [vmem:[#allocation5 + $0x1698] sm:$0xff]
    %v947 = vld [vmem:[#allocation5 + $0x16a0] sm:$0xff]
    %v948 = vld [vmem:[#allocation5 + $0x16a8] sm:$0xff]
    %v949 = vld [vmem:[#allocation5 + $0x16b0] sm:$0xff]
    %v950 = vld [vmem:[#allocation5 + $0x16b8] sm:$0xff]
    %v951 = vld [vmem:[#allocation5 + $0x16c0] sm:$0xff]
    %v952 = vld [vmem:[#allocation5 + $0x16c8] sm:$0xff]
    %v953 = vld [vmem:[#allocation5 + $0x16d0] sm:$0xff]
    %v954 = vld [vmem:[#allocation5 + $0x16d8] sm:$0xff]
    %v955 = vld [vmem:[#allocation5 + $0x16e0] sm:$0xff]
    %v956 = vld [vmem:[#allocation5 + $0x16e8] sm:$0xff]
    %v957 = vld [vmem:[#allocation5 + $0x16f0] sm:$0xff]
    %v958 = vld [vmem:[#allocation5 + $0x16f8] sm:$0xff]
    %v959 = vld [vmem:[#allocation5 + $0x1700] sm:$0xff]
    %v960 = vld [vmem:[#allocation5 + $0x1708] sm:$0xff]
    %v961 = vld [vmem:[#allocation5 + $0x1710] sm:$0xff]
    %v962 = vld [vmem:[#allocation5 + $0x1718] sm:$0xff]
    %v963 = vld [vmem:[#allocation5 + $0x1720] sm:$0xff]
    %v964 = vld [vmem:[#allocation5 + $0x1728] sm:$0xff]
    %v965 = vld [vmem:[#allocation5 + $0x1730] sm:$0xff]
    %v966 = vld [vmem:[#allocation5 + $0x1738] sm:$0xff]
    %v967 = vld [vmem:[#allocation5 + $0x1740] sm:$0xff]
    %v968 = vld [vmem:[#allocation5 + $0x1748] sm:$0xff]
    %v969 = vld [vmem:[#allocation5 + $0x1750] sm:$0xff]
    %v970 = vld [vmem:[#allocation5 + $0x1758] sm:$0xff]
    %v971 = vld [vmem:[#allocation5 + $0x1760] sm:$0xff]
    %v972 = vld [vmem:[#allocation5 + $0x1768] sm:$0xff]
    %v973 = vld [vmem:[#allocation5 + $0x1770] sm:$0xff]
    %v974 = vld [vmem:[#allocation5 + $0x1778] sm:$0xff]
    %v975 = vld [vmem:[#allocation5 + $0x1780] sm:$0xff]
    %v976 = vld [vmem:[#allocation5 + $0x1788] sm:$0xff]
    %v977 = vld [vmem:[#allocation5 + $0x1790] sm:$0xff]
    %v978 = vld [vmem:[#allocation5 + $0x1798] sm:$0xff]
    %v979 = vld [vmem:[#allocation5 + $0x17a0] sm:$0xff]
    %v980 = vld [vmem:[#allocation5 + $0x17a8] sm:$0xff]
    %v981 = vld [vmem:[#allocation5 + $0x17b0] sm:$0xff]
    %v982 = vld [vmem:[#allocation5 + $0x17b8] sm:$0xff]
    %v983 = vld [vmem:[#allocation5 + $0x17c0] sm:$0xff]
    %v984 = vld [vmem:[#allocation5 + $0x17c8] sm:$0xff]
    %v985 = vld [vmem:[#allocation5 + $0x17d0] sm:$0xff]
    %v986 = vld [vmem:[#allocation5 + $0x17d8] sm:$0xff]
    %v987 = vld [vmem:[#allocation5 + $0x17e0] sm:$0xff]
    %v988 = vld [vmem:[#allocation5 + $0x17e8] sm:$0xff]
    %v989 = vld [vmem:[#allocation5 + $0x17f0] sm:$0xff]
    %v990 = vld [vmem:[#allocation5 + $0x17f8] sm:$0xff]
    %v991 = vld [vmem:[#allocation5 + $0x1800] sm:$0xff]
    %v992 = vld [vmem:[#allocation5 + $0x1808] sm:$0xff]
    %v993 = vld [vmem:[#allocation5 + $0x1810] sm:$0xff]
    %v994 = vld [vmem:[#allocation5 + $0x1818] sm:$0xff]
    %v995 = vld [vmem:[#allocation5 + $0x1820] sm:$0xff]
    %v996 = vld [vmem:[#allocation5 + $0x1828] sm:$0xff]
    %v997 = vld [vmem:[#allocation5 + $0x1830] sm:$0xff]
    %v998 = vld [vmem:[#allocation5 + $0x1838] sm:$0xff]
    %v999 = vld [vmem:[#allocation5 + $0x1840] sm:$0xff]
    %v1000 = vld [vmem:[#allocation5 + $0x1848] sm:$0xff]
    %v1001 = vld [vmem:[#allocation5 + $0x1850] sm:$0xff]
    %v1002 = vld [vmem:[#allocation5 + $0x1858] sm:$0xff]
    %v1003 = vld [vmem:[#allocation5 + $0x1860] sm:$0xff]
    %v1004 = vld [vmem:[#allocation5 + $0x1868] sm:$0xff]
    %v1005 = vld [vmem:[#allocation5 + $0x1870] sm:$0xff]
    %v1006 = vld [vmem:[#allocation5 + $0x1878] sm:$0xff]
    %v1007 = vld [vmem:[#allocation5 + $0x1880] sm:$0xff]
    %v1008 = vld [vmem:[#allocation5 + $0x1888] sm:$0xff]
    %v1009 = vld [vmem:[#allocation5 + $0x1890] sm:$0xff]
    %v1010 = vld [vmem:[#allocation5 + $0x1898] sm:$0xff]
    %v1011 = vld [vmem:[#allocation5 + $0x18a0] sm:$0xff]
    %v1012 = vld [vmem:[#allocation5 + $0x18a8] sm:$0xff]
    %v1013 = vld [vmem:[#allocation5 + $0x18b0] sm:$0xff]
    %v1014 = vld [vmem:[#allocation5 + $0x18b8] sm:$0xff]
    %v1015 = vld [vmem:[#allocation5 + $0x18c0] sm:$0xff]
    %v1016 = vld [vmem:[#allocation5 + $0x18c8] sm:$0xff]
    %v1017 = vld [vmem:[#allocation5 + $0x18d0] sm:$0xff]
    %v1018 = vld [vmem:[#allocation5 + $0x18d8] sm:$0xff]
    %v1019 = vld [vmem:[#allocation5 + $0x18e0] sm:$0xff]
    %v1020 = vld [vmem:[#allocation5 + $0x18e8] sm:$0xff]
    %v1021 = vld [vmem:[#allocation5 + $0x18f0] sm:$0xff]
    %v1022 = vld [vmem:[#allocation5 + $0x18f8] sm:$0xff]
    %v1023 = vld [vmem:[#allocation5 + $0x1900] sm:$0xff]
    %v1024 = vld [vmem:[#allocation5 + $0x1908] sm:$0xff]
    %v1025 = vld [vmem:[#allocation5 + $0x1910] sm:$0xff]
    %v1026 = vld [vmem:[#allocation5 + $0x1918] sm:$0xff]
    %v1027 = vld [vmem:[#allocation5 + $0x1920] sm:$0xff]
    %v1028 = vld [vmem:[#allocation5 + $0x1928] sm:$0xff]
    %v1029 = vld [vmem:[#allocation5 + $0x1930] sm:$0xff]
    %v1030 = vld [vmem:[#allocation5 + $0x1938] sm:$0xff]
    %v1031 = vld [vmem:[#allocation5 + $0x1940] sm:$0xff]
    %v1032 = vld [vmem:[#allocation5 + $0x1948] sm:$0xff]
    %v1033 = vld [vmem:[#allocation5 + $0x1950] sm:$0xff]
    %v1034 = vld [vmem:[#allocation5 + $0x1958] sm:$0xff]
    %v1035 = vld [vmem:[#allocation5 + $0x1960] sm:$0xff]
    %v1036 = vld [vmem:[#allocation5 + $0x1968] sm:$0xff]
    %v1037 = vld [vmem:[#allocation5 + $0x1970] sm:$0xff]
    %v1038 = vld [vmem:[#allocation5 + $0x1978] sm:$0xff]
    %v1039 = vld [vmem:[#allocation5 + $0x1980] sm:$0xff]
    %v1040 = vld [vmem:[#allocation5 + $0x1988] sm:$0xff]
    %v1041 = vld [vmem:[#allocation5 + $0x1990] sm:$0xff]
    %v1042 = vld [vmem:[#allocation5 + $0x1998] sm:$0xff]
    %v1043 = vld [vmem:[#allocation5 + $0x19a0] sm:$0xff]
    %v1044 = vld [vmem:[#allocation5 + $0x19a8] sm:$0xff]
    %v1045 = vld [vmem:[#allocation5 + $0x19b0] sm:$0xff]
    %v1046 = vld [vmem:[#allocation5 + $0x19b8] sm:$0xff]
    %v1047 = vld [vmem:[#allocation5 + $0x19c0] sm:$0xff]
    %v1048 = vld [vmem:[#allocation5 + $0x19c8] sm:$0xff]
    %v1049 = vld [vmem:[#allocation5 + $0x19d0] sm:$0xff]
    %v1050 = vld [vmem:[#allocation5 + $0x19d8] sm:$0xff]
    %v1051 = vld [vmem:[#allocation5 + $0x19e0] sm:$0xff]
    %v1052 = vld [vmem:[#allocation5 + $0x19e8] sm:$0xff]
    %v1053 = vld [vmem:[#allocation5 + $0x19f0] sm:$0xff]
    %v1054 = vld [vmem:[#allocation5 + $0x19f8] sm:$0xff]
    %v1055 = vld [vmem:[#allocation5 + $0x1a00] sm:$0xff]
    %v1056 = vld [vmem:[#allocation5 + $0x1a08] sm:$0xff]
    %v1057 = vld [vmem:[#allocation5 + $0x1a10] sm:$0xff]
    %v1058 = vld [vmem:[#allocation5 + $0x1a18] sm:$0xff]
    %v1059 = vld [vmem:[#allocation5 + $0x1a20] sm:$0xff]
    %v1060 = vld [vmem:[#allocation5 + $0x1a28] sm:$0xff]
    %v1061 = vld [vmem:[#allocation5 + $0x1a30] sm:$0xff]
    %v1062 = vld [vmem:[#allocation5 + $0x1a38] sm:$0xff]
    %v1063 = vld [vmem:[#allocation5 + $0x1a40] sm:$0xff]
    %v1064 = vld [vmem:[#allocation5 + $0x1a48] sm:$0xff]
    %v1065 = vld [vmem:[#allocation5 + $0x1a50] sm:$0xff]
    %v1066 = vld [vmem:[#allocation5 + $0x1a58] sm:$0xff]
    %v1067 = vld [vmem:[#allocation5 + $0x1a60] sm:$0xff]
    %v1068 = vld [vmem:[#allocation5 + $0x1a68] sm:$0xff]
    %v1069 = vld [vmem:[#allocation5 + $0x1a70] sm:$0xff]
    %v1070 = vld [vmem:[#allocation5 + $0x1a78] sm:$0xff]
    %v1071 = vld [vmem:[#allocation5 + $0x1a80] sm:$0xff]
    %v1072 = vld [vmem:[#allocation5 + $0x1a88] sm:$0xff]
    %v1073 = vld [vmem:[#allocation5 + $0x1a90] sm:$0xff]
    %v1074 = vld [vmem:[#allocation5 + $0x1a98] sm:$0xff]
    %v1075 = vld [vmem:[#allocation5 + $0x1aa0] sm:$0xff]
    %v1076 = vld [vmem:[#allocation5 + $0x1aa8] sm:$0xff]
    %v1077 = vld [vmem:[#allocation5 + $0x1ab0] sm:$0xff]
    %v1078 = vld [vmem:[#allocation5 + $0x1ab8] sm:$0xff]
    %v1079 = vld [vmem:[#allocation5 + $0x1ac0] sm:$0xff]
    %v1080 = vld [vmem:[#allocation5 + $0x1ac8] sm:$0xff]
    %v1081 = vld [vmem:[#allocation5 + $0x1ad0] sm:$0xff]
    %v1082 = vld [vmem:[#allocation5 + $0x1ad8] sm:$0xff]
    %v1083 = vld [vmem:[#allocation5 + $0x1ae0] sm:$0xff]
    %v1084 = vld [vmem:[#allocation5 + $0x1ae8] sm:$0xff]
    %v1085 = vld [vmem:[#allocation5 + $0x1af0] sm:$0xff]
    %v1086 = vld [vmem:[#allocation5 + $0x1af8] sm:$0xff]
    %v1087 = vld [vmem:[#allocation5 + $0x1b00] sm:$0xff]
    %v1088 = vld [vmem:[#allocation5 + $0x1b08] sm:$0xff]
    %v1089 = vld [vmem:[#allocation5 + $0x1b10] sm:$0xff]
    %v1090 = vld [vmem:[#allocation5 + $0x1b18] sm:$0xff]
    %v1091 = vld [vmem:[#allocation5 + $0x1b20] sm:$0xff]
    %v1092 = vld [vmem:[#allocation5 + $0x1b28] sm:$0xff]
    %v1093 = vld [vmem:[#allocation5 + $0x1b30] sm:$0xff]
    %v1094 = vld [vmem:[#allocation5 + $0x1b38] sm:$0xff]
    %v1095 = vld [vmem:[#allocation5 + $0x1b40] sm:$0xff]
    %v1096 = vld [vmem:[#allocation5 + $0x1b48] sm:$0xff]
    %v1097 = vld [vmem:[#allocation5 + $0x1b50] sm:$0xff]
    %v1098 = vld [vmem:[#allocation5 + $0x1b58] sm:$0xff]
    %v1099 = vld [vmem:[#allocation5 + $0x1b60] sm:$0xff]
    %v1100 = vld [vmem:[#allocation5 + $0x1b68] sm:$0xff]
    %v1101 = vld [vmem:[#allocation5 + $0x1b70] sm:$0xff]
    %v1102 = vld [vmem:[#allocation5 + $0x1b78] sm:$0xff]
    %v1103 = vld [vmem:[#allocation5 + $0x1b80] sm:$0xff]
    %v1104 = vld [vmem:[#allocation5 + $0x1b88] sm:$0xff]
    %v1105 = vld [vmem:[#allocation5 + $0x1b90] sm:$0xff]
    %v1106 = vld [vmem:[#allocation5 + $0x1b98] sm:$0xff]
    %v1107 = vld [vmem:[#allocation5 + $0x1ba0] sm:$0xff]
    %v1108 = vld [vmem:[#allocation5 + $0x1ba8] sm:$0xff]
    %v1109 = vld [vmem:[#allocation5 + $0x1bb0] sm:$0xff]
    %v1110 = vld [vmem:[#allocation5 + $0x1bb8] sm:$0xff]
    %v1111 = vld [vmem:[#allocation5 + $0x1bc0] sm:$0xff]
    %v1112 = vld [vmem:[#allocation5 + $0x1bc8] sm:$0xff]
    %v1113 = vld [vmem:[#allocation5 + $0x1bd0] sm:$0xff]
    %v1114 = vld [vmem:[#allocation5 + $0x1bd8] sm:$0xff]
    %v1115 = vld [vmem:[#allocation5 + $0x1be0] sm:$0xff]
    %v1116 = vld [vmem:[#allocation5 + $0x1be8] sm:$0xff]
    %v1117 = vld [vmem:[#allocation5 + $0x1bf0] sm:$0xff]
    %v1118 = vld [vmem:[#allocation5 + $0x1bf8] sm:$0xff]
    %v1119 = vld [vmem:[#allocation5 + $0x1c00] sm:$0xff]
    %v1120 = vld [vmem:[#allocation5 + $0x1c08] sm:$0xff]
    %v1121 = vld [vmem:[#allocation5 + $0x1c10] sm:$0xff]
    %v1122 = vld [vmem:[#allocation5 + $0x1c18] sm:$0xff]
    %v1123 = vld [vmem:[#allocation5 + $0x1c20] sm:$0xff]
    %v1124 = vld [vmem:[#allocation5 + $0x1c28] sm:$0xff]
    %v1125 = vld [vmem:[#allocation5 + $0x1c30] sm:$0xff]
    %v1126 = vld [vmem:[#allocation5 + $0x1c38] sm:$0xff]
    %v1127 = vld [vmem:[#allocation5 + $0x1c40] sm:$0xff]
    %v1128 = vld [vmem:[#allocation5 + $0x1c48] sm:$0xff]
    %v1129 = vld [vmem:[#allocation5 + $0x1c50] sm:$0xff]
    %v1130 = vld [vmem:[#allocation5 + $0x1c58] sm:$0xff]
    %v1131 = vld [vmem:[#allocation5 + $0x1c60] sm:$0xff]
    %v1132 = vld [vmem:[#allocation5 + $0x1c68] sm:$0xff]
    %v1133 = vld [vmem:[#allocation5 + $0x1c70] sm:$0xff]
    %v1134 = vld [vmem:[#allocation5 + $0x1c78] sm:$0xff]
    %v1135 = vld [vmem:[#allocation5 + $0x1c80] sm:$0xff]
    %v1136 = vld [vmem:[#allocation5 + $0x1c88] sm:$0xff]
    %v1137 = vld [vmem:[#allocation5 + $0x1c90] sm:$0xff]
    %v1138 = vld [vmem:[#allocation5 + $0x1c98] sm:$0xff]
    %v1139 = vld [vmem:[#allocation5 + $0x1ca0] sm:$0xff]
    %v1140 = vld [vmem:[#allocation5 + $0x1ca8] sm:$0xff]
    %v1141 = vld [vmem:[#allocation5 + $0x1cb0] sm:$0xff]
    %v1142 = vld [vmem:[#allocation5 + $0x1cb8] sm:$0xff]
    %v1143 = vld [vmem:[#allocation5 + $0x1cc0] sm:$0xff]
    %v1144 = vld [vmem:[#allocation5 + $0x1cc8] sm:$0xff]
    %v1145 = vld [vmem:[#allocation5 + $0x1cd0] sm:$0xff]
    %v1146 = vld [vmem:[#allocation5 + $0x1cd8] sm:$0xff]
    %v1147 = vld [vmem:[#allocation5 + $0x1ce0] sm:$0xff]
    %v1148 = vld [vmem:[#allocation5 + $0x1ce8] sm:$0xff]
    %v1149 = vld [vmem:[#allocation5 + $0x1cf0] sm:$0xff]
    %v1150 = vld [vmem:[#allocation5 + $0x1cf8] sm:$0xff]
    %v1151 = vld [vmem:[#allocation5 + $0x1d00] sm:$0xff]
    %v1152 = vld [vmem:[#allocation5 + $0x1d08] sm:$0xff]
    %v1153 = vld [vmem:[#allocation5 + $0x1d10] sm:$0xff]
    %v1154 = vld [vmem:[#allocation5 + $0x1d18] sm:$0xff]
    %v1155 = vld [vmem:[#allocation5 + $0x1d20] sm:$0xff]
    %v1156 = vld [vmem:[#allocation5 + $0x1d28] sm:$0xff]
    %v1157 = vld [vmem:[#allocation5 + $0x1d30] sm:$0xff]
    %v1158 = vld [vmem:[#allocation5 + $0x1d38] sm:$0xff]
    %v1159 = vld [vmem:[#allocation5 + $0x1d40] sm:$0xff]
    %v1160 = vld [vmem:[#allocation5 + $0x1d48] sm:$0xff]
    %v1161 = vld [vmem:[#allocation5 + $0x1d50] sm:$0xff]
    %v1162 = vld [vmem:[#allocation5 + $0x1d58] sm:$0xff]
    %v1163 = vld [vmem:[#allocation5 + $0x1d60] sm:$0xff]
    %v1164 = vld [vmem:[#allocation5 + $0x1d68] sm:$0xff]
    %v1165 = vld [vmem:[#allocation5 + $0x1d70] sm:$0xff]
    %v1166 = vld [vmem:[#allocation5 + $0x1d78] sm:$0xff]
    %v1167 = vld [vmem:[#allocation5 + $0x1d80] sm:$0xff]
    %v1168 = vld [vmem:[#allocation5 + $0x1d88] sm:$0xff]
    %v1169 = vld [vmem:[#allocation5 + $0x1d90] sm:$0xff]
    %v1170 = vld [vmem:[#allocation5 + $0x1d98] sm:$0xff]
    %v1171 = vld [vmem:[#allocation5 + $0x1da0] sm:$0xff]
    %v1172 = vld [vmem:[#allocation5 + $0x1da8] sm:$0xff]
    %v1173 = vld [vmem:[#allocation5 + $0x1db0] sm:$0xff]
    %v1174 = vld [vmem:[#allocation5 + $0x1db8] sm:$0xff]
    %v1175 = vld [vmem:[#allocation5 + $0x1dc0] sm:$0xff]
    %v1176 = vld [vmem:[#allocation5 + $0x1dc8] sm:$0xff]
    %v1177 = vld [vmem:[#allocation5 + $0x1dd0] sm:$0xff]
    %v1178 = vld [vmem:[#allocation5 + $0x1dd8] sm:$0xff]
    %v1179 = vld [vmem:[#allocation5 + $0x1de0] sm:$0xff]
    %v1180 = vld [vmem:[#allocation5 + $0x1de8] sm:$0xff]
    %v1181 = vld [vmem:[#allocation5 + $0x1df0] sm:$0xff]
    %v1182 = vld [vmem:[#allocation5 + $0x1df8] sm:$0xff]
    %v1183 = vld [vmem:[#allocation5 + $0x1e00] sm:$0xff]
    %v1184 = vld [vmem:[#allocation5 + $0x1e08] sm:$0xff]
    %v1185 = vld [vmem:[#allocation5 + $0x1e10] sm:$0xff]
    %v1186 = vld [vmem:[#allocation5 + $0x1e18] sm:$0xff]
    %v1187 = vld [vmem:[#allocation5 + $0x1e20] sm:$0xff]
    %v1188 = vld [vmem:[#allocation5 + $0x1e28] sm:$0xff]
    %v1189 = vld [vmem:[#allocation5 + $0x1e30] sm:$0xff]
    %v1190 = vld [vmem:[#allocation5 + $0x1e38] sm:$0xff]
    %v1191 = vld [vmem:[#allocation5 + $0x1e40] sm:$0xff]
    %v1192 = vld [vmem:[#allocation5 + $0x1e48] sm:$0xff]
    %v1193 = vld [vmem:[#allocation5 + $0x1e50] sm:$0xff]
    %v1194 = vld [vmem:[#allocation5 + $0x1e58] sm:$0xff]
    %v1195 = vld [vmem:[#allocation5 + $0x1e60] sm:$0xff]
    %v1196 = vld [vmem:[#allocation5 + $0x1e68] sm:$0xff]
    %v1197 = vld [vmem:[#allocation5 + $0x1e70] sm:$0xff]
    %v1198 = vld [vmem:[#allocation5 + $0x1e78] sm:$0xff]
    %v1199 = vld [vmem:[#allocation5 + $0x1e80] sm:$0xff]
    %v1200 = vld [vmem:[#allocation5 + $0x1e88] sm:$0xff]
    %v1201 = vld [vmem:[#allocation5 + $0x1e90] sm:$0xff]
    %v1202 = vld [vmem:[#allocation5 + $0x1e98] sm:$0xff]
    %v1203 = vld [vmem:[#allocation5 + $0x1ea0] sm:$0xff]
    %v1204 = vld [vmem:[#allocation5 + $0x1ea8] sm:$0xff]
    %v1205 = vld [vmem:[#allocation5 + $0x1eb0] sm:$0xff]
    %v1206 = vld [vmem:[#allocation5 + $0x1eb8] sm:$0xff]
    %v1207 = vld [vmem:[#allocation5 + $0x1ec0] sm:$0xff]
    %v1208 = vld [vmem:[#allocation5 + $0x1ec8] sm:$0xff]
    %v1209 = vld [vmem:[#allocation5 + $0x1ed0] sm:$0xff]
    %v1210 = vld [vmem:[#allocation5 + $0x1ed8] sm:$0xff]
    %v1211 = vld [vmem:[#allocation5 + $0x1ee0] sm:$0xff]
    %v1212 = vld [vmem:[#allocation5 + $0x1ee8] sm:$0xff]
    %v1213 = vld [vmem:[#allocation5 + $0x1ef0] sm:$0xff]
    %v1214 = vld [vmem:[#allocation5 + $0x1ef8] sm:$0xff]
    %v1215 = vld [vmem:[#allocation5 + $0x1f00] sm:$0xff]
    %v1216 = vld [vmem:[#allocation5 + $0x1f08] sm:$0xff]
    %v1217 = vld [vmem:[#allocation5 + $0x1f10] sm:$0xff]
    %v1218 = vld [vmem:[#allocation5 + $0x1f18] sm:$0xff]
    %v1219 = vld [vmem:[#allocation5 + $0x1f20] sm:$0xff]
    %v1220 = vld [vmem:[#allocation5 + $0x1f28] sm:$0xff]
    %v1221 = vld [vmem:[#allocation5 + $0x1f30] sm:$0xff]
    %v1222 = vld [vmem:[#allocation5 + $0x1f38] sm:$0xff]
    %v1223 = vld [vmem:[#allocation5 + $0x1f40] sm:$0xff]
    %v1224 = vld [vmem:[#allocation5 + $0x1f48] sm:$0xff]
    %v1225 = vld [vmem:[#allocation5 + $0x1f50] sm:$0xff]
    %v1226 = vld [vmem:[#allocation5 + $0x1f58] sm:$0xff]
    %v1227 = vld [vmem:[#allocation5 + $0x1f60] sm:$0xff]
    %v1228 = vld [vmem:[#allocation5 + $0x1f68] sm:$0xff]
    %v1229 = vld [vmem:[#allocation5 + $0x1f70] sm:$0xff]
    %v1230 = vld [vmem:[#allocation5 + $0x1f78] sm:$0xff]
    %v1231 = vld [vmem:[#allocation5 + $0x1f80] sm:$0xff]
    %v1232 = vld [vmem:[#allocation5 + $0x1f88] sm:$0xff]
    %v1233 = vld [vmem:[#allocation5 + $0x1f90] sm:$0xff]
    %v1234 = vld [vmem:[#allocation5 + $0x1f98] sm:$0xff]
    %v1235 = vld [vmem:[#allocation5 + $0x1fa0] sm:$0xff]
    %v1236 = vld [vmem:[#allocation5 + $0x1fa8] sm:$0xff]
    %v1237 = vld [vmem:[#allocation5 + $0x1fb0] sm:$0xff]
    %v1238 = vld [vmem:[#allocation5 + $0x1fb8] sm:$0xff]
    %v1239 = vld [vmem:[#allocation5 + $0x1fc0] sm:$0xff]
    %v1240 = vld [vmem:[#allocation5 + $0x1fc8] sm:$0xff]
    %v1241 = vld [vmem:[#allocation5 + $0x1fd0] sm:$0xff]
    %v1242 = vld [vmem:[#allocation5 + $0x1fd8] sm:$0xff]
    %v1243 = vld [vmem:[#allocation5 + $0x1fe0] sm:$0xff]
    %v1244 = vld [vmem:[#allocation5 + $0x1fe8] sm:$0xff]
    %v1245 = vld [vmem:[#allocation5 + $0x1ff0] sm:$0xff]
    %v1246 = vld [vmem:[#allocation5 + $0x1ff8] sm:$0xff]
    %v1247 = vld [vmem:[#allocation7] sm:$0xff]
    %v1249 = vlaneseq
    %v1250 = vshrl.u32 %v1249, 7
    %v1251 = vsub.s32 0, %v1250
    %v1252 = vrot.slane %v1247, %v1251
    %v1253 = vlaneseq
    %v1254 = vshrl.u32 %v1253, 7
    %v1255 = vsub.s32 1, %v1254
    %v1256 = vrot.slane %v1247, %v1255
    %v1257 = vlaneseq
    %v1258 = vshrl.u32 %v1257, 7
    %v1259 = vsub.s32 2, %v1258
    %v1260 = vrot.slane %v1247, %v1259
    %v1261 = vlaneseq
    %v1262 = vshrl.u32 %v1261, 7
    %v1263 = vsub.s32 3, %v1262
    %v1264 = vrot.slane %v1247, %v1263
    %v1265 = vlaneseq
    %v1266 = vshrl.u32 %v1265, 7
    %v1267 = vsub.s32 4, %v1266
    %v1268 = vrot.slane %v1247, %v1267
    %v1269 = vlaneseq
    %v1270 = vshrl.u32 %v1269, 7
    %v1271 = vsub.s32 5, %v1270
    %v1272 = vrot.slane %v1247, %v1271
    %v1273 = vlaneseq
    %v1274 = vshrl.u32 %v1273, 7
    %v1275 = vsub.s32 6, %v1274
    %v1276 = vrot.slane %v1247, %v1275
    %v1277 = vlaneseq
    %v1278 = vshrl.u32 %v1277, 7
    %v1279 = vsub.s32 7, %v1278
    %v1280 = vrot.slane %v1247, %v1279
    %v2313 = vunpack.c.l.b16 %v223
    %v2314 = vunpack.c.h.b16 %v223
    %v2315 = vunpack.c.l.b16 %v224
    %v2316 = vunpack.c.h.b16 %v224
    %v2317 = vunpack.c.l.b16 %v225
    %v2318 = vunpack.c.h.b16 %v225
    %v2319 = vunpack.c.l.b16 %v226
    %v2320 = vunpack.c.h.b16 %v226
    %v2321 = vunpack.c.l.b16 %v227
    %v2322 = vunpack.c.h.b16 %v227
    %v2323 = vunpack.c.l.b16 %v228
    %v2324 = vunpack.c.h.b16 %v228
    %v2325 = vunpack.c.l.b16 %v229
    %v2326 = vunpack.c.h.b16 %v229
    %v2327 = vunpack.c.l.b16 %v230
    %v2328 = vunpack.c.h.b16 %v230
    %v2329 = vunpack.c.l.b16 %v231
    %v2330 = vunpack.c.h.b16 %v231
    %v2331 = vunpack.c.l.b16 %v232
    %v2332 = vunpack.c.h.b16 %v232
    %v2333 = vunpack.c.l.b16 %v233
    %v2334 = vunpack.c.h.b16 %v233
    %v2335 = vunpack.c.l.b16 %v234
    %v2336 = vunpack.c.h.b16 %v234
    %v2337 = vunpack.c.l.b16 %v235
    %v2338 = vunpack.c.h.b16 %v235
    %v2339 = vunpack.c.l.b16 %v236
    %v2340 = vunpack.c.h.b16 %v236
    %v2341 = vunpack.c.l.b16 %v237
    %v2342 = vunpack.c.h.b16 %v237
    %v2343 = vunpack.c.l.b16 %v238
    %v2344 = vunpack.c.h.b16 %v238
    %v2345 = vunpack.c.l.b16 %v239
    %v2346 = vunpack.c.h.b16 %v239
    %v2347 = vunpack.c.l.b16 %v240
    %v2348 = vunpack.c.h.b16 %v240
    %v2349 = vunpack.c.l.b16 %v241
    %v2350 = vunpack.c.h.b16 %v241
    %v2351 = vunpack.c.l.b16 %v242
    %v2352 = vunpack.c.h.b16 %v242
    %v2353 = vunpack.c.l.b16 %v243
    %v2354 = vunpack.c.h.b16 %v243
    %v2355 = vunpack.c.l.b16 %v244
    %v2356 = vunpack.c.h.b16 %v244
    %v2357 = vunpack.c.l.b16 %v245
    %v2358 = vunpack.c.h.b16 %v245
    %v2359 = vunpack.c.l.b16 %v246
    %v2360 = vunpack.c.h.b16 %v246
    %v2361 = vunpack.c.l.b16 %v247
    %v2362 = vunpack.c.h.b16 %v247
    %v2363 = vunpack.c.l.b16 %v248
    %v2364 = vunpack.c.h.b16 %v248
    %v2365 = vunpack.c.l.b16 %v249
    %v2366 = vunpack.c.h.b16 %v249
    %v2367 = vunpack.c.l.b16 %v250
    %v2368 = vunpack.c.h.b16 %v250
    %v2369 = vunpack.c.l.b16 %v251
    %v2370 = vunpack.c.h.b16 %v251
    %v2371 = vunpack.c.l.b16 %v252
    %v2372 = vunpack.c.h.b16 %v252
    %v2373 = vunpack.c.l.b16 %v253
    %v2374 = vunpack.c.h.b16 %v253
    %v2375 = vunpack.c.l.b16 %v254
    %v2376 = vunpack.c.h.b16 %v254
    %v2377 = vunpack.c.l.b16 %v255
    %v2378 = vunpack.c.h.b16 %v255
    %v2379 = vunpack.c.l.b16 %v256
    %v2380 = vunpack.c.h.b16 %v256
    %v2381 = vunpack.c.l.b16 %v257
    %v2382 = vunpack.c.h.b16 %v257
    %v2383 = vunpack.c.l.b16 %v258
    %v2384 = vunpack.c.h.b16 %v258
    %v2385 = vunpack.c.l.b16 %v259
    %v2386 = vunpack.c.h.b16 %v259
    %v2387 = vunpack.c.l.b16 %v260
    %v2388 = vunpack.c.h.b16 %v260
    %v2389 = vunpack.c.l.b16 %v261
    %v2390 = vunpack.c.h.b16 %v261
    %v2391 = vunpack.c.l.b16 %v262
    %v2392 = vunpack.c.h.b16 %v262
    %v2393 = vunpack.c.l.b16 %v263
    %v2394 = vunpack.c.h.b16 %v263
    %v2395 = vunpack.c.l.b16 %v264
    %v2396 = vunpack.c.h.b16 %v264
    %v2397 = vunpack.c.l.b16 %v265
    %v2398 = vunpack.c.h.b16 %v265
    %v2399 = vunpack.c.l.b16 %v266
    %v2400 = vunpack.c.h.b16 %v266
    %v2401 = vunpack.c.l.b16 %v267
    %v2402 = vunpack.c.h.b16 %v267
    %v2403 = vunpack.c.l.b16 %v268
    %v2404 = vunpack.c.h.b16 %v268
    %v2405 = vunpack.c.l.b16 %v269
    %v2406 = vunpack.c.h.b16 %v269
    %v2407 = vunpack.c.l.b16 %v270
    %v2408 = vunpack.c.h.b16 %v270
    %v2409 = vunpack.c.l.b16 %v271
    %v2410 = vunpack.c.h.b16 %v271
    %v2411 = vunpack.c.l.b16 %v272
    %v2412 = vunpack.c.h.b16 %v272
    %v2413 = vunpack.c.l.b16 %v273
    %v2414 = vunpack.c.h.b16 %v273
    %v2415 = vunpack.c.l.b16 %v274
    %v2416 = vunpack.c.h.b16 %v274
    %v2417 = vunpack.c.l.b16 %v275
    %v2418 = vunpack.c.h.b16 %v275
    %v2419 = vunpack.c.l.b16 %v276
    %v2420 = vunpack.c.h.b16 %v276
    %v2421 = vunpack.c.l.b16 %v277
    %v2422 = vunpack.c.h.b16 %v277
    %v2423 = vunpack.c.l.b16 %v278
    %v2424 = vunpack.c.h.b16 %v278
    %v2425 = vunpack.c.l.b16 %v279
    %v2426 = vunpack.c.h.b16 %v279
    %v2427 = vunpack.c.l.b16 %v280
    %v2428 = vunpack.c.h.b16 %v280
    %v2429 = vunpack.c.l.b16 %v281
    %v2430 = vunpack.c.h.b16 %v281
    %v2431 = vunpack.c.l.b16 %v282
    %v2432 = vunpack.c.h.b16 %v282
    %v2433 = vunpack.c.l.b16 %v283
    %v2434 = vunpack.c.h.b16 %v283
    %v2435 = vunpack.c.l.b16 %v284
    %v2436 = vunpack.c.h.b16 %v284
    %v2437 = vunpack.c.l.b16 %v285
    %v2438 = vunpack.c.h.b16 %v285
    %v2439 = vunpack.c.l.b16 %v286
    %v2440 = vunpack.c.h.b16 %v286
    %v2441 = vunpack.c.l.b16 %v287
    %v2442 = vunpack.c.h.b16 %v287
    %v2443 = vunpack.c.l.b16 %v288
    %v2444 = vunpack.c.h.b16 %v288
    %v2445 = vunpack.c.l.b16 %v289
    %v2446 = vunpack.c.h.b16 %v289
    %v2447 = vunpack.c.l.b16 %v290
    %v2448 = vunpack.c.h.b16 %v290
    %v2449 = vunpack.c.l.b16 %v291
    %v2450 = vunpack.c.h.b16 %v291
    %v2451 = vunpack.c.l.b16 %v292
    %v2452 = vunpack.c.h.b16 %v292
    %v2453 = vunpack.c.l.b16 %v293
    %v2454 = vunpack.c.h.b16 %v293
    %v2455 = vunpack.c.l.b16 %v294
    %v2456 = vunpack.c.h.b16 %v294
    %v2457 = vunpack.c.l.b16 %v295
    %v2458 = vunpack.c.h.b16 %v295
    %v2459 = vunpack.c.l.b16 %v296
    %v2460 = vunpack.c.h.b16 %v296
    %v2461 = vunpack.c.l.b16 %v297
    %v2462 = vunpack.c.h.b16 %v297
    %v2463 = vunpack.c.l.b16 %v298
    %v2464 = vunpack.c.h.b16 %v298
    %v2465 = vunpack.c.l.b16 %v299
    %v2466 = vunpack.c.h.b16 %v299
    %v2467 = vunpack.c.l.b16 %v300
    %v2468 = vunpack.c.h.b16 %v300
    %v2469 = vunpack.c.l.b16 %v301
    %v2470 = vunpack.c.h.b16 %v301
    %v2471 = vunpack.c.l.b16 %v302
    %v2472 = vunpack.c.h.b16 %v302
    %v2473 = vunpack.c.l.b16 %v303
    %v2474 = vunpack.c.h.b16 %v303
    %v2475 = vunpack.c.l.b16 %v304
    %v2476 = vunpack.c.h.b16 %v304
    %v2477 = vunpack.c.l.b16 %v305
    %v2478 = vunpack.c.h.b16 %v305
    %v2479 = vunpack.c.l.b16 %v306
    %v2480 = vunpack.c.h.b16 %v306
    %v2481 = vunpack.c.l.b16 %v307
    %v2482 = vunpack.c.h.b16 %v307
    %v2483 = vunpack.c.l.b16 %v308
    %v2484 = vunpack.c.h.b16 %v308
    %v2485 = vunpack.c.l.b16 %v309
    %v2486 = vunpack.c.h.b16 %v309
    %v2487 = vunpack.c.l.b16 %v310
    %v2488 = vunpack.c.h.b16 %v310
    %v2489 = vunpack.c.l.b16 %v311
    %v2490 = vunpack.c.h.b16 %v311
    %v2491 = vunpack.c.l.b16 %v312
    %v2492 = vunpack.c.h.b16 %v312
    %v2493 = vunpack.c.l.b16 %v313
    %v2494 = vunpack.c.h.b16 %v313
    %v2495 = vunpack.c.l.b16 %v314
    %v2496 = vunpack.c.h.b16 %v314
    %v2497 = vunpack.c.l.b16 %v315
    %v2498 = vunpack.c.h.b16 %v315
    %v2499 = vunpack.c.l.b16 %v316
    %v2500 = vunpack.c.h.b16 %v316
    %v2501 = vunpack.c.l.b16 %v317
    %v2502 = vunpack.c.h.b16 %v317
    %v2503 = vunpack.c.l.b16 %v318
    %v2504 = vunpack.c.h.b16 %v318
    %v2505 = vunpack.c.l.b16 %v319
    %v2506 = vunpack.c.h.b16 %v319
    %v2507 = vunpack.c.l.b16 %v320
    %v2508 = vunpack.c.h.b16 %v320
    %v2509 = vunpack.c.l.b16 %v321
    %v2510 = vunpack.c.h.b16 %v321
    %v2511 = vunpack.c.l.b16 %v322
    %v2512 = vunpack.c.h.b16 %v322
    %v2513 = vunpack.c.l.b16 %v323
    %v2514 = vunpack.c.h.b16 %v323
    %v2515 = vunpack.c.l.b16 %v324
    %v2516 = vunpack.c.h.b16 %v324
    %v2517 = vunpack.c.l.b16 %v325
    %v2518 = vunpack.c.h.b16 %v325
    %v2519 = vunpack.c.l.b16 %v326
    %v2520 = vunpack.c.h.b16 %v326
    %v2521 = vunpack.c.l.b16 %v327
    %v2522 = vunpack.c.h.b16 %v327
    %v2523 = vunpack.c.l.b16 %v328
    %v2524 = vunpack.c.h.b16 %v328
    %v2525 = vunpack.c.l.b16 %v329
    %v2526 = vunpack.c.h.b16 %v329
    %v2527 = vunpack.c.l.b16 %v330
    %v2528 = vunpack.c.h.b16 %v330
    %v2529 = vunpack.c.l.b16 %v331
    %v2530 = vunpack.c.h.b16 %v331
    %v2531 = vunpack.c.l.b16 %v332
    %v2532 = vunpack.c.h.b16 %v332
    %v2533 = vunpack.c.l.b16 %v333
    %v2534 = vunpack.c.h.b16 %v333
    %v2535 = vunpack.c.l.b16 %v334
    %v2536 = vunpack.c.h.b16 %v334
    %v2537 = vunpack.c.l.b16 %v335
    %v2538 = vunpack.c.h.b16 %v335
    %v2539 = vunpack.c.l.b16 %v336
    %v2540 = vunpack.c.h.b16 %v336
    %v2541 = vunpack.c.l.b16 %v337
    %v2542 = vunpack.c.h.b16 %v337
    %v2543 = vunpack.c.l.b16 %v338
    %v2544 = vunpack.c.h.b16 %v338
    %v2545 = vunpack.c.l.b16 %v339
    %v2546 = vunpack.c.h.b16 %v339
    %v2547 = vunpack.c.l.b16 %v340
    %v2548 = vunpack.c.h.b16 %v340
    %v2549 = vunpack.c.l.b16 %v341
    %v2550 = vunpack.c.h.b16 %v341
    %v2551 = vunpack.c.l.b16 %v342
    %v2552 = vunpack.c.h.b16 %v342
    %v2553 = vunpack.c.l.b16 %v343
    %v2554 = vunpack.c.h.b16 %v343
    %v2555 = vunpack.c.l.b16 %v344
    %v2556 = vunpack.c.h.b16 %v344
    %v2557 = vunpack.c.l.b16 %v345
    %v2558 = vunpack.c.h.b16 %v345
    %v2559 = vunpack.c.l.b16 %v346
    %v2560 = vunpack.c.h.b16 %v346
    %v2561 = vunpack.c.l.b16 %v347
    %v2562 = vunpack.c.h.b16 %v347
    %v2563 = vunpack.c.l.b16 %v348
    %v2564 = vunpack.c.h.b16 %v348
    %v2565 = vunpack.c.l.b16 %v349
    %v2566 = vunpack.c.h.b16 %v349
    %v2567 = vunpack.c.l.b16 %v350
    %v2568 = vunpack.c.h.b16 %v350
    %v2569 = vunpack.c.l.b16 %v351
    %v2570 = vunpack.c.h.b16 %v351
    %v2571 = vunpack.c.l.b16 %v352
    %v2572 = vunpack.c.h.b16 %v352
    %v2573 = vunpack.c.l.b16 %v353
    %v2574 = vunpack.c.h.b16 %v353
    %v2575 = vunpack.c.l.b16 %v354
    %v2576 = vunpack.c.h.b16 %v354
    %v2577 = vunpack.c.l.b16 %v355
    %v2578 = vunpack.c.h.b16 %v355
    %v2579 = vunpack.c.l.b16 %v356
    %v2580 = vunpack.c.h.b16 %v356
    %v2581 = vunpack.c.l.b16 %v357
    %v2582 = vunpack.c.h.b16 %v357
    %v2583 = vunpack.c.l.b16 %v358
    %v2584 = vunpack.c.h.b16 %v358
    %v2585 = vunpack.c.l.b16 %v359
    %v2586 = vunpack.c.h.b16 %v359
    %v2587 = vunpack.c.l.b16 %v360
    %v2588 = vunpack.c.h.b16 %v360
    %v2589 = vunpack.c.l.b16 %v361
    %v2590 = vunpack.c.h.b16 %v361
    %v2591 = vunpack.c.l.b16 %v362
    %v2592 = vunpack.c.h.b16 %v362
    %v2593 = vunpack.c.l.b16 %v363
    %v2594 = vunpack.c.h.b16 %v363
    %v2595 = vunpack.c.l.b16 %v364
    %v2596 = vunpack.c.h.b16 %v364
    %v2597 = vunpack.c.l.b16 %v365
    %v2598 = vunpack.c.h.b16 %v365
    %v2599 = vunpack.c.l.b16 %v366
    %v2600 = vunpack.c.h.b16 %v366
    %v2601 = vunpack.c.l.b16 %v367
    %v2602 = vunpack.c.h.b16 %v367
    %v2603 = vunpack.c.l.b16 %v368
    %v2604 = vunpack.c.h.b16 %v368
    %v2605 = vunpack.c.l.b16 %v369
    %v2606 = vunpack.c.h.b16 %v369
    %v2607 = vunpack.c.l.b16 %v370
    %v2608 = vunpack.c.h.b16 %v370
    %v2609 = vunpack.c.l.b16 %v371
    %v2610 = vunpack.c.h.b16 %v371
    %v2611 = vunpack.c.l.b16 %v372
    %v2612 = vunpack.c.h.b16 %v372
    %v2613 = vunpack.c.l.b16 %v373
    %v2614 = vunpack.c.h.b16 %v373
    %v2615 = vunpack.c.l.b16 %v374
    %v2616 = vunpack.c.h.b16 %v374
    %v2617 = vunpack.c.l.b16 %v375
    %v2618 = vunpack.c.h.b16 %v375
    %v2619 = vunpack.c.l.b16 %v376
    %v2620 = vunpack.c.h.b16 %v376
    %v2621 = vunpack.c.l.b16 %v377
    %v2622 = vunpack.c.h.b16 %v377
    %v2623 = vunpack.c.l.b16 %v378
    %v2624 = vunpack.c.h.b16 %v378
    %v2625 = vunpack.c.l.b16 %v379
    %v2626 = vunpack.c.h.b16 %v379
    %v2627 = vunpack.c.l.b16 %v380
    %v2628 = vunpack.c.h.b16 %v380
    %v2629 = vunpack.c.l.b16 %v381
    %v2630 = vunpack.c.h.b16 %v381
    %v2631 = vunpack.c.l.b16 %v382
    %v2632 = vunpack.c.h.b16 %v382
    %v2633 = vunpack.c.l.b16 %v383
    %v2634 = vunpack.c.h.b16 %v383
    %v2635 = vunpack.c.l.b16 %v384
    %v2636 = vunpack.c.h.b16 %v384
    %v2637 = vunpack.c.l.b16 %v385
    %v2638 = vunpack.c.h.b16 %v385
    %v2639 = vunpack.c.l.b16 %v386
    %v2640 = vunpack.c.h.b16 %v386
    %v2641 = vunpack.c.l.b16 %v387
    %v2642 = vunpack.c.h.b16 %v387
    %v2643 = vunpack.c.l.b16 %v388
    %v2644 = vunpack.c.h.b16 %v388
    %v2645 = vunpack.c.l.b16 %v389
    %v2646 = vunpack.c.h.b16 %v389
    %v2647 = vunpack.c.l.b16 %v390
    %v2648 = vunpack.c.h.b16 %v390
    %v2649 = vunpack.c.l.b16 %v391
    %v2650 = vunpack.c.h.b16 %v391
    %v2651 = vunpack.c.l.b16 %v392
    %v2652 = vunpack.c.h.b16 %v392
    %v2653 = vunpack.c.l.b16 %v393
    %v2654 = vunpack.c.h.b16 %v393
    %v2655 = vunpack.c.l.b16 %v394
    %v2656 = vunpack.c.h.b16 %v394
    %v2657 = vunpack.c.l.b16 %v395
    %v2658 = vunpack.c.h.b16 %v395
    %v2659 = vunpack.c.l.b16 %v396
    %v2660 = vunpack.c.h.b16 %v396
    %v2661 = vunpack.c.l.b16 %v397
    %v2662 = vunpack.c.h.b16 %v397
    %v2663 = vunpack.c.l.b16 %v398
    %v2664 = vunpack.c.h.b16 %v398
    %v2665 = vunpack.c.l.b16 %v399
    %v2666 = vunpack.c.h.b16 %v399
    %v2667 = vunpack.c.l.b16 %v400
    %v2668 = vunpack.c.h.b16 %v400
    %v2669 = vunpack.c.l.b16 %v401
    %v2670 = vunpack.c.h.b16 %v401
    %v2671 = vunpack.c.l.b16 %v402
    %v2672 = vunpack.c.h.b16 %v402
    %v2673 = vunpack.c.l.b16 %v403
    %v2674 = vunpack.c.h.b16 %v403
    %v2675 = vunpack.c.l.b16 %v404
    %v2676 = vunpack.c.h.b16 %v404
    %v2677 = vunpack.c.l.b16 %v405
    %v2678 = vunpack.c.h.b16 %v405
    %v2679 = vunpack.c.l.b16 %v406
    %v2680 = vunpack.c.h.b16 %v406
    %v2681 = vunpack.c.l.b16 %v407
    %v2682 = vunpack.c.h.b16 %v407
    %v2683 = vunpack.c.l.b16 %v408
    %v2684 = vunpack.c.h.b16 %v408
    %v2685 = vunpack.c.l.b16 %v409
    %v2686 = vunpack.c.h.b16 %v409
    %v2687 = vunpack.c.l.b16 %v410
    %v2688 = vunpack.c.h.b16 %v410
    %v2689 = vunpack.c.l.b16 %v411
    %v2690 = vunpack.c.h.b16 %v411
    %v2691 = vunpack.c.l.b16 %v412
    %v2692 = vunpack.c.h.b16 %v412
    %v2693 = vunpack.c.l.b16 %v413
    %v2694 = vunpack.c.h.b16 %v413
    %v2695 = vunpack.c.l.b16 %v414
    %v2696 = vunpack.c.h.b16 %v414
    %v2697 = vunpack.c.l.b16 %v415
    %v2698 = vunpack.c.h.b16 %v415
    %v2699 = vunpack.c.l.b16 %v416
    %v2700 = vunpack.c.h.b16 %v416
    %v2701 = vunpack.c.l.b16 %v417
    %v2702 = vunpack.c.h.b16 %v417
    %v2703 = vunpack.c.l.b16 %v418
    %v2704 = vunpack.c.h.b16 %v418
    %v2705 = vunpack.c.l.b16 %v419
    %v2706 = vunpack.c.h.b16 %v419
    %v2707 = vunpack.c.l.b16 %v420
    %v2708 = vunpack.c.h.b16 %v420
    %v2709 = vunpack.c.l.b16 %v421
    %v2710 = vunpack.c.h.b16 %v421
    %v2711 = vunpack.c.l.b16 %v422
    %v2712 = vunpack.c.h.b16 %v422
    %v2713 = vunpack.c.l.b16 %v423
    %v2714 = vunpack.c.h.b16 %v423
    %v2715 = vunpack.c.l.b16 %v424
    %v2716 = vunpack.c.h.b16 %v424
    %v2717 = vunpack.c.l.b16 %v425
    %v2718 = vunpack.c.h.b16 %v425
    %v2719 = vunpack.c.l.b16 %v426
    %v2720 = vunpack.c.h.b16 %v426
    %v2721 = vunpack.c.l.b16 %v427
    %v2722 = vunpack.c.h.b16 %v427
    %v2723 = vunpack.c.l.b16 %v428
    %v2724 = vunpack.c.h.b16 %v428
    %v2725 = vunpack.c.l.b16 %v429
    %v2726 = vunpack.c.h.b16 %v429
    %v2727 = vunpack.c.l.b16 %v430
    %v2728 = vunpack.c.h.b16 %v430
    %v2729 = vunpack.c.l.b16 %v431
    %v2730 = vunpack.c.h.b16 %v431
    %v2731 = vunpack.c.l.b16 %v432
    %v2732 = vunpack.c.h.b16 %v432
    %v2733 = vunpack.c.l.b16 %v433
    %v2734 = vunpack.c.h.b16 %v433
    %v2735 = vunpack.c.l.b16 %v434
    %v2736 = vunpack.c.h.b16 %v434
    %v2737 = vunpack.c.l.b16 %v435
    %v2738 = vunpack.c.h.b16 %v435
    %v2739 = vunpack.c.l.b16 %v436
    %v2740 = vunpack.c.h.b16 %v436
    %v2741 = vunpack.c.l.b16 %v437
    %v2742 = vunpack.c.h.b16 %v437
    %v2743 = vunpack.c.l.b16 %v438
    %v2744 = vunpack.c.h.b16 %v438
    %v2745 = vunpack.c.l.b16 %v439
    %v2746 = vunpack.c.h.b16 %v439
    %v2747 = vunpack.c.l.b16 %v440
    %v2748 = vunpack.c.h.b16 %v440
    %v2749 = vunpack.c.l.b16 %v441
    %v2750 = vunpack.c.h.b16 %v441
    %v2751 = vunpack.c.l.b16 %v442
    %v2752 = vunpack.c.h.b16 %v442
    %v2753 = vunpack.c.l.b16 %v443
    %v2754 = vunpack.c.h.b16 %v443
    %v2755 = vunpack.c.l.b16 %v444
    %v2756 = vunpack.c.h.b16 %v444
    %v2757 = vunpack.c.l.b16 %v445
    %v2758 = vunpack.c.h.b16 %v445
    %v2759 = vunpack.c.l.b16 %v446
    %v2760 = vunpack.c.h.b16 %v446
    %v2761 = vunpack.c.l.b16 %v447
    %v2762 = vunpack.c.h.b16 %v447
    %v2763 = vunpack.c.l.b16 %v448
    %v2764 = vunpack.c.h.b16 %v448
    %v2765 = vunpack.c.l.b16 %v449
    %v2766 = vunpack.c.h.b16 %v449
    %v2767 = vunpack.c.l.b16 %v450
    %v2768 = vunpack.c.h.b16 %v450
    %v2769 = vunpack.c.l.b16 %v451
    %v2770 = vunpack.c.h.b16 %v451
    %v2771 = vunpack.c.l.b16 %v452
    %v2772 = vunpack.c.h.b16 %v452
    %v2773 = vunpack.c.l.b16 %v453
    %v2774 = vunpack.c.h.b16 %v453
    %v2775 = vunpack.c.l.b16 %v454
    %v2776 = vunpack.c.h.b16 %v454
    %v2777 = vunpack.c.l.b16 %v455
    %v2778 = vunpack.c.h.b16 %v455
    %v2779 = vunpack.c.l.b16 %v456
    %v2780 = vunpack.c.h.b16 %v456
    %v2781 = vunpack.c.l.b16 %v457
    %v2782 = vunpack.c.h.b16 %v457
    %v2783 = vunpack.c.l.b16 %v458
    %v2784 = vunpack.c.h.b16 %v458
    %v2785 = vunpack.c.l.b16 %v459
    %v2786 = vunpack.c.h.b16 %v459
    %v2787 = vunpack.c.l.b16 %v460
    %v2788 = vunpack.c.h.b16 %v460
    %v2789 = vunpack.c.l.b16 %v461
    %v2790 = vunpack.c.h.b16 %v461
    %v2791 = vunpack.c.l.b16 %v462
    %v2792 = vunpack.c.h.b16 %v462
    %v2793 = vunpack.c.l.b16 %v463
    %v2794 = vunpack.c.h.b16 %v463
    %v2795 = vunpack.c.l.b16 %v464
    %v2796 = vunpack.c.h.b16 %v464
    %v2797 = vunpack.c.l.b16 %v465
    %v2798 = vunpack.c.h.b16 %v465
    %v2799 = vunpack.c.l.b16 %v466
    %v2800 = vunpack.c.h.b16 %v466
    %v2801 = vunpack.c.l.b16 %v467
    %v2802 = vunpack.c.h.b16 %v467
    %v2803 = vunpack.c.l.b16 %v468
    %v2804 = vunpack.c.h.b16 %v468
    %v2805 = vunpack.c.l.b16 %v469
    %v2806 = vunpack.c.h.b16 %v469
    %v2807 = vunpack.c.l.b16 %v470
    %v2808 = vunpack.c.h.b16 %v470
    %v2809 = vunpack.c.l.b16 %v471
    %v2810 = vunpack.c.h.b16 %v471
    %v2811 = vunpack.c.l.b16 %v472
    %v2812 = vunpack.c.h.b16 %v472
    %v2813 = vunpack.c.l.b16 %v473
    %v2814 = vunpack.c.h.b16 %v473
    %v2815 = vunpack.c.l.b16 %v474
    %v2816 = vunpack.c.h.b16 %v474
    %v2817 = vunpack.c.l.b16 %v475
    %v2818 = vunpack.c.h.b16 %v475
    %v2819 = vunpack.c.l.b16 %v476
    %v2820 = vunpack.c.h.b16 %v476
    %v2821 = vunpack.c.l.b16 %v477
    %v2822 = vunpack.c.h.b16 %v477
    %v2823 = vunpack.c.l.b16 %v478
    %v2824 = vunpack.c.h.b16 %v478
    %v2825 = vunpack.c.l.b16 %v479
    %v2826 = vunpack.c.h.b16 %v479
    %v2827 = vunpack.c.l.b16 %v480
    %v2828 = vunpack.c.h.b16 %v480
    %v2829 = vunpack.c.l.b16 %v481
    %v2830 = vunpack.c.h.b16 %v481
    %v2831 = vunpack.c.l.b16 %v482
    %v2832 = vunpack.c.h.b16 %v482
    %v2833 = vunpack.c.l.b16 %v483
    %v2834 = vunpack.c.h.b16 %v483
    %v2835 = vunpack.c.l.b16 %v484
    %v2836 = vunpack.c.h.b16 %v484
    %v2837 = vunpack.c.l.b16 %v485
    %v2838 = vunpack.c.h.b16 %v485
    %v2839 = vunpack.c.l.b16 %v486
    %v2840 = vunpack.c.h.b16 %v486
    %v2841 = vunpack.c.l.b16 %v487
    %v2842 = vunpack.c.h.b16 %v487
    %v2843 = vunpack.c.l.b16 %v488
    %v2844 = vunpack.c.h.b16 %v488
    %v2845 = vunpack.c.l.b16 %v489
    %v2846 = vunpack.c.h.b16 %v489
    %v2847 = vunpack.c.l.b16 %v490
    %v2848 = vunpack.c.h.b16 %v490
    %v2849 = vunpack.c.l.b16 %v491
    %v2850 = vunpack.c.h.b16 %v491
    %v2851 = vunpack.c.l.b16 %v492
    %v2852 = vunpack.c.h.b16 %v492
    %v2853 = vunpack.c.l.b16 %v493
    %v2854 = vunpack.c.h.b16 %v493
    %v2855 = vunpack.c.l.b16 %v494
    %v2856 = vunpack.c.h.b16 %v494
    %v2857 = vunpack.c.l.b16 %v495
    %v2858 = vunpack.c.h.b16 %v495
    %v2859 = vunpack.c.l.b16 %v496
    %v2860 = vunpack.c.h.b16 %v496
    %v2861 = vunpack.c.l.b16 %v497
    %v2862 = vunpack.c.h.b16 %v497
    %v2863 = vunpack.c.l.b16 %v498
    %v2864 = vunpack.c.h.b16 %v498
    %v2865 = vunpack.c.l.b16 %v499
    %v2866 = vunpack.c.h.b16 %v499
    %v2867 = vunpack.c.l.b16 %v500
    %v2868 = vunpack.c.h.b16 %v500
    %v2869 = vunpack.c.l.b16 %v501
    %v2870 = vunpack.c.h.b16 %v501
    %v2871 = vunpack.c.l.b16 %v502
    %v2872 = vunpack.c.h.b16 %v502
    %v2873 = vunpack.c.l.b16 %v503
    %v2874 = vunpack.c.h.b16 %v503
    %v2875 = vunpack.c.l.b16 %v504
    %v2876 = vunpack.c.h.b16 %v504
    %v2877 = vunpack.c.l.b16 %v505
    %v2878 = vunpack.c.h.b16 %v505
    %v2879 = vunpack.c.l.b16 %v506
    %v2880 = vunpack.c.h.b16 %v506
    %v2881 = vunpack.c.l.b16 %v507
    %v2882 = vunpack.c.h.b16 %v507
    %v2883 = vunpack.c.l.b16 %v508
    %v2884 = vunpack.c.h.b16 %v508
    %v2885 = vunpack.c.l.b16 %v509
    %v2886 = vunpack.c.h.b16 %v509
    %v2887 = vunpack.c.l.b16 %v510
    %v2888 = vunpack.c.h.b16 %v510
    %v2889 = vunpack.c.l.b16 %v511
    %v2890 = vunpack.c.h.b16 %v511
    %v2891 = vunpack.c.l.b16 %v512
    %v2892 = vunpack.c.h.b16 %v512
    %v2893 = vunpack.c.l.b16 %v513
    %v2894 = vunpack.c.h.b16 %v513
    %v2895 = vunpack.c.l.b16 %v514
    %v2896 = vunpack.c.h.b16 %v514
    %v2897 = vunpack.c.l.b16 %v515
    %v2898 = vunpack.c.h.b16 %v515
    %v2899 = vunpack.c.l.b16 %v516
    %v2900 = vunpack.c.h.b16 %v516
    %v2901 = vunpack.c.l.b16 %v517
    %v2902 = vunpack.c.h.b16 %v517
    %v2903 = vunpack.c.l.b16 %v518
    %v2904 = vunpack.c.h.b16 %v518
    %v2905 = vunpack.c.l.b16 %v519
    %v2906 = vunpack.c.h.b16 %v519
    %v2907 = vunpack.c.l.b16 %v520
    %v2908 = vunpack.c.h.b16 %v520
    %v2909 = vunpack.c.l.b16 %v521
    %v2910 = vunpack.c.h.b16 %v521
    %v2911 = vunpack.c.l.b16 %v522
    %v2912 = vunpack.c.h.b16 %v522
    %v2913 = vunpack.c.l.b16 %v523
    %v2914 = vunpack.c.h.b16 %v523
    %v2915 = vunpack.c.l.b16 %v524
    %v2916 = vunpack.c.h.b16 %v524
    %v2917 = vunpack.c.l.b16 %v525
    %v2918 = vunpack.c.h.b16 %v525
    %v2919 = vunpack.c.l.b16 %v526
    %v2920 = vunpack.c.h.b16 %v526
    %v2921 = vunpack.c.l.b16 %v527
    %v2922 = vunpack.c.h.b16 %v527
    %v2923 = vunpack.c.l.b16 %v528
    %v2924 = vunpack.c.h.b16 %v528
    %v2925 = vunpack.c.l.b16 %v529
    %v2926 = vunpack.c.h.b16 %v529
    %v2927 = vunpack.c.l.b16 %v530
    %v2928 = vunpack.c.h.b16 %v530
    %v2929 = vunpack.c.l.b16 %v531
    %v2930 = vunpack.c.h.b16 %v531
    %v2931 = vunpack.c.l.b16 %v532
    %v2932 = vunpack.c.h.b16 %v532
    %v2933 = vunpack.c.l.b16 %v533
    %v2934 = vunpack.c.h.b16 %v533
    %v2935 = vunpack.c.l.b16 %v534
    %v2936 = vunpack.c.h.b16 %v534
    %v2937 = vunpack.c.l.b16 %v535
    %v2938 = vunpack.c.h.b16 %v535
    %v2939 = vunpack.c.l.b16 %v536
    %v2940 = vunpack.c.h.b16 %v536
    %v2941 = vunpack.c.l.b16 %v537
    %v2942 = vunpack.c.h.b16 %v537
    %v2943 = vunpack.c.l.b16 %v538
    %v2944 = vunpack.c.h.b16 %v538
    %v2945 = vunpack.c.l.b16 %v539
    %v2946 = vunpack.c.h.b16 %v539
    %v2947 = vunpack.c.l.b16 %v540
    %v2948 = vunpack.c.h.b16 %v540
    %v2949 = vunpack.c.l.b16 %v541
    %v2950 = vunpack.c.h.b16 %v541
    %v2951 = vunpack.c.l.b16 %v542
    %v2952 = vunpack.c.h.b16 %v542
    %v2953 = vunpack.c.l.b16 %v543
    %v2954 = vunpack.c.h.b16 %v543
    %v2955 = vunpack.c.l.b16 %v544
    %v2956 = vunpack.c.h.b16 %v544
    %v2957 = vunpack.c.l.b16 %v545
    %v2958 = vunpack.c.h.b16 %v545
    %v2959 = vunpack.c.l.b16 %v546
    %v2960 = vunpack.c.h.b16 %v546
    %v2961 = vunpack.c.l.b16 %v547
    %v2962 = vunpack.c.h.b16 %v547
    %v2963 = vunpack.c.l.b16 %v548
    %v2964 = vunpack.c.h.b16 %v548
    %v2965 = vunpack.c.l.b16 %v549
    %v2966 = vunpack.c.h.b16 %v549
    %v2967 = vunpack.c.l.b16 %v550
    %v2968 = vunpack.c.h.b16 %v550
    %v2969 = vunpack.c.l.b16 %v551
    %v2970 = vunpack.c.h.b16 %v551
    %v2971 = vunpack.c.l.b16 %v552
    %v2972 = vunpack.c.h.b16 %v552
    %v2973 = vunpack.c.l.b16 %v553
    %v2974 = vunpack.c.h.b16 %v553
    %v2975 = vunpack.c.l.b16 %v554
    %v2976 = vunpack.c.h.b16 %v554
    %v2977 = vunpack.c.l.b16 %v555
    %v2978 = vunpack.c.h.b16 %v555
    %v2979 = vunpack.c.l.b16 %v556
    %v2980 = vunpack.c.h.b16 %v556
    %v2981 = vunpack.c.l.b16 %v557
    %v2982 = vunpack.c.h.b16 %v557
    %v2983 = vunpack.c.l.b16 %v558
    %v2984 = vunpack.c.h.b16 %v558
    %v2985 = vunpack.c.l.b16 %v559
    %v2986 = vunpack.c.h.b16 %v559
    %v2987 = vunpack.c.l.b16 %v560
    %v2988 = vunpack.c.h.b16 %v560
    %v2989 = vunpack.c.l.b16 %v561
    %v2990 = vunpack.c.h.b16 %v561
    %v2991 = vunpack.c.l.b16 %v562
    %v2992 = vunpack.c.h.b16 %v562
    %v2993 = vunpack.c.l.b16 %v563
    %v2994 = vunpack.c.h.b16 %v563
    %v2995 = vunpack.c.l.b16 %v564
    %v2996 = vunpack.c.h.b16 %v564
    %v2997 = vunpack.c.l.b16 %v565
    %v2998 = vunpack.c.h.b16 %v565
    %v2999 = vunpack.c.l.b16 %v566
    %v3000 = vunpack.c.h.b16 %v566
    %v3001 = vunpack.c.l.b16 %v567
    %v3002 = vunpack.c.h.b16 %v567
    %v3003 = vunpack.c.l.b16 %v568
    %v3004 = vunpack.c.h.b16 %v568
    %v3005 = vunpack.c.l.b16 %v569
    %v3006 = vunpack.c.h.b16 %v569
    %v3007 = vunpack.c.l.b16 %v570
    %v3008 = vunpack.c.h.b16 %v570
    %v3009 = vunpack.c.l.b16 %v571
    %v3010 = vunpack.c.h.b16 %v571
    %v3011 = vunpack.c.l.b16 %v572
    %v3012 = vunpack.c.h.b16 %v572
    %v3013 = vunpack.c.l.b16 %v573
    %v3014 = vunpack.c.h.b16 %v573
    %v3015 = vunpack.c.l.b16 %v574
    %v3016 = vunpack.c.h.b16 %v574
    %v3017 = vunpack.c.l.b16 %v575
    %v3018 = vunpack.c.h.b16 %v575
    %v3019 = vunpack.c.l.b16 %v576
    %v3020 = vunpack.c.h.b16 %v576
    %v3021 = vunpack.c.l.b16 %v577
    %v3022 = vunpack.c.h.b16 %v577
    %v3023 = vunpack.c.l.b16 %v578
    %v3024 = vunpack.c.h.b16 %v578
    %v3025 = vunpack.c.l.b16 %v579
    %v3026 = vunpack.c.h.b16 %v579
    %v3027 = vunpack.c.l.b16 %v580
    %v3028 = vunpack.c.h.b16 %v580
    %v3029 = vunpack.c.l.b16 %v581
    %v3030 = vunpack.c.h.b16 %v581
    %v3031 = vunpack.c.l.b16 %v582
    %v3032 = vunpack.c.h.b16 %v582
    %v3033 = vunpack.c.l.b16 %v583
    %v3034 = vunpack.c.h.b16 %v583
    %v3035 = vunpack.c.l.b16 %v584
    %v3036 = vunpack.c.h.b16 %v584
    %v3037 = vunpack.c.l.b16 %v585
    %v3038 = vunpack.c.h.b16 %v585
    %v3039 = vunpack.c.l.b16 %v586
    %v3040 = vunpack.c.h.b16 %v586
    %v3041 = vunpack.c.l.b16 %v587
    %v3042 = vunpack.c.h.b16 %v587
    %v3043 = vunpack.c.l.b16 %v588
    %v3044 = vunpack.c.h.b16 %v588
    %v3045 = vunpack.c.l.b16 %v589
    %v3046 = vunpack.c.h.b16 %v589
    %v3047 = vunpack.c.l.b16 %v590
    %v3048 = vunpack.c.h.b16 %v590
    %v3049 = vunpack.c.l.b16 %v591
    %v3050 = vunpack.c.h.b16 %v591
    %v3051 = vunpack.c.l.b16 %v592
    %v3052 = vunpack.c.h.b16 %v592
    %v3053 = vunpack.c.l.b16 %v593
    %v3054 = vunpack.c.h.b16 %v593
    %v3055 = vunpack.c.l.b16 %v594
    %v3056 = vunpack.c.h.b16 %v594
    %v3057 = vunpack.c.l.b16 %v595
    %v3058 = vunpack.c.h.b16 %v595
    %v3059 = vunpack.c.l.b16 %v596
    %v3060 = vunpack.c.h.b16 %v596
    %v3061 = vunpack.c.l.b16 %v597
    %v3062 = vunpack.c.h.b16 %v597
    %v3063 = vunpack.c.l.b16 %v598
    %v3064 = vunpack.c.h.b16 %v598
    %v3065 = vunpack.c.l.b16 %v599
    %v3066 = vunpack.c.h.b16 %v599
    %v3067 = vunpack.c.l.b16 %v600
    %v3068 = vunpack.c.h.b16 %v600
    %v3069 = vunpack.c.l.b16 %v601
    %v3070 = vunpack.c.h.b16 %v601
    %v3071 = vunpack.c.l.b16 %v602
    %v3072 = vunpack.c.h.b16 %v602
    %v3073 = vunpack.c.l.b16 %v603
    %v3074 = vunpack.c.h.b16 %v603
    %v3075 = vunpack.c.l.b16 %v604
    %v3076 = vunpack.c.h.b16 %v604
    %v3077 = vunpack.c.l.b16 %v605
    %v3078 = vunpack.c.h.b16 %v605
    %v3079 = vunpack.c.l.b16 %v606
    %v3080 = vunpack.c.h.b16 %v606
    %v3081 = vunpack.c.l.b16 %v607
    %v3082 = vunpack.c.h.b16 %v607
    %v3083 = vunpack.c.l.b16 %v608
    %v3084 = vunpack.c.h.b16 %v608
    %v3085 = vunpack.c.l.b16 %v609
    %v3086 = vunpack.c.h.b16 %v609
    %v3087 = vunpack.c.l.b16 %v610
    %v3088 = vunpack.c.h.b16 %v610
    %v3089 = vunpack.c.l.b16 %v611
    %v3090 = vunpack.c.h.b16 %v611
    %v3091 = vunpack.c.l.b16 %v612
    %v3092 = vunpack.c.h.b16 %v612
    %v3093 = vunpack.c.l.b16 %v613
    %v3094 = vunpack.c.h.b16 %v613
    %v3095 = vunpack.c.l.b16 %v614
    %v3096 = vunpack.c.h.b16 %v614
    %v3097 = vunpack.c.l.b16 %v615
    %v3098 = vunpack.c.h.b16 %v615
    %v3099 = vunpack.c.l.b16 %v616
    %v3100 = vunpack.c.h.b16 %v616
    %v3101 = vunpack.c.l.b16 %v617
    %v3102 = vunpack.c.h.b16 %v617
    %v3103 = vunpack.c.l.b16 %v618
    %v3104 = vunpack.c.h.b16 %v618
    %v3105 = vunpack.c.l.b16 %v619
    %v3106 = vunpack.c.h.b16 %v619
    %v3107 = vunpack.c.l.b16 %v620
    %v3108 = vunpack.c.h.b16 %v620
    %v3109 = vunpack.c.l.b16 %v621
    %v3110 = vunpack.c.h.b16 %v621
    %v3111 = vunpack.c.l.b16 %v622
    %v3112 = vunpack.c.h.b16 %v622
    %v3113 = vunpack.c.l.b16 %v623
    %v3114 = vunpack.c.h.b16 %v623
    %v3115 = vunpack.c.l.b16 %v624
    %v3116 = vunpack.c.h.b16 %v624
    %v3117 = vunpack.c.l.b16 %v625
    %v3118 = vunpack.c.h.b16 %v625
    %v3119 = vunpack.c.l.b16 %v626
    %v3120 = vunpack.c.h.b16 %v626
    %v3121 = vunpack.c.l.b16 %v627
    %v3122 = vunpack.c.h.b16 %v627
    %v3123 = vunpack.c.l.b16 %v628
    %v3124 = vunpack.c.h.b16 %v628
    %v3125 = vunpack.c.l.b16 %v629
    %v3126 = vunpack.c.h.b16 %v629
    %v3127 = vunpack.c.l.b16 %v630
    %v3128 = vunpack.c.h.b16 %v630
    %v3129 = vunpack.c.l.b16 %v631
    %v3130 = vunpack.c.h.b16 %v631
    %v3131 = vunpack.c.l.b16 %v632
    %v3132 = vunpack.c.h.b16 %v632
    %v3133 = vunpack.c.l.b16 %v633
    %v3134 = vunpack.c.h.b16 %v633
    %v3135 = vunpack.c.l.b16 %v634
    %v3136 = vunpack.c.h.b16 %v634
    %v3137 = vunpack.c.l.b16 %v635
    %v3138 = vunpack.c.h.b16 %v635
    %v3139 = vunpack.c.l.b16 %v636
    %v3140 = vunpack.c.h.b16 %v636
    %v3141 = vunpack.c.l.b16 %v637
    %v3142 = vunpack.c.h.b16 %v637
    %v3143 = vunpack.c.l.b16 %v638
    %v3144 = vunpack.c.h.b16 %v638
    %v3145 = vunpack.c.l.b16 %v639
    %v3146 = vunpack.c.h.b16 %v639
    %v3147 = vunpack.c.l.b16 %v640
    %v3148 = vunpack.c.h.b16 %v640
    %v3149 = vunpack.c.l.b16 %v641
    %v3150 = vunpack.c.h.b16 %v641
    %v3151 = vunpack.c.l.b16 %v642
    %v3152 = vunpack.c.h.b16 %v642
    %v3153 = vunpack.c.l.b16 %v643
    %v3154 = vunpack.c.h.b16 %v643
    %v3155 = vunpack.c.l.b16 %v644
    %v3156 = vunpack.c.h.b16 %v644
    %v3157 = vunpack.c.l.b16 %v645
    %v3158 = vunpack.c.h.b16 %v645
    %v3159 = vunpack.c.l.b16 %v646
    %v3160 = vunpack.c.h.b16 %v646
    %v3161 = vunpack.c.l.b16 %v647
    %v3162 = vunpack.c.h.b16 %v647
    %v3163 = vunpack.c.l.b16 %v648
    %v3164 = vunpack.c.h.b16 %v648
    %v3165 = vunpack.c.l.b16 %v649
    %v3166 = vunpack.c.h.b16 %v649
    %v3167 = vunpack.c.l.b16 %v650
    %v3168 = vunpack.c.h.b16 %v650
    %v3169 = vunpack.c.l.b16 %v651
    %v3170 = vunpack.c.h.b16 %v651
    %v3171 = vunpack.c.l.b16 %v652
    %v3172 = vunpack.c.h.b16 %v652
    %v3173 = vunpack.c.l.b16 %v653
    %v3174 = vunpack.c.h.b16 %v653
    %v3175 = vunpack.c.l.b16 %v654
    %v3176 = vunpack.c.h.b16 %v654
    %v3177 = vunpack.c.l.b16 %v655
    %v3178 = vunpack.c.h.b16 %v655
    %v3179 = vunpack.c.l.b16 %v656
    %v3180 = vunpack.c.h.b16 %v656
    %v3181 = vunpack.c.l.b16 %v657
    %v3182 = vunpack.c.h.b16 %v657
    %v3183 = vunpack.c.l.b16 %v658
    %v3184 = vunpack.c.h.b16 %v658
    %v3185 = vunpack.c.l.b16 %v659
    %v3186 = vunpack.c.h.b16 %v659
    %v3187 = vunpack.c.l.b16 %v660
    %v3188 = vunpack.c.h.b16 %v660
    %v3189 = vunpack.c.l.b16 %v661
    %v3190 = vunpack.c.h.b16 %v661
    %v3191 = vunpack.c.l.b16 %v662
    %v3192 = vunpack.c.h.b16 %v662
    %v3193 = vunpack.c.l.b16 %v663
    %v3194 = vunpack.c.h.b16 %v663
    %v3195 = vunpack.c.l.b16 %v664
    %v3196 = vunpack.c.h.b16 %v664
    %v3197 = vunpack.c.l.b16 %v665
    %v3198 = vunpack.c.h.b16 %v665
    %v3199 = vunpack.c.l.b16 %v666
    %v3200 = vunpack.c.h.b16 %v666
    %v3201 = vunpack.c.l.b16 %v667
    %v3202 = vunpack.c.h.b16 %v667
    %v3203 = vunpack.c.l.b16 %v668
    %v3204 = vunpack.c.h.b16 %v668
    %v3205 = vunpack.c.l.b16 %v669
    %v3206 = vunpack.c.h.b16 %v669
    %v3207 = vunpack.c.l.b16 %v670
    %v3208 = vunpack.c.h.b16 %v670
    %v3209 = vunpack.c.l.b16 %v671
    %v3210 = vunpack.c.h.b16 %v671
    %v3211 = vunpack.c.l.b16 %v672
    %v3212 = vunpack.c.h.b16 %v672
    %v3213 = vunpack.c.l.b16 %v673
    %v3214 = vunpack.c.h.b16 %v673
    %v3215 = vunpack.c.l.b16 %v674
    %v3216 = vunpack.c.h.b16 %v674
    %v3217 = vunpack.c.l.b16 %v675
    %v3218 = vunpack.c.h.b16 %v675
    %v3219 = vunpack.c.l.b16 %v676
    %v3220 = vunpack.c.h.b16 %v676
    %v3221 = vunpack.c.l.b16 %v677
    %v3222 = vunpack.c.h.b16 %v677
    %v3223 = vunpack.c.l.b16 %v678
    %v3224 = vunpack.c.h.b16 %v678
    %v3225 = vunpack.c.l.b16 %v679
    %v3226 = vunpack.c.h.b16 %v679
    %v3227 = vunpack.c.l.b16 %v680
    %v3228 = vunpack.c.h.b16 %v680
    %v3229 = vunpack.c.l.b16 %v681
    %v3230 = vunpack.c.h.b16 %v681
    %v3231 = vunpack.c.l.b16 %v682
    %v3232 = vunpack.c.h.b16 %v682
    %v3233 = vunpack.c.l.b16 %v683
    %v3234 = vunpack.c.h.b16 %v683
    %v3235 = vunpack.c.l.b16 %v684
    %v3236 = vunpack.c.h.b16 %v684
    %v3237 = vunpack.c.l.b16 %v685
    %v3238 = vunpack.c.h.b16 %v685
    %v3239 = vunpack.c.l.b16 %v686
    %v3240 = vunpack.c.h.b16 %v686
    %v3241 = vunpack.c.l.b16 %v687
    %v3242 = vunpack.c.h.b16 %v687
    %v3243 = vunpack.c.l.b16 %v688
    %v3244 = vunpack.c.h.b16 %v688
    %v3245 = vunpack.c.l.b16 %v689
    %v3246 = vunpack.c.h.b16 %v689
    %v3247 = vunpack.c.l.b16 %v690
    %v3248 = vunpack.c.h.b16 %v690
    %v3249 = vunpack.c.l.b16 %v691
    %v3250 = vunpack.c.h.b16 %v691
    %v3251 = vunpack.c.l.b16 %v692
    %v3252 = vunpack.c.h.b16 %v692
    %v3253 = vunpack.c.l.b16 %v693
    %v3254 = vunpack.c.h.b16 %v693
    %v3255 = vunpack.c.l.b16 %v694
    %v3256 = vunpack.c.h.b16 %v694
    %v3257 = vunpack.c.l.b16 %v695
    %v3258 = vunpack.c.h.b16 %v695
    %v3259 = vunpack.c.l.b16 %v696
    %v3260 = vunpack.c.h.b16 %v696
    %v3261 = vunpack.c.l.b16 %v697
    %v3262 = vunpack.c.h.b16 %v697
    %v3263 = vunpack.c.l.b16 %v698
    %v3264 = vunpack.c.h.b16 %v698
    %v3265 = vunpack.c.l.b16 %v699
    %v3266 = vunpack.c.h.b16 %v699
    %v3267 = vunpack.c.l.b16 %v700
    %v3268 = vunpack.c.h.b16 %v700
    %v3269 = vunpack.c.l.b16 %v701
    %v3270 = vunpack.c.h.b16 %v701
    %v3271 = vunpack.c.l.b16 %v702
    %v3272 = vunpack.c.h.b16 %v702
    %v3273 = vunpack.c.l.b16 %v703
    %v3274 = vunpack.c.h.b16 %v703
    %v3275 = vunpack.c.l.b16 %v704
    %v3276 = vunpack.c.h.b16 %v704
    %v3277 = vunpack.c.l.b16 %v705
    %v3278 = vunpack.c.h.b16 %v705
    %v3279 = vunpack.c.l.b16 %v706
    %v3280 = vunpack.c.h.b16 %v706
    %v3281 = vunpack.c.l.b16 %v707
    %v3282 = vunpack.c.h.b16 %v707
    %v3283 = vunpack.c.l.b16 %v708
    %v3284 = vunpack.c.h.b16 %v708
    %v3285 = vunpack.c.l.b16 %v709
    %v3286 = vunpack.c.h.b16 %v709
    %v3287 = vunpack.c.l.b16 %v710
    %v3288 = vunpack.c.h.b16 %v710
    %v3289 = vunpack.c.l.b16 %v711
    %v3290 = vunpack.c.h.b16 %v711
    %v3291 = vunpack.c.l.b16 %v712
    %v3292 = vunpack.c.h.b16 %v712
    %v3293 = vunpack.c.l.b16 %v713
    %v3294 = vunpack.c.h.b16 %v713
    %v3295 = vunpack.c.l.b16 %v714
    %v3296 = vunpack.c.h.b16 %v714
    %v3297 = vunpack.c.l.b16 %v715
    %v3298 = vunpack.c.h.b16 %v715
    %v3299 = vunpack.c.l.b16 %v716
    %v3300 = vunpack.c.h.b16 %v716
    %v3301 = vunpack.c.l.b16 %v717
    %v3302 = vunpack.c.h.b16 %v717
    %v3303 = vunpack.c.l.b16 %v718
    %v3304 = vunpack.c.h.b16 %v718
    %v3305 = vunpack.c.l.b16 %v719
    %v3306 = vunpack.c.h.b16 %v719
    %v3307 = vunpack.c.l.b16 %v720
    %v3308 = vunpack.c.h.b16 %v720
    %v3309 = vunpack.c.l.b16 %v721
    %v3310 = vunpack.c.h.b16 %v721
    %v3311 = vunpack.c.l.b16 %v722
    %v3312 = vunpack.c.h.b16 %v722
    %v3313 = vunpack.c.l.b16 %v723
    %v3314 = vunpack.c.h.b16 %v723
    %v3315 = vunpack.c.l.b16 %v724
    %v3316 = vunpack.c.h.b16 %v724
    %v3317 = vunpack.c.l.b16 %v725
    %v3318 = vunpack.c.h.b16 %v725
    %v3319 = vunpack.c.l.b16 %v726
    %v3320 = vunpack.c.h.b16 %v726
    %v3321 = vunpack.c.l.b16 %v727
    %v3322 = vunpack.c.h.b16 %v727
    %v3323 = vunpack.c.l.b16 %v728
    %v3324 = vunpack.c.h.b16 %v728
    %v3325 = vunpack.c.l.b16 %v729
    %v3326 = vunpack.c.h.b16 %v729
    %v3327 = vunpack.c.l.b16 %v730
    %v3328 = vunpack.c.h.b16 %v730
    %v3329 = vunpack.c.l.b16 %v731
    %v3330 = vunpack.c.h.b16 %v731
    %v3331 = vunpack.c.l.b16 %v732
    %v3332 = vunpack.c.h.b16 %v732
    %v3333 = vunpack.c.l.b16 %v733
    %v3334 = vunpack.c.h.b16 %v733
    %v3335 = vunpack.c.l.b16 %v734
    %v3336 = vunpack.c.h.b16 %v734
    %v3337 = vunpack.c.l.b16 %v735
    %v3338 = vunpack.c.h.b16 %v735
    %v3339 = vunpack.c.l.b16 %v736
    %v3340 = vunpack.c.h.b16 %v736
    %v3341 = vunpack.c.l.b16 %v737
    %v3342 = vunpack.c.h.b16 %v737
    %v3343 = vunpack.c.l.b16 %v738
    %v3344 = vunpack.c.h.b16 %v738
    %v3345 = vunpack.c.l.b16 %v739
    %v3346 = vunpack.c.h.b16 %v739
    %v3347 = vunpack.c.l.b16 %v740
    %v3348 = vunpack.c.h.b16 %v740
    %v3349 = vunpack.c.l.b16 %v741
    %v3350 = vunpack.c.h.b16 %v741
    %v3351 = vunpack.c.l.b16 %v742
    %v3352 = vunpack.c.h.b16 %v742
    %v3353 = vunpack.c.l.b16 %v743
    %v3354 = vunpack.c.h.b16 %v743
    %v3355 = vunpack.c.l.b16 %v744
    %v3356 = vunpack.c.h.b16 %v744
    %v3357 = vunpack.c.l.b16 %v745
    %v3358 = vunpack.c.h.b16 %v745
    %v3359 = vunpack.c.l.b16 %v746
    %v3360 = vunpack.c.h.b16 %v746
    %v3361 = vunpack.c.l.b16 %v747
    %v3362 = vunpack.c.h.b16 %v747
    %v3363 = vunpack.c.l.b16 %v748
    %v3364 = vunpack.c.h.b16 %v748
    %v3365 = vunpack.c.l.b16 %v749
    %v3366 = vunpack.c.h.b16 %v749
    %v3367 = vunpack.c.l.b16 %v750
    %v3368 = vunpack.c.h.b16 %v750
    %v3369 = vunpack.c.l.b16 %v751
    %v3370 = vunpack.c.h.b16 %v751
    %v3371 = vunpack.c.l.b16 %v752
    %v3372 = vunpack.c.h.b16 %v752
    %v3373 = vunpack.c.l.b16 %v753
    %v3374 = vunpack.c.h.b16 %v753
    %v3375 = vunpack.c.l.b16 %v754
    %v3376 = vunpack.c.h.b16 %v754
    %v3377 = vunpack.c.l.b16 %v755
    %v3378 = vunpack.c.h.b16 %v755
    %v3379 = vunpack.c.l.b16 %v756
    %v3380 = vunpack.c.h.b16 %v756
    %v3381 = vunpack.c.l.b16 %v757
    %v3382 = vunpack.c.h.b16 %v757
    %v3383 = vunpack.c.l.b16 %v758
    %v3384 = vunpack.c.h.b16 %v758
    %v3385 = vunpack.c.l.b16 %v759
    %v3386 = vunpack.c.h.b16 %v759
    %v3387 = vunpack.c.l.b16 %v760
    %v3388 = vunpack.c.h.b16 %v760
    %v3389 = vunpack.c.l.b16 %v761
    %v3390 = vunpack.c.h.b16 %v761
    %v3391 = vunpack.c.l.b16 %v762
    %v3392 = vunpack.c.h.b16 %v762
    %v3393 = vunpack.c.l.b16 %v763
    %v3394 = vunpack.c.h.b16 %v763
    %v3395 = vunpack.c.l.b16 %v764
    %v3396 = vunpack.c.h.b16 %v764
    %v3397 = vunpack.c.l.b16 %v765
    %v3398 = vunpack.c.h.b16 %v765
    %v3399 = vunpack.c.l.b16 %v766
    %v3400 = vunpack.c.h.b16 %v766
    %v3401 = vunpack.c.l.b16 %v767
    %v3402 = vunpack.c.h.b16 %v767
    %v3403 = vunpack.c.l.b16 %v768
    %v3404 = vunpack.c.h.b16 %v768
    %v3405 = vunpack.c.l.b16 %v769
    %v3406 = vunpack.c.h.b16 %v769
    %v3407 = vunpack.c.l.b16 %v770
    %v3408 = vunpack.c.h.b16 %v770
    %v3409 = vunpack.c.l.b16 %v771
    %v3410 = vunpack.c.h.b16 %v771
    %v3411 = vunpack.c.l.b16 %v772
    %v3412 = vunpack.c.h.b16 %v772
    %v3413 = vunpack.c.l.b16 %v773
    %v3414 = vunpack.c.h.b16 %v773
    %v3415 = vunpack.c.l.b16 %v774
    %v3416 = vunpack.c.h.b16 %v774
    %v3417 = vunpack.c.l.b16 %v775
    %v3418 = vunpack.c.h.b16 %v775
    %v3419 = vunpack.c.l.b16 %v776
    %v3420 = vunpack.c.h.b16 %v776
    %v3421 = vunpack.c.l.b16 %v777
    %v3422 = vunpack.c.h.b16 %v777
    %v3423 = vunpack.c.l.b16 %v778
    %v3424 = vunpack.c.h.b16 %v778
    %v3425 = vunpack.c.l.b16 %v779
    %v3426 = vunpack.c.h.b16 %v779
    %v3427 = vunpack.c.l.b16 %v780
    %v3428 = vunpack.c.h.b16 %v780
    %v3429 = vunpack.c.l.b16 %v781
    %v3430 = vunpack.c.h.b16 %v781
    %v3431 = vunpack.c.l.b16 %v782
    %v3432 = vunpack.c.h.b16 %v782
    %v3433 = vunpack.c.l.b16 %v783
    %v3434 = vunpack.c.h.b16 %v783
    %v3435 = vunpack.c.l.b16 %v784
    %v3436 = vunpack.c.h.b16 %v784
    %v3437 = vunpack.c.l.b16 %v785
    %v3438 = vunpack.c.h.b16 %v785
    %v3439 = vunpack.c.l.b16 %v786
    %v3440 = vunpack.c.h.b16 %v786
    %v3441 = vunpack.c.l.b16 %v787
    %v3442 = vunpack.c.h.b16 %v787
    %v3443 = vunpack.c.l.b16 %v788
    %v3444 = vunpack.c.h.b16 %v788
    %v3445 = vunpack.c.l.b16 %v789
    %v3446 = vunpack.c.h.b16 %v789
    %v3447 = vunpack.c.l.b16 %v790
    %v3448 = vunpack.c.h.b16 %v790
    %v3449 = vunpack.c.l.b16 %v791
    %v3450 = vunpack.c.h.b16 %v791
    %v3451 = vunpack.c.l.b16 %v792
    %v3452 = vunpack.c.h.b16 %v792
    %v3453 = vunpack.c.l.b16 %v793
    %v3454 = vunpack.c.h.b16 %v793
    %v3455 = vunpack.c.l.b16 %v794
    %v3456 = vunpack.c.h.b16 %v794
    %v3457 = vunpack.c.l.b16 %v795
    %v3458 = vunpack.c.h.b16 %v795
    %v3459 = vunpack.c.l.b16 %v796
    %v3460 = vunpack.c.h.b16 %v796
    %v3461 = vunpack.c.l.b16 %v797
    %v3462 = vunpack.c.h.b16 %v797
    %v3463 = vunpack.c.l.b16 %v798
    %v3464 = vunpack.c.h.b16 %v798
    %v3465 = vunpack.c.l.b16 %v799
    %v3466 = vunpack.c.h.b16 %v799
    %v3467 = vunpack.c.l.b16 %v800
    %v3468 = vunpack.c.h.b16 %v800
    %v3469 = vunpack.c.l.b16 %v801
    %v3470 = vunpack.c.h.b16 %v801
    %v3471 = vunpack.c.l.b16 %v802
    %v3472 = vunpack.c.h.b16 %v802
    %v3473 = vunpack.c.l.b16 %v803
    %v3474 = vunpack.c.h.b16 %v803
    %v3475 = vunpack.c.l.b16 %v804
    %v3476 = vunpack.c.h.b16 %v804
    %v3477 = vunpack.c.l.b16 %v805
    %v3478 = vunpack.c.h.b16 %v805
    %v3479 = vunpack.c.l.b16 %v806
    %v3480 = vunpack.c.h.b16 %v806
    %v3481 = vunpack.c.l.b16 %v807
    %v3482 = vunpack.c.h.b16 %v807
    %v3483 = vunpack.c.l.b16 %v808
    %v3484 = vunpack.c.h.b16 %v808
    %v3485 = vunpack.c.l.b16 %v809
    %v3486 = vunpack.c.h.b16 %v809
    %v3487 = vunpack.c.l.b16 %v810
    %v3488 = vunpack.c.h.b16 %v810
    %v3489 = vunpack.c.l.b16 %v811
    %v3490 = vunpack.c.h.b16 %v811
    %v3491 = vunpack.c.l.b16 %v812
    %v3492 = vunpack.c.h.b16 %v812
    %v3493 = vunpack.c.l.b16 %v813
    %v3494 = vunpack.c.h.b16 %v813
    %v3495 = vunpack.c.l.b16 %v814
    %v3496 = vunpack.c.h.b16 %v814
    %v3497 = vunpack.c.l.b16 %v815
    %v3498 = vunpack.c.h.b16 %v815
    %v3499 = vunpack.c.l.b16 %v816
    %v3500 = vunpack.c.h.b16 %v816
    %v3501 = vunpack.c.l.b16 %v817
    %v3502 = vunpack.c.h.b16 %v817
    %v3503 = vunpack.c.l.b16 %v818
    %v3504 = vunpack.c.h.b16 %v818
    %v3505 = vunpack.c.l.b16 %v819
    %v3506 = vunpack.c.h.b16 %v819
    %v3507 = vunpack.c.l.b16 %v820
    %v3508 = vunpack.c.h.b16 %v820
    %v3509 = vunpack.c.l.b16 %v821
    %v3510 = vunpack.c.h.b16 %v821
    %v3511 = vunpack.c.l.b16 %v822
    %v3512 = vunpack.c.h.b16 %v822
    %v3513 = vunpack.c.l.b16 %v823
    %v3514 = vunpack.c.h.b16 %v823
    %v3515 = vunpack.c.l.b16 %v824
    %v3516 = vunpack.c.h.b16 %v824
    %v3517 = vunpack.c.l.b16 %v825
    %v3518 = vunpack.c.h.b16 %v825
    %v3519 = vunpack.c.l.b16 %v826
    %v3520 = vunpack.c.h.b16 %v826
    %v3521 = vunpack.c.l.b16 %v827
    %v3522 = vunpack.c.h.b16 %v827
    %v3523 = vunpack.c.l.b16 %v828
    %v3524 = vunpack.c.h.b16 %v828
    %v3525 = vunpack.c.l.b16 %v829
    %v3526 = vunpack.c.h.b16 %v829
    %v3527 = vunpack.c.l.b16 %v830
    %v3528 = vunpack.c.h.b16 %v830
    %v3529 = vunpack.c.l.b16 %v831
    %v3530 = vunpack.c.h.b16 %v831
    %v3531 = vunpack.c.l.b16 %v832
    %v3532 = vunpack.c.h.b16 %v832
    %v3533 = vunpack.c.l.b16 %v833
    %v3534 = vunpack.c.h.b16 %v833
    %v3535 = vunpack.c.l.b16 %v834
    %v3536 = vunpack.c.h.b16 %v834
    %v3537 = vunpack.c.l.b16 %v835
    %v3538 = vunpack.c.h.b16 %v835
    %v3539 = vunpack.c.l.b16 %v836
    %v3540 = vunpack.c.h.b16 %v836
    %v3541 = vunpack.c.l.b16 %v837
    %v3542 = vunpack.c.h.b16 %v837
    %v3543 = vunpack.c.l.b16 %v838
    %v3544 = vunpack.c.h.b16 %v838
    %v3545 = vunpack.c.l.b16 %v839
    %v3546 = vunpack.c.h.b16 %v839
    %v3547 = vunpack.c.l.b16 %v840
    %v3548 = vunpack.c.h.b16 %v840
    %v3549 = vunpack.c.l.b16 %v841
    %v3550 = vunpack.c.h.b16 %v841
    %v3551 = vunpack.c.l.b16 %v842
    %v3552 = vunpack.c.h.b16 %v842
    %v3553 = vunpack.c.l.b16 %v843
    %v3554 = vunpack.c.h.b16 %v843
    %v3555 = vunpack.c.l.b16 %v844
    %v3556 = vunpack.c.h.b16 %v844
    %v3557 = vunpack.c.l.b16 %v845
    %v3558 = vunpack.c.h.b16 %v845
    %v3559 = vunpack.c.l.b16 %v846
    %v3560 = vunpack.c.h.b16 %v846
    %v3561 = vunpack.c.l.b16 %v847
    %v3562 = vunpack.c.h.b16 %v847
    %v3563 = vunpack.c.l.b16 %v848
    %v3564 = vunpack.c.h.b16 %v848
    %v3565 = vunpack.c.l.b16 %v849
    %v3566 = vunpack.c.h.b16 %v849
    %v3567 = vunpack.c.l.b16 %v850
    %v3568 = vunpack.c.h.b16 %v850
    %v3569 = vunpack.c.l.b16 %v851
    %v3570 = vunpack.c.h.b16 %v851
    %v3571 = vunpack.c.l.b16 %v852
    %v3572 = vunpack.c.h.b16 %v852
    %v3573 = vunpack.c.l.b16 %v853
    %v3574 = vunpack.c.h.b16 %v853
    %v3575 = vunpack.c.l.b16 %v854
    %v3576 = vunpack.c.h.b16 %v854
    %v3577 = vunpack.c.l.b16 %v855
    %v3578 = vunpack.c.h.b16 %v855
    %v3579 = vunpack.c.l.b16 %v856
    %v3580 = vunpack.c.h.b16 %v856
    %v3581 = vunpack.c.l.b16 %v857
    %v3582 = vunpack.c.h.b16 %v857
    %v3583 = vunpack.c.l.b16 %v858
    %v3584 = vunpack.c.h.b16 %v858
    %v3585 = vunpack.c.l.b16 %v859
    %v3586 = vunpack.c.h.b16 %v859
    %v3587 = vunpack.c.l.b16 %v860
    %v3588 = vunpack.c.h.b16 %v860
    %v3589 = vunpack.c.l.b16 %v861
    %v3590 = vunpack.c.h.b16 %v861
    %v3591 = vunpack.c.l.b16 %v862
    %v3592 = vunpack.c.h.b16 %v862
    %v3593 = vunpack.c.l.b16 %v863
    %v3594 = vunpack.c.h.b16 %v863
    %v3595 = vunpack.c.l.b16 %v864
    %v3596 = vunpack.c.h.b16 %v864
    %v3597 = vunpack.c.l.b16 %v865
    %v3598 = vunpack.c.h.b16 %v865
    %v3599 = vunpack.c.l.b16 %v866
    %v3600 = vunpack.c.h.b16 %v866
    %v3601 = vunpack.c.l.b16 %v867
    %v3602 = vunpack.c.h.b16 %v867
    %v3603 = vunpack.c.l.b16 %v868
    %v3604 = vunpack.c.h.b16 %v868
    %v3605 = vunpack.c.l.b16 %v869
    %v3606 = vunpack.c.h.b16 %v869
    %v3607 = vunpack.c.l.b16 %v870
    %v3608 = vunpack.c.h.b16 %v870
    %v3609 = vunpack.c.l.b16 %v871
    %v3610 = vunpack.c.h.b16 %v871
    %v3611 = vunpack.c.l.b16 %v872
    %v3612 = vunpack.c.h.b16 %v872
    %v3613 = vunpack.c.l.b16 %v873
    %v3614 = vunpack.c.h.b16 %v873
    %v3615 = vunpack.c.l.b16 %v874
    %v3616 = vunpack.c.h.b16 %v874
    %v3617 = vunpack.c.l.b16 %v875
    %v3618 = vunpack.c.h.b16 %v875
    %v3619 = vunpack.c.l.b16 %v876
    %v3620 = vunpack.c.h.b16 %v876
    %v3621 = vunpack.c.l.b16 %v877
    %v3622 = vunpack.c.h.b16 %v877
    %v3623 = vunpack.c.l.b16 %v878
    %v3624 = vunpack.c.h.b16 %v878
    %v3625 = vunpack.c.l.b16 %v879
    %v3626 = vunpack.c.h.b16 %v879
    %v3627 = vunpack.c.l.b16 %v880
    %v3628 = vunpack.c.h.b16 %v880
    %v3629 = vunpack.c.l.b16 %v881
    %v3630 = vunpack.c.h.b16 %v881
    %v3631 = vunpack.c.l.b16 %v882
    %v3632 = vunpack.c.h.b16 %v882
    %v3633 = vunpack.c.l.b16 %v883
    %v3634 = vunpack.c.h.b16 %v883
    %v3635 = vunpack.c.l.b16 %v884
    %v3636 = vunpack.c.h.b16 %v884
    %v3637 = vunpack.c.l.b16 %v885
    %v3638 = vunpack.c.h.b16 %v885
    %v3639 = vunpack.c.l.b16 %v886
    %v3640 = vunpack.c.h.b16 %v886
    %v3641 = vunpack.c.l.b16 %v887
    %v3642 = vunpack.c.h.b16 %v887
    %v3643 = vunpack.c.l.b16 %v888
    %v3644 = vunpack.c.h.b16 %v888
    %v3645 = vunpack.c.l.b16 %v889
    %v3646 = vunpack.c.h.b16 %v889
    %v3647 = vunpack.c.l.b16 %v890
    %v3648 = vunpack.c.h.b16 %v890
    %v3649 = vunpack.c.l.b16 %v891
    %v3650 = vunpack.c.h.b16 %v891
    %v3651 = vunpack.c.l.b16 %v892
    %v3652 = vunpack.c.h.b16 %v892
    %v3653 = vunpack.c.l.b16 %v893
    %v3654 = vunpack.c.h.b16 %v893
    %v3655 = vunpack.c.l.b16 %v894
    %v3656 = vunpack.c.h.b16 %v894
    %v3657 = vunpack.c.l.b16 %v895
    %v3658 = vunpack.c.h.b16 %v895
    %v3659 = vunpack.c.l.b16 %v896
    %v3660 = vunpack.c.h.b16 %v896
    %v3661 = vunpack.c.l.b16 %v897
    %v3662 = vunpack.c.h.b16 %v897
    %v3663 = vunpack.c.l.b16 %v898
    %v3664 = vunpack.c.h.b16 %v898
    %v3665 = vunpack.c.l.b16 %v899
    %v3666 = vunpack.c.h.b16 %v899
    %v3667 = vunpack.c.l.b16 %v900
    %v3668 = vunpack.c.h.b16 %v900
    %v3669 = vunpack.c.l.b16 %v901
    %v3670 = vunpack.c.h.b16 %v901
    %v3671 = vunpack.c.l.b16 %v902
    %v3672 = vunpack.c.h.b16 %v902
    %v3673 = vunpack.c.l.b16 %v903
    %v3674 = vunpack.c.h.b16 %v903
    %v3675 = vunpack.c.l.b16 %v904
    %v3676 = vunpack.c.h.b16 %v904
    %v3677 = vunpack.c.l.b16 %v905
    %v3678 = vunpack.c.h.b16 %v905
    %v3679 = vunpack.c.l.b16 %v906
    %v3680 = vunpack.c.h.b16 %v906
    %v3681 = vunpack.c.l.b16 %v907
    %v3682 = vunpack.c.h.b16 %v907
    %v3683 = vunpack.c.l.b16 %v908
    %v3684 = vunpack.c.h.b16 %v908
    %v3685 = vunpack.c.l.b16 %v909
    %v3686 = vunpack.c.h.b16 %v909
    %v3687 = vunpack.c.l.b16 %v910
    %v3688 = vunpack.c.h.b16 %v910
    %v3689 = vunpack.c.l.b16 %v911
    %v3690 = vunpack.c.h.b16 %v911
    %v3691 = vunpack.c.l.b16 %v912
    %v3692 = vunpack.c.h.b16 %v912
    %v3693 = vunpack.c.l.b16 %v913
    %v3694 = vunpack.c.h.b16 %v913
    %v3695 = vunpack.c.l.b16 %v914
    %v3696 = vunpack.c.h.b16 %v914
    %v3697 = vunpack.c.l.b16 %v915
    %v3698 = vunpack.c.h.b16 %v915
    %v3699 = vunpack.c.l.b16 %v916
    %v3700 = vunpack.c.h.b16 %v916
    %v3701 = vunpack.c.l.b16 %v917
    %v3702 = vunpack.c.h.b16 %v917
    %v3703 = vunpack.c.l.b16 %v918
    %v3704 = vunpack.c.h.b16 %v918
    %v3705 = vunpack.c.l.b16 %v919
    %v3706 = vunpack.c.h.b16 %v919
    %v3707 = vunpack.c.l.b16 %v920
    %v3708 = vunpack.c.h.b16 %v920
    %v3709 = vunpack.c.l.b16 %v921
    %v3710 = vunpack.c.h.b16 %v921
    %v3711 = vunpack.c.l.b16 %v922
    %v3712 = vunpack.c.h.b16 %v922
    %v3713 = vunpack.c.l.b16 %v923
    %v3714 = vunpack.c.h.b16 %v923
    %v3715 = vunpack.c.l.b16 %v924
    %v3716 = vunpack.c.h.b16 %v924
    %v3717 = vunpack.c.l.b16 %v925
    %v3718 = vunpack.c.h.b16 %v925
    %v3719 = vunpack.c.l.b16 %v926
    %v3720 = vunpack.c.h.b16 %v926
    %v3721 = vunpack.c.l.b16 %v927
    %v3722 = vunpack.c.h.b16 %v927
    %v3723 = vunpack.c.l.b16 %v928
    %v3724 = vunpack.c.h.b16 %v928
    %v3725 = vunpack.c.l.b16 %v929
    %v3726 = vunpack.c.h.b16 %v929
    %v3727 = vunpack.c.l.b16 %v930
    %v3728 = vunpack.c.h.b16 %v930
    %v3729 = vunpack.c.l.b16 %v931
    %v3730 = vunpack.c.h.b16 %v931
    %v3731 = vunpack.c.l.b16 %v932
    %v3732 = vunpack.c.h.b16 %v932
    %v3733 = vunpack.c.l.b16 %v933
    %v3734 = vunpack.c.h.b16 %v933
    %v3735 = vunpack.c.l.b16 %v934
    %v3736 = vunpack.c.h.b16 %v934
    %v3737 = vunpack.c.l.b16 %v935
    %v3738 = vunpack.c.h.b16 %v935
    %v3739 = vunpack.c.l.b16 %v936
    %v3740 = vunpack.c.h.b16 %v936
    %v3741 = vunpack.c.l.b16 %v937
    %v3742 = vunpack.c.h.b16 %v937
    %v3743 = vunpack.c.l.b16 %v938
    %v3744 = vunpack.c.h.b16 %v938
    %v3745 = vunpack.c.l.b16 %v939
    %v3746 = vunpack.c.h.b16 %v939
    %v3747 = vunpack.c.l.b16 %v940
    %v3748 = vunpack.c.h.b16 %v940
    %v3749 = vunpack.c.l.b16 %v941
    %v3750 = vunpack.c.h.b16 %v941
    %v3751 = vunpack.c.l.b16 %v942
    %v3752 = vunpack.c.h.b16 %v942
    %v3753 = vunpack.c.l.b16 %v943
    %v3754 = vunpack.c.h.b16 %v943
    %v3755 = vunpack.c.l.b16 %v944
    %v3756 = vunpack.c.h.b16 %v944
    %v3757 = vunpack.c.l.b16 %v945
    %v3758 = vunpack.c.h.b16 %v945
    %v3759 = vunpack.c.l.b16 %v946
    %v3760 = vunpack.c.h.b16 %v946
    %v3761 = vunpack.c.l.b16 %v947
    %v3762 = vunpack.c.h.b16 %v947
    %v3763 = vunpack.c.l.b16 %v948
    %v3764 = vunpack.c.h.b16 %v948
    %v3765 = vunpack.c.l.b16 %v949
    %v3766 = vunpack.c.h.b16 %v949
    %v3767 = vunpack.c.l.b16 %v950
    %v3768 = vunpack.c.h.b16 %v950
    %v3769 = vunpack.c.l.b16 %v951
    %v3770 = vunpack.c.h.b16 %v951
    %v3771 = vunpack.c.l.b16 %v952
    %v3772 = vunpack.c.h.b16 %v952
    %v3773 = vunpack.c.l.b16 %v953
    %v3774 = vunpack.c.h.b16 %v953
    %v3775 = vunpack.c.l.b16 %v954
    %v3776 = vunpack.c.h.b16 %v954
    %v3777 = vunpack.c.l.b16 %v955
    %v3778 = vunpack.c.h.b16 %v955
    %v3779 = vunpack.c.l.b16 %v956
    %v3780 = vunpack.c.h.b16 %v956
    %v3781 = vunpack.c.l.b16 %v957
    %v3782 = vunpack.c.h.b16 %v957
    %v3783 = vunpack.c.l.b16 %v958
    %v3784 = vunpack.c.h.b16 %v958
    %v3785 = vunpack.c.l.b16 %v959
    %v3786 = vunpack.c.h.b16 %v959
    %v3787 = vunpack.c.l.b16 %v960
    %v3788 = vunpack.c.h.b16 %v960
    %v3789 = vunpack.c.l.b16 %v961
    %v3790 = vunpack.c.h.b16 %v961
    %v3791 = vunpack.c.l.b16 %v962
    %v3792 = vunpack.c.h.b16 %v962
    %v3793 = vunpack.c.l.b16 %v963
    %v3794 = vunpack.c.h.b16 %v963
    %v3795 = vunpack.c.l.b16 %v964
    %v3796 = vunpack.c.h.b16 %v964
    %v3797 = vunpack.c.l.b16 %v965
    %v3798 = vunpack.c.h.b16 %v965
    %v3799 = vunpack.c.l.b16 %v966
    %v3800 = vunpack.c.h.b16 %v966
    %v3801 = vunpack.c.l.b16 %v967
    %v3802 = vunpack.c.h.b16 %v967
    %v3803 = vunpack.c.l.b16 %v968
    %v3804 = vunpack.c.h.b16 %v968
    %v3805 = vunpack.c.l.b16 %v969
    %v3806 = vunpack.c.h.b16 %v969
    %v3807 = vunpack.c.l.b16 %v970
    %v3808 = vunpack.c.h.b16 %v970
    %v3809 = vunpack.c.l.b16 %v971
    %v3810 = vunpack.c.h.b16 %v971
    %v3811 = vunpack.c.l.b16 %v972
    %v3812 = vunpack.c.h.b16 %v972
    %v3813 = vunpack.c.l.b16 %v973
    %v3814 = vunpack.c.h.b16 %v973
    %v3815 = vunpack.c.l.b16 %v974
    %v3816 = vunpack.c.h.b16 %v974
    %v3817 = vunpack.c.l.b16 %v975
    %v3818 = vunpack.c.h.b16 %v975
    %v3819 = vunpack.c.l.b16 %v976
    %v3820 = vunpack.c.h.b16 %v976
    %v3821 = vunpack.c.l.b16 %v977
    %v3822 = vunpack.c.h.b16 %v977
    %v3823 = vunpack.c.l.b16 %v978
    %v3824 = vunpack.c.h.b16 %v978
    %v3825 = vunpack.c.l.b16 %v979
    %v3826 = vunpack.c.h.b16 %v979
    %v3827 = vunpack.c.l.b16 %v980
    %v3828 = vunpack.c.h.b16 %v980
    %v3829 = vunpack.c.l.b16 %v981
    %v3830 = vunpack.c.h.b16 %v981
    %v3831 = vunpack.c.l.b16 %v982
    %v3832 = vunpack.c.h.b16 %v982
    %v3833 = vunpack.c.l.b16 %v983
    %v3834 = vunpack.c.h.b16 %v983
    %v3835 = vunpack.c.l.b16 %v984
    %v3836 = vunpack.c.h.b16 %v984
    %v3837 = vunpack.c.l.b16 %v985
    %v3838 = vunpack.c.h.b16 %v985
    %v3839 = vunpack.c.l.b16 %v986
    %v3840 = vunpack.c.h.b16 %v986
    %v3841 = vunpack.c.l.b16 %v987
    %v3842 = vunpack.c.h.b16 %v987
    %v3843 = vunpack.c.l.b16 %v988
    %v3844 = vunpack.c.h.b16 %v988
    %v3845 = vunpack.c.l.b16 %v989
    %v3846 = vunpack.c.h.b16 %v989
    %v3847 = vunpack.c.l.b16 %v990
    %v3848 = vunpack.c.h.b16 %v990
    %v3849 = vunpack.c.l.b16 %v991
    %v3850 = vunpack.c.h.b16 %v991
    %v3851 = vunpack.c.l.b16 %v992
    %v3852 = vunpack.c.h.b16 %v992
    %v3853 = vunpack.c.l.b16 %v993
    %v3854 = vunpack.c.h.b16 %v993
    %v3855 = vunpack.c.l.b16 %v994
    %v3856 = vunpack.c.h.b16 %v994
    %v3857 = vunpack.c.l.b16 %v995
    %v3858 = vunpack.c.h.b16 %v995
    %v3859 = vunpack.c.l.b16 %v996
    %v3860 = vunpack.c.h.b16 %v996
    %v3861 = vunpack.c.l.b16 %v997
    %v3862 = vunpack.c.h.b16 %v997
    %v3863 = vunpack.c.l.b16 %v998
    %v3864 = vunpack.c.h.b16 %v998
    %v3865 = vunpack.c.l.b16 %v999
    %v3866 = vunpack.c.h.b16 %v999
    %v3867 = vunpack.c.l.b16 %v1000
    %v3868 = vunpack.c.h.b16 %v1000
    %v3869 = vunpack.c.l.b16 %v1001
    %v3870 = vunpack.c.h.b16 %v1001
    %v3871 = vunpack.c.l.b16 %v1002
    %v3872 = vunpack.c.h.b16 %v1002
    %v3873 = vunpack.c.l.b16 %v1003
    %v3874 = vunpack.c.h.b16 %v1003
    %v3875 = vunpack.c.l.b16 %v1004
    %v3876 = vunpack.c.h.b16 %v1004
    %v3877 = vunpack.c.l.b16 %v1005
    %v3878 = vunpack.c.h.b16 %v1005
    %v3879 = vunpack.c.l.b16 %v1006
    %v3880 = vunpack.c.h.b16 %v1006
    %v3881 = vunpack.c.l.b16 %v1007
    %v3882 = vunpack.c.h.b16 %v1007
    %v3883 = vunpack.c.l.b16 %v1008
    %v3884 = vunpack.c.h.b16 %v1008
    %v3885 = vunpack.c.l.b16 %v1009
    %v3886 = vunpack.c.h.b16 %v1009
    %v3887 = vunpack.c.l.b16 %v1010
    %v3888 = vunpack.c.h.b16 %v1010
    %v3889 = vunpack.c.l.b16 %v1011
    %v3890 = vunpack.c.h.b16 %v1011
    %v3891 = vunpack.c.l.b16 %v1012
    %v3892 = vunpack.c.h.b16 %v1012
    %v3893 = vunpack.c.l.b16 %v1013
    %v3894 = vunpack.c.h.b16 %v1013
    %v3895 = vunpack.c.l.b16 %v1014
    %v3896 = vunpack.c.h.b16 %v1014
    %v3897 = vunpack.c.l.b16 %v1015
    %v3898 = vunpack.c.h.b16 %v1015
    %v3899 = vunpack.c.l.b16 %v1016
    %v3900 = vunpack.c.h.b16 %v1016
    %v3901 = vunpack.c.l.b16 %v1017
    %v3902 = vunpack.c.h.b16 %v1017
    %v3903 = vunpack.c.l.b16 %v1018
    %v3904 = vunpack.c.h.b16 %v1018
    %v3905 = vunpack.c.l.b16 %v1019
    %v3906 = vunpack.c.h.b16 %v1019
    %v3907 = vunpack.c.l.b16 %v1020
    %v3908 = vunpack.c.h.b16 %v1020
    %v3909 = vunpack.c.l.b16 %v1021
    %v3910 = vunpack.c.h.b16 %v1021
    %v3911 = vunpack.c.l.b16 %v1022
    %v3912 = vunpack.c.h.b16 %v1022
    %v3913 = vunpack.c.l.b16 %v1023
    %v3914 = vunpack.c.h.b16 %v1023
    %v3915 = vunpack.c.l.b16 %v1024
    %v3916 = vunpack.c.h.b16 %v1024
    %v3917 = vunpack.c.l.b16 %v1025
    %v3918 = vunpack.c.h.b16 %v1025
    %v3919 = vunpack.c.l.b16 %v1026
    %v3920 = vunpack.c.h.b16 %v1026
    %v3921 = vunpack.c.l.b16 %v1027
    %v3922 = vunpack.c.h.b16 %v1027
    %v3923 = vunpack.c.l.b16 %v1028
    %v3924 = vunpack.c.h.b16 %v1028
    %v3925 = vunpack.c.l.b16 %v1029
    %v3926 = vunpack.c.h.b16 %v1029
    %v3927 = vunpack.c.l.b16 %v1030
    %v3928 = vunpack.c.h.b16 %v1030
    %v3929 = vunpack.c.l.b16 %v1031
    %v3930 = vunpack.c.h.b16 %v1031
    %v3931 = vunpack.c.l.b16 %v1032
    %v3932 = vunpack.c.h.b16 %v1032
    %v3933 = vunpack.c.l.b16 %v1033
    %v3934 = vunpack.c.h.b16 %v1033
    %v3935 = vunpack.c.l.b16 %v1034
    %v3936 = vunpack.c.h.b16 %v1034
    %v3937 = vunpack.c.l.b16 %v1035
    %v3938 = vunpack.c.h.b16 %v1035
    %v3939 = vunpack.c.l.b16 %v1036
    %v3940 = vunpack.c.h.b16 %v1036
    %v3941 = vunpack.c.l.b16 %v1037
    %v3942 = vunpack.c.h.b16 %v1037
    %v3943 = vunpack.c.l.b16 %v1038
    %v3944 = vunpack.c.h.b16 %v1038
    %v3945 = vunpack.c.l.b16 %v1039
    %v3946 = vunpack.c.h.b16 %v1039
    %v3947 = vunpack.c.l.b16 %v1040
    %v3948 = vunpack.c.h.b16 %v1040
    %v3949 = vunpack.c.l.b16 %v1041
    %v3950 = vunpack.c.h.b16 %v1041
    %v3951 = vunpack.c.l.b16 %v1042
    %v3952 = vunpack.c.h.b16 %v1042
    %v3953 = vunpack.c.l.b16 %v1043
    %v3954 = vunpack.c.h.b16 %v1043
    %v3955 = vunpack.c.l.b16 %v1044
    %v3956 = vunpack.c.h.b16 %v1044
    %v3957 = vunpack.c.l.b16 %v1045
    %v3958 = vunpack.c.h.b16 %v1045
    %v3959 = vunpack.c.l.b16 %v1046
    %v3960 = vunpack.c.h.b16 %v1046
    %v3961 = vunpack.c.l.b16 %v1047
    %v3962 = vunpack.c.h.b16 %v1047
    %v3963 = vunpack.c.l.b16 %v1048
    %v3964 = vunpack.c.h.b16 %v1048
    %v3965 = vunpack.c.l.b16 %v1049
    %v3966 = vunpack.c.h.b16 %v1049
    %v3967 = vunpack.c.l.b16 %v1050
    %v3968 = vunpack.c.h.b16 %v1050
    %v3969 = vunpack.c.l.b16 %v1051
    %v3970 = vunpack.c.h.b16 %v1051
    %v3971 = vunpack.c.l.b16 %v1052
    %v3972 = vunpack.c.h.b16 %v1052
    %v3973 = vunpack.c.l.b16 %v1053
    %v3974 = vunpack.c.h.b16 %v1053
    %v3975 = vunpack.c.l.b16 %v1054
    %v3976 = vunpack.c.h.b16 %v1054
    %v3977 = vunpack.c.l.b16 %v1055
    %v3978 = vunpack.c.h.b16 %v1055
    %v3979 = vunpack.c.l.b16 %v1056
    %v3980 = vunpack.c.h.b16 %v1056
    %v3981 = vunpack.c.l.b16 %v1057
    %v3982 = vunpack.c.h.b16 %v1057
    %v3983 = vunpack.c.l.b16 %v1058
    %v3984 = vunpack.c.h.b16 %v1058
    %v3985 = vunpack.c.l.b16 %v1059
    %v3986 = vunpack.c.h.b16 %v1059
    %v3987 = vunpack.c.l.b16 %v1060
    %v3988 = vunpack.c.h.b16 %v1060
    %v3989 = vunpack.c.l.b16 %v1061
    %v3990 = vunpack.c.h.b16 %v1061
    %v3991 = vunpack.c.l.b16 %v1062
    %v3992 = vunpack.c.h.b16 %v1062
    %v3993 = vunpack.c.l.b16 %v1063
    %v3994 = vunpack.c.h.b16 %v1063
    %v3995 = vunpack.c.l.b16 %v1064
    %v3996 = vunpack.c.h.b16 %v1064
    %v3997 = vunpack.c.l.b16 %v1065
    %v3998 = vunpack.c.h.b16 %v1065
    %v3999 = vunpack.c.l.b16 %v1066
    %v4000 = vunpack.c.h.b16 %v1066
    %v4001 = vunpack.c.l.b16 %v1067
    %v4002 = vunpack.c.h.b16 %v1067
    %v4003 = vunpack.c.l.b16 %v1068
    %v4004 = vunpack.c.h.b16 %v1068
    %v4005 = vunpack.c.l.b16 %v1069
    %v4006 = vunpack.c.h.b16 %v1069
    %v4007 = vunpack.c.l.b16 %v1070
    %v4008 = vunpack.c.h.b16 %v1070
    %v4009 = vunpack.c.l.b16 %v1071
    %v4010 = vunpack.c.h.b16 %v1071
    %v4011 = vunpack.c.l.b16 %v1072
    %v4012 = vunpack.c.h.b16 %v1072
    %v4013 = vunpack.c.l.b16 %v1073
    %v4014 = vunpack.c.h.b16 %v1073
    %v4015 = vunpack.c.l.b16 %v1074
    %v4016 = vunpack.c.h.b16 %v1074
    %v4017 = vunpack.c.l.b16 %v1075
    %v4018 = vunpack.c.h.b16 %v1075
    %v4019 = vunpack.c.l.b16 %v1076
    %v4020 = vunpack.c.h.b16 %v1076
    %v4021 = vunpack.c.l.b16 %v1077
    %v4022 = vunpack.c.h.b16 %v1077
    %v4023 = vunpack.c.l.b16 %v1078
    %v4024 = vunpack.c.h.b16 %v1078
    %v4025 = vunpack.c.l.b16 %v1079
    %v4026 = vunpack.c.h.b16 %v1079
    %v4027 = vunpack.c.l.b16 %v1080
    %v4028 = vunpack.c.h.b16 %v1080
    %v4029 = vunpack.c.l.b16 %v1081
    %v4030 = vunpack.c.h.b16 %v1081
    %v4031 = vunpack.c.l.b16 %v1082
    %v4032 = vunpack.c.h.b16 %v1082
    %v4033 = vunpack.c.l.b16 %v1083
    %v4034 = vunpack.c.h.b16 %v1083
    %v4035 = vunpack.c.l.b16 %v1084
    %v4036 = vunpack.c.h.b16 %v1084
    %v4037 = vunpack.c.l.b16 %v1085
    %v4038 = vunpack.c.h.b16 %v1085
    %v4039 = vunpack.c.l.b16 %v1086
    %v4040 = vunpack.c.h.b16 %v1086
    %v4041 = vunpack.c.l.b16 %v1087
    %v4042 = vunpack.c.h.b16 %v1087
    %v4043 = vunpack.c.l.b16 %v1088
    %v4044 = vunpack.c.h.b16 %v1088
    %v4045 = vunpack.c.l.b16 %v1089
    %v4046 = vunpack.c.h.b16 %v1089
    %v4047 = vunpack.c.l.b16 %v1090
    %v4048 = vunpack.c.h.b16 %v1090
    %v4049 = vunpack.c.l.b16 %v1091
    %v4050 = vunpack.c.h.b16 %v1091
    %v4051 = vunpack.c.l.b16 %v1092
    %v4052 = vunpack.c.h.b16 %v1092
    %v4053 = vunpack.c.l.b16 %v1093
    %v4054 = vunpack.c.h.b16 %v1093
    %v4055 = vunpack.c.l.b16 %v1094
    %v4056 = vunpack.c.h.b16 %v1094
    %v4057 = vunpack.c.l.b16 %v1095
    %v4058 = vunpack.c.h.b16 %v1095
    %v4059 = vunpack.c.l.b16 %v1096
    %v4060 = vunpack.c.h.b16 %v1096
    %v4061 = vunpack.c.l.b16 %v1097
    %v4062 = vunpack.c.h.b16 %v1097
    %v4063 = vunpack.c.l.b16 %v1098
    %v4064 = vunpack.c.h.b16 %v1098
    %v4065 = vunpack.c.l.b16 %v1099
    %v4066 = vunpack.c.h.b16 %v1099
    %v4067 = vunpack.c.l.b16 %v1100
    %v4068 = vunpack.c.h.b16 %v1100
    %v4069 = vunpack.c.l.b16 %v1101
    %v4070 = vunpack.c.h.b16 %v1101
    %v4071 = vunpack.c.l.b16 %v1102
    %v4072 = vunpack.c.h.b16 %v1102
    %v4073 = vunpack.c.l.b16 %v1103
    %v4074 = vunpack.c.h.b16 %v1103
    %v4075 = vunpack.c.l.b16 %v1104
    %v4076 = vunpack.c.h.b16 %v1104
    %v4077 = vunpack.c.l.b16 %v1105
    %v4078 = vunpack.c.h.b16 %v1105
    %v4079 = vunpack.c.l.b16 %v1106
    %v4080 = vunpack.c.h.b16 %v1106
    %v4081 = vunpack.c.l.b16 %v1107
    %v4082 = vunpack.c.h.b16 %v1107
    %v4083 = vunpack.c.l.b16 %v1108
    %v4084 = vunpack.c.h.b16 %v1108
    %v4085 = vunpack.c.l.b16 %v1109
    %v4086 = vunpack.c.h.b16 %v1109
    %v4087 = vunpack.c.l.b16 %v1110
    %v4088 = vunpack.c.h.b16 %v1110
    %v4089 = vunpack.c.l.b16 %v1111
    %v4090 = vunpack.c.h.b16 %v1111
    %v4091 = vunpack.c.l.b16 %v1112
    %v4092 = vunpack.c.h.b16 %v1112
    %v4093 = vunpack.c.l.b16 %v1113
    %v4094 = vunpack.c.h.b16 %v1113
    %v4095 = vunpack.c.l.b16 %v1114
    %v4096 = vunpack.c.h.b16 %v1114
    %v4097 = vunpack.c.l.b16 %v1115
    %v4098 = vunpack.c.h.b16 %v1115
    %v4099 = vunpack.c.l.b16 %v1116
    %v4100 = vunpack.c.h.b16 %v1116
    %v4101 = vunpack.c.l.b16 %v1117
    %v4102 = vunpack.c.h.b16 %v1117
    %v4103 = vunpack.c.l.b16 %v1118
    %v4104 = vunpack.c.h.b16 %v1118
    %v4105 = vunpack.c.l.b16 %v1119
    %v4106 = vunpack.c.h.b16 %v1119
    %v4107 = vunpack.c.l.b16 %v1120
    %v4108 = vunpack.c.h.b16 %v1120
    %v4109 = vunpack.c.l.b16 %v1121
    %v4110 = vunpack.c.h.b16 %v1121
    %v4111 = vunpack.c.l.b16 %v1122
    %v4112 = vunpack.c.h.b16 %v1122
    %v4113 = vunpack.c.l.b16 %v1123
    %v4114 = vunpack.c.h.b16 %v1123
    %v4115 = vunpack.c.l.b16 %v1124
    %v4116 = vunpack.c.h.b16 %v1124
    %v4117 = vunpack.c.l.b16 %v1125
    %v4118 = vunpack.c.h.b16 %v1125
    %v4119 = vunpack.c.l.b16 %v1126
    %v4120 = vunpack.c.h.b16 %v1126
    %v4121 = vunpack.c.l.b16 %v1127
    %v4122 = vunpack.c.h.b16 %v1127
    %v4123 = vunpack.c.l.b16 %v1128
    %v4124 = vunpack.c.h.b16 %v1128
    %v4125 = vunpack.c.l.b16 %v1129
    %v4126 = vunpack.c.h.b16 %v1129
    %v4127 = vunpack.c.l.b16 %v1130
    %v4128 = vunpack.c.h.b16 %v1130
    %v4129 = vunpack.c.l.b16 %v1131
    %v4130 = vunpack.c.h.b16 %v1131
    %v4131 = vunpack.c.l.b16 %v1132
    %v4132 = vunpack.c.h.b16 %v1132
    %v4133 = vunpack.c.l.b16 %v1133
    %v4134 = vunpack.c.h.b16 %v1133
    %v4135 = vunpack.c.l.b16 %v1134
    %v4136 = vunpack.c.h.b16 %v1134
    %v4137 = vunpack.c.l.b16 %v1135
    %v4138 = vunpack.c.h.b16 %v1135
    %v4139 = vunpack.c.l.b16 %v1136
    %v4140 = vunpack.c.h.b16 %v1136
    %v4141 = vunpack.c.l.b16 %v1137
    %v4142 = vunpack.c.h.b16 %v1137
    %v4143 = vunpack.c.l.b16 %v1138
    %v4144 = vunpack.c.h.b16 %v1138
    %v4145 = vunpack.c.l.b16 %v1139
    %v4146 = vunpack.c.h.b16 %v1139
    %v4147 = vunpack.c.l.b16 %v1140
    %v4148 = vunpack.c.h.b16 %v1140
    %v4149 = vunpack.c.l.b16 %v1141
    %v4150 = vunpack.c.h.b16 %v1141
    %v4151 = vunpack.c.l.b16 %v1142
    %v4152 = vunpack.c.h.b16 %v1142
    %v4153 = vunpack.c.l.b16 %v1143
    %v4154 = vunpack.c.h.b16 %v1143
    %v4155 = vunpack.c.l.b16 %v1144
    %v4156 = vunpack.c.h.b16 %v1144
    %v4157 = vunpack.c.l.b16 %v1145
    %v4158 = vunpack.c.h.b16 %v1145
    %v4159 = vunpack.c.l.b16 %v1146
    %v4160 = vunpack.c.h.b16 %v1146
    %v4161 = vunpack.c.l.b16 %v1147
    %v4162 = vunpack.c.h.b16 %v1147
    %v4163 = vunpack.c.l.b16 %v1148
    %v4164 = vunpack.c.h.b16 %v1148
    %v4165 = vunpack.c.l.b16 %v1149
    %v4166 = vunpack.c.h.b16 %v1149
    %v4167 = vunpack.c.l.b16 %v1150
    %v4168 = vunpack.c.h.b16 %v1150
    %v4169 = vunpack.c.l.b16 %v1151
    %v4170 = vunpack.c.h.b16 %v1151
    %v4171 = vunpack.c.l.b16 %v1152
    %v4172 = vunpack.c.h.b16 %v1152
    %v4173 = vunpack.c.l.b16 %v1153
    %v4174 = vunpack.c.h.b16 %v1153
    %v4175 = vunpack.c.l.b16 %v1154
    %v4176 = vunpack.c.h.b16 %v1154
    %v4177 = vunpack.c.l.b16 %v1155
    %v4178 = vunpack.c.h.b16 %v1155
    %v4179 = vunpack.c.l.b16 %v1156
    %v4180 = vunpack.c.h.b16 %v1156
    %v4181 = vunpack.c.l.b16 %v1157
    %v4182 = vunpack.c.h.b16 %v1157
    %v4183 = vunpack.c.l.b16 %v1158
    %v4184 = vunpack.c.h.b16 %v1158
    %v4185 = vunpack.c.l.b16 %v1159
    %v4186 = vunpack.c.h.b16 %v1159
    %v4187 = vunpack.c.l.b16 %v1160
    %v4188 = vunpack.c.h.b16 %v1160
    %v4189 = vunpack.c.l.b16 %v1161
    %v4190 = vunpack.c.h.b16 %v1161
    %v4191 = vunpack.c.l.b16 %v1162
    %v4192 = vunpack.c.h.b16 %v1162
    %v4193 = vunpack.c.l.b16 %v1163
    %v4194 = vunpack.c.h.b16 %v1163
    %v4195 = vunpack.c.l.b16 %v1164
    %v4196 = vunpack.c.h.b16 %v1164
    %v4197 = vunpack.c.l.b16 %v1165
    %v4198 = vunpack.c.h.b16 %v1165
    %v4199 = vunpack.c.l.b16 %v1166
    %v4200 = vunpack.c.h.b16 %v1166
    %v4201 = vunpack.c.l.b16 %v1167
    %v4202 = vunpack.c.h.b16 %v1167
    %v4203 = vunpack.c.l.b16 %v1168
    %v4204 = vunpack.c.h.b16 %v1168
    %v4205 = vunpack.c.l.b16 %v1169
    %v4206 = vunpack.c.h.b16 %v1169
    %v4207 = vunpack.c.l.b16 %v1170
    %v4208 = vunpack.c.h.b16 %v1170
    %v4209 = vunpack.c.l.b16 %v1171
    %v4210 = vunpack.c.h.b16 %v1171
    %v4211 = vunpack.c.l.b16 %v1172
    %v4212 = vunpack.c.h.b16 %v1172
    %v4213 = vunpack.c.l.b16 %v1173
    %v4214 = vunpack.c.h.b16 %v1173
    %v4215 = vunpack.c.l.b16 %v1174
    %v4216 = vunpack.c.h.b16 %v1174
    %v4217 = vunpack.c.l.b16 %v1175
    %v4218 = vunpack.c.h.b16 %v1175
    %v4219 = vunpack.c.l.b16 %v1176
    %v4220 = vunpack.c.h.b16 %v1176
    %v4221 = vunpack.c.l.b16 %v1177
    %v4222 = vunpack.c.h.b16 %v1177
    %v4223 = vunpack.c.l.b16 %v1178
    %v4224 = vunpack.c.h.b16 %v1178
    %v4225 = vunpack.c.l.b16 %v1179
    %v4226 = vunpack.c.h.b16 %v1179
    %v4227 = vunpack.c.l.b16 %v1180
    %v4228 = vunpack.c.h.b16 %v1180
    %v4229 = vunpack.c.l.b16 %v1181
    %v4230 = vunpack.c.h.b16 %v1181
    %v4231 = vunpack.c.l.b16 %v1182
    %v4232 = vunpack.c.h.b16 %v1182
    %v4233 = vunpack.c.l.b16 %v1183
    %v4234 = vunpack.c.h.b16 %v1183
    %v4235 = vunpack.c.l.b16 %v1184
    %v4236 = vunpack.c.h.b16 %v1184
    %v4237 = vunpack.c.l.b16 %v1185
    %v4238 = vunpack.c.h.b16 %v1185
    %v4239 = vunpack.c.l.b16 %v1186
    %v4240 = vunpack.c.h.b16 %v1186
    %v4241 = vunpack.c.l.b16 %v1187
    %v4242 = vunpack.c.h.b16 %v1187
    %v4243 = vunpack.c.l.b16 %v1188
    %v4244 = vunpack.c.h.b16 %v1188
    %v4245 = vunpack.c.l.b16 %v1189
    %v4246 = vunpack.c.h.b16 %v1189
    %v4247 = vunpack.c.l.b16 %v1190
    %v4248 = vunpack.c.h.b16 %v1190
    %v4249 = vunpack.c.l.b16 %v1191
    %v4250 = vunpack.c.h.b16 %v1191
    %v4251 = vunpack.c.l.b16 %v1192
    %v4252 = vunpack.c.h.b16 %v1192
    %v4253 = vunpack.c.l.b16 %v1193
    %v4254 = vunpack.c.h.b16 %v1193
    %v4255 = vunpack.c.l.b16 %v1194
    %v4256 = vunpack.c.h.b16 %v1194
    %v4257 = vunpack.c.l.b16 %v1195
    %v4258 = vunpack.c.h.b16 %v1195
    %v4259 = vunpack.c.l.b16 %v1196
    %v4260 = vunpack.c.h.b16 %v1196
    %v4261 = vunpack.c.l.b16 %v1197
    %v4262 = vunpack.c.h.b16 %v1197
    %v4263 = vunpack.c.l.b16 %v1198
    %v4264 = vunpack.c.h.b16 %v1198
    %v4265 = vunpack.c.l.b16 %v1199
    %v4266 = vunpack.c.h.b16 %v1199
    %v4267 = vunpack.c.l.b16 %v1200
    %v4268 = vunpack.c.h.b16 %v1200
    %v4269 = vunpack.c.l.b16 %v1201
    %v4270 = vunpack.c.h.b16 %v1201
    %v4271 = vunpack.c.l.b16 %v1202
    %v4272 = vunpack.c.h.b16 %v1202
    %v4273 = vunpack.c.l.b16 %v1203
    %v4274 = vunpack.c.h.b16 %v1203
    %v4275 = vunpack.c.l.b16 %v1204
    %v4276 = vunpack.c.h.b16 %v1204
    %v4277 = vunpack.c.l.b16 %v1205
    %v4278 = vunpack.c.h.b16 %v1205
    %v4279 = vunpack.c.l.b16 %v1206
    %v4280 = vunpack.c.h.b16 %v1206
    %v4281 = vunpack.c.l.b16 %v1207
    %v4282 = vunpack.c.h.b16 %v1207
    %v4283 = vunpack.c.l.b16 %v1208
    %v4284 = vunpack.c.h.b16 %v1208
    %v4285 = vunpack.c.l.b16 %v1209
    %v4286 = vunpack.c.h.b16 %v1209
    %v4287 = vunpack.c.l.b16 %v1210
    %v4288 = vunpack.c.h.b16 %v1210
    %v4289 = vunpack.c.l.b16 %v1211
    %v4290 = vunpack.c.h.b16 %v1211
    %v4291 = vunpack.c.l.b16 %v1212
    %v4292 = vunpack.c.h.b16 %v1212
    %v4293 = vunpack.c.l.b16 %v1213
    %v4294 = vunpack.c.h.b16 %v1213
    %v4295 = vunpack.c.l.b16 %v1214
    %v4296 = vunpack.c.h.b16 %v1214
    %v4297 = vunpack.c.l.b16 %v1215
    %v4298 = vunpack.c.h.b16 %v1215
    %v4299 = vunpack.c.l.b16 %v1216
    %v4300 = vunpack.c.h.b16 %v1216
    %v4301 = vunpack.c.l.b16 %v1217
    %v4302 = vunpack.c.h.b16 %v1217
    %v4303 = vunpack.c.l.b16 %v1218
    %v4304 = vunpack.c.h.b16 %v1218
    %v4305 = vunpack.c.l.b16 %v1219
    %v4306 = vunpack.c.h.b16 %v1219
    %v4307 = vunpack.c.l.b16 %v1220
    %v4308 = vunpack.c.h.b16 %v1220
    %v4309 = vunpack.c.l.b16 %v1221
    %v4310 = vunpack.c.h.b16 %v1221
    %v4311 = vunpack.c.l.b16 %v1222
    %v4312 = vunpack.c.h.b16 %v1222
    %v4313 = vunpack.c.l.b16 %v1223
    %v4314 = vunpack.c.h.b16 %v1223
    %v4315 = vunpack.c.l.b16 %v1224
    %v4316 = vunpack.c.h.b16 %v1224
    %v4317 = vunpack.c.l.b16 %v1225
    %v4318 = vunpack.c.h.b16 %v1225
    %v4319 = vunpack.c.l.b16 %v1226
    %v4320 = vunpack.c.h.b16 %v1226
    %v4321 = vunpack.c.l.b16 %v1227
    %v4322 = vunpack.c.h.b16 %v1227
    %v4323 = vunpack.c.l.b16 %v1228
    %v4324 = vunpack.c.h.b16 %v1228
    %v4325 = vunpack.c.l.b16 %v1229
    %v4326 = vunpack.c.h.b16 %v1229
    %v4327 = vunpack.c.l.b16 %v1230
    %v4328 = vunpack.c.h.b16 %v1230
    %v4329 = vunpack.c.l.b16 %v1231
    %v4330 = vunpack.c.h.b16 %v1231
    %v4331 = vunpack.c.l.b16 %v1232
    %v4332 = vunpack.c.h.b16 %v1232
    %v4333 = vunpack.c.l.b16 %v1233
    %v4334 = vunpack.c.h.b16 %v1233
    %v4335 = vunpack.c.l.b16 %v1234
    %v4336 = vunpack.c.h.b16 %v1234
    %v4337 = vunpack.c.l.b16 %v1235
    %v4338 = vunpack.c.h.b16 %v1235
    %v4339 = vunpack.c.l.b16 %v1236
    %v4340 = vunpack.c.h.b16 %v1236
    %v4341 = vunpack.c.l.b16 %v1237
    %v4342 = vunpack.c.h.b16 %v1237
    %v4343 = vunpack.c.l.b16 %v1238
    %v4344 = vunpack.c.h.b16 %v1238
    %v4345 = vunpack.c.l.b16 %v1239
    %v4346 = vunpack.c.h.b16 %v1239
    %v4347 = vunpack.c.l.b16 %v1240
    %v4348 = vunpack.c.h.b16 %v1240
    %v4349 = vunpack.c.l.b16 %v1241
    %v4350 = vunpack.c.h.b16 %v1241
    %v4351 = vunpack.c.l.b16 %v1242
    %v4352 = vunpack.c.h.b16 %v1242
    %v4353 = vunpack.c.l.b16 %v1243
    %v4354 = vunpack.c.h.b16 %v1243
    %v4355 = vunpack.c.l.b16 %v1244
    %v4356 = vunpack.c.h.b16 %v1244
    %v4357 = vunpack.c.l.b16 %v1245
    %v4358 = vunpack.c.h.b16 %v1245
    %v4359 = vunpack.c.l.b16 %v1246
    %v4360 = vunpack.c.h.b16 %v1246
    %v4361 = vpack.c.b16 %v2321, %v2313
    %v4362 = vpack.c.b16 %v2322, %v2314
    %v4363 = vpack.c.b16 %v2323, %v2315
    %v4364 = vpack.c.b16 %v2324, %v2316
    %v4365 = vpack.c.b16 %v2325, %v2317
    %v4366 = vpack.c.b16 %v2326, %v2318
    %v4367 = vpack.c.b16 %v2327, %v2319
    %v4368 = vpack.c.b16 %v2328, %v2320
    %v4369 = vpack.c.b16 %v2337, %v2329
    %v4370 = vpack.c.b16 %v2338, %v2330
    %v4371 = vpack.c.b16 %v2339, %v2331
    %v4372 = vpack.c.b16 %v2340, %v2332
    %v4373 = vpack.c.b16 %v2341, %v2333
    %v4374 = vpack.c.b16 %v2342, %v2334
    %v4375 = vpack.c.b16 %v2343, %v2335
    %v4376 = vpack.c.b16 %v2344, %v2336
    %v4377 = vpack.c.b16 %v2353, %v2345
    %v4378 = vpack.c.b16 %v2354, %v2346
    %v4379 = vpack.c.b16 %v2355, %v2347
    %v4380 = vpack.c.b16 %v2356, %v2348
    %v4381 = vpack.c.b16 %v2357, %v2349
    %v4382 = vpack.c.b16 %v2358, %v2350
    %v4383 = vpack.c.b16 %v2359, %v2351
    %v4384 = vpack.c.b16 %v2360, %v2352
    %v4385 = vpack.c.b16 %v2369, %v2361
    %v4386 = vpack.c.b16 %v2370, %v2362
    %v4387 = vpack.c.b16 %v2371, %v2363
    %v4388 = vpack.c.b16 %v2372, %v2364
    %v4389 = vpack.c.b16 %v2373, %v2365
    %v4390 = vpack.c.b16 %v2374, %v2366
    %v4391 = vpack.c.b16 %v2375, %v2367
    %v4392 = vpack.c.b16 %v2376, %v2368
    %v4393 = vpack.c.b16 %v2385, %v2377
    %v4394 = vpack.c.b16 %v2386, %v2378
    %v4395 = vpack.c.b16 %v2387, %v2379
    %v4396 = vpack.c.b16 %v2388, %v2380
    %v4397 = vpack.c.b16 %v2389, %v2381
    %v4398 = vpack.c.b16 %v2390, %v2382
    %v4399 = vpack.c.b16 %v2391, %v2383
    %v4400 = vpack.c.b16 %v2392, %v2384
    %v4401 = vpack.c.b16 %v2401, %v2393
    %v4402 = vpack.c.b16 %v2402, %v2394
    %v4403 = vpack.c.b16 %v2403, %v2395
    %v4404 = vpack.c.b16 %v2404, %v2396
    %v4405 = vpack.c.b16 %v2405, %v2397
    %v4406 = vpack.c.b16 %v2406, %v2398
    %v4407 = vpack.c.b16 %v2407, %v2399
    %v4408 = vpack.c.b16 %v2408, %v2400
    %v4409 = vpack.c.b16 %v2417, %v2409
    %v4410 = vpack.c.b16 %v2418, %v2410
    %v4411 = vpack.c.b16 %v2419, %v2411
    %v4412 = vpack.c.b16 %v2420, %v2412
    %v4413 = vpack.c.b16 %v2421, %v2413
    %v4414 = vpack.c.b16 %v2422, %v2414
    %v4415 = vpack.c.b16 %v2423, %v2415
    %v4416 = vpack.c.b16 %v2424, %v2416
    %v4417 = vpack.c.b16 %v2433, %v2425
    %v4418 = vpack.c.b16 %v2434, %v2426
    %v4419 = vpack.c.b16 %v2435, %v2427
    %v4420 = vpack.c.b16 %v2436, %v2428
    %v4421 = vpack.c.b16 %v2437, %v2429
    %v4422 = vpack.c.b16 %v2438, %v2430
    %v4423 = vpack.c.b16 %v2439, %v2431
    %v4424 = vpack.c.b16 %v2440, %v2432
    %v4425 = vpack.c.b16 %v2449, %v2441
    %v4426 = vpack.c.b16 %v2450, %v2442
    %v4427 = vpack.c.b16 %v2451, %v2443
    %v4428 = vpack.c.b16 %v2452, %v2444
    %v4429 = vpack.c.b16 %v2453, %v2445
    %v4430 = vpack.c.b16 %v2454, %v2446
    %v4431 = vpack.c.b16 %v2455, %v2447
    %v4432 = vpack.c.b16 %v2456, %v2448
    %v4433 = vpack.c.b16 %v2465, %v2457
    %v4434 = vpack.c.b16 %v2466, %v2458
    %v4435 = vpack.c.b16 %v2467, %v2459
    %v4436 = vpack.c.b16 %v2468, %v2460
    %v4437 = vpack.c.b16 %v2469, %v2461
    %v4438 = vpack.c.b16 %v2470, %v2462
    %v4439 = vpack.c.b16 %v2471, %v2463
    %v4440 = vpack.c.b16 %v2472, %v2464
    %v4441 = vpack.c.b16 %v2481, %v2473
    %v4442 = vpack.c.b16 %v2482, %v2474
    %v4443 = vpack.c.b16 %v2483, %v2475
    %v4444 = vpack.c.b16 %v2484, %v2476
    %v4445 = vpack.c.b16 %v2485, %v2477
    %v4446 = vpack.c.b16 %v2486, %v2478
    %v4447 = vpack.c.b16 %v2487, %v2479
    %v4448 = vpack.c.b16 %v2488, %v2480
    %v4449 = vpack.c.b16 %v2497, %v2489
    %v4450 = vpack.c.b16 %v2498, %v2490
    %v4451 = vpack.c.b16 %v2499, %v2491
    %v4452 = vpack.c.b16 %v2500, %v2492
    %v4453 = vpack.c.b16 %v2501, %v2493
    %v4454 = vpack.c.b16 %v2502, %v2494
    %v4455 = vpack.c.b16 %v2503, %v2495
    %v4456 = vpack.c.b16 %v2504, %v2496
    %v4457 = vpack.c.b16 %v2513, %v2505
    %v4458 = vpack.c.b16 %v2514, %v2506
    %v4459 = vpack.c.b16 %v2515, %v2507
    %v4460 = vpack.c.b16 %v2516, %v2508
    %v4461 = vpack.c.b16 %v2517, %v2509
    %v4462 = vpack.c.b16 %v2518, %v2510
    %v4463 = vpack.c.b16 %v2519, %v2511
    %v4464 = vpack.c.b16 %v2520, %v2512
    %v4465 = vpack.c.b16 %v2529, %v2521
    %v4466 = vpack.c.b16 %v2530, %v2522
    %v4467 = vpack.c.b16 %v2531, %v2523
    %v4468 = vpack.c.b16 %v2532, %v2524
    %v4469 = vpack.c.b16 %v2533, %v2525
    %v4470 = vpack.c.b16 %v2534, %v2526
    %v4471 = vpack.c.b16 %v2535, %v2527
    %v4472 = vpack.c.b16 %v2536, %v2528
    %v4473 = vpack.c.b16 %v2545, %v2537
    %v4474 = vpack.c.b16 %v2546, %v2538
    %v4475 = vpack.c.b16 %v2547, %v2539
    %v4476 = vpack.c.b16 %v2548, %v2540
    %v4477 = vpack.c.b16 %v2549, %v2541
    %v4478 = vpack.c.b16 %v2550, %v2542
    %v4479 = vpack.c.b16 %v2551, %v2543
    %v4480 = vpack.c.b16 %v2552, %v2544
    %v4481 = vpack.c.b16 %v2561, %v2553
    %v4482 = vpack.c.b16 %v2562, %v2554
    %v4483 = vpack.c.b16 %v2563, %v2555
    %v4484 = vpack.c.b16 %v2564, %v2556
    %v4485 = vpack.c.b16 %v2565, %v2557
    %v4486 = vpack.c.b16 %v2566, %v2558
    %v4487 = vpack.c.b16 %v2567, %v2559
    %v4488 = vpack.c.b16 %v2568, %v2560
    %v4489 = vpack.c.b16 %v2577, %v2569
    %v4490 = vpack.c.b16 %v2578, %v2570
    %v4491 = vpack.c.b16 %v2579, %v2571
    %v4492 = vpack.c.b16 %v2580, %v2572
    %v4493 = vpack.c.b16 %v2581, %v2573
    %v4494 = vpack.c.b16 %v2582, %v2574
    %v4495 = vpack.c.b16 %v2583, %v2575
    %v4496 = vpack.c.b16 %v2584, %v2576
    %v4497 = vpack.c.b16 %v2593, %v2585
    %v4498 = vpack.c.b16 %v2594, %v2586
    %v4499 = vpack.c.b16 %v2595, %v2587
    %v4500 = vpack.c.b16 %v2596, %v2588
    %v4501 = vpack.c.b16 %v2597, %v2589
    %v4502 = vpack.c.b16 %v2598, %v2590
    %v4503 = vpack.c.b16 %v2599, %v2591
    %v4504 = vpack.c.b16 %v2600, %v2592
    %v4505 = vpack.c.b16 %v2609, %v2601
    %v4506 = vpack.c.b16 %v2610, %v2602
    %v4507 = vpack.c.b16 %v2611, %v2603
    %v4508 = vpack.c.b16 %v2612, %v2604
    %v4509 = vpack.c.b16 %v2613, %v2605
    %v4510 = vpack.c.b16 %v2614, %v2606
    %v4511 = vpack.c.b16 %v2615, %v2607
    %v4512 = vpack.c.b16 %v2616, %v2608
    %v4513 = vpack.c.b16 %v2625, %v2617
    %v4514 = vpack.c.b16 %v2626, %v2618
    %v4515 = vpack.c.b16 %v2627, %v2619
    %v4516 = vpack.c.b16 %v2628, %v2620
    %v4517 = vpack.c.b16 %v2629, %v2621
    %v4518 = vpack.c.b16 %v2630, %v2622
    %v4519 = vpack.c.b16 %v2631, %v2623
    %v4520 = vpack.c.b16 %v2632, %v2624
    %v4521 = vpack.c.b16 %v2641, %v2633
    %v4522 = vpack.c.b16 %v2642, %v2634
    %v4523 = vpack.c.b16 %v2643, %v2635
    %v4524 = vpack.c.b16 %v2644, %v2636
    %v4525 = vpack.c.b16 %v2645, %v2637
    %v4526 = vpack.c.b16 %v2646, %v2638
    %v4527 = vpack.c.b16 %v2647, %v2639
    %v4528 = vpack.c.b16 %v2648, %v2640
    %v4529 = vpack.c.b16 %v2657, %v2649
    %v4530 = vpack.c.b16 %v2658, %v2650
    %v4531 = vpack.c.b16 %v2659, %v2651
    %v4532 = vpack.c.b16 %v2660, %v2652
    %v4533 = vpack.c.b16 %v2661, %v2653
    %v4534 = vpack.c.b16 %v2662, %v2654
    %v4535 = vpack.c.b16 %v2663, %v2655
    %v4536 = vpack.c.b16 %v2664, %v2656
    %v4537 = vpack.c.b16 %v2673, %v2665
    %v4538 = vpack.c.b16 %v2674, %v2666
    %v4539 = vpack.c.b16 %v2675, %v2667
    %v4540 = vpack.c.b16 %v2676, %v2668
    %v4541 = vpack.c.b16 %v2677, %v2669
    %v4542 = vpack.c.b16 %v2678, %v2670
    %v4543 = vpack.c.b16 %v2679, %v2671
    %v4544 = vpack.c.b16 %v2680, %v2672
    %v4545 = vpack.c.b16 %v2689, %v2681
    %v4546 = vpack.c.b16 %v2690, %v2682
    %v4547 = vpack.c.b16 %v2691, %v2683
    %v4548 = vpack.c.b16 %v2692, %v2684
    %v4549 = vpack.c.b16 %v2693, %v2685
    %v4550 = vpack.c.b16 %v2694, %v2686
    %v4551 = vpack.c.b16 %v2695, %v2687
    %v4552 = vpack.c.b16 %v2696, %v2688
    %v4553 = vpack.c.b16 %v2705, %v2697
    %v4554 = vpack.c.b16 %v2706, %v2698
    %v4555 = vpack.c.b16 %v2707, %v2699
    %v4556 = vpack.c.b16 %v2708, %v2700
    %v4557 = vpack.c.b16 %v2709, %v2701
    %v4558 = vpack.c.b16 %v2710, %v2702
    %v4559 = vpack.c.b16 %v2711, %v2703
    %v4560 = vpack.c.b16 %v2712, %v2704
    %v4561 = vpack.c.b16 %v2721, %v2713
    %v4562 = vpack.c.b16 %v2722, %v2714
    %v4563 = vpack.c.b16 %v2723, %v2715
    %v4564 = vpack.c.b16 %v2724, %v2716
    %v4565 = vpack.c.b16 %v2725, %v2717
    %v4566 = vpack.c.b16 %v2726, %v2718
    %v4567 = vpack.c.b16 %v2727, %v2719
    %v4568 = vpack.c.b16 %v2728, %v2720
    %v4569 = vpack.c.b16 %v2737, %v2729
    %v4570 = vpack.c.b16 %v2738, %v2730
    %v4571 = vpack.c.b16 %v2739, %v2731
    %v4572 = vpack.c.b16 %v2740, %v2732
    %v4573 = vpack.c.b16 %v2741, %v2733
    %v4574 = vpack.c.b16 %v2742, %v2734
    %v4575 = vpack.c.b16 %v2743, %v2735
    %v4576 = vpack.c.b16 %v2744, %v2736
    %v4577 = vpack.c.b16 %v2753, %v2745
    %v4578 = vpack.c.b16 %v2754, %v2746
    %v4579 = vpack.c.b16 %v2755, %v2747
    %v4580 = vpack.c.b16 %v2756, %v2748
    %v4581 = vpack.c.b16 %v2757, %v2749
    %v4582 = vpack.c.b16 %v2758, %v2750
    %v4583 = vpack.c.b16 %v2759, %v2751
    %v4584 = vpack.c.b16 %v2760, %v2752
    %v4585 = vpack.c.b16 %v2769, %v2761
    %v4586 = vpack.c.b16 %v2770, %v2762
    %v4587 = vpack.c.b16 %v2771, %v2763
    %v4588 = vpack.c.b16 %v2772, %v2764
    %v4589 = vpack.c.b16 %v2773, %v2765
    %v4590 = vpack.c.b16 %v2774, %v2766
    %v4591 = vpack.c.b16 %v2775, %v2767
    %v4592 = vpack.c.b16 %v2776, %v2768
    %v4593 = vpack.c.b16 %v2785, %v2777
    %v4594 = vpack.c.b16 %v2786, %v2778
    %v4595 = vpack.c.b16 %v2787, %v2779
    %v4596 = vpack.c.b16 %v2788, %v2780
    %v4597 = vpack.c.b16 %v2789, %v2781
    %v4598 = vpack.c.b16 %v2790, %v2782
    %v4599 = vpack.c.b16 %v2791, %v2783
    %v4600 = vpack.c.b16 %v2792, %v2784
    %v4601 = vpack.c.b16 %v2801, %v2793
    %v4602 = vpack.c.b16 %v2802, %v2794
    %v4603 = vpack.c.b16 %v2803, %v2795
    %v4604 = vpack.c.b16 %v2804, %v2796
    %v4605 = vpack.c.b16 %v2805, %v2797
    %v4606 = vpack.c.b16 %v2806, %v2798
    %v4607 = vpack.c.b16 %v2807, %v2799
    %v4608 = vpack.c.b16 %v2808, %v2800
    %v4609 = vpack.c.b16 %v2817, %v2809
    %v4610 = vpack.c.b16 %v2818, %v2810
    %v4611 = vpack.c.b16 %v2819, %v2811
    %v4612 = vpack.c.b16 %v2820, %v2812
    %v4613 = vpack.c.b16 %v2821, %v2813
    %v4614 = vpack.c.b16 %v2822, %v2814
    %v4615 = vpack.c.b16 %v2823, %v2815
    %v4616 = vpack.c.b16 %v2824, %v2816
    %v4617 = vpack.c.b16 %v2833, %v2825
    %v4618 = vpack.c.b16 %v2834, %v2826
    %v4619 = vpack.c.b16 %v2835, %v2827
    %v4620 = vpack.c.b16 %v2836, %v2828
    %v4621 = vpack.c.b16 %v2837, %v2829
    %v4622 = vpack.c.b16 %v2838, %v2830
    %v4623 = vpack.c.b16 %v2839, %v2831
    %v4624 = vpack.c.b16 %v2840, %v2832
    %v4625 = vpack.c.b16 %v2849, %v2841
    %v4626 = vpack.c.b16 %v2850, %v2842
    %v4627 = vpack.c.b16 %v2851, %v2843
    %v4628 = vpack.c.b16 %v2852, %v2844
    %v4629 = vpack.c.b16 %v2853, %v2845
    %v4630 = vpack.c.b16 %v2854, %v2846
    %v4631 = vpack.c.b16 %v2855, %v2847
    %v4632 = vpack.c.b16 %v2856, %v2848
    %v4633 = vpack.c.b16 %v2865, %v2857
    %v4634 = vpack.c.b16 %v2866, %v2858
    %v4635 = vpack.c.b16 %v2867, %v2859
    %v4636 = vpack.c.b16 %v2868, %v2860
    %v4637 = vpack.c.b16 %v2869, %v2861
    %v4638 = vpack.c.b16 %v2870, %v2862
    %v4639 = vpack.c.b16 %v2871, %v2863
    %v4640 = vpack.c.b16 %v2872, %v2864
    %v4641 = vpack.c.b16 %v2881, %v2873
    %v4642 = vpack.c.b16 %v2882, %v2874
    %v4643 = vpack.c.b16 %v2883, %v2875
    %v4644 = vpack.c.b16 %v2884, %v2876
    %v4645 = vpack.c.b16 %v2885, %v2877
    %v4646 = vpack.c.b16 %v2886, %v2878
    %v4647 = vpack.c.b16 %v2887, %v2879
    %v4648 = vpack.c.b16 %v2888, %v2880
    %v4649 = vpack.c.b16 %v2897, %v2889
    %v4650 = vpack.c.b16 %v2898, %v2890
    %v4651 = vpack.c.b16 %v2899, %v2891
    %v4652 = vpack.c.b16 %v2900, %v2892
    %v4653 = vpack.c.b16 %v2901, %v2893
    %v4654 = vpack.c.b16 %v2902, %v2894
    %v4655 = vpack.c.b16 %v2903, %v2895
    %v4656 = vpack.c.b16 %v2904, %v2896
    %v4657 = vpack.c.b16 %v2913, %v2905
    %v4658 = vpack.c.b16 %v2914, %v2906
    %v4659 = vpack.c.b16 %v2915, %v2907
    %v4660 = vpack.c.b16 %v2916, %v2908
    %v4661 = vpack.c.b16 %v2917, %v2909
    %v4662 = vpack.c.b16 %v2918, %v2910
    %v4663 = vpack.c.b16 %v2919, %v2911
    %v4664 = vpack.c.b16 %v2920, %v2912
    %v4665 = vpack.c.b16 %v2929, %v2921
    %v4666 = vpack.c.b16 %v2930, %v2922
    %v4667 = vpack.c.b16 %v2931, %v2923
    %v4668 = vpack.c.b16 %v2932, %v2924
    %v4669 = vpack.c.b16 %v2933, %v2925
    %v4670 = vpack.c.b16 %v2934, %v2926
    %v4671 = vpack.c.b16 %v2935, %v2927
    %v4672 = vpack.c.b16 %v2936, %v2928
    %v4673 = vpack.c.b16 %v2945, %v2937
    %v4674 = vpack.c.b16 %v2946, %v2938
    %v4675 = vpack.c.b16 %v2947, %v2939
    %v4676 = vpack.c.b16 %v2948, %v2940
    %v4677 = vpack.c.b16 %v2949, %v2941
    %v4678 = vpack.c.b16 %v2950, %v2942
    %v4679 = vpack.c.b16 %v2951, %v2943
    %v4680 = vpack.c.b16 %v2952, %v2944
    %v4681 = vpack.c.b16 %v2961, %v2953
    %v4682 = vpack.c.b16 %v2962, %v2954
    %v4683 = vpack.c.b16 %v2963, %v2955
    %v4684 = vpack.c.b16 %v2964, %v2956
    %v4685 = vpack.c.b16 %v2965, %v2957
    %v4686 = vpack.c.b16 %v2966, %v2958
    %v4687 = vpack.c.b16 %v2967, %v2959
    %v4688 = vpack.c.b16 %v2968, %v2960
    %v4689 = vpack.c.b16 %v2977, %v2969
    %v4690 = vpack.c.b16 %v2978, %v2970
    %v4691 = vpack.c.b16 %v2979, %v2971
    %v4692 = vpack.c.b16 %v2980, %v2972
    %v4693 = vpack.c.b16 %v2981, %v2973
    %v4694 = vpack.c.b16 %v2982, %v2974
    %v4695 = vpack.c.b16 %v2983, %v2975
    %v4696 = vpack.c.b16 %v2984, %v2976
    %v4697 = vpack.c.b16 %v2993, %v2985
    %v4698 = vpack.c.b16 %v2994, %v2986
    %v4699 = vpack.c.b16 %v2995, %v2987
    %v4700 = vpack.c.b16 %v2996, %v2988
    %v4701 = vpack.c.b16 %v2997, %v2989
    %v4702 = vpack.c.b16 %v2998, %v2990
    %v4703 = vpack.c.b16 %v2999, %v2991
    %v4704 = vpack.c.b16 %v3000, %v2992
    %v4705 = vpack.c.b16 %v3009, %v3001
    %v4706 = vpack.c.b16 %v3010, %v3002
    %v4707 = vpack.c.b16 %v3011, %v3003
    %v4708 = vpack.c.b16 %v3012, %v3004
    %v4709 = vpack.c.b16 %v3013, %v3005
    %v4710 = vpack.c.b16 %v3014, %v3006
    %v4711 = vpack.c.b16 %v3015, %v3007
    %v4712 = vpack.c.b16 %v3016, %v3008
    %v4713 = vpack.c.b16 %v3025, %v3017
    %v4714 = vpack.c.b16 %v3026, %v3018
    %v4715 = vpack.c.b16 %v3027, %v3019
    %v4716 = vpack.c.b16 %v3028, %v3020
    %v4717 = vpack.c.b16 %v3029, %v3021
    %v4718 = vpack.c.b16 %v3030, %v3022
    %v4719 = vpack.c.b16 %v3031, %v3023
    %v4720 = vpack.c.b16 %v3032, %v3024
    %v4721 = vpack.c.b16 %v3041, %v3033
    %v4722 = vpack.c.b16 %v3042, %v3034
    %v4723 = vpack.c.b16 %v3043, %v3035
    %v4724 = vpack.c.b16 %v3044, %v3036
    %v4725 = vpack.c.b16 %v3045, %v3037
    %v4726 = vpack.c.b16 %v3046, %v3038
    %v4727 = vpack.c.b16 %v3047, %v3039
    %v4728 = vpack.c.b16 %v3048, %v3040
    %v4729 = vpack.c.b16 %v3057, %v3049
    %v4730 = vpack.c.b16 %v3058, %v3050
    %v4731 = vpack.c.b16 %v3059, %v3051
    %v4732 = vpack.c.b16 %v3060, %v3052
    %v4733 = vpack.c.b16 %v3061, %v3053
    %v4734 = vpack.c.b16 %v3062, %v3054
    %v4735 = vpack.c.b16 %v3063, %v3055
    %v4736 = vpack.c.b16 %v3064, %v3056
    %v4737 = vpack.c.b16 %v3073, %v3065
    %v4738 = vpack.c.b16 %v3074, %v3066
    %v4739 = vpack.c.b16 %v3075, %v3067
    %v4740 = vpack.c.b16 %v3076, %v3068
    %v4741 = vpack.c.b16 %v3077, %v3069
    %v4742 = vpack.c.b16 %v3078, %v3070
    %v4743 = vpack.c.b16 %v3079, %v3071
    %v4744 = vpack.c.b16 %v3080, %v3072
    %v4745 = vpack.c.b16 %v3089, %v3081
    %v4746 = vpack.c.b16 %v3090, %v3082
    %v4747 = vpack.c.b16 %v3091, %v3083
    %v4748 = vpack.c.b16 %v3092, %v3084
    %v4749 = vpack.c.b16 %v3093, %v3085
    %v4750 = vpack.c.b16 %v3094, %v3086
    %v4751 = vpack.c.b16 %v3095, %v3087
    %v4752 = vpack.c.b16 %v3096, %v3088
    %v4753 = vpack.c.b16 %v3105, %v3097
    %v4754 = vpack.c.b16 %v3106, %v3098
    %v4755 = vpack.c.b16 %v3107, %v3099
    %v4756 = vpack.c.b16 %v3108, %v3100
    %v4757 = vpack.c.b16 %v3109, %v3101
    %v4758 = vpack.c.b16 %v3110, %v3102
    %v4759 = vpack.c.b16 %v3111, %v3103
    %v4760 = vpack.c.b16 %v3112, %v3104
    %v4761 = vpack.c.b16 %v3121, %v3113
    %v4762 = vpack.c.b16 %v3122, %v3114
    %v4763 = vpack.c.b16 %v3123, %v3115
    %v4764 = vpack.c.b16 %v3124, %v3116
    %v4765 = vpack.c.b16 %v3125, %v3117
    %v4766 = vpack.c.b16 %v3126, %v3118
    %v4767 = vpack.c.b16 %v3127, %v3119
    %v4768 = vpack.c.b16 %v3128, %v3120
    %v4769 = vpack.c.b16 %v3137, %v3129
    %v4770 = vpack.c.b16 %v3138, %v3130
    %v4771 = vpack.c.b16 %v3139, %v3131
    %v4772 = vpack.c.b16 %v3140, %v3132
    %v4773 = vpack.c.b16 %v3141, %v3133
    %v4774 = vpack.c.b16 %v3142, %v3134
    %v4775 = vpack.c.b16 %v3143, %v3135
    %v4776 = vpack.c.b16 %v3144, %v3136
    %v4777 = vpack.c.b16 %v3153, %v3145
    %v4778 = vpack.c.b16 %v3154, %v3146
    %v4779 = vpack.c.b16 %v3155, %v3147
    %v4780 = vpack.c.b16 %v3156, %v3148
    %v4781 = vpack.c.b16 %v3157, %v3149
    %v4782 = vpack.c.b16 %v3158, %v3150
    %v4783 = vpack.c.b16 %v3159, %v3151
    %v4784 = vpack.c.b16 %v3160, %v3152
    %v4785 = vpack.c.b16 %v3169, %v3161
    %v4786 = vpack.c.b16 %v3170, %v3162
    %v4787 = vpack.c.b16 %v3171, %v3163
    %v4788 = vpack.c.b16 %v3172, %v3164
    %v4789 = vpack.c.b16 %v3173, %v3165
    %v4790 = vpack.c.b16 %v3174, %v3166
    %v4791 = vpack.c.b16 %v3175, %v3167
    %v4792 = vpack.c.b16 %v3176, %v3168
    %v4793 = vpack.c.b16 %v3185, %v3177
    %v4794 = vpack.c.b16 %v3186, %v3178
    %v4795 = vpack.c.b16 %v3187, %v3179
    %v4796 = vpack.c.b16 %v3188, %v3180
    %v4797 = vpack.c.b16 %v3189, %v3181
    %v4798 = vpack.c.b16 %v3190, %v3182
    %v4799 = vpack.c.b16 %v3191, %v3183
    %v4800 = vpack.c.b16 %v3192, %v3184
    %v4801 = vpack.c.b16 %v3201, %v3193
    %v4802 = vpack.c.b16 %v3202, %v3194
    %v4803 = vpack.c.b16 %v3203, %v3195
    %v4804 = vpack.c.b16 %v3204, %v3196
    %v4805 = vpack.c.b16 %v3205, %v3197
    %v4806 = vpack.c.b16 %v3206, %v3198
    %v4807 = vpack.c.b16 %v3207, %v3199
    %v4808 = vpack.c.b16 %v3208, %v3200
    %v4809 = vpack.c.b16 %v3217, %v3209
    %v4810 = vpack.c.b16 %v3218, %v3210
    %v4811 = vpack.c.b16 %v3219, %v3211
    %v4812 = vpack.c.b16 %v3220, %v3212
    %v4813 = vpack.c.b16 %v3221, %v3213
    %v4814 = vpack.c.b16 %v3222, %v3214
    %v4815 = vpack.c.b16 %v3223, %v3215
    %v4816 = vpack.c.b16 %v3224, %v3216
    %v4817 = vpack.c.b16 %v3233, %v3225
    %v4818 = vpack.c.b16 %v3234, %v3226
    %v4819 = vpack.c.b16 %v3235, %v3227
    %v4820 = vpack.c.b16 %v3236, %v3228
    %v4821 = vpack.c.b16 %v3237, %v3229
    %v4822 = vpack.c.b16 %v3238, %v3230
    %v4823 = vpack.c.b16 %v3239, %v3231
    %v4824 = vpack.c.b16 %v3240, %v3232
    %v4825 = vpack.c.b16 %v3249, %v3241
    %v4826 = vpack.c.b16 %v3250, %v3242
    %v4827 = vpack.c.b16 %v3251, %v3243
    %v4828 = vpack.c.b16 %v3252, %v3244
    %v4829 = vpack.c.b16 %v3253, %v3245
    %v4830 = vpack.c.b16 %v3254, %v3246
    %v4831 = vpack.c.b16 %v3255, %v3247
    %v4832 = vpack.c.b16 %v3256, %v3248
    %v4833 = vpack.c.b16 %v3265, %v3257
    %v4834 = vpack.c.b16 %v3266, %v3258
    %v4835 = vpack.c.b16 %v3267, %v3259
    %v4836 = vpack.c.b16 %v3268, %v3260
    %v4837 = vpack.c.b16 %v3269, %v3261
    %v4838 = vpack.c.b16 %v3270, %v3262
    %v4839 = vpack.c.b16 %v3271, %v3263
    %v4840 = vpack.c.b16 %v3272, %v3264
    %v4841 = vpack.c.b16 %v3281, %v3273
    %v4842 = vpack.c.b16 %v3282, %v3274
    %v4843 = vpack.c.b16 %v3283, %v3275
    %v4844 = vpack.c.b16 %v3284, %v3276
    %v4845 = vpack.c.b16 %v3285, %v3277
    %v4846 = vpack.c.b16 %v3286, %v3278
    %v4847 = vpack.c.b16 %v3287, %v3279
    %v4848 = vpack.c.b16 %v3288, %v3280
    %v4849 = vpack.c.b16 %v3297, %v3289
    %v4850 = vpack.c.b16 %v3298, %v3290
    %v4851 = vpack.c.b16 %v3299, %v3291
    %v4852 = vpack.c.b16 %v3300, %v3292
    %v4853 = vpack.c.b16 %v3301, %v3293
    %v4854 = vpack.c.b16 %v3302, %v3294
    %v4855 = vpack.c.b16 %v3303, %v3295
    %v4856 = vpack.c.b16 %v3304, %v3296
    %v4857 = vpack.c.b16 %v3313, %v3305
    %v4858 = vpack.c.b16 %v3314, %v3306
    %v4859 = vpack.c.b16 %v3315, %v3307
    %v4860 = vpack.c.b16 %v3316, %v3308
    %v4861 = vpack.c.b16 %v3317, %v3309
    %v4862 = vpack.c.b16 %v3318, %v3310
    %v4863 = vpack.c.b16 %v3319, %v3311
    %v4864 = vpack.c.b16 %v3320, %v3312
    %v4865 = vpack.c.b16 %v3329, %v3321
    %v4866 = vpack.c.b16 %v3330, %v3322
    %v4867 = vpack.c.b16 %v3331, %v3323
    %v4868 = vpack.c.b16 %v3332, %v3324
    %v4869 = vpack.c.b16 %v3333, %v3325
    %v4870 = vpack.c.b16 %v3334, %v3326
    %v4871 = vpack.c.b16 %v3335, %v3327
    %v4872 = vpack.c.b16 %v3336, %v3328
    %v4873 = vpack.c.b16 %v3345, %v3337
    %v4874 = vpack.c.b16 %v3346, %v3338
    %v4875 = vpack.c.b16 %v3347, %v3339
    %v4876 = vpack.c.b16 %v3348, %v3340
    %v4877 = vpack.c.b16 %v3349, %v3341
    %v4878 = vpack.c.b16 %v3350, %v3342
    %v4879 = vpack.c.b16 %v3351, %v3343
    %v4880 = vpack.c.b16 %v3352, %v3344
    %v4881 = vpack.c.b16 %v3361, %v3353
    %v4882 = vpack.c.b16 %v3362, %v3354
    %v4883 = vpack.c.b16 %v3363, %v3355
    %v4884 = vpack.c.b16 %v3364, %v3356
    %v4885 = vpack.c.b16 %v3365, %v3357
    %v4886 = vpack.c.b16 %v3366, %v3358
    %v4887 = vpack.c.b16 %v3367, %v3359
    %v4888 = vpack.c.b16 %v3368, %v3360
    %v4889 = vpack.c.b16 %v3377, %v3369
    %v4890 = vpack.c.b16 %v3378, %v3370
    %v4891 = vpack.c.b16 %v3379, %v3371
    %v4892 = vpack.c.b16 %v3380, %v3372
    %v4893 = vpack.c.b16 %v3381, %v3373
    %v4894 = vpack.c.b16 %v3382, %v3374
    %v4895 = vpack.c.b16 %v3383, %v3375
    %v4896 = vpack.c.b16 %v3384, %v3376
    %v4897 = vpack.c.b16 %v3393, %v3385
    %v4898 = vpack.c.b16 %v3394, %v3386
    %v4899 = vpack.c.b16 %v3395, %v3387
    %v4900 = vpack.c.b16 %v3396, %v3388
    %v4901 = vpack.c.b16 %v3397, %v3389
    %v4902 = vpack.c.b16 %v3398, %v3390
    %v4903 = vpack.c.b16 %v3399, %v3391
    %v4904 = vpack.c.b16 %v3400, %v3392
    %v4905 = vpack.c.b16 %v3409, %v3401
    %v4906 = vpack.c.b16 %v3410, %v3402
    %v4907 = vpack.c.b16 %v3411, %v3403
    %v4908 = vpack.c.b16 %v3412, %v3404
    %v4909 = vpack.c.b16 %v3413, %v3405
    %v4910 = vpack.c.b16 %v3414, %v3406
    %v4911 = vpack.c.b16 %v3415, %v3407
    %v4912 = vpack.c.b16 %v3416, %v3408
    %v4913 = vpack.c.b16 %v3425, %v3417
    %v4914 = vpack.c.b16 %v3426, %v3418
    %v4915 = vpack.c.b16 %v3427, %v3419
    %v4916 = vpack.c.b16 %v3428, %v3420
    %v4917 = vpack.c.b16 %v3429, %v3421
    %v4918 = vpack.c.b16 %v3430, %v3422
    %v4919 = vpack.c.b16 %v3431, %v3423
    %v4920 = vpack.c.b16 %v3432, %v3424
    %v4921 = vpack.c.b16 %v3441, %v3433
    %v4922 = vpack.c.b16 %v3442, %v3434
    %v4923 = vpack.c.b16 %v3443, %v3435
    %v4924 = vpack.c.b16 %v3444, %v3436
    %v4925 = vpack.c.b16 %v3445, %v3437
    %v4926 = vpack.c.b16 %v3446, %v3438
    %v4927 = vpack.c.b16 %v3447, %v3439
    %v4928 = vpack.c.b16 %v3448, %v3440
    %v4929 = vpack.c.b16 %v3457, %v3449
    %v4930 = vpack.c.b16 %v3458, %v3450
    %v4931 = vpack.c.b16 %v3459, %v3451
    %v4932 = vpack.c.b16 %v3460, %v3452
    %v4933 = vpack.c.b16 %v3461, %v3453
    %v4934 = vpack.c.b16 %v3462, %v3454
    %v4935 = vpack.c.b16 %v3463, %v3455
    %v4936 = vpack.c.b16 %v3464, %v3456
    %v4937 = vpack.c.b16 %v3473, %v3465
    %v4938 = vpack.c.b16 %v3474, %v3466
    %v4939 = vpack.c.b16 %v3475, %v3467
    %v4940 = vpack.c.b16 %v3476, %v3468
    %v4941 = vpack.c.b16 %v3477, %v3469
    %v4942 = vpack.c.b16 %v3478, %v3470
    %v4943 = vpack.c.b16 %v3479, %v3471
    %v4944 = vpack.c.b16 %v3480, %v3472
    %v4945 = vpack.c.b16 %v3489, %v3481
    %v4946 = vpack.c.b16 %v3490, %v3482
    %v4947 = vpack.c.b16 %v3491, %v3483
    %v4948 = vpack.c.b16 %v3492, %v3484
    %v4949 = vpack.c.b16 %v3493, %v3485
    %v4950 = vpack.c.b16 %v3494, %v3486
    %v4951 = vpack.c.b16 %v3495, %v3487
    %v4952 = vpack.c.b16 %v3496, %v3488
    %v4953 = vpack.c.b16 %v3505, %v3497
    %v4954 = vpack.c.b16 %v3506, %v3498
    %v4955 = vpack.c.b16 %v3507, %v3499
    %v4956 = vpack.c.b16 %v3508, %v3500
    %v4957 = vpack.c.b16 %v3509, %v3501
    %v4958 = vpack.c.b16 %v3510, %v3502
    %v4959 = vpack.c.b16 %v3511, %v3503
    %v4960 = vpack.c.b16 %v3512, %v3504
    %v4961 = vpack.c.b16 %v3521, %v3513
    %v4962 = vpack.c.b16 %v3522, %v3514
    %v4963 = vpack.c.b16 %v3523, %v3515
    %v4964 = vpack.c.b16 %v3524, %v3516
    %v4965 = vpack.c.b16 %v3525, %v3517
    %v4966 = vpack.c.b16 %v3526, %v3518
    %v4967 = vpack.c.b16 %v3527, %v3519
    %v4968 = vpack.c.b16 %v3528, %v3520
    %v4969 = vpack.c.b16 %v3537, %v3529
    %v4970 = vpack.c.b16 %v3538, %v3530
    %v4971 = vpack.c.b16 %v3539, %v3531
    %v4972 = vpack.c.b16 %v3540, %v3532
    %v4973 = vpack.c.b16 %v3541, %v3533
    %v4974 = vpack.c.b16 %v3542, %v3534
    %v4975 = vpack.c.b16 %v3543, %v3535
    %v4976 = vpack.c.b16 %v3544, %v3536
    %v4977 = vpack.c.b16 %v3553, %v3545
    %v4978 = vpack.c.b16 %v3554, %v3546
    %v4979 = vpack.c.b16 %v3555, %v3547
    %v4980 = vpack.c.b16 %v3556, %v3548
    %v4981 = vpack.c.b16 %v3557, %v3549
    %v4982 = vpack.c.b16 %v3558, %v3550
    %v4983 = vpack.c.b16 %v3559, %v3551
    %v4984 = vpack.c.b16 %v3560, %v3552
    %v4985 = vpack.c.b16 %v3569, %v3561
    %v4986 = vpack.c.b16 %v3570, %v3562
    %v4987 = vpack.c.b16 %v3571, %v3563
    %v4988 = vpack.c.b16 %v3572, %v3564
    %v4989 = vpack.c.b16 %v3573, %v3565
    %v4990 = vpack.c.b16 %v3574, %v3566
    %v4991 = vpack.c.b16 %v3575, %v3567
    %v4992 = vpack.c.b16 %v3576, %v3568
    %v4993 = vpack.c.b16 %v3585, %v3577
    %v4994 = vpack.c.b16 %v3586, %v3578
    %v4995 = vpack.c.b16 %v3587, %v3579
    %v4996 = vpack.c.b16 %v3588, %v3580
    %v4997 = vpack.c.b16 %v3589, %v3581
    %v4998 = vpack.c.b16 %v3590, %v3582
    %v4999 = vpack.c.b16 %v3591, %v3583
    %v5000 = vpack.c.b16 %v3592, %v3584
    %v5001 = vpack.c.b16 %v3601, %v3593
    %v5002 = vpack.c.b16 %v3602, %v3594
    %v5003 = vpack.c.b16 %v3603, %v3595
    %v5004 = vpack.c.b16 %v3604, %v3596
    %v5005 = vpack.c.b16 %v3605, %v3597
    %v5006 = vpack.c.b16 %v3606, %v3598
    %v5007 = vpack.c.b16 %v3607, %v3599
    %v5008 = vpack.c.b16 %v3608, %v3600
    %v5009 = vpack.c.b16 %v3617, %v3609
    %v5010 = vpack.c.b16 %v3618, %v3610
    %v5011 = vpack.c.b16 %v3619, %v3611
    %v5012 = vpack.c.b16 %v3620, %v3612
    %v5013 = vpack.c.b16 %v3621, %v3613
    %v5014 = vpack.c.b16 %v3622, %v3614
    %v5015 = vpack.c.b16 %v3623, %v3615
    %v5016 = vpack.c.b16 %v3624, %v3616
    %v5017 = vpack.c.b16 %v3633, %v3625
    %v5018 = vpack.c.b16 %v3634, %v3626
    %v5019 = vpack.c.b16 %v3635, %v3627
    %v5020 = vpack.c.b16 %v3636, %v3628
    %v5021 = vpack.c.b16 %v3637, %v3629
    %v5022 = vpack.c.b16 %v3638, %v3630
    %v5023 = vpack.c.b16 %v3639, %v3631
    %v5024 = vpack.c.b16 %v3640, %v3632
    %v5025 = vpack.c.b16 %v3649, %v3641
    %v5026 = vpack.c.b16 %v3650, %v3642
    %v5027 = vpack.c.b16 %v3651, %v3643
    %v5028 = vpack.c.b16 %v3652, %v3644
    %v5029 = vpack.c.b16 %v3653, %v3645
    %v5030 = vpack.c.b16 %v3654, %v3646
    %v5031 = vpack.c.b16 %v3655, %v3647
    %v5032 = vpack.c.b16 %v3656, %v3648
    %v5033 = vpack.c.b16 %v3665, %v3657
    %v5034 = vpack.c.b16 %v3666, %v3658
    %v5035 = vpack.c.b16 %v3667, %v3659
    %v5036 = vpack.c.b16 %v3668, %v3660
    %v5037 = vpack.c.b16 %v3669, %v3661
    %v5038 = vpack.c.b16 %v3670, %v3662
    %v5039 = vpack.c.b16 %v3671, %v3663
    %v5040 = vpack.c.b16 %v3672, %v3664
    %v5041 = vpack.c.b16 %v3681, %v3673
    %v5042 = vpack.c.b16 %v3682, %v3674
    %v5043 = vpack.c.b16 %v3683, %v3675
    %v5044 = vpack.c.b16 %v3684, %v3676
    %v5045 = vpack.c.b16 %v3685, %v3677
    %v5046 = vpack.c.b16 %v3686, %v3678
    %v5047 = vpack.c.b16 %v3687, %v3679
    %v5048 = vpack.c.b16 %v3688, %v3680
    %v5049 = vpack.c.b16 %v3697, %v3689
    %v5050 = vpack.c.b16 %v3698, %v3690
    %v5051 = vpack.c.b16 %v3699, %v3691
    %v5052 = vpack.c.b16 %v3700, %v3692
    %v5053 = vpack.c.b16 %v3701, %v3693
    %v5054 = vpack.c.b16 %v3702, %v3694
    %v5055 = vpack.c.b16 %v3703, %v3695
    %v5056 = vpack.c.b16 %v3704, %v3696
    %v5057 = vpack.c.b16 %v3713, %v3705
    %v5058 = vpack.c.b16 %v3714, %v3706
    %v5059 = vpack.c.b16 %v3715, %v3707
    %v5060 = vpack.c.b16 %v3716, %v3708
    %v5061 = vpack.c.b16 %v3717, %v3709
    %v5062 = vpack.c.b16 %v3718, %v3710
    %v5063 = vpack.c.b16 %v3719, %v3711
    %v5064 = vpack.c.b16 %v3720, %v3712
    %v5065 = vpack.c.b16 %v3729, %v3721
    %v5066 = vpack.c.b16 %v3730, %v3722
    %v5067 = vpack.c.b16 %v3731, %v3723
    %v5068 = vpack.c.b16 %v3732, %v3724
    %v5069 = vpack.c.b16 %v3733, %v3725
    %v5070 = vpack.c.b16 %v3734, %v3726
    %v5071 = vpack.c.b16 %v3735, %v3727
    %v5072 = vpack.c.b16 %v3736, %v3728
    %v5073 = vpack.c.b16 %v3745, %v3737
    %v5074 = vpack.c.b16 %v3746, %v3738
    %v5075 = vpack.c.b16 %v3747, %v3739
    %v5076 = vpack.c.b16 %v3748, %v3740
    %v5077 = vpack.c.b16 %v3749, %v3741
    %v5078 = vpack.c.b16 %v3750, %v3742
    %v5079 = vpack.c.b16 %v3751, %v3743
    %v5080 = vpack.c.b16 %v3752, %v3744
    %v5081 = vpack.c.b16 %v3761, %v3753
    %v5082 = vpack.c.b16 %v3762, %v3754
    %v5083 = vpack.c.b16 %v3763, %v3755
    %v5084 = vpack.c.b16 %v3764, %v3756
    %v5085 = vpack.c.b16 %v3765, %v3757
    %v5086 = vpack.c.b16 %v3766, %v3758
    %v5087 = vpack.c.b16 %v3767, %v3759
    %v5088 = vpack.c.b16 %v3768, %v3760
    %v5089 = vpack.c.b16 %v3777, %v3769
    %v5090 = vpack.c.b16 %v3778, %v3770
    %v5091 = vpack.c.b16 %v3779, %v3771
    %v5092 = vpack.c.b16 %v3780, %v3772
    %v5093 = vpack.c.b16 %v3781, %v3773
    %v5094 = vpack.c.b16 %v3782, %v3774
    %v5095 = vpack.c.b16 %v3783, %v3775
    %v5096 = vpack.c.b16 %v3784, %v3776
    %v5097 = vpack.c.b16 %v3793, %v3785
    %v5098 = vpack.c.b16 %v3794, %v3786
    %v5099 = vpack.c.b16 %v3795, %v3787
    %v5100 = vpack.c.b16 %v3796, %v3788
    %v5101 = vpack.c.b16 %v3797, %v3789
    %v5102 = vpack.c.b16 %v3798, %v3790
    %v5103 = vpack.c.b16 %v3799, %v3791
    %v5104 = vpack.c.b16 %v3800, %v3792
    %v5105 = vpack.c.b16 %v3809, %v3801
    %v5106 = vpack.c.b16 %v3810, %v3802
    %v5107 = vpack.c.b16 %v3811, %v3803
    %v5108 = vpack.c.b16 %v3812, %v3804
    %v5109 = vpack.c.b16 %v3813, %v3805
    %v5110 = vpack.c.b16 %v3814, %v3806
    %v5111 = vpack.c.b16 %v3815, %v3807
    %v5112 = vpack.c.b16 %v3816, %v3808
    %v5113 = vpack.c.b16 %v3825, %v3817
    %v5114 = vpack.c.b16 %v3826, %v3818
    %v5115 = vpack.c.b16 %v3827, %v3819
    %v5116 = vpack.c.b16 %v3828, %v3820
    %v5117 = vpack.c.b16 %v3829, %v3821
    %v5118 = vpack.c.b16 %v3830, %v3822
    %v5119 = vpack.c.b16 %v3831, %v3823
    %v5120 = vpack.c.b16 %v3832, %v3824
    %v5121 = vpack.c.b16 %v3841, %v3833
    %v5122 = vpack.c.b16 %v3842, %v3834
    %v5123 = vpack.c.b16 %v3843, %v3835
    %v5124 = vpack.c.b16 %v3844, %v3836
    %v5125 = vpack.c.b16 %v3845, %v3837
    %v5126 = vpack.c.b16 %v3846, %v3838
    %v5127 = vpack.c.b16 %v3847, %v3839
    %v5128 = vpack.c.b16 %v3848, %v3840
    %v5129 = vpack.c.b16 %v3857, %v3849
    %v5130 = vpack.c.b16 %v3858, %v3850
    %v5131 = vpack.c.b16 %v3859, %v3851
    %v5132 = vpack.c.b16 %v3860, %v3852
    %v5133 = vpack.c.b16 %v3861, %v3853
    %v5134 = vpack.c.b16 %v3862, %v3854
    %v5135 = vpack.c.b16 %v3863, %v3855
    %v5136 = vpack.c.b16 %v3864, %v3856
    %v5137 = vpack.c.b16 %v3873, %v3865
    %v5138 = vpack.c.b16 %v3874, %v3866
    %v5139 = vpack.c.b16 %v3875, %v3867
    %v5140 = vpack.c.b16 %v3876, %v3868
    %v5141 = vpack.c.b16 %v3877, %v3869
    %v5142 = vpack.c.b16 %v3878, %v3870
    %v5143 = vpack.c.b16 %v3879, %v3871
    %v5144 = vpack.c.b16 %v3880, %v3872
    %v5145 = vpack.c.b16 %v3889, %v3881
    %v5146 = vpack.c.b16 %v3890, %v3882
    %v5147 = vpack.c.b16 %v3891, %v3883
    %v5148 = vpack.c.b16 %v3892, %v3884
    %v5149 = vpack.c.b16 %v3893, %v3885
    %v5150 = vpack.c.b16 %v3894, %v3886
    %v5151 = vpack.c.b16 %v3895, %v3887
    %v5152 = vpack.c.b16 %v3896, %v3888
    %v5153 = vpack.c.b16 %v3905, %v3897
    %v5154 = vpack.c.b16 %v3906, %v3898
    %v5155 = vpack.c.b16 %v3907, %v3899
    %v5156 = vpack.c.b16 %v3908, %v3900
    %v5157 = vpack.c.b16 %v3909, %v3901
    %v5158 = vpack.c.b16 %v3910, %v3902
    %v5159 = vpack.c.b16 %v3911, %v3903
    %v5160 = vpack.c.b16 %v3912, %v3904
    %v5161 = vpack.c.b16 %v3921, %v3913
    %v5162 = vpack.c.b16 %v3922, %v3914
    %v5163 = vpack.c.b16 %v3923, %v3915
    %v5164 = vpack.c.b16 %v3924, %v3916
    %v5165 = vpack.c.b16 %v3925, %v3917
    %v5166 = vpack.c.b16 %v3926, %v3918
    %v5167 = vpack.c.b16 %v3927, %v3919
    %v5168 = vpack.c.b16 %v3928, %v3920
    %v5169 = vpack.c.b16 %v3937, %v3929
    %v5170 = vpack.c.b16 %v3938, %v3930
    %v5171 = vpack.c.b16 %v3939, %v3931
    %v5172 = vpack.c.b16 %v3940, %v3932
    %v5173 = vpack.c.b16 %v3941, %v3933
    %v5174 = vpack.c.b16 %v3942, %v3934
    %v5175 = vpack.c.b16 %v3943, %v3935
    %v5176 = vpack.c.b16 %v3944, %v3936
    %v5177 = vpack.c.b16 %v3953, %v3945
    %v5178 = vpack.c.b16 %v3954, %v3946
    %v5179 = vpack.c.b16 %v3955, %v3947
    %v5180 = vpack.c.b16 %v3956, %v3948
    %v5181 = vpack.c.b16 %v3957, %v3949
    %v5182 = vpack.c.b16 %v3958, %v3950
    %v5183 = vpack.c.b16 %v3959, %v3951
    %v5184 = vpack.c.b16 %v3960, %v3952
    %v5185 = vpack.c.b16 %v3969, %v3961
    %v5186 = vpack.c.b16 %v3970, %v3962
    %v5187 = vpack.c.b16 %v3971, %v3963
    %v5188 = vpack.c.b16 %v3972, %v3964
    %v5189 = vpack.c.b16 %v3973, %v3965
    %v5190 = vpack.c.b16 %v3974, %v3966
    %v5191 = vpack.c.b16 %v3975, %v3967
    %v5192 = vpack.c.b16 %v3976, %v3968
    %v5193 = vpack.c.b16 %v3985, %v3977
    %v5194 = vpack.c.b16 %v3986, %v3978
    %v5195 = vpack.c.b16 %v3987, %v3979
    %v5196 = vpack.c.b16 %v3988, %v3980
    %v5197 = vpack.c.b16 %v3989, %v3981
    %v5198 = vpack.c.b16 %v3990, %v3982
    %v5199 = vpack.c.b16 %v3991, %v3983
    %v5200 = vpack.c.b16 %v3992, %v3984
    %v5201 = vpack.c.b16 %v4001, %v3993
    %v5202 = vpack.c.b16 %v4002, %v3994
    %v5203 = vpack.c.b16 %v4003, %v3995
    %v5204 = vpack.c.b16 %v4004, %v3996
    %v5205 = vpack.c.b16 %v4005, %v3997
    %v5206 = vpack.c.b16 %v4006, %v3998
    %v5207 = vpack.c.b16 %v4007, %v3999
    %v5208 = vpack.c.b16 %v4008, %v4000
    %v5209 = vpack.c.b16 %v4017, %v4009
    %v5210 = vpack.c.b16 %v4018, %v4010
    %v5211 = vpack.c.b16 %v4019, %v4011
    %v5212 = vpack.c.b16 %v4020, %v4012
    %v5213 = vpack.c.b16 %v4021, %v4013
    %v5214 = vpack.c.b16 %v4022, %v4014
    %v5215 = vpack.c.b16 %v4023, %v4015
    %v5216 = vpack.c.b16 %v4024, %v4016
    %v5217 = vpack.c.b16 %v4033, %v4025
    %v5218 = vpack.c.b16 %v4034, %v4026
    %v5219 = vpack.c.b16 %v4035, %v4027
    %v5220 = vpack.c.b16 %v4036, %v4028
    %v5221 = vpack.c.b16 %v4037, %v4029
    %v5222 = vpack.c.b16 %v4038, %v4030
    %v5223 = vpack.c.b16 %v4039, %v4031
    %v5224 = vpack.c.b16 %v4040, %v4032
    %v5225 = vpack.c.b16 %v4049, %v4041
    %v5226 = vpack.c.b16 %v4050, %v4042
    %v5227 = vpack.c.b16 %v4051, %v4043
    %v5228 = vpack.c.b16 %v4052, %v4044
    %v5229 = vpack.c.b16 %v4053, %v4045
    %v5230 = vpack.c.b16 %v4054, %v4046
    %v5231 = vpack.c.b16 %v4055, %v4047
    %v5232 = vpack.c.b16 %v4056, %v4048
    %v5233 = vpack.c.b16 %v4065, %v4057
    %v5234 = vpack.c.b16 %v4066, %v4058
    %v5235 = vpack.c.b16 %v4067, %v4059
    %v5236 = vpack.c.b16 %v4068, %v4060
    %v5237 = vpack.c.b16 %v4069, %v4061
    %v5238 = vpack.c.b16 %v4070, %v4062
    %v5239 = vpack.c.b16 %v4071, %v4063
    %v5240 = vpack.c.b16 %v4072, %v4064
    %v5241 = vpack.c.b16 %v4081, %v4073
    %v5242 = vpack.c.b16 %v4082, %v4074
    %v5243 = vpack.c.b16 %v4083, %v4075
    %v5244 = vpack.c.b16 %v4084, %v4076
    %v5245 = vpack.c.b16 %v4085, %v4077
    %v5246 = vpack.c.b16 %v4086, %v4078
    %v5247 = vpack.c.b16 %v4087, %v4079
    %v5248 = vpack.c.b16 %v4088, %v4080
    %v5249 = vpack.c.b16 %v4097, %v4089
    %v5250 = vpack.c.b16 %v4098, %v4090
    %v5251 = vpack.c.b16 %v4099, %v4091
    %v5252 = vpack.c.b16 %v4100, %v4092
    %v5253 = vpack.c.b16 %v4101, %v4093
    %v5254 = vpack.c.b16 %v4102, %v4094
    %v5255 = vpack.c.b16 %v4103, %v4095
    %v5256 = vpack.c.b16 %v4104, %v4096
    %v5257 = vpack.c.b16 %v4113, %v4105
    %v5258 = vpack.c.b16 %v4114, %v4106
    %v5259 = vpack.c.b16 %v4115, %v4107
    %v5260 = vpack.c.b16 %v4116, %v4108
    %v5261 = vpack.c.b16 %v4117, %v4109
    %v5262 = vpack.c.b16 %v4118, %v4110
    %v5263 = vpack.c.b16 %v4119, %v4111
    %v5264 = vpack.c.b16 %v4120, %v4112
    %v5265 = vpack.c.b16 %v4129, %v4121
    %v5266 = vpack.c.b16 %v4130, %v4122
    %v5267 = vpack.c.b16 %v4131, %v4123
    %v5268 = vpack.c.b16 %v4132, %v4124
    %v5269 = vpack.c.b16 %v4133, %v4125
    %v5270 = vpack.c.b16 %v4134, %v4126
    %v5271 = vpack.c.b16 %v4135, %v4127
    %v5272 = vpack.c.b16 %v4136, %v4128
    %v5273 = vpack.c.b16 %v4145, %v4137
    %v5274 = vpack.c.b16 %v4146, %v4138
    %v5275 = vpack.c.b16 %v4147, %v4139
    %v5276 = vpack.c.b16 %v4148, %v4140
    %v5277 = vpack.c.b16 %v4149, %v4141
    %v5278 = vpack.c.b16 %v4150, %v4142
    %v5279 = vpack.c.b16 %v4151, %v4143
    %v5280 = vpack.c.b16 %v4152, %v4144
    %v5281 = vpack.c.b16 %v4161, %v4153
    %v5282 = vpack.c.b16 %v4162, %v4154
    %v5283 = vpack.c.b16 %v4163, %v4155
    %v5284 = vpack.c.b16 %v4164, %v4156
    %v5285 = vpack.c.b16 %v4165, %v4157
    %v5286 = vpack.c.b16 %v4166, %v4158
    %v5287 = vpack.c.b16 %v4167, %v4159
    %v5288 = vpack.c.b16 %v4168, %v4160
    %v5289 = vpack.c.b16 %v4177, %v4169
    %v5290 = vpack.c.b16 %v4178, %v4170
    %v5291 = vpack.c.b16 %v4179, %v4171
    %v5292 = vpack.c.b16 %v4180, %v4172
    %v5293 = vpack.c.b16 %v4181, %v4173
    %v5294 = vpack.c.b16 %v4182, %v4174
    %v5295 = vpack.c.b16 %v4183, %v4175
    %v5296 = vpack.c.b16 %v4184, %v4176
    %v5297 = vpack.c.b16 %v4193, %v4185
    %v5298 = vpack.c.b16 %v4194, %v4186
    %v5299 = vpack.c.b16 %v4195, %v4187
    %v5300 = vpack.c.b16 %v4196, %v4188
    %v5301 = vpack.c.b16 %v4197, %v4189
    %v5302 = vpack.c.b16 %v4198, %v4190
    %v5303 = vpack.c.b16 %v4199, %v4191
    %v5304 = vpack.c.b16 %v4200, %v4192
    %v5305 = vpack.c.b16 %v4209, %v4201
    %v5306 = vpack.c.b16 %v4210, %v4202
    %v5307 = vpack.c.b16 %v4211, %v4203
    %v5308 = vpack.c.b16 %v4212, %v4204
    %v5309 = vpack.c.b16 %v4213, %v4205
    %v5310 = vpack.c.b16 %v4214, %v4206
    %v5311 = vpack.c.b16 %v4215, %v4207
    %v5312 = vpack.c.b16 %v4216, %v4208
    %v5313 = vpack.c.b16 %v4225, %v4217
    %v5314 = vpack.c.b16 %v4226, %v4218
    %v5315 = vpack.c.b16 %v4227, %v4219
    %v5316 = vpack.c.b16 %v4228, %v4220
    %v5317 = vpack.c.b16 %v4229, %v4221
    %v5318 = vpack.c.b16 %v4230, %v4222
    %v5319 = vpack.c.b16 %v4231, %v4223
    %v5320 = vpack.c.b16 %v4232, %v4224
    %v5321 = vpack.c.b16 %v4241, %v4233
    %v5322 = vpack.c.b16 %v4242, %v4234
    %v5323 = vpack.c.b16 %v4243, %v4235
    %v5324 = vpack.c.b16 %v4244, %v4236
    %v5325 = vpack.c.b16 %v4245, %v4237
    %v5326 = vpack.c.b16 %v4246, %v4238
    %v5327 = vpack.c.b16 %v4247, %v4239
    %v5328 = vpack.c.b16 %v4248, %v4240
    %v5329 = vpack.c.b16 %v4257, %v4249
    %v5330 = vpack.c.b16 %v4258, %v4250
    %v5331 = vpack.c.b16 %v4259, %v4251
    %v5332 = vpack.c.b16 %v4260, %v4252
    %v5333 = vpack.c.b16 %v4261, %v4253
    %v5334 = vpack.c.b16 %v4262, %v4254
    %v5335 = vpack.c.b16 %v4263, %v4255
    %v5336 = vpack.c.b16 %v4264, %v4256
    %v5337 = vpack.c.b16 %v4273, %v4265
    %v5338 = vpack.c.b16 %v4274, %v4266
    %v5339 = vpack.c.b16 %v4275, %v4267
    %v5340 = vpack.c.b16 %v4276, %v4268
    %v5341 = vpack.c.b16 %v4277, %v4269
    %v5342 = vpack.c.b16 %v4278, %v4270
    %v5343 = vpack.c.b16 %v4279, %v4271
    %v5344 = vpack.c.b16 %v4280, %v4272
    %v5345 = vpack.c.b16 %v4289, %v4281
    %v5346 = vpack.c.b16 %v4290, %v4282
    %v5347 = vpack.c.b16 %v4291, %v4283
    %v5348 = vpack.c.b16 %v4292, %v4284
    %v5349 = vpack.c.b16 %v4293, %v4285
    %v5350 = vpack.c.b16 %v4294, %v4286
    %v5351 = vpack.c.b16 %v4295, %v4287
    %v5352 = vpack.c.b16 %v4296, %v4288
    %v5353 = vpack.c.b16 %v4305, %v4297
    %v5354 = vpack.c.b16 %v4306, %v4298
    %v5355 = vpack.c.b16 %v4307, %v4299
    %v5356 = vpack.c.b16 %v4308, %v4300
    %v5357 = vpack.c.b16 %v4309, %v4301
    %v5358 = vpack.c.b16 %v4310, %v4302
    %v5359 = vpack.c.b16 %v4311, %v4303
    %v5360 = vpack.c.b16 %v4312, %v4304
    %v5361 = vpack.c.b16 %v4321, %v4313
    %v5362 = vpack.c.b16 %v4322, %v4314
    %v5363 = vpack.c.b16 %v4323, %v4315
    %v5364 = vpack.c.b16 %v4324, %v4316
    %v5365 = vpack.c.b16 %v4325, %v4317
    %v5366 = vpack.c.b16 %v4326, %v4318
    %v5367 = vpack.c.b16 %v4327, %v4319
    %v5368 = vpack.c.b16 %v4328, %v4320
    %v5369 = vpack.c.b16 %v4337, %v4329
    %v5370 = vpack.c.b16 %v4338, %v4330
    %v5371 = vpack.c.b16 %v4339, %v4331
    %v5372 = vpack.c.b16 %v4340, %v4332
    %v5373 = vpack.c.b16 %v4341, %v4333
    %v5374 = vpack.c.b16 %v4342, %v4334
    %v5375 = vpack.c.b16 %v4343, %v4335
    %v5376 = vpack.c.b16 %v4344, %v4336
    %v5377 = vpack.c.b16 %v4353, %v4345
    %v5378 = vpack.c.b16 %v4354, %v4346
    %v5379 = vpack.c.b16 %v4355, %v4347
    %v5380 = vpack.c.b16 %v4356, %v4348
    %v5381 = vpack.c.b16 %v4357, %v4349
    %v5382 = vpack.c.b16 %v4358, %v4350
    %v5383 = vpack.c.b16 %v4359, %v4351
    %v5384 = vpack.c.b16 %v4360, %v4352
    %6409 = vmatprep.subr.bf16.mxu0 %v4362
    %6410 = vmatpush1.bf16.msra.mxu0 %v4361
    %6411 = vmatprep.subr.bf16.mxu0 %v4370
    %6412 = vmatpush1.bf16.msra.mxu0 %v4369
    %6413 = vmatprep.subr.bf16.mxu0 %v4378
    %6414 = vmatpush1.bf16.msra.mxu0 %v4377
    %6415 = vmatprep.subr.bf16.mxu0 %v4386
    %6416 = vmatpush1.bf16.msra.mxu0 %v4385
    %6417 = vmatprep.subr.bf16.mxu0 %v4394
    %6418 = vmatpush1.bf16.msra.mxu0 %v4393
    %6419 = vmatprep.subr.bf16.mxu0 %v4402
    %6420 = vmatpush1.bf16.msra.mxu0 %v4401
    %6421 = vmatprep.subr.bf16.mxu0 %v4410
    %6422 = vmatpush1.bf16.msra.mxu0 %v4409
    %6423 = vmatprep.subr.bf16.mxu0 %v4418
    %6424 = vmatpush1.bf16.msra.mxu0 %v4417
    %6425 = vmatprep.subr.bf16.mxu0 %v4426
    %6426 = vmatpush1.bf16.msra.mxu0 %v4425
    %6427 = vmatprep.subr.bf16.mxu0 %v4434
    %6428 = vmatpush1.bf16.msra.mxu0 %v4433
    %6429 = vmatprep.subr.bf16.mxu0 %v4442
    %6430 = vmatpush1.bf16.msra.mxu0 %v4441
    %6431 = vmatprep.subr.bf16.mxu0 %v4450
    %6432 = vmatpush1.bf16.msra.mxu0 %v4449
    %6433 = vmatprep.subr.bf16.mxu0 %v4458
    %6434 = vmatpush1.bf16.msra.mxu0 %v4457
    %6435 = vmatprep.subr.bf16.mxu0 %v4466
    %6436 = vmatpush1.bf16.msra.mxu0 %v4465
    %6437 = vmatprep.subr.bf16.mxu0 %v4474
    %6438 = vmatpush1.bf16.msra.mxu0 %v4473
    %6439 = vmatprep.subr.bf16.mxu0 %v4482
    %6440 = vmatpush1.bf16.msra.mxu0 %v4481
    %6441 = vmatprep.mubr.bf16.mxu0 %v208
    %6442 = vmatmul.mubr.bf16.gmra.mrb[0].mxu0 %v207
    %v6443 = vpop.f32.mrb[0].mxu0
    %v6444 = vadd.f32 %v1252, %v6443
    %v6445 = vpop.f32.mrb[0].mxu0
    %v6446 = vadd.f32 %v1256, %v6445
    %v6447 = vpop.f32.mrb[0].mxu0
    %v6448 = vpop.f32.mrb[0].mxu0
    %6449 = vdwg.mxu0
    %6450 = vmatprep.subr.bf16.mxu0 %v4490
    %6451 = vmatpush1.bf16.msra.mxu0 %v4489
    %6452 = vmatprep.subr.bf16.mxu0 %v4498
    %6453 = vmatpush1.bf16.msra.mxu0 %v4497
    %6454 = vmatprep.subr.bf16.mxu0 %v4506
    %6455 = vmatpush1.bf16.msra.mxu0 %v4505
    %6456 = vmatprep.subr.bf16.mxu0 %v4514
    %6457 = vmatpush1.bf16.msra.mxu0 %v4513
    %6458 = vmatprep.subr.bf16.mxu0 %v4522
    %6459 = vmatpush1.bf16.msra.mxu0 %v4521
    %6460 = vmatprep.subr.bf16.mxu0 %v4530
    %6461 = vmatpush1.bf16.msra.mxu0 %v4529
    %6462 = vmatprep.subr.bf16.mxu0 %v4538
    %6463 = vmatpush1.bf16.msra.mxu0 %v4537
    %6464 = vmatprep.subr.bf16.mxu0 %v4546
    %6465 = vmatpush1.bf16.msra.mxu0 %v4545
    %6466 = vmatprep.subr.bf16.mxu0 %v4554
    %6467 = vmatpush1.bf16.msra.mxu0 %v4553
    %6468 = vmatprep.subr.bf16.mxu0 %v4562
    %6469 = vmatpush1.bf16.msra.mxu0 %v4561
    %6470 = vmatprep.subr.bf16.mxu0 %v4570
    %6471 = vmatpush1.bf16.msra.mxu0 %v4569
    %6472 = vmatprep.subr.bf16.mxu0 %v4578
    %6473 = vmatpush1.bf16.msra.mxu0 %v4577
    %6474 = vmatprep.subr.bf16.mxu0 %v4586
    %6475 = vmatpush1.bf16.msra.mxu0 %v4585
    %6476 = vmatprep.subr.bf16.mxu0 %v4594
    %6477 = vmatpush1.bf16.msra.mxu0 %v4593
    %6478 = vmatprep.subr.bf16.mxu0 %v4602
    %6479 = vmatpush1.bf16.msra.mxu0 %v4601
    %6480 = vmatprep.subr.bf16.mxu0 %v4610
    %6481 = vmatpush1.bf16.msra.mxu0 %v4609
    %6482 = vmatprep.mubr.bf16.mxu0 %v210
    %6483 = vmatmul.mubr.bf16.gmra.mrb[0].mxu0 %v209
    %v6484 = vpop.f32.mrb[0].mxu0
    %v6485 = vadd.f32 %v6444, %v6484
    %v6486 = vpop.f32.mrb[0].mxu0
    %v6487 = vadd.f32 %v6446, %v6486
    %v6488 = vpop.f32.mrb[0].mxu0
    %v6489 = vpop.f32.mrb[0].mxu0
    %6490 = vdwg.mxu0
    %6491 = vmatprep.subr.bf16.mxu0 %v4618
    %6492 = vmatpush1.bf16.msra.mxu0 %v4617
    %6493 = vmatprep.subr.bf16.mxu0 %v4626
    %6494 = vmatpush1.bf16.msra.mxu0 %v4625
    %6495 = vmatprep.subr.bf16.mxu0 %v4634
    %6496 = vmatpush1.bf16.msra.mxu0 %v4633
    %6497 = vmatprep.subr.bf16.mxu0 %v4642
    %6498 = vmatpush1.bf16.msra.mxu0 %v4641
    %6499 = vmatprep.subr.bf16.mxu0 %v4650
    %6500 = vmatpush1.bf16.msra.mxu0 %v4649
    %6501 = vmatprep.subr.bf16.mxu0 %v4658
    %6502 = vmatpush1.bf16.msra.mxu0 %v4657
    %6503 = vmatprep.subr.bf16.mxu0 %v4666
    %6504 = vmatpush1.bf16.msra.mxu0 %v4665
    %6505 = vmatprep.subr.bf16.mxu0 %v4674
    %6506 = vmatpush1.bf16.msra.mxu0 %v4673
    %6507 = vmatprep.subr.bf16.mxu0 %v4682
    %6508 = vmatpush1.bf16.msra.mxu0 %v4681
    %6509 = vmatprep.subr.bf16.mxu0 %v4690
    %6510 = vmatpush1.bf16.msra.mxu0 %v4689
    %6511 = vmatprep.subr.bf16.mxu0 %v4698
    %6512 = vmatpush1.bf16.msra.mxu0 %v4697
    %6513 = vmatprep.subr.bf16.mxu0 %v4706
    %6514 = vmatpush1.bf16.msra.mxu0 %v4705
    %6515 = vmatprep.subr.bf16.mxu0 %v4714
    %6516 = vmatpush1.bf16.msra.mxu0 %v4713
    %6517 = vmatprep.subr.bf16.mxu0 %v4722
    %6518 = vmatpush1.bf16.msra.mxu0 %v4721
    %6519 = vmatprep.subr.bf16.mxu0 %v4730
    %6520 = vmatpush1.bf16.msra.mxu0 %v4729
    %6521 = vmatprep.subr.bf16.mxu0 %v4738
    %6522 = vmatpush1.bf16.msra.mxu0 %v4737
    %6523 = vmatprep.mubr.bf16.mxu0 %v212
    %6524 = vmatmul.mubr.bf16.gmra.mrb[0].mxu0 %v211
    %v6525 = vpop.f32.mrb[0].mxu0
    %v6526 = vadd.f32 %v6485, %v6525
    %v6527 = vpop.f32.mrb[0].mxu0
    %v6528 = vadd.f32 %v6487, %v6527
    %v6529 = vpop.f32.mrb[0].mxu0
    %v6530 = vpop.f32.mrb[0].mxu0
    %6531 = vdwg.mxu0
    %6532 = vmatprep.subr.bf16.mxu0 %v4746
    %6533 = vmatpush1.bf16.msra.mxu0 %v4745
    %6534 = vmatprep.subr.bf16.mxu0 %v4754
    %6535 = vmatpush1.bf16.msra.mxu0 %v4753
    %6536 = vmatprep.subr.bf16.mxu0 %v4762
    %6537 = vmatpush1.bf16.msra.mxu0 %v4761
    %6538 = vmatprep.subr.bf16.mxu0 %v4770
    %6539 = vmatpush1.bf16.msra.mxu0 %v4769
    %6540 = vmatprep.subr.bf16.mxu0 %v4778
    %6541 = vmatpush1.bf16.msra.mxu0 %v4777
    %6542 = vmatprep.subr.bf16.mxu0 %v4786
    %6543 = vmatpush1.bf16.msra.mxu0 %v4785
    %6544 = vmatprep.subr.bf16.mxu0 %v4794
    %6545 = vmatpush1.bf16.msra.mxu0 %v4793
    %6546 = vmatprep.subr.bf16.mxu0 %v4802
    %6547 = vmatpush1.bf16.msra.mxu0 %v4801
    %6548 = vmatprep.subr.bf16.mxu0 %v4810
    %6549 = vmatpush1.bf16.msra.mxu0 %v4809
    %6550 = vmatprep.subr.bf16.mxu0 %v4818
    %6551 = vmatpush1.bf16.msra.mxu0 %v4817
    %6552 = vmatprep.subr.bf16.mxu0 %v4826
    %6553 = vmatpush1.bf16.msra.mxu0 %v4825
    %6554 = vmatprep.subr.bf16.mxu0 %v4834
    %6555 = vmatpush1.bf16.msra.mxu0 %v4833
    %6556 = vmatprep.subr.bf16.mxu0 %v4842
    %6557 = vmatpush1.bf16.msra.mxu0 %v4841
    %6558 = vmatprep.subr.bf16.mxu0 %v4850
    %6559 = vmatpush1.bf16.msra.mxu0 %v4849
    %6560 = vmatprep.subr.bf16.mxu0 %v4858
    %6561 = vmatpush1.bf16.msra.mxu0 %v4857
    %6562 = vmatprep.subr.bf16.mxu0 %v4866
    %6563 = vmatpush1.bf16.msra.mxu0 %v4865
    %6564 = vmatprep.mubr.bf16.mxu0 %v214
    %6565 = vmatmul.mubr.bf16.gmra.mrb[0].mxu0 %v213
    %v6566 = vpop.f32.mrb[0].mxu0
    %v6567 = vadd.f32 %v6526, %v6566
    %v6568 = vpop.f32.mrb[0].mxu0
    %v6569 = vadd.f32 %v6528, %v6568
    %v6570 = vpop.f32.mrb[0].mxu0
    %v6571 = vpop.f32.mrb[0].mxu0
    %6572 = vdwg.mxu0
    %6573 = vmatprep.subr.bf16.mxu0 %v4874
    %6574 = vmatpush1.bf16.msra.mxu0 %v4873
    %6575 = vmatprep.subr.bf16.mxu0 %v4882
    %6576 = vmatpush1.bf16.msra.mxu0 %v4881
    %6577 = vmatprep.subr.bf16.mxu0 %v4890
    %6578 = vmatpush1.bf16.msra.mxu0 %v4889
    %6579 = vmatprep.subr.bf16.mxu0 %v4898
    %6580 = vmatpush1.bf16.msra.mxu0 %v4897
    %6581 = vmatprep.subr.bf16.mxu0 %v4906
    %6582 = vmatpush1.bf16.msra.mxu0 %v4905
    %6583 = vmatprep.subr.bf16.mxu0 %v4914
    %6584 = vmatpush1.bf16.msra.mxu0 %v4913
    %6585 = vmatprep.subr.bf16.mxu0 %v4922
    %6586 = vmatpush1.bf16.msra.mxu0 %v4921
    %6587 = vmatprep.subr.bf16.mxu0 %v4930
    %6588 = vmatpush1.bf16.msra.mxu0 %v4929
    %6589 = vmatprep.subr.bf16.mxu0 %v4938
    %6590 = vmatpush1.bf16.msra.mxu0 %v4937
    %6591 = vmatprep.subr.bf16.mxu0 %v4946
    %6592 = vmatpush1.bf16.msra.mxu0 %v4945
    %6593 = vmatprep.subr.bf16.mxu0 %v4954
    %6594 = vmatpush1.bf16.msra.mxu0 %v4953
    %6595 = vmatprep.subr.bf16.mxu0 %v4962
    %6596 = vmatpush1.bf16.msra.mxu0 %v4961
    %6597 = vmatprep.subr.bf16.mxu0 %v4970
    %6598 = vmatpush1.bf16.msra.mxu0 %v4969
    %6599 = vmatprep.subr.bf16.mxu0 %v4978
    %6600 = vmatpush1.bf16.msra.mxu0 %v4977
    %6601 = vmatprep.subr.bf16.mxu0 %v4986
    %6602 = vmatpush1.bf16.msra.mxu0 %v4985
    %6603 = vmatprep.subr.bf16.mxu0 %v4994
    %6604 = vmatpush1.bf16.msra.mxu0 %v4993
    %6605 = vmatprep.mubr.bf16.mxu0 %v216
    %6606 = vmatmul.mubr.bf16.gmra.mrb[0].mxu0 %v215
    %v6607 = vpop.f32.mrb[0].mxu0
    %v6608 = vadd.f32 %v6567, %v6607
    %v6609 = vpop.f32.mrb[0].mxu0
    %v6610 = vadd.f32 %v6569, %v6609
    %v6611 = vpop.f32.mrb[0].mxu0
    %v6612 = vpop.f32.mrb[0].mxu0
    %6613 = vdwg.mxu0
    %6614 = vmatprep.subr.bf16.mxu0 %v5002
    %6615 = vmatpush1.bf16.msra.mxu0 %v5001
    %6616 = vmatprep.subr.bf16.mxu0 %v5010
    %6617 = vmatpush1.bf16.msra.mxu0 %v5009
    %6618 = vmatprep.subr.bf16.mxu0 %v5018
    %6619 = vmatpush1.bf16.msra.mxu0 %v5017
    %6620 = vmatprep.subr.bf16.mxu0 %v5026
    %6621 = vmatpush1.bf16.msra.mxu0 %v5025
    %6622 = vmatprep.subr.bf16.mxu0 %v5034
    %6623 = vmatpush1.bf16.msra.mxu0 %v5033
    %6624 = vmatprep.subr.bf16.mxu0 %v5042
    %6625 = vmatpush1.bf16.msra.mxu0 %v5041
    %6626 = vmatprep.subr.bf16.mxu0 %v5050
    %6627 = vmatpush1.bf16.msra.mxu0 %v5049
    %6628 = vmatprep.subr.bf16.mxu0 %v5058
    %6629 = vmatpush1.bf16.msra.mxu0 %v5057
    %6630 = vmatprep.subr.bf16.mxu0 %v5066
    %6631 = vmatpush1.bf16.msra.mxu0 %v5065
    %6632 = vmatprep.subr.bf16.mxu0 %v5074
    %6633 = vmatpush1.bf16.msra.mxu0 %v5073
    %6634 = vmatprep.subr.bf16.mxu0 %v5082
    %6635 = vmatpush1.bf16.msra.mxu0 %v5081
    %6636 = vmatprep.subr.bf16.mxu0 %v5090
    %6637 = vmatpush1.bf16.msra.mxu0 %v5089
    %6638 = vmatprep.subr.bf16.mxu0 %v5098
    %6639 = vmatpush1.bf16.msra.mxu0 %v5097
    %6640 = vmatprep.subr.bf16.mxu0 %v5106
    %6641 = vmatpush1.bf16.msra.mxu0 %v5105
    %6642 = vmatprep.subr.bf16.mxu0 %v5114
    %6643 = vmatpush1.bf16.msra.mxu0 %v5113
    %6644 = vmatprep.subr.bf16.mxu0 %v5122
    %6645 = vmatpush1.bf16.msra.mxu0 %v5121
    %6646 = vmatprep.mubr.bf16.mxu0 %v218
    %6647 = vmatmul.mubr.bf16.gmra.mrb[0].mxu0 %v217
    %v6648 = vpop.f32.mrb[0].mxu0
    %v6649 = vadd.f32 %v6608, %v6648
    %v6650 = vpop.f32.mrb[0].mxu0
    %v6651 = vadd.f32 %v6610, %v6650
    %v6652 = vpop.f32.mrb[0].mxu0
    %v6653 = vpop.f32.mrb[0].mxu0
    %6654 = vdwg.mxu0
    %6655 = vmatprep.subr.bf16.mxu0 %v5130
    %6656 = vmatpush1.bf16.msra.mxu0 %v5129
    %6657 = vmatprep.subr.bf16.mxu0 %v5138
    %6658 = vmatpush1.bf16.msra.mxu0 %v5137
    %6659 = vmatprep.subr.bf16.mxu0 %v5146
    %6660 = vmatpush1.bf16.msra.mxu0 %v5145
    %6661 = vmatprep.subr.bf16.mxu0 %v5154
    %6662 = vmatpush1.bf16.msra.mxu0 %v5153
    %6663 = vmatprep.subr.bf16.mxu0 %v5162
    %6664 = vmatpush1.bf16.msra.mxu0 %v5161
    %6665 = vmatprep.subr.bf16.mxu0 %v5170
    %6666 = vmatpush1.bf16.msra.mxu0 %v5169
    %6667 = vmatprep.subr.bf16.mxu0 %v5178
    %6668 = vmatpush1.bf16.msra.mxu0 %v5177
    %6669 = vmatprep.subr.bf16.mxu0 %v5186
    %6670 = vmatpush1.bf16.msra.mxu0 %v5185
    %6671 = vmatprep.subr.bf16.mxu0 %v5194
    %6672 = vmatpush1.bf16.msra.mxu0 %v5193
    %6673 = vmatprep.subr.bf16.mxu0 %v5202
    %6674 = vmatpush1.bf16.msra.mxu0 %v5201
    %6675 = vmatprep.subr.bf16.mxu0 %v5210
    %6676 = vmatpush1.bf16.msra.mxu0 %v5209
    %6677 = vmatprep.subr.bf16.mxu0 %v5218
    %6678 = vmatpush1.bf16.msra.mxu0 %v5217
    %6679 = vmatprep.subr.bf16.mxu0 %v5226
    %6680 = vmatpush1.bf16.msra.mxu0 %v5225
    %6681 = vmatprep.subr.bf16.mxu0 %v5234
    %6682 = vmatpush1.bf16.msra.mxu0 %v5233
    %6683 = vmatprep.subr.bf16.mxu0 %v5242
    %6684 = vmatpush1.bf16.msra.mxu0 %v5241
    %6685 = vmatprep.subr.bf16.mxu0 %v5250
    %6686 = vmatpush1.bf16.msra.mxu0 %v5249
    %6687 = vmatprep.mubr.bf16.mxu0 %v220
    %6688 = vmatmul.mubr.bf16.gmra.mrb[0].mxu0 %v219
    %v6689 = vpop.f32.mrb[0].mxu0
    %v6690 = vadd.f32 %v6649, %v6689
    %v6691 = vpop.f32.mrb[0].mxu0
    %v6692 = vadd.f32 %v6651, %v6691
    %v6693 = vpop.f32.mrb[0].mxu0
    %v6694 = vpop.f32.mrb[0].mxu0
    %6695 = vdwg.mxu0
    %6696 = vmatprep.subr.bf16.mxu0 %v5258
    %6697 = vmatpush1.bf16.msra.mxu0 %v5257
    %6698 = vmatprep.subr.bf16.mxu0 %v5266
    %6699 = vmatpush1.bf16.msra.mxu0 %v5265
    %6700 = vmatprep.subr.bf16.mxu0 %v5274
    %6701 = vmatpush1.bf16.msra.mxu0 %v5273
    %6702 = vmatprep.subr.bf16.mxu0 %v5282
    %6703 = vmatpush1.bf16.msra.mxu0 %v5281
    %6704 = vmatprep.subr.bf16.mxu0 %v5290
    %6705 = vmatpush1.bf16.msra.mxu0 %v5289
    %6706 = vmatprep.subr.bf16.mxu0 %v5298
    %6707 = vmatpush1.bf16.msra.mxu0 %v5297
    %6708 = vmatprep.subr.bf16.mxu0 %v5306
    %6709 = vmatpush1.bf16.msra.mxu0 %v5305
    %6710 = vmatprep.subr.bf16.mxu0 %v5314
    %6711 = vmatpush1.bf16.msra.mxu0 %v5313
    %6712 = vmatprep.subr.bf16.mxu0 %v5322
    %6713 = vmatpush1.bf16.msra.mxu0 %v5321
    %6714 = vmatprep.subr.bf16.mxu0 %v5330
    %6715 = vmatpush1.bf16.msra.mxu0 %v5329
    %6716 = vmatprep.subr.bf16.mxu0 %v5338
    %6717 = vmatpush1.bf16.msra.mxu0 %v5337
    %6718 = vmatprep.subr.bf16.mxu0 %v5346
    %6719 = vmatpush1.bf16.msra.mxu0 %v5345
    %6720 = vmatprep.subr.bf16.mxu0 %v5354
    %6721 = vmatpush1.bf16.msra.mxu0 %v5353
    %6722 = vmatprep.subr.bf16.mxu0 %v5362
    %6723 = vmatpush1.bf16.msra.mxu0 %v5361
    %6724 = vmatprep.subr.bf16.mxu0 %v5370
    %6725 = vmatpush1.bf16.msra.mxu0 %v5369
    %6726 = vmatprep.subr.bf16.mxu0 %v5378
    %6727 = vmatpush1.bf16.msra.mxu0 %v5377
    %6728 = vmatprep.mubr.bf16.mxu0 %v222
    %6729 = vmatmul.mubr.bf16.gmra.mrb[0].mxu0 %v221
    %v6730 = vpop.f32.mrb[0].mxu0
    %v6731 = vadd.f32 %v6690, %v6730
    %v6732 = vpop.f32.mrb[0].mxu0
    %v6733 = vadd.f32 %v6692, %v6732
    %v6734 = vpop.f32.mrb[0].mxu0
    %v6735 = vpop.f32.mrb[0].mxu0
    %6736 = vdwg.mxu0
    %6737 = vmatprep.subr.bf16.mxu0 %v4364
    %6738 = vmatpush1.bf16.msra.mxu0 %v4363
    %6739 = vmatprep.subr.bf16.mxu0 %v4372
    %6740 = vmatpush1.bf16.msra.mxu0 %v4371
    %6741 = vmatprep.subr.bf16.mxu0 %v4380
    %6742 = vmatpush1.bf16.msra.mxu0 %v4379
    %6743 = vmatprep.subr.bf16.mxu0 %v4388
    %6744 = vmatpush1.bf16.msra.mxu0 %v4387
    %6745 = vmatprep.subr.bf16.mxu0 %v4396
    %6746 = vmatpush1.bf16.msra.mxu0 %v4395
    %6747 = vmatprep.subr.bf16.mxu0 %v4404
    %6748 = vmatpush1.bf16.msra.mxu0 %v4403
    %6749 = vmatprep.subr.bf16.mxu0 %v4412
    %6750 = vmatpush1.bf16.msra.mxu0 %v4411
    %6751 = vmatprep.subr.bf16.mxu0 %v4420
    %6752 = vmatpush1.bf16.msra.mxu0 %v4419
    %6753 = vmatprep.subr.bf16.mxu0 %v4428
    %6754 = vmatpush1.bf16.msra.mxu0 %v4427
    %6755 = vmatprep.subr.bf16.mxu0 %v4436
    %6756 = vmatpush1.bf16.msra.mxu0 %v4435
    %6757 = vmatprep.subr.bf16.mxu0 %v4444
    %6758 = vmatpush1.bf16.msra.mxu0 %v4443
    %6759 = vmatprep.subr.bf16.mxu0 %v4452
    %6760 = vmatpush1.bf16.msra.mxu0 %v4451
    %6761 = vmatprep.subr.bf16.mxu0 %v4460
    %6762 = vmatpush1.bf16.msra.mxu0 %v4459
    %6763 = vmatprep.subr.bf16.mxu0 %v4468
    %6764 = vmatpush1.bf16.msra.mxu0 %v4467
    %6765 = vmatprep.subr.bf16.mxu0 %v4476
    %6766 = vmatpush1.bf16.msra.mxu0 %v4475
    %6767 = vmatprep.subr.bf16.mxu0 %v4484
    %6768 = vmatpush1.bf16.msra.mxu0 %v4483
    %6769 = vmatprep.mubr.bf16.mxu0 %v208
    %6770 = vmatmul.mubr.bf16.gmra.mrb[0].mxu0 %v207
    %v6771 = vpop.f32.mrb[0].mxu0
    %v6772 = vadd.f32 %v1260, %v6771
    %v6773 = vpop.f32.mrb[0].mxu0
    %v6774 = vadd.f32 %v1264, %v6773
    %v6775 = vpop.f32.mrb[0].mxu0
    %v6776 = vpop.f32.mrb[0].mxu0
    %6777 = vdwg.mxu0
    %6778 = vmatprep.subr.bf16.mxu0 %v4492
    %6779 = vmatpush1.bf16.msra.mxu0 %v4491
    %6780 = vmatprep.subr.bf16.mxu0 %v4500
    %6781 = vmatpush1.bf16.msra.mxu0 %v4499
    %6782 = vmatprep.subr.bf16.mxu0 %v4508
    %6783 = vmatpush1.bf16.msra.mxu0 %v4507
    %6784 = vmatprep.subr.bf16.mxu0 %v4516
    %6785 = vmatpush1.bf16.msra.mxu0 %v4515
    %6786 = vmatprep.subr.bf16.mxu0 %v4524
    %6787 = vmatpush1.bf16.msra.mxu0 %v4523
    %6788 = vmatprep.subr.bf16.mxu0 %v4532
    %6789 = vmatpush1.bf16.msra.mxu0 %v4531
    %6790 = vmatprep.subr.bf16.mxu0 %v4540
    %6791 = vmatpush1.bf16.msra.mxu0 %v4539
    %6792 = vmatprep.subr.bf16.mxu0 %v4548
    %6793 = vmatpush1.bf16.msra.mxu0 %v4547
    %6794 = vmatprep.subr.bf16.mxu0 %v4556
    %6795 = vmatpush1.bf16.msra.mxu0 %v4555
    %6796 = vmatprep.subr.bf16.mxu0 %v4564
    %6797 = vmatpush1.bf16.msra.mxu0 %v4563
    %6798 = vmatprep.subr.bf16.mxu0 %v4572
    %6799 = vmatpush1.bf16.msra.mxu0 %v4571
    %6800 = vmatprep.subr.bf16.mxu0 %v4580
    %6801 = vmatpush1.bf16.msra.mxu0 %v4579
    %6802 = vmatprep.subr.bf16.mxu0 %v4588
    %6803 = vmatpush1.bf16.msra.mxu0 %v4587
    %6804 = vmatprep.subr.bf16.mxu0 %v4596
    %6805 = vmatpush1.bf16.msra.mxu0 %v4595
    %6806 = vmatprep.subr.bf16.mxu0 %v4604
    %6807 = vmatpush1.bf16.msra.mxu0 %v4603
    %6808 = vmatprep.subr.bf16.mxu0 %v4612
    %6809 = vmatpush1.bf16.msra.mxu0 %v4611
    %6810 = vmatprep.mubr.bf16.mxu0 %v210
    %6811 = vmatmul.mubr.bf16.gmra.mrb[0].mxu0 %v209
    %v6812 = vpop.f32.mrb[0].mxu0
    %v6813 = vadd.f32 %v6772, %v6812
    %v6814 = vpop.f32.mrb[0].mxu0
    %v6815 = vadd.f32 %v6774, %v6814
    %v6816 = vpop.f32.mrb[0].mxu0
    %v6817 = vpop.f32.mrb[0].mxu0
    %6818 = vdwg.mxu0
    %6819 = vmatprep.subr.bf16.mxu0 %v4620
    %6820 = vmatpush1.bf16.msra.mxu0 %v4619
    %6821 = vmatprep.subr.bf16.mxu0 %v4628
    %6822 = vmatpush1.bf16.msra.mxu0 %v4627
    %6823 = vmatprep.subr.bf16.mxu0 %v4636
    %6824 = vmatpush1.bf16.msra.mxu0 %v4635
    %6825 = vmatprep.subr.bf16.mxu0 %v4644
    %6826 = vmatpush1.bf16.msra.mxu0 %v4643
    %6827 = vmatprep.subr.bf16.mxu0 %v4652
    %6828 = vmatpush1.bf16.msra.mxu0 %v4651
    %6829 = vmatprep.subr.bf16.mxu0 %v4660
    %6830 = vmatpush1.bf16.msra.mxu0 %v4659
    %6831 = vmatprep.subr.bf16.mxu0 %v4668
    %6832 = vmatpush1.bf16.msra.mxu0 %v4667
    %6833 = vmatprep.subr.bf16.mxu0 %v4676
    %6834 = vmatpush1.bf16.msra.mxu0 %v4675
    %6835 = vmatprep.subr.bf16.mxu0 %v4684
    %6836 = vmatpush1.bf16.msra.mxu0 %v4683
    %6837 = vmatprep.subr.bf16.mxu0 %v4692
    %6838 = vmatpush1.bf16.msra.mxu0 %v4691
    %6839 = vmatprep.subr.bf16.mxu0 %v4700
    %6840 = vmatpush1.bf16.msra.mxu0 %v4699
    %6841 = vmatprep.subr.bf16.mxu0 %v4708
    %6842 = vmatpush1.bf16.msra.mxu0 %v4707
    %6843 = vmatprep.subr.bf16.mxu0 %v4716
    %6844 = vmatpush1.bf16.msra.mxu0 %v4715
    %6845 = vmatprep.subr.bf16.mxu0 %v4724
    %6846 = vmatpush1.bf16.msra.mxu0 %v4723
    %6847 = vmatprep.subr.bf16.mxu0 %v4732
    %6848 = vmatpush1.bf16.msra.mxu0 %v4731
    %6849 = vmatprep.subr.bf16.mxu0 %v4740
    %6850 = vmatpush1.bf16.msra.mxu0 %v4739
    %6851 = vmatprep.mubr.bf16.mxu0 %v212
    %6852 = vmatmul.mubr.bf16.gmra.mrb[0].mxu0 %v211
    %v6853 = vpop.f32.mrb[0].mxu0
    %v6854 = vadd.f32 %v6813, %v6853
    %v6855 = vpop.f32.mrb[0].mxu0
    %v6856 = vadd.f32 %v6815, %v6855
    %v6857 = vpop.f32.mrb[0].mxu0
    %v6858 = vpop.f32.mrb[0].mxu0
    %6859 = vdwg.mxu0
    %6860 = vmatprep.subr.bf16.mxu0 %v4748
    %6861 = vmatpush1.bf16.msra.mxu0 %v4747
    %6862 = vmatprep.subr.bf16.mxu0 %v4756
    %6863 = vmatpush1.bf16.msra.mxu0 %v4755
    %6864 = vmatprep.subr.bf16.mxu0 %v4764
    %6865 = vmatpush1.bf16.msra.mxu0 %v4763
    %6866 = vmatprep.subr.bf16.mxu0 %v4772
    %6867 = vmatpush1.bf16.msra.mxu0 %v4771
    %6868 = vmatprep.subr.bf16.mxu0 %v4780
    %6869 = vmatpush1.bf16.msra.mxu0 %v4779
    %6870 = vmatprep.subr.bf16.mxu0 %v4788
    %6871 = vmatpush1.bf16.msra.mxu0 %v4787
    %6872 = vmatprep.subr.bf16.mxu0 %v4796
    %6873 = vmatpush1.bf16.msra.mxu0 %v4795
    %6874 = vmatprep.subr.bf16.mxu0 %v4804
    %6875 = vmatpush1.bf16.msra.mxu0 %v4803
    %6876 = vmatprep.subr.bf16.mxu0 %v4812
    %6877 = vmatpush1.bf16.msra.mxu0 %v4811
    %6878 = vmatprep.subr.bf16.mxu0 %v4820
    %6879 = vmatpush1.bf16.msra.mxu0 %v4819
    %6880 = vmatprep.subr.bf16.mxu0 %v4828
    %6881 = vmatpush1.bf16.msra.mxu0 %v4827
    %6882 = vmatprep.subr.bf16.mxu0 %v4836
    %6883 = vmatpush1.bf16.msra.mxu0 %v4835
    %6884 = vmatprep.subr.bf16.mxu0 %v4844
    %6885 = vmatpush1.bf16.msra.mxu0 %v4843
    %6886 = vmatprep.subr.bf16.mxu0 %v4852
    %6887 = vmatpush1.bf16.msra.mxu0 %v4851
    %6888 = vmatprep.subr.bf16.mxu0 %v4860
    %6889 = vmatpush1.bf16.msra.mxu0 %v4859
    %6890 = vmatprep.subr.bf16.mxu0 %v4868
    %6891 = vmatpush1.bf16.msra.mxu0 %v4867
    %6892 = vmatprep.mubr.bf16.mxu0 %v214
    %6893 = vmatmul.mubr.bf16.gmra.mrb[0].mxu0 %v213
    %v6894 = vpop.f32.mrb[0].mxu0
    %v6895 = vadd.f32 %v6854, %v6894
    %v6896 = vpop.f32.mrb[0].mxu0
    %v6897 = vadd.f32 %v6856, %v6896
    %v6898 = vpop.f32.mrb[0].mxu0
    %v6899 = vpop.f32.mrb[0].mxu0
    %6900 = vdwg.mxu0
    %6901 = vmatprep.subr.bf16.mxu0 %v4876
    %6902 = vmatpush1.bf16.msra.mxu0 %v4875
    %6903 = vmatprep.subr.bf16.mxu0 %v4884
    %6904 = vmatpush1.bf16.msra.mxu0 %v4883
    %6905 = vmatprep.subr.bf16.mxu0 %v4892
    %6906 = vmatpush1.bf16.msra.mxu0 %v4891
    %6907 = vmatprep.subr.bf16.mxu0 %v4900
    %6908 = vmatpush1.bf16.msra.mxu0 %v4899
    %6909 = vmatprep.subr.bf16.mxu0 %v4908
    %6910 = vmatpush1.bf16.msra.mxu0 %v4907
    %6911 = vmatprep.subr.bf16.mxu0 %v4916
    %6912 = vmatpush1.bf16.msra.mxu0 %v4915
    %6913 = vmatprep.subr.bf16.mxu0 %v4924
    %6914 = vmatpush1.bf16.msra.mxu0 %v4923
    %6915 = vmatprep.subr.bf16.mxu0 %v4932
    %6916 = vmatpush1.bf16.msra.mxu0 %v4931
    %6917 = vmatprep.subr.bf16.mxu0 %v4940
    %6918 = vmatpush1.bf16.msra.mxu0 %v4939
    %6919 = vmatprep.subr.bf16.mxu0 %v4948
    %6920 = vmatpush1.bf16.msra.mxu0 %v4947
    %6921 = vmatprep.subr.bf16.mxu0 %v4956
    %6922 = vmatpush1.bf16.msra.mxu0 %v4955
    %6923 = vmatprep.subr.bf16.mxu0 %v4964
    %6924 = vmatpush1.bf16.msra.mxu0 %v4963
    %6925 = vmatprep.subr.bf16.mxu0 %v4972
    %6926 = vmatpush1.bf16.msra.mxu0 %v4971
    %6927 = vmatprep.subr.bf16.mxu0 %v4980
    %6928 = vmatpush1.bf16.msra.mxu0 %v4979
    %6929 = vmatprep.subr.bf16.mxu0 %v4988
    %6930 = vmatpush1.bf16.msra.mxu0 %v4987
    %6931 = vmatprep.subr.bf16.mxu0 %v4996
    %6932 = vmatpush1.bf16.msra.mxu0 %v4995
    %6933 = vmatprep.mubr.bf16.mxu0 %v216
    %6934 = vmatmul.mubr.bf16.gmra.mrb[0].mxu0 %v215
    %v6935 = vpop.f32.mrb[0].mxu0
    %v6936 = vadd.f32 %v6895, %v6935
    %v6937 = vpop.f32.mrb[0].mxu0
    %v6938 = vadd.f32 %v6897, %v6937
    %v6939 = vpop.f32.mrb[0].mxu0
    %v6940 = vpop.f32.mrb[0].mxu0
    %6941 = vdwg.mxu0
    %6942 = vmatprep.subr.bf16.mxu0 %v5004
    %6943 = vmatpush1.bf16.msra.mxu0 %v5003
    %6944 = vmatprep.subr.bf16.mxu0 %v5012
    %6945 = vmatpush1.bf16.msra.mxu0 %v5011
    %6946 = vmatprep.subr.bf16.mxu0 %v5020
    %6947 = vmatpush1.bf16.msra.mxu0 %v5019
    %6948 = vmatprep.subr.bf16.mxu0 %v5028
    %6949 = vmatpush1.bf16.msra.mxu0 %v5027
    %6950 = vmatprep.subr.bf16.mxu0 %v5036
    %6951 = vmatpush1.bf16.msra.mxu0 %v5035
    %6952 = vmatprep.subr.bf16.mxu0 %v5044
    %6953 = vmatpush1.bf16.msra.mxu0 %v5043
    %6954 = vmatprep.subr.bf16.mxu0 %v5052
    %6955 = vmatpush1.bf16.msra.mxu0 %v5051
    %6956 = vmatprep.subr.bf16.mxu0 %v5060
    %6957 = vmatpush1.bf16.msra.mxu0 %v5059
    %6958 = vmatprep.subr.bf16.mxu0 %v5068
    %6959 = vmatpush1.bf16.msra.mxu0 %v5067
    %6960 = vmatprep.subr.bf16.mxu0 %v5076
    %6961 = vmatpush1.bf16.msra.mxu0 %v5075
    %6962 = vmatprep.subr.bf16.mxu0 %v5084
    %6963 = vmatpush1.bf16.msra.mxu0 %v5083
    %6964 = vmatprep.subr.bf16.mxu0 %v5092
    %6965 = vmatpush1.bf16.msra.mxu0 %v5091
    %6966 = vmatprep.subr.bf16.mxu0 %v5100
    %6967 = vmatpush1.bf16.msra.mxu0 %v5099
    %6968 = vmatprep.subr.bf16.mxu0 %v5108
    %6969 = vmatpush1.bf16.msra.mxu0 %v5107
    %6970 = vmatprep.subr.bf16.mxu0 %v5116
    %6971 = vmatpush1.bf16.msra.mxu0 %v5115
    %6972 = vmatprep.subr.bf16.mxu0 %v5124
    %6973 = vmatpush1.bf16.msra.mxu0 %v5123
    %6974 = vmatprep.mubr.bf16.mxu0 %v218
    %6975 = vmatmul.mubr.bf16.gmra.mrb[0].mxu0 %v217
    %v6976 = vpop.f32.mrb[0].mxu0
    %v6977 = vadd.f32 %v6936, %v6976
    %v6978 = vpop.f32.mrb[0].mxu0
    %v6979 = vadd.f32 %v6938, %v6978
    %v6980 = vpop.f32.mrb[0].mxu0
    %v6981 = vpop.f32.mrb[0].mxu0
    %6982 = vdwg.mxu0
    %6983 = vmatprep.subr.bf16.mxu0 %v5132
    %6984 = vmatpush1.bf16.msra.mxu0 %v5131
    %6985 = vmatprep.subr.bf16.mxu0 %v5140
    %6986 = vmatpush1.bf16.msra.mxu0 %v5139
    %6987 = vmatprep.subr.bf16.mxu0 %v5148
    %6988 = vmatpush1.bf16.msra.mxu0 %v5147
    %6989 = vmatprep.subr.bf16.mxu0 %v5156
    %6990 = vmatpush1.bf16.msra.mxu0 %v5155
    %6991 = vmatprep.subr.bf16.mxu0 %v5164
    %6992 = vmatpush1.bf16.msra.mxu0 %v5163
    %6993 = vmatprep.subr.bf16.mxu0 %v5172
    %6994 = vmatpush1.bf16.msra.mxu0 %v5171
    %6995 = vmatprep.subr.bf16.mxu0 %v5180
    %6996 = vmatpush1.bf16.msra.mxu0 %v5179
    %6997 = vmatprep.subr.bf16.mxu0 %v5188
    %6998 = vmatpush1.bf16.msra.mxu0 %v5187
    %6999 = vmatprep.subr.bf16.mxu0 %v5196
    %7000 = vmatpush1.bf16.msra.mxu0 %v5195
    %7001 = vmatprep.subr.bf16.mxu0 %v5204
    %7002 = vmatpush1.bf16.msra.mxu0 %v5203
    %7003 = vmatprep.subr.bf16.mxu0 %v5212
    %7004 = vmatpush1.bf16.msra.mxu0 %v5211
    %7005 = vmatprep.subr.bf16.mxu0 %v5220
    %7006 = vmatpush1.bf16.msra.mxu0 %v5219
    %7007 = vmatprep.subr.bf16.mxu0 %v5228
    %7008 = vmatpush1.bf16.msra.mxu0 %v5227
    %7009 = vmatprep.subr.bf16.mxu0 %v5236
    %7010 = vmatpush1.bf16.msra.mxu0 %v5235
    %7011 = vmatprep.subr.bf16.mxu0 %v5244
    %7012 = vmatpush1.bf16.msra.mxu0 %v5243
    %7013 = vmatprep.subr.bf16.mxu0 %v5252
    %7014 = vmatpush1.bf16.msra.mxu0 %v5251
    %7015 = vmatprep.mubr.bf16.mxu0 %v220
    %7016 = vmatmul.mubr.bf16.gmra.mrb[0].mxu0 %v219
    %v7017 = vpop.f32.mrb[0].mxu0
    %v7018 = vadd.f32 %v6977, %v7017
    %v7019 = vpop.f32.mrb[0].mxu0
    %v7020 = vadd.f32 %v6979, %v7019
    %v7021 = vpop.f32.mrb[0].mxu0
    %v7022 = vpop.f32.mrb[0].mxu0
    %7023 = vdwg.mxu0
    %7024 = vmatprep.subr.bf16.mxu0 %v5260
    %7025 = vmatpush1.bf16.msra.mxu0 %v5259
    %7026 = vmatprep.subr.bf16.mxu0 %v5268
    %7027 = vmatpush1.bf16.msra.mxu0 %v5267
    %7028 = vmatprep.subr.bf16.mxu0 %v5276
    %7029 = vmatpush1.bf16.msra.mxu0 %v5275
    %7030 = vmatprep.subr.bf16.mxu0 %v5284
    %7031 = vmatpush1.bf16.msra.mxu0 %v5283
    %7032 = vmatprep.subr.bf16.mxu0 %v5292
    %7033 = vmatpush1.bf16.msra.mxu0 %v5291
    %7034 = vmatprep.subr.bf16.mxu0 %v5300
    %7035 = vmatpush1.bf16.msra.mxu0 %v5299
    %7036 = vmatprep.subr.bf16.mxu0 %v5308
    %7037 = vmatpush1.bf16.msra.mxu0 %v5307
    %7038 = vmatprep.subr.bf16.mxu0 %v5316
    %7039 = vmatpush1.bf16.msra.mxu0 %v5315
    %7040 = vmatprep.subr.bf16.mxu0 %v5324
    %7041 = vmatpush1.bf16.msra.mxu0 %v5323
    %7042 = vmatprep.subr.bf16.mxu0 %v5332
    %7043 = vmatpush1.bf16.msra.mxu0 %v5331
    %7044 = vmatprep.subr.bf16.mxu0 %v5340
    %7045 = vmatpush1.bf16.msra.mxu0 %v5339
    %7046 = vmatprep.subr.bf16.mxu0 %v5348
    %7047 = vmatpush1.bf16.msra.mxu0 %v5347
    %7048 = vmatprep.subr.bf16.mxu0 %v5356
    %7049 = vmatpush1.bf16.msra.mxu0 %v5355
    %7050 = vmatprep.subr.bf16.mxu0 %v5364
    %7051 = vmatpush1.bf16.msra.mxu0 %v5363
    %7052 = vmatprep.subr.bf16.mxu0 %v5372
    %7053 = vmatpush1.bf16.msra.mxu0 %v5371
    %7054 = vmatprep.subr.bf16.mxu0 %v5380
    %7055 = vmatpush1.bf16.msra.mxu0 %v5379
    %7056 = vmatprep.mubr.bf16.mxu0 %v222
    %7057 = vmatmul.mubr.bf16.gmra.mrb[0].mxu0 %v221
    %v7058 = vpop.f32.mrb[0].mxu0
    %v7059 = vadd.f32 %v7018, %v7058
    %v7060 = vpop.f32.mrb[0].mxu0
    %v7061 = vadd.f32 %v7020, %v7060
    %v7062 = vpop.f32.mrb[0].mxu0
    %v7063 = vpop.f32.mrb[0].mxu0
    %7064 = vdwg.mxu0
    %7065 = vmatprep.subr.bf16.mxu0 %v4366
    %7066 = vmatpush1.bf16.msra.mxu0 %v4365
    %7067 = vmatprep.subr.bf16.mxu0 %v4374
    %7068 = vmatpush1.bf16.msra.mxu0 %v4373
    %7069 = vmatprep.subr.bf16.mxu0 %v4382
    %7070 = vmatpush1.bf16.msra.mxu0 %v4381
    %7071 = vmatprep.subr.bf16.mxu0 %v4390
    %7072 = vmatpush1.bf16.msra.mxu0 %v4389
    %7073 = vmatprep.subr.bf16.mxu0 %v4398
    %7074 = vmatpush1.bf16.msra.mxu0 %v4397
    %7075 = vmatprep.subr.bf16.mxu0 %v4406
    %7076 = vmatpush1.bf16.msra.mxu0 %v4405
    %7077 = vmatprep.subr.bf16.mxu0 %v4414
    %7078 = vmatpush1.bf16.msra.mxu0 %v4413
    %7079 = vmatprep.subr.bf16.mxu0 %v4422
    %7080 = vmatpush1.bf16.msra.mxu0 %v4421
    %7081 = vmatprep.subr.bf16.mxu0 %v4430
    %7082 = vmatpush1.bf16.msra.mxu0 %v4429
    %7083 = vmatprep.subr.bf16.mxu0 %v4438
    %7084 = vmatpush1.bf16.msra.mxu0 %v4437
    %7085 = vmatprep.subr.bf16.mxu0 %v4446
    %7086 = vmatpush1.bf16.msra.mxu0 %v4445
    %7087 = vmatprep.subr.bf16.mxu0 %v4454
    %7088 = vmatpush1.bf16.msra.mxu0 %v4453
    %7089 = vmatprep.subr.bf16.mxu0 %v4462
    %7090 = vmatpush1.bf16.msra.mxu0 %v4461
    %7091 = vmatprep.subr.bf16.mxu0 %v4470
    %7092 = vmatpush1.bf16.msra.mxu0 %v4469
    %7093 = vmatprep.subr.bf16.mxu0 %v4478
    %7094 = vmatpush1.bf16.msra.mxu0 %v4477
    %7095 = vmatprep.subr.bf16.mxu0 %v4486
    %7096 = vmatpush1.bf16.msra.mxu0 %v4485
    %7097 = vmatprep.mubr.bf16.mxu0 %v208
    %7098 = vmatmul.mubr.bf16.gmra.mrb[0].mxu0 %v207
    %v7099 = vpop.f32.mrb[0].mxu0
    %v7100 = vadd.f32 %v1268, %v7099
    %v7101 = vpop.f32.mrb[0].mxu0
    %v7102 = vadd.f32 %v1272, %v7101
    %v7103 = vpop.f32.mrb[0].mxu0
    %v7104 = vpop.f32.mrb[0].mxu0
    %7105 = vdwg.mxu0
    %7106 = vmatprep.subr.bf16.mxu0 %v4494
    %7107 = vmatpush1.bf16.msra.mxu0 %v4493
    %7108 = vmatprep.subr.bf16.mxu0 %v4502
    %7109 = vmatpush1.bf16.msra.mxu0 %v4501
    %7110 = vmatprep.subr.bf16.mxu0 %v4510
    %7111 = vmatpush1.bf16.msra.mxu0 %v4509
    %7112 = vmatprep.subr.bf16.mxu0 %v4518
    %7113 = vmatpush1.bf16.msra.mxu0 %v4517
    %7114 = vmatprep.subr.bf16.mxu0 %v4526
    %7115 = vmatpush1.bf16.msra.mxu0 %v4525
    %7116 = vmatprep.subr.bf16.mxu0 %v4534
    %7117 = vmatpush1.bf16.msra.mxu0 %v4533
    %7118 = vmatprep.subr.bf16.mxu0 %v4542
    %7119 = vmatpush1.bf16.msra.mxu0 %v4541
    %7120 = vmatprep.subr.bf16.mxu0 %v4550
    %7121 = vmatpush1.bf16.msra.mxu0 %v4549
    %7122 = vmatprep.subr.bf16.mxu0 %v4558
    %7123 = vmatpush1.bf16.msra.mxu0 %v4557
    %7124 = vmatprep.subr.bf16.mxu0 %v4566
    %7125 = vmatpush1.bf16.msra.mxu0 %v4565
    %7126 = vmatprep.subr.bf16.mxu0 %v4574
    %7127 = vmatpush1.bf16.msra.mxu0 %v4573
    %7128 = vmatprep.subr.bf16.mxu0 %v4582
    %7129 = vmatpush1.bf16.msra.mxu0 %v4581
    %7130 = vmatprep.subr.bf16.mxu0 %v4590
    %7131 = vmatpush1.bf16.msra.mxu0 %v4589
    %7132 = vmatprep.subr.bf16.mxu0 %v4598
    %7133 = vmatpush1.bf16.msra.mxu0 %v4597
    %7134 = vmatprep.subr.bf16.mxu0 %v4606
    %7135 = vmatpush1.bf16.msra.mxu0 %v4605
    %7136 = vmatprep.subr.bf16.mxu0 %v4614
    %7137 = vmatpush1.bf16.msra.mxu0 %v4613
    %7138 = vmatprep.mubr.bf16.mxu0 %v210
    %7139 = vmatmul.mubr.bf16.gmra.mrb[0].mxu0 %v209
    %v7140 = vpop.f32.mrb[0].mxu0
    %v7141 = vadd.f32 %v7100, %v7140
    %v7142 = vpop.f32.mrb[0].mxu0
    %v7143 = vadd.f32 %v7102, %v7142
    %v7144 = vpop.f32.mrb[0].mxu0
    %v7145 = vpop.f32.mrb[0].mxu0
    %7146 = vdwg.mxu0
    %7147 = vmatprep.subr.bf16.mxu0 %v4622
    %7148 = vmatpush1.bf16.msra.mxu0 %v4621
    %7149 = vmatprep.subr.bf16.mxu0 %v4630
    %7150 = vmatpush1.bf16.msra.mxu0 %v4629
    %7151 = vmatprep.subr.bf16.mxu0 %v4638
    %7152 = vmatpush1.bf16.msra.mxu0 %v4637
    %7153 = vmatprep.subr.bf16.mxu0 %v4646
    %7154 = vmatpush1.bf16.msra.mxu0 %v4645
    %7155 = vmatprep.subr.bf16.mxu0 %v4654
    %7156 = vmatpush1.bf16.msra.mxu0 %v4653
    %7157 = vmatprep.subr.bf16.mxu0 %v4662
    %7158 = vmatpush1.bf16.msra.mxu0 %v4661
    %7159 = vmatprep.subr.bf16.mxu0 %v4670
    %7160 = vmatpush1.bf16.msra.mxu0 %v4669
    %7161 = vmatprep.subr.bf16.mxu0 %v4678
    %7162 = vmatpush1.bf16.msra.mxu0 %v4677
    %7163 = vmatprep.subr.bf16.mxu0 %v4686
    %7164 = vmatpush1.bf16.msra.mxu0 %v4685
    %7165 = vmatprep.subr.bf16.mxu0 %v4694
    %7166 = vmatpush1.bf16.msra.mxu0 %v4693
    %7167 = vmatprep.subr.bf16.mxu0 %v4702
    %7168 = vmatpush1.bf16.msra.mxu0 %v4701
    %7169 = vmatprep.subr.bf16.mxu0 %v4710
    %7170 = vmatpush1.bf16.msra.mxu0 %v4709
    %7171 = vmatprep.subr.bf16.mxu0 %v4718
    %7172 = vmatpush1.bf16.msra.mxu0 %v4717
    %7173 = vmatprep.subr.bf16.mxu0 %v4726
    %7174 = vmatpush1.bf16.msra.mxu0 %v4725
    %7175 = vmatprep.subr.bf16.mxu0 %v4734
    %7176 = vmatpush1.bf16.msra.mxu0 %v4733
    %7177 = vmatprep.subr.bf16.mxu0 %v4742
    %7178 = vmatpush1.bf16.msra.mxu0 %v4741
    %7179 = vmatprep.mubr.bf16.mxu0 %v212
    %7180 = vmatmul.mubr.bf16.gmra.mrb[0].mxu0 %v211
    %v7181 = vpop.f32.mrb[0].mxu0
    %v7182 = vadd.f32 %v7141, %v7181
    %v7183 = vpop.f32.mrb[0].mxu0
    %v7184 = vadd.f32 %v7143, %v7183
    %v7185 = vpop.f32.mrb[0].mxu0
    %v7186 = vpop.f32.mrb[0].mxu0
    %7187 = vdwg.mxu0
    %7188 = vmatprep.subr.bf16.mxu0 %v4750
    %7189 = vmatpush1.bf16.msra.mxu0 %v4749
    %7190 = vmatprep.subr.bf16.mxu0 %v4758
    %7191 = vmatpush1.bf16.msra.mxu0 %v4757
    %7192 = vmatprep.subr.bf16.mxu0 %v4766
    %7193 = vmatpush1.bf16.msra.mxu0 %v4765
    %7194 = vmatprep.subr.bf16.mxu0 %v4774
    %7195 = vmatpush1.bf16.msra.mxu0 %v4773
    %7196 = vmatprep.subr.bf16.mxu0 %v4782
    %7197 = vmatpush1.bf16.msra.mxu0 %v4781
    %7198 = vmatprep.subr.bf16.mxu0 %v4790
    %7199 = vmatpush1.bf16.msra.mxu0 %v4789
    %7200 = vmatprep.subr.bf16.mxu0 %v4798
    %7201 = vmatpush1.bf16.msra.mxu0 %v4797
    %7202 = vmatprep.subr.bf16.mxu0 %v4806
    %7203 = vmatpush1.bf16.msra.mxu0 %v4805
    %7204 = vmatprep.subr.bf16.mxu0 %v4814
    %7205 = vmatpush1.bf16.msra.mxu0 %v4813
    %7206 = vmatprep.subr.bf16.mxu0 %v4822
    %7207 = vmatpush1.bf16.msra.mxu0 %v4821
    %7208 = vmatprep.subr.bf16.mxu0 %v4830
    %7209 = vmatpush1.bf16.msra.mxu0 %v4829
    %7210 = vmatprep.subr.bf16.mxu0 %v4838
    %7211 = vmatpush1.bf16.msra.mxu0 %v4837
    %7212 = vmatprep.subr.bf16.mxu0 %v4846
    %7213 = vmatpush1.bf16.msra.mxu0 %v4845
    %7214 = vmatprep.subr.bf16.mxu0 %v4854
    %7215 = vmatpush1.bf16.msra.mxu0 %v4853
    %7216 = vmatprep.subr.bf16.mxu0 %v4862
    %7217 = vmatpush1.bf16.msra.mxu0 %v4861
    %7218 = vmatprep.subr.bf16.mxu0 %v4870
    %7219 = vmatpush1.bf16.msra.mxu0 %v4869
    %7220 = vmatprep.mubr.bf16.mxu0 %v214
    %7221 = vmatmul.mubr.bf16.gmra.mrb[0].mxu0 %v213
    %v7222 = vpop.f32.mrb[0].mxu0
    %v7223 = vadd.f32 %v7182, %v7222
    %v7224 = vpop.f32.mrb[0].mxu0
    %v7225 = vadd.f32 %v7184, %v7224
    %v7226 = vpop.f32.mrb[0].mxu0
    %v7227 = vpop.f32.mrb[0].mxu0
    %7228 = vdwg.mxu0
    %7229 = vmatprep.subr.bf16.mxu0 %v4878
    %7230 = vmatpush1.bf16.msra.mxu0 %v4877
    %7231 = vmatprep.subr.bf16.mxu0 %v4886
    %7232 = vmatpush1.bf16.msra.mxu0 %v4885
    %7233 = vmatprep.subr.bf16.mxu0 %v4894
    %7234 = vmatpush1.bf16.msra.mxu0 %v4893
    %7235 = vmatprep.subr.bf16.mxu0 %v4902
    %7236 = vmatpush1.bf16.msra.mxu0 %v4901
    %7237 = vmatprep.subr.bf16.mxu0 %v4910
    %7238 = vmatpush1.bf16.msra.mxu0 %v4909
    %7239 = vmatprep.subr.bf16.mxu0 %v4918
    %7240 = vmatpush1.bf16.msra.mxu0 %v4917
    %7241 = vmatprep.subr.bf16.mxu0 %v4926
    %7242 = vmatpush1.bf16.msra.mxu0 %v4925
    %7243 = vmatprep.subr.bf16.mxu0 %v4934
    %7244 = vmatpush1.bf16.msra.mxu0 %v4933
    %7245 = vmatprep.subr.bf16.mxu0 %v4942
    %7246 = vmatpush1.bf16.msra.mxu0 %v4941
    %7247 = vmatprep.subr.bf16.mxu0 %v4950
    %7248 = vmatpush1.bf16.msra.mxu0 %v4949
    %7249 = vmatprep.subr.bf16.mxu0 %v4958
    %7250 = vmatpush1.bf16.msra.mxu0 %v4957
    %7251 = vmatprep.subr.bf16.mxu0 %v4966
    %7252 = vmatpush1.bf16.msra.mxu0 %v4965
    %7253 = vmatprep.subr.bf16.mxu0 %v4974
    %7254 = vmatpush1.bf16.msra.mxu0 %v4973
    %7255 = vmatprep.subr.bf16.mxu0 %v4982
    %7256 = vmatpush1.bf16.msra.mxu0 %v4981
    %7257 = vmatprep.subr.bf16.mxu0 %v4990
    %7258 = vmatpush1.bf16.msra.mxu0 %v4989
    %7259 = vmatprep.subr.bf16.mxu0 %v4998
    %7260 = vmatpush1.bf16.msra.mxu0 %v4997
    %7261 = vmatprep.mubr.bf16.mxu0 %v216
    %7262 = vmatmul.mubr.bf16.gmra.mrb[0].mxu0 %v215
    %v7263 = vpop.f32.mrb[0].mxu0
    %v7264 = vadd.f32 %v7223, %v7263
    %v7265 = vpop.f32.mrb[0].mxu0
    %v7266 = vadd.f32 %v7225, %v7265
    %v7267 = vpop.f32.mrb[0].mxu0
    %v7268 = vpop.f32.mrb[0].mxu0
    %7269 = vdwg.mxu0
    %7270 = vmatprep.subr.bf16.mxu0 %v5006
    %7271 = vmatpush1.bf16.msra.mxu0 %v5005
    %7272 = vmatprep.subr.bf16.mxu0 %v5014
    %7273 = vmatpush1.bf16.msra.mxu0 %v5013
    %7274 = vmatprep.subr.bf16.mxu0 %v5022
    %7275 = vmatpush1.bf16.msra.mxu0 %v5021
    %7276 = vmatprep.subr.bf16.mxu0 %v5030
    %7277 = vmatpush1.bf16.msra.mxu0 %v5029
    %7278 = vmatprep.subr.bf16.mxu0 %v5038
    %7279 = vmatpush1.bf16.msra.mxu0 %v5037
    %7280 = vmatprep.subr.bf16.mxu0 %v5046
    %7281 = vmatpush1.bf16.msra.mxu0 %v5045
    %7282 = vmatprep.subr.bf16.mxu0 %v5054
    %7283 = vmatpush1.bf16.msra.mxu0 %v5053
    %7284 = vmatprep.subr.bf16.mxu0 %v5062
    %7285 = vmatpush1.bf16.msra.mxu0 %v5061
    %7286 = vmatprep.subr.bf16.mxu0 %v5070
    %7287 = vmatpush1.bf16.msra.mxu0 %v5069
    %7288 = vmatprep.subr.bf16.mxu0 %v5078
    %7289 = vmatpush1.bf16.msra.mxu0 %v5077
    %7290 = vmatprep.subr.bf16.mxu0 %v5086
    %7291 = vmatpush1.bf16.msra.mxu0 %v5085
    %7292 = vmatprep.subr.bf16.mxu0 %v5094
    %7293 = vmatpush1.bf16.msra.mxu0 %v5093
    %7294 = vmatprep.subr.bf16.mxu0 %v5102
    %7295 = vmatpush1.bf16.msra.mxu0 %v5101
    %7296 = vmatprep.subr.bf16.mxu0 %v5110
    %7297 = vmatpush1.bf16.msra.mxu0 %v5109
    %7298 = vmatprep.subr.bf16.mxu0 %v5118
    %7299 = vmatpush1.bf16.msra.mxu0 %v5117
    %7300 = vmatprep.subr.bf16.mxu0 %v5126
    %7301 = vmatpush1.bf16.msra.mxu0 %v5125
    %7302 = vmatprep.mubr.bf16.mxu0 %v218
    %7303 = vmatmul.mubr.bf16.gmra.mrb[0].mxu0 %v217
    %v7304 = vpop.f32.mrb[0].mxu0
    %v7305 = vadd.f32 %v7264, %v7304
    %v7306 = vpop.f32.mrb[0].mxu0
    %v7307 = vadd.f32 %v7266, %v7306
    %v7308 = vpop.f32.mrb[0].mxu0
    %v7309 = vpop.f32.mrb[0].mxu0
    %7310 = vdwg.mxu0
    %7311 = vmatprep.subr.bf16.mxu0 %v5134
    %7312 = vmatpush1.bf16.msra.mxu0 %v5133
    %7313 = vmatprep.subr.bf16.mxu0 %v5142
    %7314 = vmatpush1.bf16.msra.mxu0 %v5141
    %7315 = vmatprep.subr.bf16.mxu0 %v5150
    %7316 = vmatpush1.bf16.msra.mxu0 %v5149
    %7317 = vmatprep.subr.bf16.mxu0 %v5158
    %7318 = vmatpush1.bf16.msra.mxu0 %v5157
    %7319 = vmatprep.subr.bf16.mxu0 %v5166
    %7320 = vmatpush1.bf16.msra.mxu0 %v5165
    %7321 = vmatprep.subr.bf16.mxu0 %v5174
    %7322 = vmatpush1.bf16.msra.mxu0 %v5173
    %7323 = vmatprep.subr.bf16.mxu0 %v5182
    %7324 = vmatpush1.bf16.msra.mxu0 %v5181
    %7325 = vmatprep.subr.bf16.mxu0 %v5190
    %7326 = vmatpush1.bf16.msra.mxu0 %v5189
    %7327 = vmatprep.subr.bf16.mxu0 %v5198
    %7328 = vmatpush1.bf16.msra.mxu0 %v5197
    %7329 = vmatprep.subr.bf16.mxu0 %v5206
    %7330 = vmatpush1.bf16.msra.mxu0 %v5205
    %7331 = vmatprep.subr.bf16.mxu0 %v5214
    %7332 = vmatpush1.bf16.msra.mxu0 %v5213
    %7333 = vmatprep.subr.bf16.mxu0 %v5222
    %7334 = vmatpush1.bf16.msra.mxu0 %v5221
    %7335 = vmatprep.subr.bf16.mxu0 %v5230
    %7336 = vmatpush1.bf16.msra.mxu0 %v5229
    %7337 = vmatprep.subr.bf16.mxu0 %v5238
    %7338 = vmatpush1.bf16.msra.mxu0 %v5237
    %7339 = vmatprep.subr.bf16.mxu0 %v5246
    %7340 = vmatpush1.bf16.msra.mxu0 %v5245
    %7341 = vmatprep.subr.bf16.mxu0 %v5254
    %7342 = vmatpush1.bf16.msra.mxu0 %v5253
    %7343 = vmatprep.mubr.bf16.mxu0 %v220
    %7344 = vmatmul.mubr.bf16.gmra.mrb[0].mxu0 %v219
    %v7345 = vpop.f32.mrb[0].mxu0
    %v7346 = vadd.f32 %v7305, %v7345
    %v7347 = vpop.f32.mrb[0].mxu0
    %v7348 = vadd.f32 %v7307, %v7347
    %v7349 = vpop.f32.mrb[0].mxu0
    %v7350 = vpop.f32.mrb[0].mxu0
    %7351 = vdwg.mxu0
    %7352 = vmatprep.subr.bf16.mxu0 %v5262
    %7353 = vmatpush1.bf16.msra.mxu0 %v5261
    %7354 = vmatprep.subr.bf16.mxu0 %v5270
    %7355 = vmatpush1.bf16.msra.mxu0 %v5269
    %7356 = vmatprep.subr.bf16.mxu0 %v5278
    %7357 = vmatpush1.bf16.msra.mxu0 %v5277
    %7358 = vmatprep.subr.bf16.mxu0 %v5286
    %7359 = vmatpush1.bf16.msra.mxu0 %v5285
    %7360 = vmatprep.subr.bf16.mxu0 %v5294
    %7361 = vmatpush1.bf16.msra.mxu0 %v5293
    %7362 = vmatprep.subr.bf16.mxu0 %v5302
    %7363 = vmatpush1.bf16.msra.mxu0 %v5301
    %7364 = vmatprep.subr.bf16.mxu0 %v5310
    %7365 = vmatpush1.bf16.msra.mxu0 %v5309
    %7366 = vmatprep.subr.bf16.mxu0 %v5318
    %7367 = vmatpush1.bf16.msra.mxu0 %v5317
    %7368 = vmatprep.subr.bf16.mxu0 %v5326
    %7369 = vmatpush1.bf16.msra.mxu0 %v5325
    %7370 = vmatprep.subr.bf16.mxu0 %v5334
    %7371 = vmatpush1.bf16.msra.mxu0 %v5333
    %7372 = vmatprep.subr.bf16.mxu0 %v5342
    %7373 = vmatpush1.bf16.msra.mxu0 %v5341
    %7374 = vmatprep.subr.bf16.mxu0 %v5350
    %7375 = vmatpush1.bf16.msra.mxu0 %v5349
    %7376 = vmatprep.subr.bf16.mxu0 %v5358
    %7377 = vmatpush1.bf16.msra.mxu0 %v5357
    %7378 = vmatprep.subr.bf16.mxu0 %v5366
    %7379 = vmatpush1.bf16.msra.mxu0 %v5365
    %7380 = vmatprep.subr.bf16.mxu0 %v5374
    %7381 = vmatpush1.bf16.msra.mxu0 %v5373
    %7382 = vmatprep.subr.bf16.mxu0 %v5382
    %7383 = vmatpush1.bf16.msra.mxu0 %v5381
    %7384 = vmatprep.mubr.bf16.mxu0 %v222
    %7385 = vmatmul.mubr.bf16.gmra.mrb[0].mxu0 %v221
    %v7386 = vpop.f32.mrb[0].mxu0
    %v7387 = vadd.f32 %v7346, %v7386
    %v7388 = vpop.f32.mrb[0].mxu0
    %v7389 = vadd.f32 %v7348, %v7388
    %v7390 = vpop.f32.mrb[0].mxu0
    %v7391 = vpop.f32.mrb[0].mxu0
    %7392 = vdwg.mxu0
    %7393 = vmatprep.subr.bf16.mxu0 %v4368
    %7394 = vmatpush1.bf16.msra.mxu0 %v4367
    %7395 = vmatprep.subr.bf16.mxu0 %v4376
    %7396 = vmatpush1.bf16.msra.mxu0 %v4375
    %7397 = vmatprep.subr.bf16.mxu0 %v4384
    %7398 = vmatpush1.bf16.msra.mxu0 %v4383
    %7399 = vmatprep.subr.bf16.mxu0 %v4392
    %7400 = vmatpush1.bf16.msra.mxu0 %v4391
    %7401 = vmatprep.subr.bf16.mxu0 %v4400
    %7402 = vmatpush1.bf16.msra.mxu0 %v4399
    %7403 = vmatprep.subr.bf16.mxu0 %v4408
    %7404 = vmatpush1.bf16.msra.mxu0 %v4407
    %7405 = vmatprep.subr.bf16.mxu0 %v4416
    %7406 = vmatpush1.bf16.msra.mxu0 %v4415
    %7407 = vmatprep.subr.bf16.mxu0 %v4424
    %7408 = vmatpush1.bf16.msra.mxu0 %v4423
    %7409 = vmatprep.subr.bf16.mxu0 %v4432
    %7410 = vmatpush1.bf16.msra.mxu0 %v4431
    %7411 = vmatprep.subr.bf16.mxu0 %v4440
    %7412 = vmatpush1.bf16.msra.mxu0 %v4439
    %7413 = vmatprep.subr.bf16.mxu0 %v4448
    %7414 = vmatpush1.bf16.msra.mxu0 %v4447
    %7415 = vmatprep.subr.bf16.mxu0 %v4456
    %7416 = vmatpush1.bf16.msra.mxu0 %v4455
    %7417 = vmatprep.subr.bf16.mxu0 %v4464
    %7418 = vmatpush1.bf16.msra.mxu0 %v4463
    %7419 = vmatprep.subr.bf16.mxu0 %v4472
    %7420 = vmatpush1.bf16.msra.mxu0 %v4471
    %7421 = vmatprep.subr.bf16.mxu0 %v4480
    %7422 = vmatpush1.bf16.msra.mxu0 %v4479
    %7423 = vmatprep.subr.bf16.mxu0 %v4488
    %7424 = vmatpush1.bf16.msra.mxu0 %v4487
    %7425 = vmatprep.mubr.bf16.mxu0 %v208
    %7426 = vmatmul.mubr.bf16.gmra.mrb[0].mxu0 %v207
    %v7427 = vpop.f32.mrb[0].mxu0
    %v7428 = vadd.f32 %v1276, %v7427
    %v7429 = vpop.f32.mrb[0].mxu0
    %v7430 = vadd.f32 %v1280, %v7429
    %v7431 = vpop.f32.mrb[0].mxu0
    %v7432 = vpop.f32.mrb[0].mxu0
    %7433 = vdwg.mxu0
    %7434 = vmatprep.subr.bf16.mxu0 %v4496
    %7435 = vmatpush1.bf16.msra.mxu0 %v4495
    %7436 = vmatprep.subr.bf16.mxu0 %v4504
    %7437 = vmatpush1.bf16.msra.mxu0 %v4503
    %7438 = vmatprep.subr.bf16.mxu0 %v4512
    %7439 = vmatpush1.bf16.msra.mxu0 %v4511
    %7440 = vmatprep.subr.bf16.mxu0 %v4520
    %7441 = vmatpush1.bf16.msra.mxu0 %v4519
    %7442 = vmatprep.subr.bf16.mxu0 %v4528
    %7443 = vmatpush1.bf16.msra.mxu0 %v4527
    %7444 = vmatprep.subr.bf16.mxu0 %v4536
    %7445 = vmatpush1.bf16.msra.mxu0 %v4535
    %7446 = vmatprep.subr.bf16.mxu0 %v4544
    %7447 = vmatpush1.bf16.msra.mxu0 %v4543
    %7448 = vmatprep.subr.bf16.mxu0 %v4552
    %7449 = vmatpush1.bf16.msra.mxu0 %v4551
    %7450 = vmatprep.subr.bf16.mxu0 %v4560
    %7451 = vmatpush1.bf16.msra.mxu0 %v4559
    %7452 = vmatprep.subr.bf16.mxu0 %v4568
    %7453 = vmatpush1.bf16.msra.mxu0 %v4567
    %7454 = vmatprep.subr.bf16.mxu0 %v4576
    %7455 = vmatpush1.bf16.msra.mxu0 %v4575
    %7456 = vmatprep.subr.bf16.mxu0 %v4584
    %7457 = vmatpush1.bf16.msra.mxu0 %v4583
    %7458 = vmatprep.subr.bf16.mxu0 %v4592
    %7459 = vmatpush1.bf16.msra.mxu0 %v4591
    %7460 = vmatprep.subr.bf16.mxu0 %v4600
    %7461 = vmatpush1.bf16.msra.mxu0 %v4599
    %7462 = vmatprep.subr.bf16.mxu0 %v4608
    %7463 = vmatpush1.bf16.msra.mxu0 %v4607
    %7464 = vmatprep.subr.bf16.mxu0 %v4616
    %7465 = vmatpush1.bf16.msra.mxu0 %v4615
    %7466 = vmatprep.mubr.bf16.mxu0 %v210
    %7467 = vmatmul.mubr.bf16.gmra.mrb[0].mxu0 %v209
    %v7468 = vpop.f32.mrb[0].mxu0
    %v7469 = vadd.f32 %v7428, %v7468
    %v7470 = vpop.f32.mrb[0].mxu0
    %v7471 = vadd.f32 %v7430, %v7470
    %v7472 = vpop.f32.mrb[0].mxu0
    %v7473 = vpop.f32.mrb[0].mxu0
    %7474 = vdwg.mxu0
    %7475 = vmatprep.subr.bf16.mxu0 %v4624
    %7476 = vmatpush1.bf16.msra.mxu0 %v4623
    %7477 = vmatprep.subr.bf16.mxu0 %v4632
    %7478 = vmatpush1.bf16.msra.mxu0 %v4631
    %7479 = vmatprep.subr.bf16.mxu0 %v4640
    %7480 = vmatpush1.bf16.msra.mxu0 %v4639
    %7481 = vmatprep.subr.bf16.mxu0 %v4648
    %7482 = vmatpush1.bf16.msra.mxu0 %v4647
    %7483 = vmatprep.subr.bf16.mxu0 %v4656
    %7484 = vmatpush1.bf16.msra.mxu0 %v4655
    %7485 = vmatprep.subr.bf16.mxu0 %v4664
    %7486 = vmatpush1.bf16.msra.mxu0 %v4663
    %7487 = vmatprep.subr.bf16.mxu0 %v4672
    %7488 = vmatpush1.bf16.msra.mxu0 %v4671
    %7489 = vmatprep.subr.bf16.mxu0 %v4680
    %7490 = vmatpush1.bf16.msra.mxu0 %v4679
    %7491 = vmatprep.subr.bf16.mxu0 %v4688
    %7492 = vmatpush1.bf16.msra.mxu0 %v4687
    %7493 = vmatprep.subr.bf16.mxu0 %v4696
    %7494 = vmatpush1.bf16.msra.mxu0 %v4695
    %7495 = vmatprep.subr.bf16.mxu0 %v4704
    %7496 = vmatpush1.bf16.msra.mxu0 %v4703
    %7497 = vmatprep.subr.bf16.mxu0 %v4712
    %7498 = vmatpush1.bf16.msra.mxu0 %v4711
    %7499 = vmatprep.subr.bf16.mxu0 %v4720
    %7500 = vmatpush1.bf16.msra.mxu0 %v4719
    %7501 = vmatprep.subr.bf16.mxu0 %v4728
    %7502 = vmatpush1.bf16.msra.mxu0 %v4727
    %7503 = vmatprep.subr.bf16.mxu0 %v4736
    %7504 = vmatpush1.bf16.msra.mxu0 %v4735
    %7505 = vmatprep.subr.bf16.mxu0 %v4744
    %7506 = vmatpush1.bf16.msra.mxu0 %v4743
    %7507 = vmatprep.mubr.bf16.mxu0 %v212
    %7508 = vmatmul.mubr.bf16.gmra.mrb[0].mxu0 %v211
    %v7509 = vpop.f32.mrb[0].mxu0
    %v7510 = vadd.f32 %v7469, %v7509
    %v7511 = vpop.f32.mrb[0].mxu0
    %v7512 = vadd.f32 %v7471, %v7511
    %v7513 = vpop.f32.mrb[0].mxu0
    %v7514 = vpop.f32.mrb[0].mxu0
    %7515 = vdwg.mxu0
    %7516 = vmatprep.subr.bf16.mxu0 %v4752
    %7517 = vmatpush1.bf16.msra.mxu0 %v4751
    %7518 = vmatprep.subr.bf16.mxu0 %v4760
    %7519 = vmatpush1.bf16.msra.mxu0 %v4759
    %7520 = vmatprep.subr.bf16.mxu0 %v4768
    %7521 = vmatpush1.bf16.msra.mxu0 %v4767
    %7522 = vmatprep.subr.bf16.mxu0 %v4776
    %7523 = vmatpush1.bf16.msra.mxu0 %v4775
    %7524 = vmatprep.subr.bf16.mxu0 %v4784
    %7525 = vmatpush1.bf16.msra.mxu0 %v4783
    %7526 = vmatprep.subr.bf16.mxu0 %v4792
    %7527 = vmatpush1.bf16.msra.mxu0 %v4791
    %7528 = vmatprep.subr.bf16.mxu0 %v4800
    %7529 = vmatpush1.bf16.msra.mxu0 %v4799
    %7530 = vmatprep.subr.bf16.mxu0 %v4808
    %7531 = vmatpush1.bf16.msra.mxu0 %v4807
    %7532 = vmatprep.subr.bf16.mxu0 %v4816
    %7533 = vmatpush1.bf16.msra.mxu0 %v4815
    %7534 = vmatprep.subr.bf16.mxu0 %v4824
    %7535 = vmatpush1.bf16.msra.mxu0 %v4823
    %7536 = vmatprep.subr.bf16.mxu0 %v4832
    %7537 = vmatpush1.bf16.msra.mxu0 %v4831
    %7538 = vmatprep.subr.bf16.mxu0 %v4840
    %7539 = vmatpush1.bf16.msra.mxu0 %v4839
    %7540 = vmatprep.subr.bf16.mxu0 %v4848
    %7541 = vmatpush1.bf16.msra.mxu0 %v4847
    %7542 = vmatprep.subr.bf16.mxu0 %v4856
    %7543 = vmatpush1.bf16.msra.mxu0 %v4855
    %7544 = vmatprep.subr.bf16.mxu0 %v4864
    %7545 = vmatpush1.bf16.msra.mxu0 %v4863
    %7546 = vmatprep.subr.bf16.mxu0 %v4872
    %7547 = vmatpush1.bf16.msra.mxu0 %v4871
    %7548 = vmatprep.mubr.bf16.mxu0 %v214
    %7549 = vmatmul.mubr.bf16.gmra.mrb[0].mxu0 %v213
    %v7550 = vpop.f32.mrb[0].mxu0
    %v7551 = vadd.f32 %v7510, %v7550
    %v7552 = vpop.f32.mrb[0].mxu0
    %v7553 = vadd.f32 %v7512, %v7552
    %v7554 = vpop.f32.mrb[0].mxu0
    %v7555 = vpop.f32.mrb[0].mxu0
    %7556 = vdwg.mxu0
    %7557 = vmatprep.subr.bf16.mxu0 %v4880
    %7558 = vmatpush1.bf16.msra.mxu0 %v4879
    %7559 = vmatprep.subr.bf16.mxu0 %v4888
    %7560 = vmatpush1.bf16.msra.mxu0 %v4887
    %7561 = vmatprep.subr.bf16.mxu0 %v4896
    %7562 = vmatpush1.bf16.msra.mxu0 %v4895
    %7563 = vmatprep.subr.bf16.mxu0 %v4904
    %7564 = vmatpush1.bf16.msra.mxu0 %v4903
    %7565 = vmatprep.subr.bf16.mxu0 %v4912
    %7566 = vmatpush1.bf16.msra.mxu0 %v4911
    %7567 = vmatprep.subr.bf16.mxu0 %v4920
    %7568 = vmatpush1.bf16.msra.mxu0 %v4919
    %7569 = vmatprep.subr.bf16.mxu0 %v4928
    %7570 = vmatpush1.bf16.msra.mxu0 %v4927
    %7571 = vmatprep.subr.bf16.mxu0 %v4936
    %7572 = vmatpush1.bf16.msra.mxu0 %v4935
    %7573 = vmatprep.subr.bf16.mxu0 %v4944
    %7574 = vmatpush1.bf16.msra.mxu0 %v4943
    %7575 = vmatprep.subr.bf16.mxu0 %v4952
    %7576 = vmatpush1.bf16.msra.mxu0 %v4951
    %7577 = vmatprep.subr.bf16.mxu0 %v4960
    %7578 = vmatpush1.bf16.msra.mxu0 %v4959
    %7579 = vmatprep.subr.bf16.mxu0 %v4968
    %7580 = vmatpush1.bf16.msra.mxu0 %v4967
    %7581 = vmatprep.subr.bf16.mxu0 %v4976
    %7582 = vmatpush1.bf16.msra.mxu0 %v4975
    %7583 = vmatprep.subr.bf16.mxu0 %v4984
    %7584 = vmatpush1.bf16.msra.mxu0 %v4983
    %7585 = vmatprep.subr.bf16.mxu0 %v4992
    %7586 = vmatpush1.bf16.msra.mxu0 %v4991
    %7587 = vmatprep.subr.bf16.mxu0 %v5000
    %7588 = vmatpush1.bf16.msra.mxu0 %v4999
    %7589 = vmatprep.mubr.bf16.mxu0 %v216
    %7590 = vmatmul.mubr.bf16.gmra.mrb[0].mxu0 %v215
    %v7591 = vpop.f32.mrb[0].mxu0
    %v7592 = vadd.f32 %v7551, %v7591
    %v7593 = vpop.f32.mrb[0].mxu0
    %v7594 = vadd.f32 %v7553, %v7593
    %v7595 = vpop.f32.mrb[0].mxu0
    %v7596 = vpop.f32.mrb[0].mxu0
    %7597 = vdwg.mxu0
    %7598 = vmatprep.subr.bf16.mxu0 %v5008
    %7599 = vmatpush1.bf16.msra.mxu0 %v5007
    %7600 = vmatprep.subr.bf16.mxu0 %v5016
    %7601 = vmatpush1.bf16.msra.mxu0 %v5015
    %7602 = vmatprep.subr.bf16.mxu0 %v5024
    %7603 = vmatpush1.bf16.msra.mxu0 %v5023
    %7604 = vmatprep.subr.bf16.mxu0 %v5032
    %7605 = vmatpush1.bf16.msra.mxu0 %v5031
    %7606 = vmatprep.subr.bf16.mxu0 %v5040
    %7607 = vmatpush1.bf16.msra.mxu0 %v5039
    %7608 = vmatprep.subr.bf16.mxu0 %v5048
    %7609 = vmatpush1.bf16.msra.mxu0 %v5047
    %7610 = vmatprep.subr.bf16.mxu0 %v5056
    %7611 = vmatpush1.bf16.msra.mxu0 %v5055
    %7612 = vmatprep.subr.bf16.mxu0 %v5064
    %7613 = vmatpush1.bf16.msra.mxu0 %v5063
    %7614 = vmatprep.subr.bf16.mxu0 %v5072
    %7615 = vmatpush1.bf16.msra.mxu0 %v5071
    %7616 = vmatprep.subr.bf16.mxu0 %v5080
    %7617 = vmatpush1.bf16.msra.mxu0 %v5079
    %7618 = vmatprep.subr.bf16.mxu0 %v5088
    %7619 = vmatpush1.bf16.msra.mxu0 %v5087
    %7620 = vmatprep.subr.bf16.mxu0 %v5096
    %7621 = vmatpush1.bf16.msra.mxu0 %v5095
    %7622 = vmatprep.subr.bf16.mxu0 %v5104
    %7623 = vmatpush1.bf16.msra.mxu0 %v5103
    %7624 = vmatprep.subr.bf16.mxu0 %v5112
    %7625 = vmatpush1.bf16.msra.mxu0 %v5111
    %7626 = vmatprep.subr.bf16.mxu0 %v5120
    %7627 = vmatpush1.bf16.msra.mxu0 %v5119
    %7628 = vmatprep.subr.bf16.mxu0 %v5128
    %7629 = vmatpush1.bf16.msra.mxu0 %v5127
    %7630 = vmatprep.mubr.bf16.mxu0 %v218
    %7631 = vmatmul.mubr.bf16.gmra.mrb[0].mxu0 %v217
    %v7632 = vpop.f32.mrb[0].mxu0
    %v7633 = vadd.f32 %v7592, %v7632
    %v7634 = vpop.f32.mrb[0].mxu0
    %v7635 = vadd.f32 %v7594, %v7634
    %v7636 = vpop.f32.mrb[0].mxu0
    %v7637 = vpop.f32.mrb[0].mxu0
    %7638 = vdwg.mxu0
    %7639 = vmatprep.subr.bf16.mxu0 %v5136
    %7640 = vmatpush1.bf16.msra.mxu0 %v5135
    %7641 = vmatprep.subr.bf16.mxu0 %v5144
    %7642 = vmatpush1.bf16.msra.mxu0 %v5143
    %7643 = vmatprep.subr.bf16.mxu0 %v5152
    %7644 = vmatpush1.bf16.msra.mxu0 %v5151
    %7645 = vmatprep.subr.bf16.mxu0 %v5160
    %7646 = vmatpush1.bf16.msra.mxu0 %v5159
    %7647 = vmatprep.subr.bf16.mxu0 %v5168
    %7648 = vmatpush1.bf16.msra.mxu0 %v5167
    %7649 = vmatprep.subr.bf16.mxu0 %v5176
    %7650 = vmatpush1.bf16.msra.mxu0 %v5175
    %7651 = vmatprep.subr.bf16.mxu0 %v5184
    %7652 = vmatpush1.bf16.msra.mxu0 %v5183
    %7653 = vmatprep.subr.bf16.mxu0 %v5192
    %7654 = vmatpush1.bf16.msra.mxu0 %v5191
    %7655 = vmatprep.subr.bf16.mxu0 %v5200
    %7656 = vmatpush1.bf16.msra.mxu0 %v5199
    %7657 = vmatprep.subr.bf16.mxu0 %v5208
    %7658 = vmatpush1.bf16.msra.mxu0 %v5207
    %7659 = vmatprep.subr.bf16.mxu0 %v5216
    %7660 = vmatpush1.bf16.msra.mxu0 %v5215
    %7661 = vmatprep.subr.bf16.mxu0 %v5224
    %7662 = vmatpush1.bf16.msra.mxu0 %v5223
    %7663 = vmatprep.subr.bf16.mxu0 %v5232
    %7664 = vmatpush1.bf16.msra.mxu0 %v5231
    %7665 = vmatprep.subr.bf16.mxu0 %v5240
    %7666 = vmatpush1.bf16.msra.mxu0 %v5239
    %7667 = vmatprep.subr.bf16.mxu0 %v5248
    %7668 = vmatpush1.bf16.msra.mxu0 %v5247
    %7669 = vmatprep.subr.bf16.mxu0 %v5256
    %7670 = vmatpush1.bf16.msra.mxu0 %v5255
    %7671 = vmatprep.mubr.bf16.mxu0 %v220
    %7672 = vmatmul.mubr.bf16.gmra.mrb[0].mxu0 %v219
    %v7673 = vpop.f32.mrb[0].mxu0
    %v7674 = vadd.f32 %v7633, %v7673
    %v7675 = vpop.f32.mrb[0].mxu0
    %v7676 = vadd.f32 %v7635, %v7675
    %v7677 = vpop.f32.mrb[0].mxu0
    %v7678 = vpop.f32.mrb[0].mxu0
    %7679 = vdwg.mxu0
    %7680 = vmatprep.subr.bf16.mxu0 %v5264
    %7681 = vmatpush1.bf16.msra.mxu0 %v5263
    %7682 = vmatprep.subr.bf16.mxu0 %v5272
    %7683 = vmatpush1.bf16.msra.mxu0 %v5271
    %7684 = vmatprep.subr.bf16.mxu0 %v5280
    %7685 = vmatpush1.bf16.msra.mxu0 %v5279
    %7686 = vmatprep.subr.bf16.mxu0 %v5288
    %7687 = vmatpush1.bf16.msra.mxu0 %v5287
    %7688 = vmatprep.subr.bf16.mxu0 %v5296
    %7689 = vmatpush1.bf16.msra.mxu0 %v5295
    %7690 = vmatprep.subr.bf16.mxu0 %v5304
    %7691 = vmatpush1.bf16.msra.mxu0 %v5303
    %7692 = vmatprep.subr.bf16.mxu0 %v5312
    %7693 = vmatpush1.bf16.msra.mxu0 %v5311
    %7694 = vmatprep.subr.bf16.mxu0 %v5320
    %7695 = vmatpush1.bf16.msra.mxu0 %v5319
    %7696 = vmatprep.subr.bf16.mxu0 %v5328
    %7697 = vmatpush1.bf16.msra.mxu0 %v5327
    %7698 = vmatprep.subr.bf16.mxu0 %v5336
    %7699 = vmatpush1.bf16.msra.mxu0 %v5335
    %7700 = vmatprep.subr.bf16.mxu0 %v5344
    %7701 = vmatpush1.bf16.msra.mxu0 %v5343
    %7702 = vmatprep.subr.bf16.mxu0 %v5352
    %7703 = vmatpush1.bf16.msra.mxu0 %v5351
    %7704 = vmatprep.subr.bf16.mxu0 %v5360
    %7705 = vmatpush1.bf16.msra.mxu0 %v5359
    %7706 = vmatprep.subr.bf16.mxu0 %v5368
    %7707 = vmatpush1.bf16.msra.mxu0 %v5367
    %7708 = vmatprep.subr.bf16.mxu0 %v5376
    %7709 = vmatpush1.bf16.msra.mxu0 %v5375
    %7710 = vmatprep.subr.bf16.mxu0 %v5384
    %7711 = vmatpush1.bf16.msra.mxu0 %v5383
    %7712 = vmatprep.mubr.bf16.mxu0 %v222
    %7713 = vmatmul.mubr.bf16.gmra.mrb[0].mxu0 %v221
    %v7714 = vpop.f32.mrb[0].mxu0
    %v7715 = vadd.f32 %v7674, %v7714
    %v7716 = vpop.f32.mrb[0].mxu0
    %v7717 = vadd.f32 %v7676, %v7716
    %v7718 = vpop.f32.mrb[0].mxu0
    %v7719 = vpop.f32.mrb[0].mxu0
    %7720 = vdwg.mxu0
    %v7721 = vmax.f32 %v6731, 0.0
    %v7722 = vmax.f32 %v6733, 0.0
    %v7723 = vmax.f32 %v7059, 0.0
    %v7724 = vmax.f32 %v7061, 0.0
    %v7725 = vmax.f32 %v7387, 0.0
    %v7726 = vmax.f32 %v7389, 0.0
    %v7727 = vmax.f32 %v7715, 0.0
    %v7728 = vmax.f32 %v7717, 0.0
    %v7729 = vpack.c.bf16 %v7721, %v7721
    %v7730 = vpack.c.bf16 %v7722, %v7722
    %v7731 = vpack.c.bf16 %v7723, %v7723
    %v7732 = vpack.c.bf16 %v7724, %v7724
    %v7733 = vpack.c.bf16 %v7725, %v7725
    %v7734 = vpack.c.bf16 %v7726, %v7726
    %v7735 = vpack.c.bf16 %v7727, %v7727
    %v7736 = vpack.c.bf16 %v7728, %v7728
    %v7737 = vld [vmem:[#allocation8] sm:$0xff]
    %v7738 = vld [vmem:[#allocation8 + $0x8] sm:$0xff]
    %v7739 = vld [vmem:[#allocation8 + $0x10] sm:$0xff]
    %v7740 = vld [vmem:[#allocation8 + $0x18] sm:$0xff]
    %v7741 = vld [vmem:[#allocation8 + $0x20] sm:$0xff]
    %v7742 = vld [vmem:[#allocation8 + $0x28] sm:$0xff]
    %v7743 = vld [vmem:[#allocation8 + $0x30] sm:$0xff]
    %v7744 = vld [vmem:[#allocation8 + $0x38] sm:$0xff]
    %v7745 = vld [vmem:[#allocation8 + $0x40] sm:$0xff]
    %v7746 = vld [vmem:[#allocation8 + $0x48] sm:$0xff]
    %v7747 = vld [vmem:[#allocation8 + $0x50] sm:$0xff]
    %v7748 = vld [vmem:[#allocation8 + $0x58] sm:$0xff]
    %v7749 = vld [vmem:[#allocation8 + $0x60] sm:$0xff]
    %v7750 = vld [vmem:[#allocation8 + $0x68] sm:$0xff]
    %v7751 = vld [vmem:[#allocation8 + $0x70] sm:$0xff]
    %v7752 = vld [vmem:[#allocation8 + $0x78] sm:$0xff]
    %v7753 = vld [vmem:[#allocation8 + $0x80] sm:$0xff]
    %v7754 = vld [vmem:[#allocation8 + $0x88] sm:$0xff]
    %v7755 = vld [vmem:[#allocation8 + $0x90] sm:$0xff]
    %v7756 = vld [vmem:[#allocation8 + $0x98] sm:$0xff]
    %v7757 = vld [vmem:[#allocation8 + $0xa0] sm:$0xff]
    %v7758 = vld [vmem:[#allocation8 + $0xa8] sm:$0xff]
    %v7759 = vld [vmem:[#allocation8 + $0xb0] sm:$0xff]
    %v7760 = vld [vmem:[#allocation8 + $0xb8] sm:$0xff]
    %v7761 = vld [vmem:[#allocation8 + $0xc0] sm:$0xff]
    %v7762 = vld [vmem:[#allocation8 + $0xc8] sm:$0xff]
    %v7763 = vld [vmem:[#allocation8 + $0xd0] sm:$0xff]
    %v7764 = vld [vmem:[#allocation8 + $0xd8] sm:$0xff]
    %v7765 = vld [vmem:[#allocation8 + $0xe0] sm:$0xff]
    %v7766 = vld [vmem:[#allocation8 + $0xe8] sm:$0xff]
    %v7767 = vld [vmem:[#allocation8 + $0xf0] sm:$0xff]
    %v7768 = vld [vmem:[#allocation8 + $0xf8] sm:$0xff]
    %v7769 = vld [vmem:[#allocation8 + $0x100] sm:$0xff]
    %v7770 = vld [vmem:[#allocation8 + $0x108] sm:$0xff]
    %v7771 = vld [vmem:[#allocation8 + $0x110] sm:$0xff]
    %v7772 = vld [vmem:[#allocation8 + $0x118] sm:$0xff]
    %v7773 = vld [vmem:[#allocation8 + $0x120] sm:$0xff]
    %v7774 = vld [vmem:[#allocation8 + $0x128] sm:$0xff]
    %v7775 = vld [vmem:[#allocation8 + $0x130] sm:$0xff]
    %v7776 = vld [vmem:[#allocation8 + $0x138] sm:$0xff]
    %v7777 = vld [vmem:[#allocation8 + $0x140] sm:$0xff]
    %v7778 = vld [vmem:[#allocation8 + $0x148] sm:$0xff]
    %v7779 = vld [vmem:[#allocation8 + $0x150] sm:$0xff]
    %v7780 = vld [vmem:[#allocation8 + $0x158] sm:$0xff]
    %v7781 = vld [vmem:[#allocation8 + $0x160] sm:$0xff]
    %v7782 = vld [vmem:[#allocation8 + $0x168] sm:$0xff]
    %v7783 = vld [vmem:[#allocation8 + $0x170] sm:$0xff]
    %v7784 = vld [vmem:[#allocation8 + $0x178] sm:$0xff]
    %v7785 = vld [vmem:[#allocation8 + $0x180] sm:$0xff]
    %v7786 = vld [vmem:[#allocation8 + $0x188] sm:$0xff]
    %v7787 = vld [vmem:[#allocation8 + $0x190] sm:$0xff]
    %v7788 = vld [vmem:[#allocation8 + $0x198] sm:$0xff]
    %v7789 = vld [vmem:[#allocation8 + $0x1a0] sm:$0xff]
    %v7790 = vld [vmem:[#allocation8 + $0x1a8] sm:$0xff]
    %v7791 = vld [vmem:[#allocation8 + $0x1b0] sm:$0xff]
    %v7792 = vld [vmem:[#allocation8 + $0x1b8] sm:$0xff]
    %v7793 = vld [vmem:[#allocation8 + $0x1c0] sm:$0xff]
    %v7794 = vld [vmem:[#allocation8 + $0x1c8] sm:$0xff]
    %v7795 = vld [vmem:[#allocation8 + $0x1d0] sm:$0xff]
    %v7796 = vld [vmem:[#allocation8 + $0x1d8] sm:$0xff]
    %v7797 = vld [vmem:[#allocation8 + $0x1e0] sm:$0xff]
    %v7798 = vld [vmem:[#allocation8 + $0x1e8] sm:$0xff]
    %v7799 = vld [vmem:[#allocation8 + $0x1f0] sm:$0xff]
    %v7800 = vld [vmem:[#allocation8 + $0x1f8] sm:$0xff]
    %v7801 = vld [vmem:[#allocation8 + $0x200] sm:$0xff]
    %v7802 = vld [vmem:[#allocation8 + $0x208] sm:$0xff]
    %v7803 = vld [vmem:[#allocation8 + $0x210] sm:$0xff]
    %v7804 = vld [vmem:[#allocation8 + $0x218] sm:$0xff]
    %v7805 = vld [vmem:[#allocation8 + $0x220] sm:$0xff]
    %v7806 = vld [vmem:[#allocation8 + $0x228] sm:$0xff]
    %v7807 = vld [vmem:[#allocation8 + $0x230] sm:$0xff]
    %v7808 = vld [vmem:[#allocation8 + $0x238] sm:$0xff]
    %v7809 = vld [vmem:[#allocation8 + $0x240] sm:$0xff]
    %v7810 = vld [vmem:[#allocation8 + $0x248] sm:$0xff]
    %v7811 = vld [vmem:[#allocation8 + $0x250] sm:$0xff]
    %v7812 = vld [vmem:[#allocation8 + $0x258] sm:$0xff]
    %v7813 = vld [vmem:[#allocation8 + $0x260] sm:$0xff]
    %v7814 = vld [vmem:[#allocation8 + $0x268] sm:$0xff]
    %v7815 = vld [vmem:[#allocation8 + $0x270] sm:$0xff]
    %v7816 = vld [vmem:[#allocation8 + $0x278] sm:$0xff]
    %v7817 = vld [vmem:[#allocation8 + $0x280] sm:$0xff]
    %v7818 = vld [vmem:[#allocation8 + $0x288] sm:$0xff]
    %v7819 = vld [vmem:[#allocation8 + $0x290] sm:$0xff]
    %v7820 = vld [vmem:[#allocation8 + $0x298] sm:$0xff]
    %v7821 = vld [vmem:[#allocation8 + $0x2a0] sm:$0xff]
    %v7822 = vld [vmem:[#allocation8 + $0x2a8] sm:$0xff]
    %v7823 = vld [vmem:[#allocation8 + $0x2b0] sm:$0xff]
    %v7824 = vld [vmem:[#allocation8 + $0x2b8] sm:$0xff]
    %v7825 = vld [vmem:[#allocation8 + $0x2c0] sm:$0xff]
    %v7826 = vld [vmem:[#allocation8 + $0x2c8] sm:$0xff]
    %v7827 = vld [vmem:[#allocation8 + $0x2d0] sm:$0xff]
    %v7828 = vld [vmem:[#allocation8 + $0x2d8] sm:$0xff]
    %v7829 = vld [vmem:[#allocation8 + $0x2e0] sm:$0xff]
    %v7830 = vld [vmem:[#allocation8 + $0x2e8] sm:$0xff]
    %v7831 = vld [vmem:[#allocation8 + $0x2f0] sm:$0xff]
    %v7832 = vld [vmem:[#allocation8 + $0x2f8] sm:$0xff]
    %v7833 = vld [vmem:[#allocation8 + $0x300] sm:$0xff]
    %v7834 = vld [vmem:[#allocation8 + $0x308] sm:$0xff]
    %v7835 = vld [vmem:[#allocation8 + $0x310] sm:$0xff]
    %v7836 = vld [vmem:[#allocation8 + $0x318] sm:$0xff]
    %v7837 = vld [vmem:[#allocation8 + $0x320] sm:$0xff]
    %v7838 = vld [vmem:[#allocation8 + $0x328] sm:$0xff]
    %v7839 = vld [vmem:[#allocation8 + $0x330] sm:$0xff]
    %v7840 = vld [vmem:[#allocation8 + $0x338] sm:$0xff]
    %v7841 = vld [vmem:[#allocation8 + $0x340] sm:$0xff]
    %v7842 = vld [vmem:[#allocation8 + $0x348] sm:$0xff]
    %v7843 = vld [vmem:[#allocation8 + $0x350] sm:$0xff]
    %v7844 = vld [vmem:[#allocation8 + $0x358] sm:$0xff]
    %v7845 = vld [vmem:[#allocation8 + $0x360] sm:$0xff]
    %v7846 = vld [vmem:[#allocation8 + $0x368] sm:$0xff]
    %v7847 = vld [vmem:[#allocation8 + $0x370] sm:$0xff]
    %v7848 = vld [vmem:[#allocation8 + $0x378] sm:$0xff]
    %v7849 = vld [vmem:[#allocation8 + $0x380] sm:$0xff]
    %v7850 = vld [vmem:[#allocation8 + $0x388] sm:$0xff]
    %v7851 = vld [vmem:[#allocation8 + $0x390] sm:$0xff]
    %v7852 = vld [vmem:[#allocation8 + $0x398] sm:$0xff]
    %v7853 = vld [vmem:[#allocation8 + $0x3a0] sm:$0xff]
    %v7854 = vld [vmem:[#allocation8 + $0x3a8] sm:$0xff]
    %v7855 = vld [vmem:[#allocation8 + $0x3b0] sm:$0xff]
    %v7856 = vld [vmem:[#allocation8 + $0x3b8] sm:$0xff]
    %v7857 = vld [vmem:[#allocation8 + $0x3c0] sm:$0xff]
    %v7858 = vld [vmem:[#allocation8 + $0x3c8] sm:$0xff]
    %v7859 = vld [vmem:[#allocation8 + $0x3d0] sm:$0xff]
    %v7860 = vld [vmem:[#allocation8 + $0x3d8] sm:$0xff]
    %v7861 = vld [vmem:[#allocation8 + $0x3e0] sm:$0xff]
    %v7862 = vld [vmem:[#allocation8 + $0x3e8] sm:$0xff]
    %v7863 = vld [vmem:[#allocation8 + $0x3f0] sm:$0xff]
    %v7864 = vld [vmem:[#allocation8 + $0x3f8] sm:$0xff]
    %v7865 = vld [vmem:[#allocation8 + $0x400] sm:$0xff]
    %v7866 = vld [vmem:[#allocation8 + $0x408] sm:$0xff]
    %v7867 = vld [vmem:[#allocation8 + $0x410] sm:$0xff]
    %v7868 = vld [vmem:[#allocation8 + $0x418] sm:$0xff]
    %v7869 = vld [vmem:[#allocation8 + $0x420] sm:$0xff]
    %v7870 = vld [vmem:[#allocation8 + $0x428] sm:$0xff]
    %v7871 = vld [vmem:[#allocation8 + $0x430] sm:$0xff]
    %v7872 = vld [vmem:[#allocation8 + $0x438] sm:$0xff]
    %v7873 = vld [vmem:[#allocation8 + $0x440] sm:$0xff]
    %v7874 = vld [vmem:[#allocation8 + $0x448] sm:$0xff]
    %v7875 = vld [vmem:[#allocation8 + $0x450] sm:$0xff]
    %v7876 = vld [vmem:[#allocation8 + $0x458] sm:$0xff]
    %v7877 = vld [vmem:[#allocation8 + $0x460] sm:$0xff]
    %v7878 = vld [vmem:[#allocation8 + $0x468] sm:$0xff]
    %v7879 = vld [vmem:[#allocation8 + $0x470] sm:$0xff]
    %v7880 = vld [vmem:[#allocation8 + $0x478] sm:$0xff]
    %v7881 = vld [vmem:[#allocation8 + $0x480] sm:$0xff]
    %v7882 = vld [vmem:[#allocation8 + $0x488] sm:$0xff]
    %v7883 = vld [vmem:[#allocation8 + $0x490] sm:$0xff]
    %v7884 = vld [vmem:[#allocation8 + $0x498] sm:$0xff]
    %v7885 = vld [vmem:[#allocation8 + $0x4a0] sm:$0xff]
    %v7886 = vld [vmem:[#allocation8 + $0x4a8] sm:$0xff]
    %v7887 = vld [vmem:[#allocation8 + $0x4b0] sm:$0xff]
    %v7888 = vld [vmem:[#allocation8 + $0x4b8] sm:$0xff]
    %v7889 = vld [vmem:[#allocation8 + $0x4c0] sm:$0xff]
    %v7890 = vld [vmem:[#allocation8 + $0x4c8] sm:$0xff]
    %v7891 = vld [vmem:[#allocation8 + $0x4d0] sm:$0xff]
    %v7892 = vld [vmem:[#allocation8 + $0x4d8] sm:$0xff]
    %v7893 = vld [vmem:[#allocation8 + $0x4e0] sm:$0xff]
    %v7894 = vld [vmem:[#allocation8 + $0x4e8] sm:$0xff]
    %v7895 = vld [vmem:[#allocation8 + $0x4f0] sm:$0xff]
    %v7896 = vld [vmem:[#allocation8 + $0x4f8] sm:$0xff]
    %v7897 = vld [vmem:[#allocation8 + $0x500] sm:$0xff]
    %v7898 = vld [vmem:[#allocation8 + $0x508] sm:$0xff]
    %v7899 = vld [vmem:[#allocation8 + $0x510] sm:$0xff]
    %v7900 = vld [vmem:[#allocation8 + $0x518] sm:$0xff]
    %v7901 = vld [vmem:[#allocation8 + $0x520] sm:$0xff]
    %v7902 = vld [vmem:[#allocation8 + $0x528] sm:$0xff]
    %v7903 = vld [vmem:[#allocation8 + $0x530] sm:$0xff]
    %v7904 = vld [vmem:[#allocation8 + $0x538] sm:$0xff]
    %v7905 = vld [vmem:[#allocation8 + $0x540] sm:$0xff]
    %v7906 = vld [vmem:[#allocation8 + $0x548] sm:$0xff]
    %v7907 = vld [vmem:[#allocation8 + $0x550] sm:$0xff]
    %v7908 = vld [vmem:[#allocation8 + $0x558] sm:$0xff]
    %v7909 = vld [vmem:[#allocation8 + $0x560] sm:$0xff]
    %v7910 = vld [vmem:[#allocation8 + $0x568] sm:$0xff]
    %v7911 = vld [vmem:[#allocation8 + $0x570] sm:$0xff]
    %v7912 = vld [vmem:[#allocation8 + $0x578] sm:$0xff]
    %v7913 = vld [vmem:[#allocation8 + $0x580] sm:$0xff]
    %v7914 = vld [vmem:[#allocation8 + $0x588] sm:$0xff]
    %v7915 = vld [vmem:[#allocation8 + $0x590] sm:$0xff]
    %v7916 = vld [vmem:[#allocation8 + $0x598] sm:$0xff]
    %v7917 = vld [vmem:[#allocation8 + $0x5a0] sm:$0xff]
    %v7918 = vld [vmem:[#allocation8 + $0x5a8] sm:$0xff]
    %v7919 = vld [vmem:[#allocation8 + $0x5b0] sm:$0xff]
    %v7920 = vld [vmem:[#allocation8 + $0x5b8] sm:$0xff]
    %v7921 = vld [vmem:[#allocation8 + $0x5c0] sm:$0xff]
    %v7922 = vld [vmem:[#allocation8 + $0x5c8] sm:$0xff]
    %v7923 = vld [vmem:[#allocation8 + $0x5d0] sm:$0xff]
    %v7924 = vld [vmem:[#allocation8 + $0x5d8] sm:$0xff]
    %v7925 = vld [vmem:[#allocation8 + $0x5e0] sm:$0xff]
    %v7926 = vld [vmem:[#allocation8 + $0x5e8] sm:$0xff]
    %v7927 = vld [vmem:[#allocation8 + $0x5f0] sm:$0xff]
    %v7928 = vld [vmem:[#allocation8 + $0x5f8] sm:$0xff]
    %v7929 = vld [vmem:[#allocation8 + $0x600] sm:$0xff]
    %v7930 = vld [vmem:[#allocation8 + $0x608] sm:$0xff]
    %v7931 = vld [vmem:[#allocation8 + $0x610] sm:$0xff]
    %v7932 = vld [vmem:[#allocation8 + $0x618] sm:$0xff]
    %v7933 = vld [vmem:[#allocation8 + $0x620] sm:$0xff]
    %v7934 = vld [vmem:[#allocation8 + $0x628] sm:$0xff]
    %v7935 = vld [vmem:[#allocation8 + $0x630] sm:$0xff]
    %v7936 = vld [vmem:[#allocation8 + $0x638] sm:$0xff]
    %v7937 = vld [vmem:[#allocation8 + $0x640] sm:$0xff]
    %v7938 = vld [vmem:[#allocation8 + $0x648] sm:$0xff]
    %v7939 = vld [vmem:[#allocation8 + $0x650] sm:$0xff]
    %v7940 = vld [vmem:[#allocation8 + $0x658] sm:$0xff]
    %v7941 = vld [vmem:[#allocation8 + $0x660] sm:$0xff]
    %v7942 = vld [vmem:[#allocation8 + $0x668] sm:$0xff]
    %v7943 = vld [vmem:[#allocation8 + $0x670] sm:$0xff]
    %v7944 = vld [vmem:[#allocation8 + $0x678] sm:$0xff]
    %v7945 = vld [vmem:[#allocation8 + $0x680] sm:$0xff]
    %v7946 = vld [vmem:[#allocation8 + $0x688] sm:$0xff]
    %v7947 = vld [vmem:[#allocation8 + $0x690] sm:$0xff]
    %v7948 = vld [vmem:[#allocation8 + $0x698] sm:$0xff]
    %v7949 = vld [vmem:[#allocation8 + $0x6a0] sm:$0xff]
    %v7950 = vld [vmem:[#allocation8 + $0x6a8] sm:$0xff]
    %v7951 = vld [vmem:[#allocation8 + $0x6b0] sm:$0xff]
    %v7952 = vld [vmem:[#allocation8 + $0x6b8] sm:$0xff]
    %v7953 = vld [vmem:[#allocation8 + $0x6c0] sm:$0xff]
    %v7954 = vld [vmem:[#allocation8 + $0x6c8] sm:$0xff]
    %v7955 = vld [vmem:[#allocation8 + $0x6d0] sm:$0xff]
    %v7956 = vld [vmem:[#allocation8 + $0x6d8] sm:$0xff]
    %v7957 = vld [vmem:[#allocation8 + $0x6e0] sm:$0xff]
    %v7958 = vld [vmem:[#allocation8 + $0x6e8] sm:$0xff]
    %v7959 = vld [vmem:[#allocation8 + $0x6f0] sm:$0xff]
    %v7960 = vld [vmem:[#allocation8 + $0x6f8] sm:$0xff]
    %v7961 = vld [vmem:[#allocation8 + $0x700] sm:$0xff]
    %v7962 = vld [vmem:[#allocation8 + $0x708] sm:$0xff]
    %v7963 = vld [vmem:[#allocation8 + $0x710] sm:$0xff]
    %v7964 = vld [vmem:[#allocation8 + $0x718] sm:$0xff]
    %v7965 = vld [vmem:[#allocation8 + $0x720] sm:$0xff]
    %v7966 = vld [vmem:[#allocation8 + $0x728] sm:$0xff]
    %v7967 = vld [vmem:[#allocation8 + $0x730] sm:$0xff]
    %v7968 = vld [vmem:[#allocation8 + $0x738] sm:$0xff]
    %v7969 = vld [vmem:[#allocation8 + $0x740] sm:$0xff]
    %v7970 = vld [vmem:[#allocation8 + $0x748] sm:$0xff]
    %v7971 = vld [vmem:[#allocation8 + $0x750] sm:$0xff]
    %v7972 = vld [vmem:[#allocation8 + $0x758] sm:$0xff]
    %v7973 = vld [vmem:[#allocation8 + $0x760] sm:$0xff]
    %v7974 = vld [vmem:[#allocation8 + $0x768] sm:$0xff]
    %v7975 = vld [vmem:[#allocation8 + $0x770] sm:$0xff]
    %v7976 = vld [vmem:[#allocation8 + $0x778] sm:$0xff]
    %v7977 = vld [vmem:[#allocation8 + $0x780] sm:$0xff]
    %v7978 = vld [vmem:[#allocation8 + $0x788] sm:$0xff]
    %v7979 = vld [vmem:[#allocation8 + $0x790] sm:$0xff]
    %v7980 = vld [vmem:[#allocation8 + $0x798] sm:$0xff]
    %v7981 = vld [vmem:[#allocation8 + $0x7a0] sm:$0xff]
    %v7982 = vld [vmem:[#allocation8 + $0x7a8] sm:$0xff]
    %v7983 = vld [vmem:[#allocation8 + $0x7b0] sm:$0xff]
    %v7984 = vld [vmem:[#allocation8 + $0x7b8] sm:$0xff]
    %v7985 = vld [vmem:[#allocation8 + $0x7c0] sm:$0xff]
    %v7986 = vld [vmem:[#allocation8 + $0x7c8] sm:$0xff]
    %v7987 = vld [vmem:[#allocation8 + $0x7d0] sm:$0xff]
    %v7988 = vld [vmem:[#allocation8 + $0x7d8] sm:$0xff]
    %v7989 = vld [vmem:[#allocation8 + $0x7e0] sm:$0xff]
    %v7990 = vld [vmem:[#allocation8 + $0x7e8] sm:$0xff]
    %v7991 = vld [vmem:[#allocation8 + $0x7f0] sm:$0xff]
    %v7992 = vld [vmem:[#allocation8 + $0x7f8] sm:$0xff]
    %v7993 = vld [vmem:[#allocation10] sm:$0xf]
    %v7995 = vlaneseq
    %v7996 = vshrl.u32 %v7995, 7
    %v7997 = vsub.s32 0, %v7996
    %v7998 = vrot.slane %v7993, %v7997
    %v7999 = vlaneseq
    %v8000 = vshrl.u32 %v7999, 7
    %v8001 = vsub.s32 1, %v8000
    %v8002 = vrot.slane %v7993, %v8001
    %v8003 = vlaneseq
    %v8004 = vshrl.u32 %v8003, 7
    %v8005 = vsub.s32 2, %v8004
    %v8006 = vrot.slane %v7993, %v8005
    %v8007 = vlaneseq
    %v8008 = vshrl.u32 %v8007, 7
    %v8009 = vsub.s32 3, %v8008
    %v8010 = vrot.slane %v7993, %v8009
    %v8271 = vunpack.c.l.b16 %v7737
    %v8272 = vunpack.c.h.b16 %v7737
    %v8273 = vunpack.c.l.b16 %v7738
    %v8274 = vunpack.c.h.b16 %v7738
    %v8275 = vunpack.c.l.b16 %v7739
    %v8276 = vunpack.c.h.b16 %v7739
    %v8277 = vunpack.c.l.b16 %v7740
    %v8278 = vunpack.c.h.b16 %v7740
    %v8279 = vunpack.c.l.b16 %v7741
    %v8280 = vunpack.c.h.b16 %v7741
    %v8281 = vunpack.c.l.b16 %v7742
    %v8282 = vunpack.c.h.b16 %v7742
    %v8283 = vunpack.c.l.b16 %v7743
    %v8284 = vunpack.c.h.b16 %v7743
    %v8285 = vunpack.c.l.b16 %v7744
    %v8286 = vunpack.c.h.b16 %v7744
    %v8287 = vunpack.c.l.b16 %v7745
    %v8288 = vunpack.c.h.b16 %v7745
    %v8289 = vunpack.c.l.b16 %v7746
    %v8290 = vunpack.c.h.b16 %v7746
    %v8291 = vunpack.c.l.b16 %v7747
    %v8292 = vunpack.c.h.b16 %v7747
    %v8293 = vunpack.c.l.b16 %v7748
    %v8294 = vunpack.c.h.b16 %v7748
    %v8295 = vunpack.c.l.b16 %v7749
    %v8296 = vunpack.c.h.b16 %v7749
    %v8297 = vunpack.c.l.b16 %v7750
    %v8298 = vunpack.c.h.b16 %v7750
    %v8299 = vunpack.c.l.b16 %v7751
    %v8300 = vunpack.c.h.b16 %v7751
    %v8301 = vunpack.c.l.b16 %v7752
    %v8302 = vunpack.c.h.b16 %v7752
    %v8303 = vunpack.c.l.b16 %v7753
    %v8304 = vunpack.c.h.b16 %v7753
    %v8305 = vunpack.c.l.b16 %v7754
    %v8306 = vunpack.c.h.b16 %v7754
    %v8307 = vunpack.c.l.b16 %v7755
    %v8308 = vunpack.c.h.b16 %v7755
    %v8309 = vunpack.c.l.b16 %v7756
    %v8310 = vunpack.c.h.b16 %v7756
    %v8311 = vunpack.c.l.b16 %v7757
    %v8312 = vunpack.c.h.b16 %v7757
    %v8313 = vunpack.c.l.b16 %v7758
    %v8314 = vunpack.c.h.b16 %v7758
    %v8315 = vunpack.c.l.b16 %v7759
    %v8316 = vunpack.c.h.b16 %v7759
    %v8317 = vunpack.c.l.b16 %v7760
    %v8318 = vunpack.c.h.b16 %v7760
    %v8319 = vunpack.c.l.b16 %v7761
    %v8320 = vunpack.c.h.b16 %v7761
    %v8321 = vunpack.c.l.b16 %v7762
    %v8322 = vunpack.c.h.b16 %v7762
    %v8323 = vunpack.c.l.b16 %v7763
    %v8324 = vunpack.c.h.b16 %v7763
    %v8325 = vunpack.c.l.b16 %v7764
    %v8326 = vunpack.c.h.b16 %v7764
    %v8327 = vunpack.c.l.b16 %v7765
    %v8328 = vunpack.c.h.b16 %v7765
    %v8329 = vunpack.c.l.b16 %v7766
    %v8330 = vunpack.c.h.b16 %v7766
    %v8331 = vunpack.c.l.b16 %v7767
    %v8332 = vunpack.c.h.b16 %v7767
    %v8333 = vunpack.c.l.b16 %v7768
    %v8334 = vunpack.c.h.b16 %v7768
    %v8335 = vunpack.c.l.b16 %v7769
    %v8336 = vunpack.c.h.b16 %v7769
    %v8337 = vunpack.c.l.b16 %v7770
    %v8338 = vunpack.c.h.b16 %v7770
    %v8339 = vunpack.c.l.b16 %v7771
    %v8340 = vunpack.c.h.b16 %v7771
    %v8341 = vunpack.c.l.b16 %v7772
    %v8342 = vunpack.c.h.b16 %v7772
    %v8343 = vunpack.c.l.b16 %v7773
    %v8344 = vunpack.c.h.b16 %v7773
    %v8345 = vunpack.c.l.b16 %v7774
    %v8346 = vunpack.c.h.b16 %v7774
    %v8347 = vunpack.c.l.b16 %v7775
    %v8348 = vunpack.c.h.b16 %v7775
    %v8349 = vunpack.c.l.b16 %v7776
    %v8350 = vunpack.c.h.b16 %v7776
    %v8351 = vunpack.c.l.b16 %v7777
    %v8352 = vunpack.c.h.b16 %v7777
    %v8353 = vunpack.c.l.b16 %v7778
    %v8354 = vunpack.c.h.b16 %v7778
    %v8355 = vunpack.c.l.b16 %v7779
    %v8356 = vunpack.c.h.b16 %v7779
    %v8357 = vunpack.c.l.b16 %v7780
    %v8358 = vunpack.c.h.b16 %v7780
    %v8359 = vunpack.c.l.b16 %v7781
    %v8360 = vunpack.c.h.b16 %v7781
    %v8361 = vunpack.c.l.b16 %v7782
    %v8362 = vunpack.c.h.b16 %v7782
    %v8363 = vunpack.c.l.b16 %v7783
    %v8364 = vunpack.c.h.b16 %v7783
    %v8365 = vunpack.c.l.b16 %v7784
    %v8366 = vunpack.c.h.b16 %v7784
    %v8367 = vunpack.c.l.b16 %v7785
    %v8368 = vunpack.c.h.b16 %v7785
    %v8369 = vunpack.c.l.b16 %v7786
    %v8370 = vunpack.c.h.b16 %v7786
    %v8371 = vunpack.c.l.b16 %v7787
    %v8372 = vunpack.c.h.b16 %v7787
    %v8373 = vunpack.c.l.b16 %v7788
    %v8374 = vunpack.c.h.b16 %v7788
    %v8375 = vunpack.c.l.b16 %v7789
    %v8376 = vunpack.c.h.b16 %v7789
    %v8377 = vunpack.c.l.b16 %v7790
    %v8378 = vunpack.c.h.b16 %v7790
    %v8379 = vunpack.c.l.b16 %v7791
    %v8380 = vunpack.c.h.b16 %v7791
    %v8381 = vunpack.c.l.b16 %v7792
    %v8382 = vunpack.c.h.b16 %v7792
    %v8383 = vunpack.c.l.b16 %v7793
    %v8384 = vunpack.c.h.b16 %v7793
    %v8385 = vunpack.c.l.b16 %v7794
    %v8386 = vunpack.c.h.b16 %v7794
    %v8387 = vunpack.c.l.b16 %v7795
    %v8388 = vunpack.c.h.b16 %v7795
    %v8389 = vunpack.c.l.b16 %v7796
    %v8390 = vunpack.c.h.b16 %v7796
    %v8391 = vunpack.c.l.b16 %v7797
    %v8392 = vunpack.c.h.b16 %v7797
    %v8393 = vunpack.c.l.b16 %v7798
    %v8394 = vunpack.c.h.b16 %v7798
    %v8395 = vunpack.c.l.b16 %v7799
    %v8396 = vunpack.c.h.b16 %v7799
    %v8397 = vunpack.c.l.b16 %v7800
    %v8398 = vunpack.c.h.b16 %v7800
    %v8399 = vunpack.c.l.b16 %v7801
    %v8400 = vunpack.c.h.b16 %v7801
    %v8401 = vunpack.c.l.b16 %v7802
    %v8402 = vunpack.c.h.b16 %v7802
    %v8403 = vunpack.c.l.b16 %v7803
    %v8404 = vunpack.c.h.b16 %v7803
    %v8405 = vunpack.c.l.b16 %v7804
    %v8406 = vunpack.c.h.b16 %v7804
    %v8407 = vunpack.c.l.b16 %v7805
    %v8408 = vunpack.c.h.b16 %v7805
    %v8409 = vunpack.c.l.b16 %v7806
    %v8410 = vunpack.c.h.b16 %v7806
    %v8411 = vunpack.c.l.b16 %v7807
    %v8412 = vunpack.c.h.b16 %v7807
    %v8413 = vunpack.c.l.b16 %v7808
    %v8414 = vunpack.c.h.b16 %v7808
    %v8415 = vunpack.c.l.b16 %v7809
    %v8416 = vunpack.c.h.b16 %v7809
    %v8417 = vunpack.c.l.b16 %v7810
    %v8418 = vunpack.c.h.b16 %v7810
    %v8419 = vunpack.c.l.b16 %v7811
    %v8420 = vunpack.c.h.b16 %v7811
    %v8421 = vunpack.c.l.b16 %v7812
    %v8422 = vunpack.c.h.b16 %v7812
    %v8423 = vunpack.c.l.b16 %v7813
    %v8424 = vunpack.c.h.b16 %v7813
    %v8425 = vunpack.c.l.b16 %v7814
    %v8426 = vunpack.c.h.b16 %v7814
    %v8427 = vunpack.c.l.b16 %v7815
    %v8428 = vunpack.c.h.b16 %v7815
    %v8429 = vunpack.c.l.b16 %v7816
    %v8430 = vunpack.c.h.b16 %v7816
    %v8431 = vunpack.c.l.b16 %v7817
    %v8432 = vunpack.c.h.b16 %v7817
    %v8433 = vunpack.c.l.b16 %v7818
    %v8434 = vunpack.c.h.b16 %v7818
    %v8435 = vunpack.c.l.b16 %v7819
    %v8436 = vunpack.c.h.b16 %v7819
    %v8437 = vunpack.c.l.b16 %v7820
    %v8438 = vunpack.c.h.b16 %v7820
    %v8439 = vunpack.c.l.b16 %v7821
    %v8440 = vunpack.c.h.b16 %v7821
    %v8441 = vunpack.c.l.b16 %v7822
    %v8442 = vunpack.c.h.b16 %v7822
    %v8443 = vunpack.c.l.b16 %v7823
    %v8444 = vunpack.c.h.b16 %v7823
    %v8445 = vunpack.c.l.b16 %v7824
    %v8446 = vunpack.c.h.b16 %v7824
    %v8447 = vunpack.c.l.b16 %v7825
    %v8448 = vunpack.c.h.b16 %v7825
    %v8449 = vunpack.c.l.b16 %v7826
    %v8450 = vunpack.c.h.b16 %v7826
    %v8451 = vunpack.c.l.b16 %v7827
    %v8452 = vunpack.c.h.b16 %v7827
    %v8453 = vunpack.c.l.b16 %v7828
    %v8454 = vunpack.c.h.b16 %v7828
    %v8455 = vunpack.c.l.b16 %v7829
    %v8456 = vunpack.c.h.b16 %v7829
    %v8457 = vunpack.c.l.b16 %v7830
    %v8458 = vunpack.c.h.b16 %v7830
    %v8459 = vunpack.c.l.b16 %v7831
    %v8460 = vunpack.c.h.b16 %v7831
    %v8461 = vunpack.c.l.b16 %v7832
    %v8462 = vunpack.c.h.b16 %v7832
    %v8463 = vunpack.c.l.b16 %v7833
    %v8464 = vunpack.c.h.b16 %v7833
    %v8465 = vunpack.c.l.b16 %v7834
    %v8466 = vunpack.c.h.b16 %v7834
    %v8467 = vunpack.c.l.b16 %v7835
    %v8468 = vunpack.c.h.b16 %v7835
    %v8469 = vunpack.c.l.b16 %v7836
    %v8470 = vunpack.c.h.b16 %v7836
    %v8471 = vunpack.c.l.b16 %v7837
    %v8472 = vunpack.c.h.b16 %v7837
    %v8473 = vunpack.c.l.b16 %v7838
    %v8474 = vunpack.c.h.b16 %v7838
    %v8475 = vunpack.c.l.b16 %v7839
    %v8476 = vunpack.c.h.b16 %v7839
    %v8477 = vunpack.c.l.b16 %v7840
    %v8478 = vunpack.c.h.b16 %v7840
    %v8479 = vunpack.c.l.b16 %v7841
    %v8480 = vunpack.c.h.b16 %v7841
    %v8481 = vunpack.c.l.b16 %v7842
    %v8482 = vunpack.c.h.b16 %v7842
    %v8483 = vunpack.c.l.b16 %v7843
    %v8484 = vunpack.c.h.b16 %v7843
    %v8485 = vunpack.c.l.b16 %v7844
    %v8486 = vunpack.c.h.b16 %v7844
    %v8487 = vunpack.c.l.b16 %v7845
    %v8488 = vunpack.c.h.b16 %v7845
    %v8489 = vunpack.c.l.b16 %v7846
    %v8490 = vunpack.c.h.b16 %v7846
    %v8491 = vunpack.c.l.b16 %v7847
    %v8492 = vunpack.c.h.b16 %v7847
    %v8493 = vunpack.c.l.b16 %v7848
    %v8494 = vunpack.c.h.b16 %v7848
    %v8495 = vunpack.c.l.b16 %v7849
    %v8496 = vunpack.c.h.b16 %v7849
    %v8497 = vunpack.c.l.b16 %v7850
    %v8498 = vunpack.c.h.b16 %v7850
    %v8499 = vunpack.c.l.b16 %v7851
    %v8500 = vunpack.c.h.b16 %v7851
    %v8501 = vunpack.c.l.b16 %v7852
    %v8502 = vunpack.c.h.b16 %v7852
    %v8503 = vunpack.c.l.b16 %v7853
    %v8504 = vunpack.c.h.b16 %v7853
    %v8505 = vunpack.c.l.b16 %v7854
    %v8506 = vunpack.c.h.b16 %v7854
    %v8507 = vunpack.c.l.b16 %v7855
    %v8508 = vunpack.c.h.b16 %v7855
    %v8509 = vunpack.c.l.b16 %v7856
    %v8510 = vunpack.c.h.b16 %v7856
    %v8511 = vunpack.c.l.b16 %v7857
    %v8512 = vunpack.c.h.b16 %v7857
    %v8513 = vunpack.c.l.b16 %v7858
    %v8514 = vunpack.c.h.b16 %v7858
    %v8515 = vunpack.c.l.b16 %v7859
    %v8516 = vunpack.c.h.b16 %v7859
    %v8517 = vunpack.c.l.b16 %v7860
    %v8518 = vunpack.c.h.b16 %v7860
    %v8519 = vunpack.c.l.b16 %v7861
    %v8520 = vunpack.c.h.b16 %v7861
    %v8521 = vunpack.c.l.b16 %v7862
    %v8522 = vunpack.c.h.b16 %v7862
    %v8523 = vunpack.c.l.b16 %v7863
    %v8524 = vunpack.c.h.b16 %v7863
    %v8525 = vunpack.c.l.b16 %v7864
    %v8526 = vunpack.c.h.b16 %v7864
    %v8527 = vunpack.c.l.b16 %v7865
    %v8528 = vunpack.c.h.b16 %v7865
    %v8529 = vunpack.c.l.b16 %v7866
    %v8530 = vunpack.c.h.b16 %v7866
    %v8531 = vunpack.c.l.b16 %v7867
    %v8532 = vunpack.c.h.b16 %v7867
    %v8533 = vunpack.c.l.b16 %v7868
    %v8534 = vunpack.c.h.b16 %v7868
    %v8535 = vunpack.c.l.b16 %v7869
    %v8536 = vunpack.c.h.b16 %v7869
    %v8537 = vunpack.c.l.b16 %v7870
    %v8538 = vunpack.c.h.b16 %v7870
    %v8539 = vunpack.c.l.b16 %v7871
    %v8540 = vunpack.c.h.b16 %v7871
    %v8541 = vunpack.c.l.b16 %v7872
    %v8542 = vunpack.c.h.b16 %v7872
    %v8543 = vunpack.c.l.b16 %v7873
    %v8544 = vunpack.c.h.b16 %v7873
    %v8545 = vunpack.c.l.b16 %v7874
    %v8546 = vunpack.c.h.b16 %v7874
    %v8547 = vunpack.c.l.b16 %v7875
    %v8548 = vunpack.c.h.b16 %v7875
    %v8549 = vunpack.c.l.b16 %v7876
    %v8550 = vunpack.c.h.b16 %v7876
    %v8551 = vunpack.c.l.b16 %v7877
    %v8552 = vunpack.c.h.b16 %v7877
    %v8553 = vunpack.c.l.b16 %v7878
    %v8554 = vunpack.c.h.b16 %v7878
    %v8555 = vunpack.c.l.b16 %v7879
    %v8556 = vunpack.c.h.b16 %v7879
    %v8557 = vunpack.c.l.b16 %v7880
    %v8558 = vunpack.c.h.b16 %v7880
    %v8559 = vunpack.c.l.b16 %v7881
    %v8560 = vunpack.c.h.b16 %v7881
    %v8561 = vunpack.c.l.b16 %v7882
    %v8562 = vunpack.c.h.b16 %v7882
    %v8563 = vunpack.c.l.b16 %v7883
    %v8564 = vunpack.c.h.b16 %v7883
    %v8565 = vunpack.c.l.b16 %v7884
    %v8566 = vunpack.c.h.b16 %v7884
    %v8567 = vunpack.c.l.b16 %v7885
    %v8568 = vunpack.c.h.b16 %v7885
    %v8569 = vunpack.c.l.b16 %v7886
    %v8570 = vunpack.c.h.b16 %v7886
    %v8571 = vunpack.c.l.b16 %v7887
    %v8572 = vunpack.c.h.b16 %v7887
    %v8573 = vunpack.c.l.b16 %v7888
    %v8574 = vunpack.c.h.b16 %v7888
    %v8575 = vunpack.c.l.b16 %v7889
    %v8576 = vunpack.c.h.b16 %v7889
    %v8577 = vunpack.c.l.b16 %v7890
    %v8578 = vunpack.c.h.b16 %v7890
    %v8579 = vunpack.c.l.b16 %v7891
    %v8580 = vunpack.c.h.b16 %v7891
    %v8581 = vunpack.c.l.b16 %v7892
    %v8582 = vunpack.c.h.b16 %v7892
    %v8583 = vunpack.c.l.b16 %v7893
    %v8584 = vunpack.c.h.b16 %v7893
    %v8585 = vunpack.c.l.b16 %v7894
    %v8586 = vunpack.c.h.b16 %v7894
    %v8587 = vunpack.c.l.b16 %v7895
    %v8588 = vunpack.c.h.b16 %v7895
    %v8589 = vunpack.c.l.b16 %v7896
    %v8590 = vunpack.c.h.b16 %v7896
    %v8591 = vunpack.c.l.b16 %v7897
    %v8592 = vunpack.c.h.b16 %v7897
    %v8593 = vunpack.c.l.b16 %v7898
    %v8594 = vunpack.c.h.b16 %v7898
    %v8595 = vunpack.c.l.b16 %v7899
    %v8596 = vunpack.c.h.b16 %v7899
    %v8597 = vunpack.c.l.b16 %v7900
    %v8598 = vunpack.c.h.b16 %v7900
    %v8599 = vunpack.c.l.b16 %v7901
    %v8600 = vunpack.c.h.b16 %v7901
    %v8601 = vunpack.c.l.b16 %v7902
    %v8602 = vunpack.c.h.b16 %v7902
    %v8603 = vunpack.c.l.b16 %v7903
    %v8604 = vunpack.c.h.b16 %v7903
    %v8605 = vunpack.c.l.b16 %v7904
    %v8606 = vunpack.c.h.b16 %v7904
    %v8607 = vunpack.c.l.b16 %v7905
    %v8608 = vunpack.c.h.b16 %v7905
    %v8609 = vunpack.c.l.b16 %v7906
    %v8610 = vunpack.c.h.b16 %v7906
    %v8611 = vunpack.c.l.b16 %v7907
    %v8612 = vunpack.c.h.b16 %v7907
    %v8613 = vunpack.c.l.b16 %v7908
    %v8614 = vunpack.c.h.b16 %v7908
    %v8615 = vunpack.c.l.b16 %v7909
    %v8616 = vunpack.c.h.b16 %v7909
    %v8617 = vunpack.c.l.b16 %v7910
    %v8618 = vunpack.c.h.b16 %v7910
    %v8619 = vunpack.c.l.b16 %v7911
    %v8620 = vunpack.c.h.b16 %v7911
    %v8621 = vunpack.c.l.b16 %v7912
    %v8622 = vunpack.c.h.b16 %v7912
    %v8623 = vunpack.c.l.b16 %v7913
    %v8624 = vunpack.c.h.b16 %v7913
    %v8625 = vunpack.c.l.b16 %v7914
    %v8626 = vunpack.c.h.b16 %v7914
    %v8627 = vunpack.c.l.b16 %v7915
    %v8628 = vunpack.c.h.b16 %v7915
    %v8629 = vunpack.c.l.b16 %v7916
    %v8630 = vunpack.c.h.b16 %v7916
    %v8631 = vunpack.c.l.b16 %v7917
    %v8632 = vunpack.c.h.b16 %v7917
    %v8633 = vunpack.c.l.b16 %v7918
    %v8634 = vunpack.c.h.b16 %v7918
    %v8635 = vunpack.c.l.b16 %v7919
    %v8636 = vunpack.c.h.b16 %v7919
    %v8637 = vunpack.c.l.b16 %v7920
    %v8638 = vunpack.c.h.b16 %v7920
    %v8639 = vunpack.c.l.b16 %v7921
    %v8640 = vunpack.c.h.b16 %v7921
    %v8641 = vunpack.c.l.b16 %v7922
    %v8642 = vunpack.c.h.b16 %v7922
    %v8643 = vunpack.c.l.b16 %v7923
    %v8644 = vunpack.c.h.b16 %v7923
    %v8645 = vunpack.c.l.b16 %v7924
    %v8646 = vunpack.c.h.b16 %v7924
    %v8647 = vunpack.c.l.b16 %v7925
    %v8648 = vunpack.c.h.b16 %v7925
    %v8649 = vunpack.c.l.b16 %v7926
    %v8650 = vunpack.c.h.b16 %v7926
    %v8651 = vunpack.c.l.b16 %v7927
    %v8652 = vunpack.c.h.b16 %v7927
    %v8653 = vunpack.c.l.b16 %v7928
    %v8654 = vunpack.c.h.b16 %v7928
    %v8655 = vunpack.c.l.b16 %v7929
    %v8656 = vunpack.c.h.b16 %v7929
    %v8657 = vunpack.c.l.b16 %v7930
    %v8658 = vunpack.c.h.b16 %v7930
    %v8659 = vunpack.c.l.b16 %v7931
    %v8660 = vunpack.c.h.b16 %v7931
    %v8661 = vunpack.c.l.b16 %v7932
    %v8662 = vunpack.c.h.b16 %v7932
    %v8663 = vunpack.c.l.b16 %v7933
    %v8664 = vunpack.c.h.b16 %v7933
    %v8665 = vunpack.c.l.b16 %v7934
    %v8666 = vunpack.c.h.b16 %v7934
    %v8667 = vunpack.c.l.b16 %v7935
    %v8668 = vunpack.c.h.b16 %v7935
    %v8669 = vunpack.c.l.b16 %v7936
    %v8670 = vunpack.c.h.b16 %v7936
    %v8671 = vunpack.c.l.b16 %v7937
    %v8672 = vunpack.c.h.b16 %v7937
    %v8673 = vunpack.c.l.b16 %v7938
    %v8674 = vunpack.c.h.b16 %v7938
    %v8675 = vunpack.c.l.b16 %v7939
    %v8676 = vunpack.c.h.b16 %v7939
    %v8677 = vunpack.c.l.b16 %v7940
    %v8678 = vunpack.c.h.b16 %v7940
    %v8679 = vunpack.c.l.b16 %v7941
    %v8680 = vunpack.c.h.b16 %v7941
    %v8681 = vunpack.c.l.b16 %v7942
    %v8682 = vunpack.c.h.b16 %v7942
    %v8683 = vunpack.c.l.b16 %v7943
    %v8684 = vunpack.c.h.b16 %v7943
    %v8685 = vunpack.c.l.b16 %v7944
    %v8686 = vunpack.c.h.b16 %v7944
    %v8687 = vunpack.c.l.b16 %v7945
    %v8688 = vunpack.c.h.b16 %v7945
    %v8689 = vunpack.c.l.b16 %v7946
    %v8690 = vunpack.c.h.b16 %v7946
    %v8691 = vunpack.c.l.b16 %v7947
    %v8692 = vunpack.c.h.b16 %v7947
    %v8693 = vunpack.c.l.b16 %v7948
    %v8694 = vunpack.c.h.b16 %v7948
    %v8695 = vunpack.c.l.b16 %v7949
    %v8696 = vunpack.c.h.b16 %v7949
    %v8697 = vunpack.c.l.b16 %v7950
    %v8698 = vunpack.c.h.b16 %v7950
    %v8699 = vunpack.c.l.b16 %v7951
    %v8700 = vunpack.c.h.b16 %v7951
    %v8701 = vunpack.c.l.b16 %v7952
    %v8702 = vunpack.c.h.b16 %v7952
    %v8703 = vunpack.c.l.b16 %v7953
    %v8704 = vunpack.c.h.b16 %v7953
    %v8705 = vunpack.c.l.b16 %v7954
    %v8706 = vunpack.c.h.b16 %v7954
    %v8707 = vunpack.c.l.b16 %v7955
    %v8708 = vunpack.c.h.b16 %v7955
    %v8709 = vunpack.c.l.b16 %v7956
    %v8710 = vunpack.c.h.b16 %v7956
    %v8711 = vunpack.c.l.b16 %v7957
    %v8712 = vunpack.c.h.b16 %v7957
    %v8713 = vunpack.c.l.b16 %v7958
    %v8714 = vunpack.c.h.b16 %v7958
    %v8715 = vunpack.c.l.b16 %v7959
    %v8716 = vunpack.c.h.b16 %v7959
    %v8717 = vunpack.c.l.b16 %v7960
    %v8718 = vunpack.c.h.b16 %v7960
    %v8719 = vunpack.c.l.b16 %v7961
    %v8720 = vunpack.c.h.b16 %v7961
    %v8721 = vunpack.c.l.b16 %v7962
    %v8722 = vunpack.c.h.b16 %v7962
    %v8723 = vunpack.c.l.b16 %v7963
    %v8724 = vunpack.c.h.b16 %v7963
    %v8725 = vunpack.c.l.b16 %v7964
    %v8726 = vunpack.c.h.b16 %v7964
    %v8727 = vunpack.c.l.b16 %v7965
    %v8728 = vunpack.c.h.b16 %v7965
    %v8729 = vunpack.c.l.b16 %v7966
    %v8730 = vunpack.c.h.b16 %v7966
    %v8731 = vunpack.c.l.b16 %v7967
    %v8732 = vunpack.c.h.b16 %v7967
    %v8733 = vunpack.c.l.b16 %v7968
    %v8734 = vunpack.c.h.b16 %v7968
    %v8735 = vunpack.c.l.b16 %v7969
    %v8736 = vunpack.c.h.b16 %v7969
    %v8737 = vunpack.c.l.b16 %v7970
    %v8738 = vunpack.c.h.b16 %v7970
    %v8739 = vunpack.c.l.b16 %v7971
    %v8740 = vunpack.c.h.b16 %v7971
    %v8741 = vunpack.c.l.b16 %v7972
    %v8742 = vunpack.c.h.b16 %v7972
    %v8743 = vunpack.c.l.b16 %v7973
    %v8744 = vunpack.c.h.b16 %v7973
    %v8745 = vunpack.c.l.b16 %v7974
    %v8746 = vunpack.c.h.b16 %v7974
    %v8747 = vunpack.c.l.b16 %v7975
    %v8748 = vunpack.c.h.b16 %v7975
    %v8749 = vunpack.c.l.b16 %v7976
    %v8750 = vunpack.c.h.b16 %v7976
    %v8751 = vunpack.c.l.b16 %v7977
    %v8752 = vunpack.c.h.b16 %v7977
    %v8753 = vunpack.c.l.b16 %v7978
    %v8754 = vunpack.c.h.b16 %v7978
    %v8755 = vunpack.c.l.b16 %v7979
    %v8756 = vunpack.c.h.b16 %v7979
    %v8757 = vunpack.c.l.b16 %v7980
    %v8758 = vunpack.c.h.b16 %v7980
    %v8759 = vunpack.c.l.b16 %v7981
    %v8760 = vunpack.c.h.b16 %v7981
    %v8761 = vunpack.c.l.b16 %v7982
    %v8762 = vunpack.c.h.b16 %v7982
    %v8763 = vunpack.c.l.b16 %v7983
    %v8764 = vunpack.c.h.b16 %v7983
    %v8765 = vunpack.c.l.b16 %v7984
    %v8766 = vunpack.c.h.b16 %v7984
    %v8767 = vunpack.c.l.b16 %v7985
    %v8768 = vunpack.c.h.b16 %v7985
    %v8769 = vunpack.c.l.b16 %v7986
    %v8770 = vunpack.c.h.b16 %v7986
    %v8771 = vunpack.c.l.b16 %v7987
    %v8772 = vunpack.c.h.b16 %v7987
    %v8773 = vunpack.c.l.b16 %v7988
    %v8774 = vunpack.c.h.b16 %v7988
    %v8775 = vunpack.c.l.b16 %v7989
    %v8776 = vunpack.c.h.b16 %v7989
    %v8777 = vunpack.c.l.b16 %v7990
    %v8778 = vunpack.c.h.b16 %v7990
    %v8779 = vunpack.c.l.b16 %v7991
    %v8780 = vunpack.c.h.b16 %v7991
    %v8781 = vunpack.c.l.b16 %v7992
    %v8782 = vunpack.c.h.b16 %v7992
    %v8783 = vpack.c.b16 %v8275, %v8271
    %v8784 = vpack.c.b16 %v8276, %v8272
    %v8785 = vpack.c.b16 %v8277, %v8273
    %v8786 = vpack.c.b16 %v8278, %v8274
    %v8787 = vpack.c.b16 %v8283, %v8279
    %v8788 = vpack.c.b16 %v8284, %v8280
    %v8789 = vpack.c.b16 %v8285, %v8281
    %v8790 = vpack.c.b16 %v8286, %v8282
    %v8791 = vpack.c.b16 %v8291, %v8287
    %v8792 = vpack.c.b16 %v8292, %v8288
    %v8793 = vpack.c.b16 %v8293, %v8289
    %v8794 = vpack.c.b16 %v8294, %v8290
    %v8795 = vpack.c.b16 %v8299, %v8295
    %v8796 = vpack.c.b16 %v8300, %v8296
    %v8797 = vpack.c.b16 %v8301, %v8297
    %v8798 = vpack.c.b16 %v8302, %v8298
    %v8799 = vpack.c.b16 %v8307, %v8303
    %v8800 = vpack.c.b16 %v8308, %v8304
    %v8801 = vpack.c.b16 %v8309, %v8305
    %v8802 = vpack.c.b16 %v8310, %v8306
    %v8803 = vpack.c.b16 %v8315, %v8311
    %v8804 = vpack.c.b16 %v8316, %v8312
    %v8805 = vpack.c.b16 %v8317, %v8313
    %v8806 = vpack.c.b16 %v8318, %v8314
    %v8807 = vpack.c.b16 %v8323, %v8319
    %v8808 = vpack.c.b16 %v8324, %v8320
    %v8809 = vpack.c.b16 %v8325, %v8321
    %v8810 = vpack.c.b16 %v8326, %v8322
    %v8811 = vpack.c.b16 %v8331, %v8327
    %v8812 = vpack.c.b16 %v8332, %v8328
    %v8813 = vpack.c.b16 %v8333, %v8329
    %v8814 = vpack.c.b16 %v8334, %v8330
    %v8815 = vpack.c.b16 %v8339, %v8335
    %v8816 = vpack.c.b16 %v8340, %v8336
    %v8817 = vpack.c.b16 %v8341, %v8337
    %v8818 = vpack.c.b16 %v8342, %v8338
    %v8819 = vpack.c.b16 %v8347, %v8343
    %v8820 = vpack.c.b16 %v8348, %v8344
    %v8821 = vpack.c.b16 %v8349, %v8345
    %v8822 = vpack.c.b16 %v8350, %v8346
    %v8823 = vpack.c.b16 %v8355, %v8351
    %v8824 = vpack.c.b16 %v8356, %v8352
    %v8825 = vpack.c.b16 %v8357, %v8353
    %v8826 = vpack.c.b16 %v8358, %v8354
    %v8827 = vpack.c.b16 %v8363, %v8359
    %v8828 = vpack.c.b16 %v8364, %v8360
    %v8829 = vpack.c.b16 %v8365, %v8361
    %v8830 = vpack.c.b16 %v8366, %v8362
    %v8831 = vpack.c.b16 %v8371, %v8367
    %v8832 = vpack.c.b16 %v8372, %v8368
    %v8833 = vpack.c.b16 %v8373, %v8369
    %v8834 = vpack.c.b16 %v8374, %v8370
    %v8835 = vpack.c.b16 %v8379, %v8375
    %v8836 = vpack.c.b16 %v8380, %v8376
    %v8837 = vpack.c.b16 %v8381, %v8377
    %v8838 = vpack.c.b16 %v8382, %v8378
    %v8839 = vpack.c.b16 %v8387, %v8383
    %v8840 = vpack.c.b16 %v8388, %v8384
    %v8841 = vpack.c.b16 %v8389, %v8385
    %v8842 = vpack.c.b16 %v8390, %v8386
    %v8843 = vpack.c.b16 %v8395, %v8391
    %v8844 = vpack.c.b16 %v8396, %v8392
    %v8845 = vpack.c.b16 %v8397, %v8393
    %v8846 = vpack.c.b16 %v8398, %v8394
    %v8847 = vpack.c.b16 %v8403, %v8399
    %v8848 = vpack.c.b16 %v8404, %v8400
    %v8849 = vpack.c.b16 %v8405, %v8401
    %v8850 = vpack.c.b16 %v8406, %v8402
    %v8851 = vpack.c.b16 %v8411, %v8407
    %v8852 = vpack.c.b16 %v8412, %v8408
    %v8853 = vpack.c.b16 %v8413, %v8409
    %v8854 = vpack.c.b16 %v8414, %v8410
    %v8855 = vpack.c.b16 %v8419, %v8415
    %v8856 = vpack.c.b16 %v8420, %v8416
    %v8857 = vpack.c.b16 %v8421, %v8417
    %v8858 = vpack.c.b16 %v8422, %v8418
    %v8859 = vpack.c.b16 %v8427, %v8423
    %v8860 = vpack.c.b16 %v8428, %v8424
    %v8861 = vpack.c.b16 %v8429, %v8425
    %v8862 = vpack.c.b16 %v8430, %v8426
    %v8863 = vpack.c.b16 %v8435, %v8431
    %v8864 = vpack.c.b16 %v8436, %v8432
    %v8865 = vpack.c.b16 %v8437, %v8433
    %v8866 = vpack.c.b16 %v8438, %v8434
    %v8867 = vpack.c.b16 %v8443, %v8439
    %v8868 = vpack.c.b16 %v8444, %v8440
    %v8869 = vpack.c.b16 %v8445, %v8441
    %v8870 = vpack.c.b16 %v8446, %v8442
    %v8871 = vpack.c.b16 %v8451, %v8447
    %v8872 = vpack.c.b16 %v8452, %v8448
    %v8873 = vpack.c.b16 %v8453, %v8449
    %v8874 = vpack.c.b16 %v8454, %v8450
    %v8875 = vpack.c.b16 %v8459, %v8455
    %v8876 = vpack.c.b16 %v8460, %v8456
    %v8877 = vpack.c.b16 %v8461, %v8457
    %v8878 = vpack.c.b16 %v8462, %v8458
    %v8879 = vpack.c.b16 %v8467, %v8463
    %v8880 = vpack.c.b16 %v8468, %v8464
    %v8881 = vpack.c.b16 %v8469, %v8465
    %v8882 = vpack.c.b16 %v8470, %v8466
    %v8883 = vpack.c.b16 %v8475, %v8471
    %v8884 = vpack.c.b16 %v8476, %v8472
    %v8885 = vpack.c.b16 %v8477, %v8473
    %v8886 = vpack.c.b16 %v8478, %v8474
    %v8887 = vpack.c.b16 %v8483, %v8479
    %v8888 = vpack.c.b16 %v8484, %v8480
    %v8889 = vpack.c.b16 %v8485, %v8481
    %v8890 = vpack.c.b16 %v8486, %v8482
    %v8891 = vpack.c.b16 %v8491, %v8487
    %v8892 = vpack.c.b16 %v8492, %v8488
    %v8893 = vpack.c.b16 %v8493, %v8489
    %v8894 = vpack.c.b16 %v8494, %v8490
    %v8895 = vpack.c.b16 %v8499, %v8495
    %v8896 = vpack.c.b16 %v8500, %v8496
    %v8897 = vpack.c.b16 %v8501, %v8497
    %v8898 = vpack.c.b16 %v8502, %v8498
    %v8899 = vpack.c.b16 %v8507, %v8503
    %v8900 = vpack.c.b16 %v8508, %v8504
    %v8901 = vpack.c.b16 %v8509, %v8505
    %v8902 = vpack.c.b16 %v8510, %v8506
    %v8903 = vpack.c.b16 %v8515, %v8511
    %v8904 = vpack.c.b16 %v8516, %v8512
    %v8905 = vpack.c.b16 %v8517, %v8513
    %v8906 = vpack.c.b16 %v8518, %v8514
    %v8907 = vpack.c.b16 %v8523, %v8519
    %v8908 = vpack.c.b16 %v8524, %v8520
    %v8909 = vpack.c.b16 %v8525, %v8521
    %v8910 = vpack.c.b16 %v8526, %v8522
    %v8911 = vpack.c.b16 %v8531, %v8527
    %v8912 = vpack.c.b16 %v8532, %v8528
    %v8913 = vpack.c.b16 %v8533, %v8529
    %v8914 = vpack.c.b16 %v8534, %v8530
    %v8915 = vpack.c.b16 %v8539, %v8535
    %v8916 = vpack.c.b16 %v8540, %v8536
    %v8917 = vpack.c.b16 %v8541, %v8537
    %v8918 = vpack.c.b16 %v8542, %v8538
    %v8919 = vpack.c.b16 %v8547, %v8543
    %v8920 = vpack.c.b16 %v8548, %v8544
    %v8921 = vpack.c.b16 %v8549, %v8545
    %v8922 = vpack.c.b16 %v8550, %v8546
    %v8923 = vpack.c.b16 %v8555, %v8551
    %v8924 = vpack.c.b16 %v8556, %v8552
    %v8925 = vpack.c.b16 %v8557, %v8553
    %v8926 = vpack.c.b16 %v8558, %v8554
    %v8927 = vpack.c.b16 %v8563, %v8559
    %v8928 = vpack.c.b16 %v8564, %v8560
    %v8929 = vpack.c.b16 %v8565, %v8561
    %v8930 = vpack.c.b16 %v8566, %v8562
    %v8931 = vpack.c.b16 %v8571, %v8567
    %v8932 = vpack.c.b16 %v8572, %v8568
    %v8933 = vpack.c.b16 %v8573, %v8569
    %v8934 = vpack.c.b16 %v8574, %v8570
    %v8935 = vpack.c.b16 %v8579, %v8575
    %v8936 = vpack.c.b16 %v8580, %v8576
    %v8937 = vpack.c.b16 %v8581, %v8577
    %v8938 = vpack.c.b16 %v8582, %v8578
    %v8939 = vpack.c.b16 %v8587, %v8583
    %v8940 = vpack.c.b16 %v8588, %v8584
    %v8941 = vpack.c.b16 %v8589, %v8585
    %v8942 = vpack.c.b16 %v8590, %v8586
    %v8943 = vpack.c.b16 %v8595, %v8591
    %v8944 = vpack.c.b16 %v8596, %v8592
    %v8945 = vpack.c.b16 %v8597, %v8593
    %v8946 = vpack.c.b16 %v8598, %v8594
    %v8947 = vpack.c.b16 %v8603, %v8599
    %v8948 = vpack.c.b16 %v8604, %v8600
    %v8949 = vpack.c.b16 %v8605, %v8601
    %v8950 = vpack.c.b16 %v8606, %v8602
    %v8951 = vpack.c.b16 %v8611, %v8607
    %v8952 = vpack.c.b16 %v8612, %v8608
    %v8953 = vpack.c.b16 %v8613, %v8609
    %v8954 = vpack.c.b16 %v8614, %v8610
    %v8955 = vpack.c.b16 %v8619, %v8615
    %v8956 = vpack.c.b16 %v8620, %v8616
    %v8957 = vpack.c.b16 %v8621, %v8617
    %v8958 = vpack.c.b16 %v8622, %v8618
    %v8959 = vpack.c.b16 %v8627, %v8623
    %v8960 = vpack.c.b16 %v8628, %v8624
    %v8961 = vpack.c.b16 %v8629, %v8625
    %v8962 = vpack.c.b16 %v8630, %v8626
    %v8963 = vpack.c.b16 %v8635, %v8631
    %v8964 = vpack.c.b16 %v8636, %v8632
    %v8965 = vpack.c.b16 %v8637, %v8633
    %v8966 = vpack.c.b16 %v8638, %v8634
    %v8967 = vpack.c.b16 %v8643, %v8639
    %v8968 = vpack.c.b16 %v8644, %v8640
    %v8969 = vpack.c.b16 %v8645, %v8641
    %v8970 = vpack.c.b16 %v8646, %v8642
    %v8971 = vpack.c.b16 %v8651, %v8647
    %v8972 = vpack.c.b16 %v8652, %v8648
    %v8973 = vpack.c.b16 %v8653, %v8649
    %v8974 = vpack.c.b16 %v8654, %v8650
    %v8975 = vpack.c.b16 %v8659, %v8655
    %v8976 = vpack.c.b16 %v8660, %v8656
    %v8977 = vpack.c.b16 %v8661, %v8657
    %v8978 = vpack.c.b16 %v8662, %v8658
    %v8979 = vpack.c.b16 %v8667, %v8663
    %v8980 = vpack.c.b16 %v8668, %v8664
    %v8981 = vpack.c.b16 %v8669, %v8665
    %v8982 = vpack.c.b16 %v8670, %v8666
    %v8983 = vpack.c.b16 %v8675, %v8671
    %v8984 = vpack.c.b16 %v8676, %v8672
    %v8985 = vpack.c.b16 %v8677, %v8673
    %v8986 = vpack.c.b16 %v8678, %v8674
    %v8987 = vpack.c.b16 %v8683, %v8679
    %v8988 = vpack.c.b16 %v8684, %v8680
    %v8989 = vpack.c.b16 %v8685, %v8681
    %v8990 = vpack.c.b16 %v8686, %v8682
    %v8991 = vpack.c.b16 %v8691, %v8687
    %v8992 = vpack.c.b16 %v8692, %v8688
    %v8993 = vpack.c.b16 %v8693, %v8689
    %v8994 = vpack.c.b16 %v8694, %v8690
    %v8995 = vpack.c.b16 %v8699, %v8695
    %v8996 = vpack.c.b16 %v8700, %v8696
    %v8997 = vpack.c.b16 %v8701, %v8697
    %v8998 = vpack.c.b16 %v8702, %v8698
    %v8999 = vpack.c.b16 %v8707, %v8703
    %v9000 = vpack.c.b16 %v8708, %v8704
    %v9001 = vpack.c.b16 %v8709, %v8705
    %v9002 = vpack.c.b16 %v8710, %v8706
    %v9003 = vpack.c.b16 %v8715, %v8711
    %v9004 = vpack.c.b16 %v8716, %v8712
    %v9005 = vpack.c.b16 %v8717, %v8713
    %v9006 = vpack.c.b16 %v8718, %v8714
    %v9007 = vpack.c.b16 %v8723, %v8719
    %v9008 = vpack.c.b16 %v8724, %v8720
    %v9009 = vpack.c.b16 %v8725, %v8721
    %v9010 = vpack.c.b16 %v8726, %v8722
    %v9011 = vpack.c.b16 %v8731, %v8727
    %v9012 = vpack.c.b16 %v8732, %v8728
    %v9013 = vpack.c.b16 %v8733, %v8729
    %v9014 = vpack.c.b16 %v8734, %v8730
    %v9015 = vpack.c.b16 %v8739, %v8735
    %v9016 = vpack.c.b16 %v8740, %v8736
    %v9017 = vpack.c.b16 %v8741, %v8737
    %v9018 = vpack.c.b16 %v8742, %v8738
    %v9019 = vpack.c.b16 %v8747, %v8743
    %v9020 = vpack.c.b16 %v8748, %v8744
    %v9021 = vpack.c.b16 %v8749, %v8745
    %v9022 = vpack.c.b16 %v8750, %v8746
    %v9023 = vpack.c.b16 %v8755, %v8751
    %v9024 = vpack.c.b16 %v8756, %v8752
    %v9025 = vpack.c.b16 %v8757, %v8753
    %v9026 = vpack.c.b16 %v8758, %v8754
    %v9027 = vpack.c.b16 %v8763, %v8759
    %v9028 = vpack.c.b16 %v8764, %v8760
    %v9029 = vpack.c.b16 %v8765, %v8761
    %v9030 = vpack.c.b16 %v8766, %v8762
    %v9031 = vpack.c.b16 %v8771, %v8767
    %v9032 = vpack.c.b16 %v8772, %v8768
    %v9033 = vpack.c.b16 %v8773, %v8769
    %v9034 = vpack.c.b16 %v8774, %v8770
    %v9035 = vpack.c.b16 %v8779, %v8775
    %v9036 = vpack.c.b16 %v8780, %v8776
    %v9037 = vpack.c.b16 %v8781, %v8777
    %v9038 = vpack.c.b16 %v8782, %v8778
    %9295 = vmatprep.subr.bf16.mxu0 %v8784
    %9296 = vmatpush1.bf16.msra.mxu0 %v8783
    %9297 = vmatprep.subr.bf16.mxu0 %v8788
    %9298 = vmatpush1.bf16.msra.mxu0 %v8787
    %9299 = vmatprep.subr.bf16.mxu0 %v8792
    %9300 = vmatpush1.bf16.msra.mxu0 %v8791
    %9301 = vmatprep.subr.bf16.mxu0 %v8796
    %9302 = vmatpush1.bf16.msra.mxu0 %v8795
    %9303 = vmatprep.subr.bf16.mxu0 %v8800
    %9304 = vmatpush1.bf16.msra.mxu0 %v8799
    %9305 = vmatprep.subr.bf16.mxu0 %v8804
    %9306 = vmatpush1.bf16.msra.mxu0 %v8803
    %9307 = vmatprep.subr.bf16.mxu0 %v8808
    %9308 = vmatpush1.bf16.msra.mxu0 %v8807
    %9309 = vmatprep.subr.bf16.mxu0 %v8812
    %9310 = vmatpush1.bf16.msra.mxu0 %v8811
    %9311 = vmatprep.subr.bf16.mxu0 %v8816
    %9312 = vmatpush1.bf16.msra.mxu0 %v8815
    %9313 = vmatprep.subr.bf16.mxu0 %v8820
    %9314 = vmatpush1.bf16.msra.mxu0 %v8819
    %9315 = vmatprep.subr.bf16.mxu0 %v8824
    %9316 = vmatpush1.bf16.msra.mxu0 %v8823
    %9317 = vmatprep.subr.bf16.mxu0 %v8828
    %9318 = vmatpush1.bf16.msra.mxu0 %v8827
    %9319 = vmatprep.subr.bf16.mxu0 %v8832
    %9320 = vmatpush1.bf16.msra.mxu0 %v8831
    %9321 = vmatprep.subr.bf16.mxu0 %v8836
    %9322 = vmatpush1.bf16.msra.mxu0 %v8835
    %9323 = vmatprep.subr.bf16.mxu0 %v8840
    %9324 = vmatpush1.bf16.msra.mxu0 %v8839
    %9325 = vmatprep.subr.bf16.mxu0 %v8844
    %9326 = vmatpush1.bf16.msra.mxu0 %v8843
    %9327 = vmatprep.mubr.bf16.mxu0 %v7730
    %9328 = vmatmul.mubr.bf16.gmra.mrb[0].mxu0 %v7729
    %v9329 = vpop.f32.mrb[0].mxu0
    %v9330 = vadd.f32 %v7998, %v9329
    %v9331 = vpop.f32.mrb[0].mxu0
    %v9332 = vadd.f32 %v8002, %v9331
    %v9333 = vpop.f32.mrb[0].mxu0
    %v9334 = vpop.f32.mrb[0].mxu0
    %9335 = vdwg.mxu0
    %9336 = vmatprep.subr.bf16.mxu0 %v8848
    %9337 = vmatpush1.bf16.msra.mxu0 %v8847
    %9338 = vmatprep.subr.bf16.mxu0 %v8852
    %9339 = vmatpush1.bf16.msra.mxu0 %v8851
    %9340 = vmatprep.subr.bf16.mxu0 %v8856
    %9341 = vmatpush1.bf16.msra.mxu0 %v8855
    %9342 = vmatprep.subr.bf16.mxu0 %v8860
    %9343 = vmatpush1.bf16.msra.mxu0 %v8859
    %9344 = vmatprep.subr.bf16.mxu0 %v8864
    %9345 = vmatpush1.bf16.msra.mxu0 %v8863
    %9346 = vmatprep.subr.bf16.mxu0 %v8868
    %9347 = vmatpush1.bf16.msra.mxu0 %v8867
    %9348 = vmatprep.subr.bf16.mxu0 %v8872
    %9349 = vmatpush1.bf16.msra.mxu0 %v8871
    %9350 = vmatprep.subr.bf16.mxu0 %v8876
    %9351 = vmatpush1.bf16.msra.mxu0 %v8875
    %9352 = vmatprep.subr.bf16.mxu0 %v8880
    %9353 = vmatpush1.bf16.msra.mxu0 %v8879
    %9354 = vmatprep.subr.bf16.mxu0 %v8884
    %9355 = vmatpush1.bf16.msra.mxu0 %v8883
    %9356 = vmatprep.subr.bf16.mxu0 %v8888
    %9357 = vmatpush1.bf16.msra.mxu0 %v8887
    %9358 = vmatprep.subr.bf16.mxu0 %v8892
    %9359 = vmatpush1.bf16.msra.mxu0 %v8891
    %9360 = vmatprep.subr.bf16.mxu0 %v8896
    %9361 = vmatpush1.bf16.msra.mxu0 %v8895
    %9362 = vmatprep.subr.bf16.mxu0 %v8900
    %9363 = vmatpush1.bf16.msra.mxu0 %v8899
    %9364 = vmatprep.subr.bf16.mxu0 %v8904
    %9365 = vmatpush1.bf16.msra.mxu0 %v8903
    %9366 = vmatprep.subr.bf16.mxu0 %v8908
    %9367 = vmatpush1.bf16.msra.mxu0 %v8907
    %9368 = vmatprep.mubr.bf16.mxu0 %v7732
    %9369 = vmatmul.mubr.bf16.gmra.mrb[0].mxu0 %v7731
    %v9370 = vpop.f32.mrb[0].mxu0
    %v9371 = vadd.f32 %v9330, %v9370
    %v9372 = vpop.f32.mrb[0].mxu0
    %v9373 = vadd.f32 %v9332, %v9372
    %v9374 = vpop.f32.mrb[0].mxu0
    %v9375 = vpop.f32.mrb[0].mxu0
    %9376 = vdwg.mxu0
    %9377 = vmatprep.subr.bf16.mxu0 %v8912
    %9378 = vmatpush1.bf16.msra.mxu0 %v8911
    %9379 = vmatprep.subr.bf16.mxu0 %v8916
    %9380 = vmatpush1.bf16.msra.mxu0 %v8915
    %9381 = vmatprep.subr.bf16.mxu0 %v8920
    %9382 = vmatpush1.bf16.msra.mxu0 %v8919
    %9383 = vmatprep.subr.bf16.mxu0 %v8924
    %9384 = vmatpush1.bf16.msra.mxu0 %v8923
    %9385 = vmatprep.subr.bf16.mxu0 %v8928
    %9386 = vmatpush1.bf16.msra.mxu0 %v8927
    %9387 = vmatprep.subr.bf16.mxu0 %v8932
    %9388 = vmatpush1.bf16.msra.mxu0 %v8931
    %9389 = vmatprep.subr.bf16.mxu0 %v8936
    %9390 = vmatpush1.bf16.msra.mxu0 %v8935
    %9391 = vmatprep.subr.bf16.mxu0 %v8940
    %9392 = vmatpush1.bf16.msra.mxu0 %v8939
    %9393 = vmatprep.subr.bf16.mxu0 %v8944
    %9394 = vmatpush1.bf16.msra.mxu0 %v8943
    %9395 = vmatprep.subr.bf16.mxu0 %v8948
    %9396 = vmatpush1.bf16.msra.mxu0 %v8947
    %9397 = vmatprep.subr.bf16.mxu0 %v8952
    %9398 = vmatpush1.bf16.msra.mxu0 %v8951
    %9399 = vmatprep.subr.bf16.mxu0 %v8956
    %9400 = vmatpush1.bf16.msra.mxu0 %v8955
    %9401 = vmatprep.subr.bf16.mxu0 %v8960
    %9402 = vmatpush1.bf16.msra.mxu0 %v8959
    %9403 = vmatprep.subr.bf16.mxu0 %v8964
    %9404 = vmatpush1.bf16.msra.mxu0 %v8963
    %9405 = vmatprep.subr.bf16.mxu0 %v8968
    %9406 = vmatpush1.bf16.msra.mxu0 %v8967
    %9407 = vmatprep.subr.bf16.mxu0 %v8972
    %9408 = vmatpush1.bf16.msra.mxu0 %v8971
    %9409 = vmatprep.mubr.bf16.mxu0 %v7734
    %9410 = vmatmul.mubr.bf16.gmra.mrb[0].mxu0 %v7733
    %v9411 = vpop.f32.mrb[0].mxu0
    %v9412 = vadd.f32 %v9371, %v9411
    %v9413 = vpop.f32.mrb[0].mxu0
    %v9414 = vadd.f32 %v9373, %v9413
    %v9415 = vpop.f32.mrb[0].mxu0
    %v9416 = vpop.f32.mrb[0].mxu0
    %9417 = vdwg.mxu0
    %9418 = vmatprep.subr.bf16.mxu0 %v8976
    %9419 = vmatpush1.bf16.msra.mxu0 %v8975
    %9420 = vmatprep.subr.bf16.mxu0 %v8980
    %9421 = vmatpush1.bf16.msra.mxu0 %v8979
    %9422 = vmatprep.subr.bf16.mxu0 %v8984
    %9423 = vmatpush1.bf16.msra.mxu0 %v8983
    %9424 = vmatprep.subr.bf16.mxu0 %v8988
    %9425 = vmatpush1.bf16.msra.mxu0 %v8987
    %9426 = vmatprep.subr.bf16.mxu0 %v8992
    %9427 = vmatpush1.bf16.msra.mxu0 %v8991
    %9428 = vmatprep.subr.bf16.mxu0 %v8996
    %9429 = vmatpush1.bf16.msra.mxu0 %v8995
    %9430 = vmatprep.subr.bf16.mxu0 %v9000
    %9431 = vmatpush1.bf16.msra.mxu0 %v8999
    %9432 = vmatprep.subr.bf16.mxu0 %v9004
    %9433 = vmatpush1.bf16.msra.mxu0 %v9003
    %9434 = vmatprep.subr.bf16.mxu0 %v9008
    %9435 = vmatpush1.bf16.msra.mxu0 %v9007
    %9436 = vmatprep.subr.bf16.mxu0 %v9012
    %9437 = vmatpush1.bf16.msra.mxu0 %v9011
    %9438 = vmatprep.subr.bf16.mxu0 %v9016
    %9439 = vmatpush1.bf16.msra.mxu0 %v9015
    %9440 = vmatprep.subr.bf16.mxu0 %v9020
    %9441 = vmatpush1.bf16.msra.mxu0 %v9019
    %9442 = vmatprep.subr.bf16.mxu0 %v9024
    %9443 = vmatpush1.bf16.msra.mxu0 %v9023
    %9444 = vmatprep.subr.bf16.mxu0 %v9028
    %9445 = vmatpush1.bf16.msra.mxu0 %v9027
    %9446 = vmatprep.subr.bf16.mxu0 %v9032
    %9447 = vmatpush1.bf16.msra.mxu0 %v9031
    %9448 = vmatprep.subr.bf16.mxu0 %v9036
    %9449 = vmatpush1.bf16.msra.mxu0 %v9035
    %9450 = vmatprep.mubr.bf16.mxu0 %v7736
    %9451 = vmatmul.mubr.bf16.gmra.mrb[0].mxu0 %v7735
    %v9452 = vpop.f32.mrb[0].mxu0
    %v9453 = vadd.f32 %v9412, %v9452
    %v9454 = vpop.f32.mrb[0].mxu0
    %v9455 = vadd.f32 %v9414, %v9454
    %v9456 = vpop.f32.mrb[0].mxu0
    %v9457 = vpop.f32.mrb[0].mxu0
    %9458 = vdwg.mxu0
    %9459 = vmatprep.subr.bf16.mxu0 %v8786
    %9460 = vmatpush1.bf16.msra.mxu0 %v8785
    %9461 = vmatprep.subr.bf16.mxu0 %v8790
    %9462 = vmatpush1.bf16.msra.mxu0 %v8789
    %9463 = vmatprep.subr.bf16.mxu0 %v8794
    %9464 = vmatpush1.bf16.msra.mxu0 %v8793
    %9465 = vmatprep.subr.bf16.mxu0 %v8798
    %9466 = vmatpush1.bf16.msra.mxu0 %v8797
    %9467 = vmatprep.subr.bf16.mxu0 %v8802
    %9468 = vmatpush1.bf16.msra.mxu0 %v8801
    %9469 = vmatprep.subr.bf16.mxu0 %v8806
    %9470 = vmatpush1.bf16.msra.mxu0 %v8805
    %9471 = vmatprep.subr.bf16.mxu0 %v8810
    %9472 = vmatpush1.bf16.msra.mxu0 %v8809
    %9473 = vmatprep.subr.bf16.mxu0 %v8814
    %9474 = vmatpush1.bf16.msra.mxu0 %v8813
    %9475 = vmatprep.subr.bf16.mxu0 %v8818
    %9476 = vmatpush1.bf16.msra.mxu0 %v8817
    %9477 = vmatprep.subr.bf16.mxu0 %v8822
    %9478 = vmatpush1.bf16.msra.mxu0 %v8821
    %9479 = vmatprep.subr.bf16.mxu0 %v8826
    %9480 = vmatpush1.bf16.msra.mxu0 %v8825
    %9481 = vmatprep.subr.bf16.mxu0 %v8830
    %9482 = vmatpush1.bf16.msra.mxu0 %v8829
    %9483 = vmatprep.subr.bf16.mxu0 %v8834
    %9484 = vmatpush1.bf16.msra.mxu0 %v8833
    %9485 = vmatprep.subr.bf16.mxu0 %v8838
    %9486 = vmatpush1.bf16.msra.mxu0 %v8837
    %9487 = vmatprep.subr.bf16.mxu0 %v8842
    %9488 = vmatpush1.bf16.msra.mxu0 %v8841
    %9489 = vmatprep.subr.bf16.mxu0 %v8846
    %9490 = vmatpush1.bf16.msra.mxu0 %v8845
    %9491 = vmatprep.mubr.bf16.mxu0 %v7730
    %9492 = vmatmul.mubr.bf16.gmra.mrb[0].mxu0 %v7729
    %v9493 = vpop.f32.mrb[0].mxu0
    %v9494 = vadd.f32 %v8006, %v9493
    %v9495 = vpop.f32.mrb[0].mxu0
    %v9496 = vadd.f32 %v8010, %v9495
    %v9497 = vpop.f32.mrb[0].mxu0
    %v9498 = vpop.f32.mrb[0].mxu0
    %9499 = vdwg.mxu0
    %9500 = vmatprep.subr.bf16.mxu0 %v8850
    %9501 = vmatpush1.bf16.msra.mxu0 %v8849
    %9502 = vmatprep.subr.bf16.mxu0 %v8854
    %9503 = vmatpush1.bf16.msra.mxu0 %v8853
    %9504 = vmatprep.subr.bf16.mxu0 %v8858
    %9505 = vmatpush1.bf16.msra.mxu0 %v8857
    %9506 = vmatprep.subr.bf16.mxu0 %v8862
    %9507 = vmatpush1.bf16.msra.mxu0 %v8861
    %9508 = vmatprep.subr.bf16.mxu0 %v8866
    %9509 = vmatpush1.bf16.msra.mxu0 %v8865
    %9510 = vmatprep.subr.bf16.mxu0 %v8870
    %9511 = vmatpush1.bf16.msra.mxu0 %v8869
    %9512 = vmatprep.subr.bf16.mxu0 %v8874
    %9513 = vmatpush1.bf16.msra.mxu0 %v8873
    %9514 = vmatprep.subr.bf16.mxu0 %v8878
    %9515 = vmatpush1.bf16.msra.mxu0 %v8877
    %9516 = vmatprep.subr.bf16.mxu0 %v8882
    %9517 = vmatpush1.bf16.msra.mxu0 %v8881
    %9518 = vmatprep.subr.bf16.mxu0 %v8886
    %9519 = vmatpush1.bf16.msra.mxu0 %v8885
    %9520 = vmatprep.subr.bf16.mxu0 %v8890
    %9521 = vmatpush1.bf16.msra.mxu0 %v8889
    %9522 = vmatprep.subr.bf16.mxu0 %v8894
    %9523 = vmatpush1.bf16.msra.mxu0 %v8893
    %9524 = vmatprep.subr.bf16.mxu0 %v8898
    %9525 = vmatpush1.bf16.msra.mxu0 %v8897
    %9526 = vmatprep.subr.bf16.mxu0 %v8902
    %9527 = vmatpush1.bf16.msra.mxu0 %v8901
    %9528 = vmatprep.subr.bf16.mxu0 %v8906
    %9529 = vmatpush1.bf16.msra.mxu0 %v8905
    %9530 = vmatprep.subr.bf16.mxu0 %v8910
    %9531 = vmatpush1.bf16.msra.mxu0 %v8909
    %9532 = vmatprep.mubr.bf16.mxu0 %v7732
    %9533 = vmatmul.mubr.bf16.gmra.mrb[0].mxu0 %v7731
    %v9534 = vpop.f32.mrb[0].mxu0
    %v9535 = vadd.f32 %v9494, %v9534
    %v9536 = vpop.f32.mrb[0].mxu0
    %v9537 = vadd.f32 %v9496, %v9536
    %v9538 = vpop.f32.mrb[0].mxu0
    %v9539 = vpop.f32.mrb[0].mxu0
    %9540 = vdwg.mxu0
    %9541 = vmatprep.subr.bf16.mxu0 %v8914
    %9542 = vmatpush1.bf16.msra.mxu0 %v8913
    %9543 = vmatprep.subr.bf16.mxu0 %v8918
    %9544 = vmatpush1.bf16.msra.mxu0 %v8917
    %9545 = vmatprep.subr.bf16.mxu0 %v8922
    %9546 = vmatpush1.bf16.msra.mxu0 %v8921
    %9547 = vmatprep.subr.bf16.mxu0 %v8926
    %9548 = vmatpush1.bf16.msra.mxu0 %v8925
    %9549 = vmatprep.subr.bf16.mxu0 %v8930
    %9550 = vmatpush1.bf16.msra.mxu0 %v8929
    %9551 = vmatprep.subr.bf16.mxu0 %v8934
    %9552 = vmatpush1.bf16.msra.mxu0 %v8933
    %9553 = vmatprep.subr.bf16.mxu0 %v8938
    %9554 = vmatpush1.bf16.msra.mxu0 %v8937
    %9555 = vmatprep.subr.bf16.mxu0 %v8942
    %9556 = vmatpush1.bf16.msra.mxu0 %v8941
    %9557 = vmatprep.subr.bf16.mxu0 %v8946
    %9558 = vmatpush1.bf16.msra.mxu0 %v8945
    %9559 = vmatprep.subr.bf16.mxu0 %v8950
    %9560 = vmatpush1.bf16.msra.mxu0 %v8949
    %9561 = vmatprep.subr.bf16.mxu0 %v8954
    %9562 = vmatpush1.bf16.msra.mxu0 %v8953
    %9563 = vmatprep.subr.bf16.mxu0 %v8958
    %9564 = vmatpush1.bf16.msra.mxu0 %v8957
    %9565 = vmatprep.subr.bf16.mxu0 %v8962
    %9566 = vmatpush1.bf16.msra.mxu0 %v8961
    %9567 = vmatprep.subr.bf16.mxu0 %v8966
    %9568 = vmatpush1.bf16.msra.mxu0 %v8965
    %9569 = vmatprep.subr.bf16.mxu0 %v8970
    %9570 = vmatpush1.bf16.msra.mxu0 %v8969
    %9571 = vmatprep.subr.bf16.mxu0 %v8974
    %9572 = vmatpush1.bf16.msra.mxu0 %v8973
    %9573 = vmatprep.mubr.bf16.mxu0 %v7734
    %9574 = vmatmul.mubr.bf16.gmra.mrb[0].mxu0 %v7733
    %v9575 = vpop.f32.mrb[0].mxu0
    %v9576 = vadd.f32 %v9535, %v9575
    %v9577 = vpop.f32.mrb[0].mxu0
    %v9578 = vadd.f32 %v9537, %v9577
    %v9579 = vpop.f32.mrb[0].mxu0
    %v9580 = vpop.f32.mrb[0].mxu0
    %9581 = vdwg.mxu0
    %9582 = vmatprep.subr.bf16.mxu0 %v8978
    %9583 = vmatpush1.bf16.msra.mxu0 %v8977
    %9584 = vmatprep.subr.bf16.mxu0 %v8982
    %9585 = vmatpush1.bf16.msra.mxu0 %v8981
    %9586 = vmatprep.subr.bf16.mxu0 %v8986
    %9587 = vmatpush1.bf16.msra.mxu0 %v8985
    %9588 = vmatprep.subr.bf16.mxu0 %v8990
    %9589 = vmatpush1.bf16.msra.mxu0 %v8989
    %9590 = vmatprep.subr.bf16.mxu0 %v8994
    %9591 = vmatpush1.bf16.msra.mxu0 %v8993
    %9592 = vmatprep.subr.bf16.mxu0 %v8998
    %9593 = vmatpush1.bf16.msra.mxu0 %v8997
    %9594 = vmatprep.subr.bf16.mxu0 %v9002
    %9595 = vmatpush1.bf16.msra.mxu0 %v9001
    %9596 = vmatprep.subr.bf16.mxu0 %v9006
    %9597 = vmatpush1.bf16.msra.mxu0 %v9005
    %9598 = vmatprep.subr.bf16.mxu0 %v9010
    %9599 = vmatpush1.bf16.msra.mxu0 %v9009
    %9600 = vmatprep.subr.bf16.mxu0 %v9014
    %9601 = vmatpush1.bf16.msra.mxu0 %v9013
    %9602 = vmatprep.subr.bf16.mxu0 %v9018
    %9603 = vmatpush1.bf16.msra.mxu0 %v9017
    %9604 = vmatprep.subr.bf16.mxu0 %v9022
    %9605 = vmatpush1.bf16.msra.mxu0 %v9021
    %9606 = vmatprep.subr.bf16.mxu0 %v9026
    %9607 = vmatpush1.bf16.msra.mxu0 %v9025
    %9608 = vmatprep.subr.bf16.mxu0 %v9030
    %9609 = vmatpush1.bf16.msra.mxu0 %v9029
    %9610 = vmatprep.subr.bf16.mxu0 %v9034
    %9611 = vmatpush1.bf16.msra.mxu0 %v9033
    %9612 = vmatprep.subr.bf16.mxu0 %v9038
    %9613 = vmatpush1.bf16.msra.mxu0 %v9037
    %9614 = vmatprep.mubr.bf16.mxu0 %v7736
    %9615 = vmatmul.mubr.bf16.gmra.mrb[0].mxu0 %v7735
    %v9616 = vpop.f32.mrb[0].mxu0
    %v9617 = vadd.f32 %v9576, %v9616
    %v9618 = vpop.f32.mrb[0].mxu0
    %v9619 = vadd.f32 %v9578, %v9618
    %v9620 = vpop.f32.mrb[0].mxu0
    %v9621 = vpop.f32.mrb[0].mxu0
    %9622 = vdwg.mxu0
    %v9623 = vmax.f32 %v9453, 0.0
    %v9624 = vmax.f32 %v9455, 0.0
    %v9625 = vmax.f32 %v9617, 0.0
    %v9626 = vmax.f32 %v9619, 0.0
    %v9627 = vpack.c.bf16 %v9623, %v9623
    %v9628 = vpack.c.bf16 %v9624, %v9624
    %v9629 = vpack.c.bf16 %v9625, %v9625
    %v9630 = vpack.c.bf16 %v9626, %v9626
    %v9631 = vld [vmem:[#allocation11] sm:$0xf]
    %v9632 = vld [vmem:[#allocation11 + $0x4] sm:$0xf]
    %v9633 = vld [vmem:[#allocation11 + $0x8] sm:$0xf]
    %v9634 = vld [vmem:[#allocation11 + $0xc] sm:$0xf]
    %v9635 = vld [vmem:[#allocation11 + $0x10] sm:$0xf]
    %v9636 = vld [vmem:[#allocation11 + $0x14] sm:$0xf]
    %v9637 = vld [vmem:[#allocation11 + $0x18] sm:$0xf]
    %v9638 = vld [vmem:[#allocation11 + $0x1c] sm:$0xf]
    %v9639 = vld [vmem:[#allocation11 + $0x20] sm:$0xf]
    %v9640 = vld [vmem:[#allocation11 + $0x24] sm:$0xf]
    %v9641 = vld [vmem:[#allocation11 + $0x28] sm:$0xf]
    %v9642 = vld [vmem:[#allocation11 + $0x2c] sm:$0xf]
    %v9643 = vld [vmem:[#allocation11 + $0x30] sm:$0xf]
    %v9644 = vld [vmem:[#allocation11 + $0x34] sm:$0xf]
    %v9645 = vld [vmem:[#allocation11 + $0x38] sm:$0xf]
    %v9646 = vld [vmem:[#allocation11 + $0x3c] sm:$0xf]
    %v9647 = vld [vmem:[#allocation11 + $0x40] sm:$0xf]
    %v9648 = vld [vmem:[#allocation11 + $0x44] sm:$0xf]
    %v9649 = vld [vmem:[#allocation11 + $0x48] sm:$0xf]
    %v9650 = vld [vmem:[#allocation11 + $0x4c] sm:$0xf]
    %v9651 = vld [vmem:[#allocation11 + $0x50] sm:$0xf]
    %v9652 = vld [vmem:[#allocation11 + $0x54] sm:$0xf]
    %v9653 = vld [vmem:[#allocation11 + $0x58] sm:$0xf]
    %v9654 = vld [vmem:[#allocation11 + $0x5c] sm:$0xf]
    %v9655 = vld [vmem:[#allocation11 + $0x60] sm:$0xf]
    %v9656 = vld [vmem:[#allocation11 + $0x64] sm:$0xf]
    %v9657 = vld [vmem:[#allocation11 + $0x68] sm:$0xf]
    %v9658 = vld [vmem:[#allocation11 + $0x6c] sm:$0xf]
    %v9659 = vld [vmem:[#allocation11 + $0x70] sm:$0xf]
    %v9660 = vld [vmem:[#allocation11 + $0x74] sm:$0xf]
    %v9661 = vld [vmem:[#allocation11 + $0x78] sm:$0xf]
    %v9662 = vld [vmem:[#allocation11 + $0x7c] sm:$0xf]
    %v9663 = vld [vmem:[#allocation11 + $0x80] sm:$0xf]
    %v9664 = vld [vmem:[#allocation11 + $0x84] sm:$0xf]
    %v9665 = vld [vmem:[#allocation11 + $0x88] sm:$0xf]
    %v9666 = vld [vmem:[#allocation11 + $0x8c] sm:$0xf]
    %v9667 = vld [vmem:[#allocation11 + $0x90] sm:$0xf]
    %v9668 = vld [vmem:[#allocation11 + $0x94] sm:$0xf]
    %v9669 = vld [vmem:[#allocation11 + $0x98] sm:$0xf]
    %v9670 = vld [vmem:[#allocation11 + $0x9c] sm:$0xf]
    %v9671 = vld [vmem:[#allocation11 + $0xa0] sm:$0xf]
    %v9672 = vld [vmem:[#allocation11 + $0xa4] sm:$0xf]
    %v9673 = vld [vmem:[#allocation11 + $0xa8] sm:$0xf]
    %v9674 = vld [vmem:[#allocation11 + $0xac] sm:$0xf]
    %v9675 = vld [vmem:[#allocation11 + $0xb0] sm:$0xf]
    %v9676 = vld [vmem:[#allocation11 + $0xb4] sm:$0xf]
    %v9677 = vld [vmem:[#allocation11 + $0xb8] sm:$0xf]
    %v9678 = vld [vmem:[#allocation11 + $0xbc] sm:$0xf]
    %v9679 = vld [vmem:[#allocation11 + $0xc0] sm:$0xf]
    %v9680 = vld [vmem:[#allocation11 + $0xc4] sm:$0xf]
    %v9681 = vld [vmem:[#allocation11 + $0xc8] sm:$0xf]
    %v9682 = vld [vmem:[#allocation11 + $0xcc] sm:$0xf]
    %v9683 = vld [vmem:[#allocation11 + $0xd0] sm:$0xf]
    %v9684 = vld [vmem:[#allocation11 + $0xd4] sm:$0xf]
    %v9685 = vld [vmem:[#allocation11 + $0xd8] sm:$0xf]
    %v9686 = vld [vmem:[#allocation11 + $0xdc] sm:$0xf]
    %v9687 = vld [vmem:[#allocation11 + $0xe0] sm:$0xf]
    %v9688 = vld [vmem:[#allocation11 + $0xe4] sm:$0xf]
    %v9689 = vld [vmem:[#allocation11 + $0xe8] sm:$0xf]
    %v9690 = vld [vmem:[#allocation11 + $0xec] sm:$0xf]
    %v9691 = vld [vmem:[#allocation11 + $0xf0] sm:$0xf]
    %v9692 = vld [vmem:[#allocation11 + $0xf4] sm:$0xf]
    %v9693 = vld [vmem:[#allocation11 + $0xf8] sm:$0xf]
    %v9694 = vld [vmem:[#allocation11 + $0xfc] sm:$0xf]
    %v9695 = vld [vmem:[#allocation13] sm:$0x1]
    %v9697 = vlaneseq
    %v9698 = vshrl.u32 %v9697, 7
    %v9699 = vsub.s32 0, %v9698
    %v9700 = vrot.slane %v9695, %v9699
    %v9766 = vunpack.c.l.b16 %v9631
    %v9767 = vunpack.c.l.b16 %v9632
    %v9768 = vunpack.c.l.b16 %v9633
    %v9769 = vunpack.c.l.b16 %v9634
    %v9770 = vunpack.c.l.b16 %v9635
    %v9771 = vunpack.c.l.b16 %v9636
    %v9772 = vunpack.c.l.b16 %v9637
    %v9773 = vunpack.c.l.b16 %v9638
    %v9774 = vunpack.c.l.b16 %v9639
    %v9775 = vunpack.c.l.b16 %v9640
    %v9776 = vunpack.c.l.b16 %v9641
    %v9777 = vunpack.c.l.b16 %v9642
    %v9778 = vunpack.c.l.b16 %v9643
    %v9779 = vunpack.c.l.b16 %v9644
    %v9780 = vunpack.c.l.b16 %v9645
    %v9781 = vunpack.c.l.b16 %v9646
    %v9782 = vunpack.c.l.b16 %v9647
    %v9783 = vunpack.c.l.b16 %v9648
    %v9784 = vunpack.c.l.b16 %v9649
    %v9785 = vunpack.c.l.b16 %v9650
    %v9786 = vunpack.c.l.b16 %v9651
    %v9787 = vunpack.c.l.b16 %v9652
    %v9788 = vunpack.c.l.b16 %v9653
    %v9789 = vunpack.c.l.b16 %v9654
    %v9790 = vunpack.c.l.b16 %v9655
    %v9791 = vunpack.c.l.b16 %v9656
    %v9792 = vunpack.c.l.b16 %v9657
    %v9793 = vunpack.c.l.b16 %v9658
    %v9794 = vunpack.c.l.b16 %v9659
    %v9795 = vunpack.c.l.b16 %v9660
    %v9796 = vunpack.c.l.b16 %v9661
    %v9797 = vunpack.c.l.b16 %v9662
    %v9798 = vunpack.c.l.b16 %v9663
    %v9799 = vunpack.c.l.b16 %v9664
    %v9800 = vunpack.c.l.b16 %v9665
    %v9801 = vunpack.c.l.b16 %v9666
    %v9802 = vunpack.c.l.b16 %v9667
    %v9803 = vunpack.c.l.b16 %v9668
    %v9804 = vunpack.c.l.b16 %v9669
    %v9805 = vunpack.c.l.b16 %v9670
    %v9806 = vunpack.c.l.b16 %v9671
    %v9807 = vunpack.c.l.b16 %v9672
    %v9808 = vunpack.c.l.b16 %v9673
    %v9809 = vunpack.c.l.b16 %v9674
    %v9810 = vunpack.c.l.b16 %v9675
    %v9811 = vunpack.c.l.b16 %v9676
    %v9812 = vunpack.c.l.b16 %v9677
    %v9813 = vunpack.c.l.b16 %v9678
    %v9814 = vunpack.c.l.b16 %v9679
    %v9815 = vunpack.c.l.b16 %v9680
    %v9816 = vunpack.c.l.b16 %v9681
    %v9817 = vunpack.c.l.b16 %v9682
    %v9818 = vunpack.c.l.b16 %v9683
    %v9819 = vunpack.c.l.b16 %v9684
    %v9820 = vunpack.c.l.b16 %v9685
    %v9821 = vunpack.c.l.b16 %v9686
    %v9822 = vunpack.c.l.b16 %v9687
    %v9823 = vunpack.c.l.b16 %v9688
    %v9824 = vunpack.c.l.b16 %v9689
    %v9825 = vunpack.c.l.b16 %v9690
    %v9826 = vunpack.c.l.b16 %v9691
    %v9827 = vunpack.c.l.b16 %v9692
    %v9828 = vunpack.c.l.b16 %v9693
    %v9829 = vunpack.c.l.b16 %v9694
    %v9830 = vpack.c.b16 %v9767, %v9766
    %v9831 = vpack.c.b16 %v9769, %v9768
    %v9832 = vpack.c.b16 %v9771, %v9770
    %v9833 = vpack.c.b16 %v9773, %v9772
    %v9834 = vpack.c.b16 %v9775, %v9774
    %v9835 = vpack.c.b16 %v9777, %v9776
    %v9836 = vpack.c.b16 %v9779, %v9778
    %v9837 = vpack.c.b16 %v9781, %v9780
    %v9838 = vpack.c.b16 %v9783, %v9782
    %v9839 = vpack.c.b16 %v9785, %v9784
    %v9840 = vpack.c.b16 %v9787, %v9786
    %v9841 = vpack.c.b16 %v9789, %v9788
    %v9842 = vpack.c.b16 %v9791, %v9790
    %v9843 = vpack.c.b16 %v9793, %v9792
    %v9844 = vpack.c.b16 %v9795, %v9794
    %v9845 = vpack.c.b16 %v9797, %v9796
    %v9846 = vpack.c.b16 %v9799, %v9798
    %v9847 = vpack.c.b16 %v9801, %v9800
    %v9848 = vpack.c.b16 %v9803, %v9802
    %v9849 = vpack.c.b16 %v9805, %v9804
    %v9850 = vpack.c.b16 %v9807, %v9806
    %v9851 = vpack.c.b16 %v9809, %v9808
    %v9852 = vpack.c.b16 %v9811, %v9810
    %v9853 = vpack.c.b16 %v9813, %v9812
    %v9854 = vpack.c.b16 %v9815, %v9814
    %v9855 = vpack.c.b16 %v9817, %v9816
    %v9856 = vpack.c.b16 %v9819, %v9818
    %v9857 = vpack.c.b16 %v9821, %v9820
    %v9858 = vpack.c.b16 %v9823, %v9822
    %v9859 = vpack.c.b16 %v9825, %v9824
    %v9860 = vpack.c.b16 %v9827, %v9826
    %v9861 = vpack.c.b16 %v9829, %v9828
    %9894 = vmatprep.subr.bf16.mxu0 0
    %9895 = vmatpush1.bf16.msra.mxu0 %v9830
    %9896 = vmatprep.subr.bf16.mxu0 0
    %9897 = vmatpush1.bf16.msra.mxu0 %v9831
    %9898 = vmatprep.subr.bf16.mxu0 0
    %9899 = vmatpush1.bf16.msra.mxu0 %v9832
    %9900 = vmatprep.subr.bf16.mxu0 0
    %9901 = vmatpush1.bf16.msra.mxu0 %v9833
    %9902 = vmatprep.subr.bf16.mxu0 0
    %9903 = vmatpush1.bf16.msra.mxu0 %v9834
    %9904 = vmatprep.subr.bf16.mxu0 0
    %9905 = vmatpush1.bf16.msra.mxu0 %v9835
    %9906 = vmatprep.subr.bf16.mxu0 0
    %9907 = vmatpush1.bf16.msra.mxu0 %v9836
    %9908 = vmatprep.subr.bf16.mxu0 0
    %9909 = vmatpush1.bf16.msra.mxu0 %v9837
    %9910 = vmatprep.subr.bf16.mxu0 0
    %9911 = vmatpush1.bf16.msra.mxu0 %v9838
    %9912 = vmatprep.subr.bf16.mxu0 0
    %9913 = vmatpush1.bf16.msra.mxu0 %v9839
    %9914 = vmatprep.subr.bf16.mxu0 0
    %9915 = vmatpush1.bf16.msra.mxu0 %v9840
    %9916 = vmatprep.subr.bf16.mxu0 0
    %9917 = vmatpush1.bf16.msra.mxu0 %v9841
    %9918 = vmatprep.subr.bf16.mxu0 0
    %9919 = vmatpush1.bf16.msra.mxu0 %v9842
    %9920 = vmatprep.subr.bf16.mxu0 0
    %9921 = vmatpush1.bf16.msra.mxu0 %v9843
    %9922 = vmatprep.subr.bf16.mxu0 0
    %9923 = vmatpush1.bf16.msra.mxu0 %v9844
    %9924 = vmatprep.subr.bf16.mxu0 0
    %9925 = vmatpush1.bf16.msra.mxu0 %v9845
    %9926 = vmatprep.mubr.bf16.mxu0 %v9628
    %9927 = vmatmul.mubr.bf16.gmra.mrb[0].mxu0 %v9627
    %v9928 = vpop.f32.mrb[0].mxu0
    %v9929 = vadd.f32 %v9700, %v9928
    %v9930 = vpop.f32.mrb[0].mxu0
    %v9931 = vpop.f32.mrb[0].mxu0
    %v9932 = vpop.f32.mrb[0].mxu0
    %9933 = vdwg.mxu0
    %9934 = vmatprep.subr.bf16.mxu0 0
    %9935 = vmatpush1.bf16.msra.mxu0 %v9846
    %9936 = vmatprep.subr.bf16.mxu0 0
    %9937 = vmatpush1.bf16.msra.mxu0 %v9847
    %9938 = vmatprep.subr.bf16.mxu0 0
    %9939 = vmatpush1.bf16.msra.mxu0 %v9848
    %9940 = vmatprep.subr.bf16.mxu0 0
    %9941 = vmatpush1.bf16.msra.mxu0 %v9849
    %9942 = vmatprep.subr.bf16.mxu0 0
    %9943 = vmatpush1.bf16.msra.mxu0 %v9850
    %9944 = vmatprep.subr.bf16.mxu0 0
    %9945 = vmatpush1.bf16.msra.mxu0 %v9851
    %9946 = vmatprep.subr.bf16.mxu0 0
    %9947 = vmatpush1.bf16.msra.mxu0 %v9852
    %9948 = vmatprep.subr.bf16.mxu0 0
    %9949 = vmatpush1.bf16.msra.mxu0 %v9853
    %9950 = vmatprep.subr.bf16.mxu0 0
    %9951 = vmatpush1.bf16.msra.mxu0 %v9854
    %9952 = vmatprep.subr.bf16.mxu0 0
    %9953 = vmatpush1.bf16.msra.mxu0 %v9855
    %9954 = vmatprep.subr.bf16.mxu0 0
    %9955 = vmatpush1.bf16.msra.mxu0 %v9856
    %9956 = vmatprep.subr.bf16.mxu0 0
    %9957 = vmatpush1.bf16.msra.mxu0 %v9857
    %9958 = vmatprep.subr.bf16.mxu0 0
    %9959 = vmatpush1.bf16.msra.mxu0 %v9858
    %9960 = vmatprep.subr.bf16.mxu0 0
    %9961 = vmatpush1.bf16.msra.mxu0 %v9859
    %9962 = vmatprep.subr.bf16.mxu0 0
    %9963 = vmatpush1.bf16.msra.mxu0 %v9860
    %9964 = vmatprep.subr.bf16.mxu0 0
    %9965 = vmatpush1.bf16.msra.mxu0 %v9861
    %9966 = vmatprep.mubr.bf16.mxu0 %v9630
    %9967 = vmatmul.mubr.bf16.gmra.mrb[0].mxu0 %v9629
    %v9968 = vpop.f32.mrb[0].mxu0
    %v9969 = vadd.f32 %v9929, %v9968
    %v9970 = vpop.f32.mrb[0].mxu0
    %v9971 = vpop.f32.mrb[0].mxu0
    %v9972 = vpop.f32.mrb[0].mxu0
    %9973 = vdwg.mxu0
    %9974 = vst [vmem:[#allocation14] sm:$0x3] %v9969
    // Predicated region
    $region58: #{tpu_custom_call.1} parent=1 // pred_check
      _
    $region59: #{tpu_custom_call.1} parent=1 // pred_check_branch
      %9976 = sbr.rel (0) target = $region61
    $region60: #{tpu_custom_call.1} parent=1 // pred_region
      %s9978 = ssub.s32 32, 32
      %9979 = vsyncadd [#allocation4], %s9978
      %s9981 = sshll.u32 [#allocation14], 4
      %s9982 = int_to_ptr.vmem [resolvable:$true] %s9981
      %9984 = dma.vmem_to_hbm [thread:$0]  %s9982, 32, %s7, [#allocation4]
    $region61: #{tpu_custom_call.1} parent=1 // pred_fallthru
      _
    // Predicated region
    $region62: #{tpu_custom_call.1} parent=1 // pred_check
      _
    $region63: #{tpu_custom_call.1} parent=1 // pred_check_branch
      %9986 = sbr.rel (0) target = $region65
    $region64: #{tpu_custom_call.1} parent=1 // pred_region
      %9987 = dma.done [#allocation4], 32
    $region65: #{tpu_custom_call.1} parent=1 // pred_fallthru
      _
    %9988 = vsyncpa [#allocation3], 1
    %9989 = vsyncpa [#allocation6], 1
    %9990 = vsyncpa [#allocation9], 1
    %9991 = vsyncpa [#allocation12], 1
    %9992 = vsyncpa [#allocation4], 1

</llo_original>
